<compile_context>
chip_gen: v6e
topology: v6e:2x2x1
jax: 0.10.0
libtpu: 0.0.40
codegen_flags: <defaults>
</compile_context>

<pallas_src>
import functools

import jax
import jax.numpy as jnp
from jax.experimental import pallas as pl
from jax.experimental.pallas import tpu as pltpu


# ----------------------------------------------------------------------------
# fc layer: ConvTranspose2d(z_dim, C, k0, stride=1, pad=0) on a 1x1 input
# == a plain linear layer producing NHWC-ordered columns (y, x, co).
# ----------------------------------------------------------------------------
def _matmul_bias_kernel(a_ref, w_ref, b_ref, o_ref):
    acc = jnp.dot(a_ref[...], w_ref[...], preferred_element_type=jnp.float32)
    acc = acc + b_ref[...]                      # bias broadcast over rows (f32)
    o_ref[...] = acc.astype(o_ref.dtype)


def fc_forward(z, wm, bias_t):
    """z: (B, z_dim) -> (B, k0*k0*C) bf16, columns ordered (y, x, co)."""
    B, K = z.shape
    N = wm.shape[1]
    return pl.pallas_call(
        _matmul_bias_kernel,
        out_shape=jax.ShapeDtypeStruct((B, N), jnp.bfloat16),
        in_specs=[
            pl.BlockSpec((B, K), lambda: (0, 0)),
            pl.BlockSpec((K, N), lambda: (0, 0)),
            pl.BlockSpec((1, N), lambda: (0, 0)),
        ],
        out_specs=pl.BlockSpec((B, N), lambda: (0, 0)),
    )(z.astype(jnp.bfloat16), wm, bias_t.reshape(1, N))


# ----------------------------------------------------------------------------
# ConvTranspose2d(k=4, s=2, p=1) as 4 parity sub-convolutions, fused in-kernel.
#
# out[b, 2q_y+r_y, 2q_x+r_x, co] =
#   bias[co] + sum_{ci, dy, dx in {0,1}}
#       xpad[b, q_y+r_y+dy, q_x+r_x+dx, ci] * W[ci, co, 3-2dy-r_y, 3-2dx-r_x]
#
# The kernel reads the whole padded image of one batch element from VMEM and
# writes a "super-pixel" output (B, H, W, 4*Cout) with last dim (r_y, r_x, co)
# in one lane-dense store.  When `with_stats`, it also emits per-batch
# per-(parity, channel) sums / sums-of-squares for the downstream BatchNorm,
# so no separate stats pass over the activation is needed.
# TODO(synk): for very large spatial sizes, additionally tile the row axis.
# ----------------------------------------------------------------------------
def _deconv_s2_kernel(xp_ref, w_ref, b_ref, *out_refs, act, with_stats):
    o_ref = out_refs[0]
    _, Hp, Wp, Cin = xp_ref.shape
    H, W = Hp - 2, Wp - 2
    Cout = w_ref.shape[2]
    bias = b_ref[...]                                    # (1, Cout) f32

    outs, sums, sqs = [], [], []
    for ry in range(2):
        for rx in range(2):
            acc = jnp.zeros((H * W, Cout), jnp.float32)
            for dy in range(2):
                for dx in range(2):
                    xs = xp_ref[0, ry + dy:ry + dy + H, rx + dx:rx + dx + W, :]
                    xs = xs.reshape(H * W, Cin)          # bf16 patch slab
                    widx = ((ry * 2 + rx) * 2 + dy) * 2 + dx
                    acc = acc + jnp.dot(xs, w_ref[widx],
                                        preferred_element_type=jnp.float32)
            acc = acc + bias
            if act == "tanh":
                acc = jnp.tanh(acc)
            if with_stats:
                sums.append(jnp.sum(acc, axis=0, keepdims=True))
                sqs.append(jnp.sum(acc * acc, axis=0, keepdims=True))
            outs.append(acc)

    full = jnp.concatenate(outs, axis=-1)                # (H*W, 4*Cout) f32
    o_ref[...] = full.reshape(1, H, W, 4 * Cout).astype(o_ref.dtype)
    if with_stats:
        sum_ref, sq_ref = out_refs[1], out_refs[2]
        sum_ref[...] = jnp.concatenate(sums, axis=-1).reshape(1, 1, 4 * Cout)
        sq_ref[...] = jnp.concatenate(sqs, axis=-1).reshape(1, 1, 4 * Cout)


def deconv4x4_s2(x_nhwc, wsub, bias, act="none", with_stats=False,
                 out_dtype=jnp.float32):
    """x_nhwc: (B, H, W, Cin) -> parity-grouped output (B, H, W, 4*Cout)."""
    B, H, W, Cin = x_nhwc.shape
    Cout = wsub.shape[2]
    xp = jnp.pad(x_nhwc, ((0, 0), (1, 1), (1, 1), (0, 0))).astype(jnp.bfloat16)
    kern = functools.partial(_deconv_s2_kernel, act=act, with_stats=with_stats)

    main_shape = jax.ShapeDtypeStruct((B, H, W, 4 * Cout), out_dtype)
    main_spec = pl.BlockSpec((1, H, W, 4 * Cout), lambda b: (b, 0, 0, 0))
    if with_stats:
        stat_shape = jax.ShapeDtypeStruct((B, 1, 4 * Cout), jnp.float32)
        stat_spec = pl.BlockSpec((1, 1, 4 * Cout), lambda b: (b, 0, 0))
        out_shape = (main_shape, stat_shape, stat_shape)
        out_specs = (main_spec, stat_spec, stat_spec)
    else:
        out_shape = main_shape
        out_specs = main_spec

    return pl.pallas_call(
        kern,
        out_shape=out_shape,
        grid=(B,),
        in_specs=[
            pl.BlockSpec((1, H + 2, W + 2, Cin), lambda b: (b, 0, 0, 0)),
            pl.BlockSpec((16, Cin, Cout), lambda b: (0, 0, 0)),
            pl.BlockSpec((1, Cout), lambda b: (0, 0)),
        ],
        out_specs=out_specs,
        compiler_params=pltpu.CompilerParams(dimension_semantics=("parallel",)),
    )(xp, wsub, bias.reshape(1, Cout).astype(jnp.float32))


def _depth_to_space(y):
    """(B, H, W, 4*C) with last dim (ry, rx, c) -> NHWC (B, 2H, 2W, C)."""
    B, H, W, FC = y.shape
    C = FC // 4
    y = y.reshape(B, H, W, 2, 2, C).transpose(0, 1, 3, 2, 4, 5)
    return y.reshape(B, 2 * H, 2 * W, C)


# ----------------------------------------------------------------------------
# Training-mode BatchNorm (+ LeakyReLU).  Stats arrive pre-reduced per batch
# element / parity group from the deconv kernel; scale & shift are folded on
# the tiny (C,) vectors in XLA, then applied by a tiled lane-dense kernel on
# the parity-grouped bf16 activation.
# ----------------------------------------------------------------------------
def _bn_scale_shift(sums, sqs, gamma, beta, count, eps=1e-5):
    C = gamma.shape[0]
    s = jnp.sum(sums.reshape(-1, C), axis=0)   # fold batch and 4 parity groups
    q = jnp.sum(sqs.reshape(-1, C), axis=0)
    mean = s / count
    var = jnp.maximum(q / count - mean * mean, 0.0)      # biased variance
    scale = gamma * jax.lax.rsqrt(var + eps)
    shift = beta - mean * scale
    return (jnp.tile(scale, 4).reshape(1, 4 * C),
            jnp.tile(shift, 4).reshape(1, 4 * C))


def _bn_apply_lrelu_kernel(x_ref, scale_ref, shift_ref, o_ref, *, slope):
    y = x_ref[...].astype(jnp.float32) * scale_ref[...] + shift_ref[...]
    o_ref[...] = jnp.where(y >= 0, y, slope * y).astype(o_ref.dtype)


def _row_tile(m, cap=1024):
    if m <= cap:
        return m
    for t in (cap, 512, 256, 128, 64, 32, 16, 8):
        if m % t == 0:
            return t
    return m  # TODO(synk): ragged M fallback (never hit for this model's shapes)


def bn_apply_leaky_relu(y, scale, shift, slope=0.05):
    """y: (B, H, W, G) bf16 parity-grouped; scale/shift: (1, G) f32 -> bf16."""
    B, H, W, G = y.shape
    M = B * H * W
    x = y.reshape(M, G)
    tm = _row_tile(M)
    kern = functools.partial(_bn_apply_lrelu_kernel, slope=slope)
    out = pl.pallas_call(
        kern,
        out_shape=jax.ShapeDtypeStruct((M, G), jnp.bfloat16),
        grid=(M // tm,),
        in_specs=[
            pl.BlockSpec((tm, G), lambda i: (i, 0)),
            pl.BlockSpec((1, G), lambda i: (0, 0)),
            pl.BlockSpec((1, G), lambda i: (0, 0)),
        ],
        out_specs=pl.BlockSpec((tm, G), lambda i: (i, 0)),
        compiler_params=pltpu.CompilerParams(dimension_semantics=("parallel",)),
    )(x, scale, shift)
    return out.reshape(B, H, W, G)


# ----------------------------------------------------------------------------
# Generator forward + parameter construction
# ----------------------------------------------------------------------------
def generator_forward(z, params, *, image_size, conv_dim):
    B = z.shape[0]
    k0 = image_size // 16
    c8 = conv_dim * 8

    h = fc_forward(z, params["fc_wm"], params["fc_bt"])      # (B, k0*k0*c8) bf16
    x = h.reshape(B, k0, k0, c8)                              # NHWC bf16

    for i in (1, 2, 3):                                       # deconv + BN + LeakyReLU
        y, sums, sqs = deconv4x4_s2(x, params[f"d{i}_w"], params[f"d{i}_b"],
                                    with_stats=True, out_dtype=jnp.bfloat16)
        Bq, Hq, Wq, _ = y.shape
        count = float(Bq * Hq * Wq * 4)                       # elems per channel
        scale, shift = _bn_scale_shift(sums, sqs, params[f"d{i}_gamma"],
                                       params[f"d{i}_beta"], count)
        y = bn_apply_leaky_relu(y, scale, shift)              # (B, H, W, 4C) bf16
        x = _depth_to_space(y)                                # (B, 2H, 2W, C) bf16

    y = deconv4x4_s2(x, params["d4_w"], params["d4_b"], act="tanh")
    y = _depth_to_space(y)                                    # (B, S, S, 3) f32
    return y.transpose(0, 3, 1, 2)                            # NCHW f32


def _prep_deconv_weight(w):
    """(Cin, Cout, 4, 4) -> (16, Cin, Cout) bf16 sub-filters, idx=((ry*2+rx)*2+dy)*2+dx."""
    subs = []
    for ry in range(2):
        for rx in range(2):
            for dy in range(2):
                for dx in range(2):
                    subs.append(w[:, :, 3 - 2 * dy - ry, 3 - 2 * dx - rx])
    return jnp.stack(subs, axis=0).astype(jnp.bfloat16)


def init_params(key, z_dim, image_size, conv_dim):
    k0 = image_size // 16
    c8, c4, c2, c1 = conv_dim * 8, conv_dim * 4, conv_dim * 2, conv_dim
    layer_shapes = {
        "fc": ((z_dim, c8, k0, k0), (c8,)),
        "d1": ((c8, c4, 4, 4), (c4,)),
        "d2": ((c4, c2, 4, 4), (c2,)),
        "d3": ((c2, c1, 4, 4), (c1,)),
        "d4": ((c1, 3, 4, 4), (3,)),
    }
    params = {}
    keys = jax.random.split(key, 2 * len(layer_shapes))
    for idx, (name, (ws, bs)) in enumerate(layer_shapes.items()):
        w = 0.05 * jax.random.normal(keys[2 * idx], ws, jnp.float32)
        b = 0.05 * jax.random.normal(keys[2 * idx + 1], bs, jnp.float32)
        if name == "fc":
            params["fc_wm"] = (w.transpose(0, 2, 3, 1)
                               .reshape(z_dim, k0 * k0 * c8).astype(jnp.bfloat16))
            params["fc_bt"] = jnp.tile(b, k0 * k0).astype(jnp.float32)
        else:
            params[f"{name}_w"] = _prep_deconv_weight(w)
            params[f"{name}_b"] = b
    for name, c in (("d1", c4), ("d2", c2), ("d3", c1)):
        params[f"{name}_gamma"] = jnp.ones((c,), jnp.float32)
        params[f"{name}_beta"] = jnp.zeros((c,), jnp.float32)
    return params


if __name__ == "__main__":
    z_dim, image_size, conv_dim, batch = 16, 16, 8, 2
    key = jax.random.PRNGKey(0)
    pkey, zkey = jax.random.split(key)
    params = init_params(pkey, z_dim, image_size, conv_dim)
    z = jax.random.normal(zkey, (batch, z_dim), jnp.float32)

    fwd = jax.jit(functools.partial(generator_forward,
                                    image_size=image_size, conv_dim=conv_dim))
    out = jax.block_until_ready(fwd(z, params))

    assert out.shape == (batch, 3, image_size, image_size), out.shape
    assert out.dtype == jnp.float32
    assert bool(jnp.all(jnp.isfinite(out)))
    assert bool(jnp.all(jnp.abs(out) <= 1.0))  # tanh output range
    print("KERNEL_OK")
</pallas_src>

<mosaic_0001>
module attributes {stable_mosaic.version = 11 : i64} {
  func.func @_matmul_bias_kernel(%arg0: memref<2x16xbf16, #tpu.memory_space<vmem>>, %arg1: memref<16x64xbf16, #tpu.memory_space<vmem>>, %arg2: memref<1x64xf32, #tpu.memory_space<vmem>>, %arg3: memref<2x64xbf16, #tpu.memory_space<vmem>>) attributes {dimension_semantics = [], scalar_prefetch = 0 : i64, scratch_operands = 0 : i64, tpu.core_type = #tpu.core_type<tc>} {
    %c0 = arith.constant 0 : index
    %c0_0 = arith.constant 0 : index
    %0 = vector.load %arg0[%c0, %c0_0] : memref<2x16xbf16, #tpu.memory_space<vmem>>, vector<2x16xbf16>
    %c0_1 = arith.constant 0 : index
    %c0_2 = arith.constant 0 : index
    %1 = vector.load %arg1[%c0_1, %c0_2] : memref<16x64xbf16, #tpu.memory_space<vmem>>, vector<16x64xbf16>
    %cst = arith.constant dense<0.000000e+00> : vector<2x64xf32>
    %2 = tpu.matmul %0, %1, %cst {dimension_numbers = #tpu.dot_dimension_numbers<[1], [0], [0], [1], [0, 0, 1, 1], [], []>} : vector<2x16xbf16>, vector<16x64xbf16>, vector<2x64xf32> -> vector<2x64xf32>
    %c0_3 = arith.constant 0 : index
    %c0_4 = arith.constant 0 : index
    %3 = vector.load %arg2[%c0_3, %c0_4] : memref<1x64xf32, #tpu.memory_space<vmem>>, vector<1x64xf32>
    %4 = vector.broadcast %3 : vector<1x64xf32> to vector<2x64xf32>
    %5 = arith.addf %2, %4 : vector<2x64xf32>
    %6 = arith.truncf %5 : vector<2x64xf32> to vector<2x64xbf16>
    %c0_5 = arith.constant 0 : index
    %c0_6 = arith.constant 0 : index
    %7 = vector.load %arg3[%c0_5, %c0_6] : memref<2x64xbf16, #tpu.memory_space<vmem>>, vector<2x64xbf16>
    tpu.vector_store %arg3[%c0_5, %c0_6], %6 {strides = array<i32>} : memref<2x64xbf16, #tpu.memory_space<vmem>>, vector<2x64xbf16>,
    return
  }
}

module attributes {stable_mosaic.version = 11 : i64} {
  func.func @_deconv_s2_kernel(%arg0: i32, %arg1: memref<1x3x3x64xbf16, #tpu.memory_space<vmem>>, %arg2: memref<16x64x32xbf16, #tpu.memory_space<vmem>>, %arg3: memref<1x32xf32, #tpu.memory_space<vmem>>, %arg4: memref<1x1x1x128xbf16, #tpu.memory_space<vmem>>, %arg5: memref<1x1x128xf32, #tpu.memory_space<vmem>>, %arg6: memref<1x1x128xf32, #tpu.memory_space<vmem>>) attributes {dimension_semantics = [#tpu.dimension_semantics<parallel>], iteration_bounds = array<i64: 2>, scalar_prefetch = 0 : i64, scratch_operands = 0 : i64, tpu.core_type = #tpu.core_type<tc>, window_params = [{transform_indices = @transform_0, window_bounds = array<i64: 1, 3, 3, 64>}, {pipeline_mode = #tpu.pipeline_mode<synchronous>, transform_indices = @transform_1, window_bounds = array<i64: 16, 64, 32>}, {pipeline_mode = #tpu.pipeline_mode<synchronous>, transform_indices = @transform_2, window_bounds = array<i64: 1, 32>}, {transform_indices = @transform_3, window_bounds = array<i64: 1, 1, 1, 128>}, {transform_indices = @transform_4, window_bounds = array<i64: 1, 1, 128>}, {transform_indices = @transform_5, window_bounds = array<i64: 1, 1, 128>}]} {
    %c0 = arith.constant 0 : index
    %c0_0 = arith.constant 0 : index
    %0 = vector.load %arg3[%c0, %c0_0] : memref<1x32xf32, #tpu.memory_space<vmem>>, vector<1x32xf32>
    %cst = arith.constant 0.000000e+00 : f32
    %1 = vector.broadcast %cst : f32 to vector<1x32xf32>
    %c0_1 = arith.constant 0 : index
    %c0_2 = arith.constant 0 : index
    %c0_3 = arith.constant 0 : index
    %c0_4 = arith.constant 0 : index
    %2 = vector.load %arg1[%c0_1, %c0_2, %c0_3, %c0_4] : memref<1x3x3x64xbf16, #tpu.memory_space<vmem>>, vector<1x1x1x64xbf16>
    %3 = vector.shape_cast %2 : vector<1x1x1x64xbf16> to vector<1x1x64xbf16>
    %4 = vector.shape_cast %3 : vector<1x1x64xbf16> to vector<1x64xbf16>
    %c0_5 = arith.constant 0 : index
    %c0_6 = arith.constant 0 : index
    %c0_7 = arith.constant 0 : index
    %5 = vector.load %arg2[%c0_5, %c0_6, %c0_7] : memref<16x64x32xbf16, #tpu.memory_space<vmem>>, vector<1x64x32xbf16>
    %6 = vector.shape_cast %5 : vector<1x64x32xbf16> to vector<64x32xbf16>
    %cst_8 = arith.constant dense<0.000000e+00> : vector<1x32xf32>
    %7 = tpu.matmul %4, %6, %cst_8 {dimension_numbers = #tpu.dot_dimension_numbers<[1], [0], [0], [1], [0, 0, 1, 1], [], []>} : vector<1x64xbf16>, vector<64x32xbf16>, vector<1x32xf32> -> vector<1x32xf32>
    %8 = arith.addf %1, %7 : vector<1x32xf32>
    %c0_9 = arith.constant 0 : index
    %c0_10 = arith.constant 0 : index
    %c1 = arith.constant 1 : index
    %c0_11 = arith.constant 0 : index
    %9 = vector.load %arg1[%c0_9, %c0_10, %c1, %c0_11] : memref<1x3x3x64xbf16, #tpu.memory_space<vmem>>, vector<1x1x1x64xbf16>
    %10 = vector.shape_cast %9 : vector<1x1x1x64xbf16> to vector<1x1x64xbf16>
    %11 = vector.shape_cast %10 : vector<1x1x64xbf16> to vector<1x64xbf16>
    %c1_12 = arith.constant 1 : index
    %c0_13 = arith.constant 0 : index
    %c0_14 = arith.constant 0 : index
    %12 = vector.load %arg2[%c1_12, %c0_13, %c0_14] : memref<16x64x32xbf16, #tpu.memory_space<vmem>>, vector<1x64x32xbf16>
    %13 = vector.shape_cast %12 : vector<1x64x32xbf16> to vector<64x32xbf16>
    %cst_15 = arith.constant dense<0.000000e+00> : vector<1x32xf32>
    %14 = tpu.matmul %11, %13, %cst_15 {dimension_numbers = #tpu.dot_dimension_numbers<[1], [0], [0], [1], [0, 0, 1, 1], [], []>} : vector<1x64xbf16>, vector<64x32xbf16>, vector<1x32xf32> -> vector<1x32xf32>
    %15 = arith.addf %8, %14 : vector<1x32xf32>
    %c0_16 = arith.constant 0 : index
    %c1_17 = arith.constant 1 : index
    %c0_18 = arith.constant 0 : index
    %c0_19 = arith.constant 0 : index
    %16 = vector.load %arg1[%c0_16, %c1_17, %c0_18, %c0_19] : memref<1x3x3x64xbf16, #tpu.memory_space<vmem>>, vector<1x1x1x64xbf16>
    %17 = vector.shape_cast %16 : vector<1x1x1x64xbf16> to vector<1x1x64xbf16>
    %18 = vector.shape_cast %17 : vector<1x1x64xbf16> to vector<1x64xbf16>
    %c2 = arith.constant 2 : index
    %c0_20 = arith.constant 0 : index
    %c0_21 = arith.constant 0 : index
    %19 = vector.load %arg2[%c2, %c0_20, %c0_21] : memref<16x64x32xbf16, #tpu.memory_space<vmem>>, vector<1x64x32xbf16>
    %20 = vector.shape_cast %19 : vector<1x64x32xbf16> to vector<64x32xbf16>
    %cst_22 = arith.constant dense<0.000000e+00> : vector<1x32xf32>
    %21 = tpu.matmul %18, %20, %cst_22 {dimension_numbers = #tpu.dot_dimension_numbers<[1], [0], [0], [1], [0, 0, 1, 1], [], []>} : vector<1x64xbf16>, vector<64x32xbf16>, vector<1x32xf32> -> vector<1x32xf32>
    %22 = arith.addf %15, %21 : vector<1x32xf32>
    %c0_23 = arith.constant 0 : index
    %c1_24 = arith.constant 1 : index
    %c1_25 = arith.constant 1 : index
    %c0_26 = arith.constant 0 : index
    %23 = vector.load %arg1[%c0_23, %c1_24, %c1_25, %c0_26] : memref<1x3x3x64xbf16, #tpu.memory_space<vmem>>, vector<1x1x1x64xbf16>
    %24 = vector.shape_cast %23 : vector<1x1x1x64xbf16> to vector<1x1x64xbf16>
    %25 = vector.shape_cast %24 : vector<1x1x64xbf16> to vector<1x64xbf16>
    %c3 = arith.constant 3 : index
    %c0_27 = arith.constant 0 : index
    %c0_28 = arith.constant 0 : index
    %26 = vector.load %arg2[%c3, %c0_27, %c0_28] : memref<16x64x32xbf16, #tpu.memory_space<vmem>>, vector<1x64x32xbf16>
    %27 = vector.shape_cast %26 : vector<1x64x32xbf16> to vector<64x32xbf16>
    %cst_29 = arith.constant dense<0.000000e+00> : vector<1x32xf32>
    %28 = tpu.matmul %25, %27, %cst_29 {dimension_numbers = #tpu.dot_dimension_numbers<[1], [0], [0], [1], [0, 0, 1, 1], [], []>} : vector<1x64xbf16>, vector<64x32xbf16>, vector<1x32xf32> -> vector<1x32xf32>
    %29 = arith.addf %22, %28 : vector<1x32xf32>
    %30 = arith.addf %29, %0 : vector<1x32xf32>
    %cst_30 = arith.constant dense<0.000000e+00> : vector<32xf32>
    %31 = vector.multi_reduction <add>, %30, %cst_30 [0] : vector<1x32xf32> to vector<32xf32>
    %32 = vector.shape_cast %31 : vector<32xf32> to vector<1x32xf32>
    %33 = arith.mulf %30, %30 : vector<1x32xf32>
    %cst_31 = arith.constant dense<0.000000e+00> : vector<32xf32>
    %34 = vector.multi_reduction <add>, %33, %cst_31 [0] : vector<1x32xf32> to vector<32xf32>
    %35 = vector.shape_cast %34 : vector<32xf32> to vector<1x32xf32>
    %cst_32 = arith.constant 0.000000e+00 : f32
    %36 = vector.broadcast %cst_32 : f32 to vector<1x32xf32>
    %c0_33 = arith.constant 0 : index
    %c0_34 = arith.constant 0 : index
    %c1_35 = arith.constant 1 : index
    %c0_36 = arith.constant 0 : index
    %37 = vector.load %arg1[%c0_33, %c0_34, %c1_35, %c0_36] : memref<1x3x3x64xbf16, #tpu.memory_space<vmem>>, vector<1x1x1x64xbf16>
    %38 = vector.shape_cast %37 : vector<1x1x1x64xbf16> to vector<1x1x64xbf16>
    %39 = vector.shape_cast %38 : vector<1x1x64xbf16> to vector<1x64xbf16>
    %c4 = arith.constant 4 : index
    %c0_37 = arith.constant 0 : index
    %c0_38 = arith.constant 0 : index
    %40 = vector.load %arg2[%c4, %c0_37, %c0_38] : memref<16x64x32xbf16, #tpu.memory_space<vmem>>, vector<1x64x32xbf16>
    %41 = vector.shape_cast %40 : vector<1x64x32xbf16> to vector<64x32xbf16>
    %cst_39 = arith.constant dense<0.000000e+00> : vector<1x32xf32>
    %42 = tpu.matmul %39, %41, %cst_39 {dimension_numbers = #tpu.dot_dimension_numbers<[1], [0], [0], [1], [0, 0, 1, 1], [], []>} : vector<1x64xbf16>, vector<64x32xbf16>, vector<1x32xf32> -> vector<1x32xf32>
    %43 = arith.addf %36, %42 : vector<1x32xf32>
    %c0_40 = arith.constant 0 : index
    %c0_41 = arith.constant 0 : index
    %c2_42 = arith.constant 2 : index
    %c0_43 = arith.constant 0 : index
    %44 = vector.load %arg1[%c0_40, %c0_41, %c2_42, %c0_43] : memref<1x3x3x64xbf16, #tpu.memory_space<vmem>>, vector<1x1x1x64xbf16>
    %45 = vector.shape_cast %44 : vector<1x1x1x64xbf16> to vector<1x1x64xbf16>
    %46 = vector.shape_cast %45 : vector<1x1x64xbf16> to vector<1x64xbf16>
    %c5 = arith.constant 5 : index
    %c0_44 = arith.constant 0 : index
    %c0_45 = arith.constant 0 : index
    %47 = vector.load %arg2[%c5, %c0_44, %c0_45] : memref<16x64x32xbf16, #tpu.memory_space<vmem>>, vector<1x64x32xbf16>
    %48 = vector.shape_cast %47 : vector<1x64x32xbf16> to vector<64x32xbf16>
    %cst_46 = arith.constant dense<0.000000e+00> : vector<1x32xf32>
    %49 = tpu.matmul %46, %48, %cst_46 {dimension_numbers = #tpu.dot_dimension_numbers<[1], [0], [0], [1], [0, 0, 1, 1], [], []>} : vector<1x64xbf16>, vector<64x32xbf16>, vector<1x32xf32> -> vector<1x32xf32>
    %50 = arith.addf %43, %49 : vector<1x32xf32>
    %c0_47 = arith.constant 0 : index
    %c1_48 = arith.constant 1 : index
    %c1_49 = arith.constant 1 : index
    %c0_50 = arith.constant 0 : index
    %51 = vector.load %arg1[%c0_47, %c1_48, %c1_49, %c0_50] : memref<1x3x3x64xbf16, #tpu.memory_space<vmem>>, vector<1x1x1x64xbf16>
    %52 = vector.shape_cast %51 : vector<1x1x1x64xbf16> to vector<1x1x64xbf16>
    %53 = vector.shape_cast %52 : vector<1x1x64xbf16> to vector<1x64xbf16>
    %c6 = arith.constant 6 : index
    %c0_51 = arith.constant 0 : index
    %c0_52 = arith.constant 0 : index
    %54 = vector.load %arg2[%c6, %c0_51, %c0_52] : memref<16x64x32xbf16, #tpu.memory_space<vmem>>, vector<1x64x32xbf16>
    %55 = vector.shape_cast %54 : vector<1x64x32xbf16> to vector<64x32xbf16>
    %cst_53 = arith.constant dense<0.000000e+00> : vector<1x32xf32>
    %56 = tpu.matmul %53, %55, %cst_53 {dimension_numbers = #tpu.dot_dimension_numbers<[1], [0], [0], [1], [0, 0, 1, 1], [], []>} : vector<1x64xbf16>, vector<64x32xbf16>, vector<1x32xf32> -> vector<1x32xf32>
    %57 = arith.addf %50, %56 : vector<1x32xf32>
    %c0_54 = arith.constant 0 : index
    %c1_55 = arith.constant 1 : index
    %c2_56 = arith.constant 2 : index
    %c0_57 = arith.constant 0 : index
    %58 = vector.load %arg1[%c0_54, %c1_55, %c2_56, %c0_57] : memref<1x3x3x64xbf16, #tpu.memory_space<vmem>>, vector<1x1x1x64xbf16>
    %59 = vector.shape_cast %58 : vector<1x1x1x64xbf16> to vector<1x1x64xbf16>
    %60 = vector.shape_cast %59 : vector<1x1x64xbf16> to vector<1x64xbf16>
    %c7 = arith.constant 7 : index
    %c0_58 = arith.constant 0 : index
    %c0_59 = arith.constant 0 : index
    %61 = vector.load %arg2[%c7, %c0_58, %c0_59] : memref<16x64x32xbf16, #tpu.memory_space<vmem>>, vector<1x64x32xbf16>
    %62 = vector.shape_cast %61 : vector<1x64x32xbf16> to vector<64x32xbf16>
    %cst_60 = arith.constant dense<0.000000e+00> : vector<1x32xf32>
    %63 = tpu.matmul %60, %62, %cst_60 {dimension_numbers = #tpu.dot_dimension_numbers<[1], [0], [0], [1], [0, 0, 1, 1], [], []>} : vector<1x64xbf16>, vector<64x32xbf16>, vector<1x32xf32> -> vector<1x32xf32>
    %64 = arith.addf %57, %63 : vector<1x32xf32>
    %65 = arith.addf %64, %0 : vector<1x32xf32>
    %cst_61 = arith.constant dense<0.000000e+00> : vector<32xf32>
    %66 = vector.multi_reduction <add>, %65, %cst_61 [0] : vector<1x32xf32> to vector<32xf32>
    %67 = vector.shape_cast %66 : vector<32xf32> to vector<1x32xf32>
    %68 = arith.mulf %65, %65 : vector<1x32xf32>
    %cst_62 = arith.constant dense<0.000000e+00> : vector<32xf32>
    %69 = vector.multi_reduction <add>, %68, %cst_62 [0] : vector<1x32xf32> to vector<32xf32>
    %70 = vector.shape_cast %69 : vector<32xf32> to vector<1x32xf32>
    %cst_63 = arith.constant 0.000000e+00 : f32
    %71 = vector.broadcast %cst_63 : f32 to vector<1x32xf32>
    %c0_64 = arith.constant 0 : index
    %c1_65 = arith.constant 1 : index
    %c0_66 = arith.constant 0 : index
    %c0_67 = arith.constant 0 : index
    %72 = vector.load %arg1[%c0_64, %c1_65, %c0_66, %c0_67] : memref<1x3x3x64xbf16, #tpu.memory_space<vmem>>, vector<1x1x1x64xbf16>
    %73 = vector.shape_cast %72 : vector<1x1x1x64xbf16> to vector<1x1x64xbf16>
    %74 = vector.shape_cast %73 : vector<1x1x64xbf16> to vector<1x64xbf16>
    %c8 = arith.constant 8 : index
    %c0_68 = arith.constant 0 : index
    %c0_69 = arith.constant 0 : index
    %75 = vector.load %arg2[%c8, %c0_68, %c0_69] : memref<16x64x32xbf16, #tpu.memory_space<vmem>>, vector<1x64x32xbf16>
    %76 = vector.shape_cast %75 : vector<1x64x32xbf16> to vector<64x32xbf16>
    %cst_70 = arith.constant dense<0.000000e+00> : vector<1x32xf32>
    %77 = tpu.matmul %74, %76, %cst_70 {dimension_numbers = #tpu.dot_dimension_numbers<[1], [0], [0], [1], [0, 0, 1, 1], [], []>} : vector<1x64xbf16>, vector<64x32xbf16>, vector<1x32xf32> -> vector<1x32xf32>
    %78 = arith.addf %71, %77 : vector<1x32xf32>
    %c0_71 = arith.constant 0 : index
    %c1_72 = arith.constant 1 : index
    %c1_73 = arith.constant 1 : index
    %c0_74 = arith.constant 0 : index
    %79 = vector.load %arg1[%c0_71, %c1_72, %c1_73, %c0_74] : memref<1x3x3x64xbf16, #tpu.memory_space<vmem>>, vector<1x1x1x64xbf16>
    %80 = vector.shape_cast %79 : vector<1x1x1x64xbf16> to vector<1x1x64xbf16>
    %81 = vector.shape_cast %80 : vector<1x1x64xbf16> to vector<1x64xbf16>
    %c9 = arith.constant 9 : index
    %c0_75 = arith.constant 0 : index
    %c0_76 = arith.constant 0 : index
    %82 = vector.load %arg2[%c9, %c0_75, %c0_76] : memref<16x64x32xbf16, #tpu.memory_space<vmem>>, vector<1x64x32xbf16>
    %83 = vector.shape_cast %82 : vector<1x64x32xbf16> to vector<64x32xbf16>
    %cst_77 = arith.constant dense<0.000000e+00> : vector<1x32xf32>
    %84 = tpu.matmul %81, %83, %cst_77 {dimension_numbers = #tpu.dot_dimension_numbers<[1], [0], [0], [1], [0, 0, 1, 1], [], []>} : vector<1x64xbf16>, vector<64x32xbf16>, vector<1x32xf32> -> vector<1x32xf32>
    %85 = arith.addf %78, %84 : vector<1x32xf32>
    %c0_78 = arith.constant 0 : index
    %c2_79 = arith.constant 2 : index
    %c0_80 = arith.constant 0 : index
    %c0_81 = arith.constant 0 : index
    %86 = vector.load %arg1[%c0_78, %c2_79, %c0_80, %c0_81] : memref<1x3x3x64xbf16, #tpu.memory_space<vmem>>, vector<1x1x1x64xbf16>
    %87 = vector.shape_cast %86 : vector<1x1x1x64xbf16> to vector<1x1x64xbf16>
    %88 = vector.shape_cast %87 : vector<1x1x64xbf16> to vector<1x64xbf16>
    %c10 = arith.constant 10 : index
    %c0_82 = arith.constant 0 : index
    %c0_83 = arith.constant 0 : index
    %89 = vector.load %arg2[%c10, %c0_82, %c0_83] : memref<16x64x32xbf16, #tpu.memory_space<vmem>>, vector<1x64x32xbf16>
    %90 = vector.shape_cast %89 : vector<1x64x32xbf16> to vector<64x32xbf16>
    %cst_84 = arith.constant dense<0.000000e+00> : vector<1x32xf32>
    %91 = tpu.matmul %88, %90, %cst_84 {dimension_numbers = #tpu.dot_dimension_numbers<[1], [0], [0], [1], [0, 0, 1, 1], [], []>} : vector<1x64xbf16>, vector<64x32xbf16>, vector<1x32xf32> -> vector<1x32xf32>
    %92 = arith.addf %85, %91 : vector<1x32xf32>
    %c0_85 = arith.constant 0 : index
    %c2_86 = arith.constant 2 : index
    %c1_87 = arith.constant 1 : index
    %c0_88 = arith.constant 0 : index
    %93 = vector.load %arg1[%c0_85, %c2_86, %c1_87, %c0_88] : memref<1x3x3x64xbf16, #tpu.memory_space<vmem>>, vector<1x1x1x64xbf16>
    %94 = vector.shape_cast %93 : vector<1x1x1x64xbf16> to vector<1x1x64xbf16>
    %95 = vector.shape_cast %94 : vector<1x1x64xbf16> to vector<1x64xbf16>
    %c11 = arith.constant 11 : index
    %c0_89 = arith.constant 0 : index
    %c0_90 = arith.constant 0 : index
    %96 = vector.load %arg2[%c11, %c0_89, %c0_90] : memref<16x64x32xbf16, #tpu.memory_space<vmem>>, vector<1x64x32xbf16>
    %97 = vector.shape_cast %96 : vector<1x64x32xbf16> to vector<64x32xbf16>
    %cst_91 = arith.constant dense<0.000000e+00> : vector<1x32xf32>
    %98 = tpu.matmul %95, %97, %cst_91 {dimension_numbers = #tpu.dot_dimension_numbers<[1], [0], [0], [1], [0, 0, 1, 1], [], []>} : vector<1x64xbf16>, vector<64x32xbf16>, vector<1x32xf32> -> vector<1x32xf32>
    %99 = arith.addf %92, %98 : vector<1x32xf32>
    %100 = arith.addf %99, %0 : vector<1x32xf32>
    %cst_92 = arith.constant dense<0.000000e+00> : vector<32xf32>
    %101 = vector.multi_reduction <add>, %100, %cst_92 [0] : vector<1x32xf32> to vector<32xf32>
    %102 = vector.shape_cast %101 : vector<32xf32> to vector<1x32xf32>
    %103 = arith.mulf %100, %100 : vector<1x32xf32>
    %cst_93 = arith.constant dense<0.000000e+00> : vector<32xf32>
    %104 = vector.multi_reduction <add>, %103, %cst_93 [0] : vector<1x32xf32> to vector<32xf32>
    %105 = vector.shape_cast %104 : vector<32xf32> to vector<1x32xf32>
    %cst_94 = arith.constant 0.000000e+00 : f32
    %106 = vector.broadcast %cst_94 : f32 to vector<1x32xf32>
    %c0_95 = arith.constant 0 : index
    %c1_96 = arith.constant 1 : index
    %c1_97 = arith.constant 1 : index
    %c0_98 = arith.constant 0 : index
    %107 = vector.load %arg1[%c0_95, %c1_96, %c1_97, %c0_98] : memref<1x3x3x64xbf16, #tpu.memory_space<vmem>>, vector<1x1x1x64xbf16>
    %108 = vector.shape_cast %107 : vector<1x1x1x64xbf16> to vector<1x1x64xbf16>
    %109 = vector.shape_cast %108 : vector<1x1x64xbf16> to vector<1x64xbf16>
    %c12 = arith.constant 12 : index
    %c0_99 = arith.constant 0 : index
    %c0_100 = arith.constant 0 : index
    %110 = vector.load %arg2[%c12, %c0_99, %c0_100] : memref<16x64x32xbf16, #tpu.memory_space<vmem>>, vector<1x64x32xbf16>
    %111 = vector.shape_cast %110 : vector<1x64x32xbf16> to vector<64x32xbf16>
    %cst_101 = arith.constant dense<0.000000e+00> : vector<1x32xf32>
    %112 = tpu.matmul %109, %111, %cst_101 {dimension_numbers = #tpu.dot_dimension_numbers<[1], [0], [0], [1], [0, 0, 1, 1], [], []>} : vector<1x64xbf16>, vector<64x32xbf16>, vector<1x32xf32> -> vector<1x32xf32>
    %113 = arith.addf %106, %112 : vector<1x32xf32>
    %c0_102 = arith.constant 0 : index
    %c1_103 = arith.constant 1 : index
    %c2_104 = arith.constant 2 : index
    %c0_105 = arith.constant 0 : index
    %114 = vector.load %arg1[%c0_102, %c1_103, %c2_104, %c0_105] : memref<1x3x3x64xbf16, #tpu.memory_space<vmem>>, vector<1x1x1x64xbf16>
    %115 = vector.shape_cast %114 : vector<1x1x1x64xbf16> to vector<1x1x64xbf16>
    %116 = vector.shape_cast %115 : vector<1x1x64xbf16> to vector<1x64xbf16>
    %c13 = arith.constant 13 : index
    %c0_106 = arith.constant 0 : index
    %c0_107 = arith.constant 0 : index
    %117 = vector.load %arg2[%c13, %c0_106, %c0_107] : memref<16x64x32xbf16, #tpu.memory_space<vmem>>, vector<1x64x32xbf16>
    %118 = vector.shape_cast %117 : vector<1x64x32xbf16> to vector<64x32xbf16>
    %cst_108 = arith.constant dense<0.000000e+00> : vector<1x32xf32>
    %119 = tpu.matmul %116, %118, %cst_108 {dimension_numbers = #tpu.dot_dimension_numbers<[1], [0], [0], [1], [0, 0, 1, 1], [], []>} : vector<1x64xbf16>, vector<64x32xbf16>, vector<1x32xf32> -> vector<1x32xf32>
    %120 = arith.addf %113, %119 : vector<1x32xf32>
    %c0_109 = arith.constant 0 : index
    %c2_110 = arith.constant 2 : index
    %c1_111 = arith.constant 1 : index
    %c0_112 = arith.constant 0 : index
    %121 = vector.load %arg1[%c0_109, %c2_110, %c1_111, %c0_112] : memref<1x3x3x64xbf16, #tpu.memory_space<vmem>>, vector<1x1x1x64xbf16>
    %122 = vector.shape_cast %121 : vector<1x1x1x64xbf16> to vector<1x1x64xbf16>
    %123 = vector.shape_cast %122 : vector<1x1x64xbf16> to vector<1x64xbf16>
    %c14 = arith.constant 14 : index
    %c0_113 = arith.constant 0 : index
    %c0_114 = arith.constant 0 : index
    %124 = vector.load %arg2[%c14, %c0_113, %c0_114] : memref<16x64x32xbf16, #tpu.memory_space<vmem>>, vector<1x64x32xbf16>
    %125 = vector.shape_cast %124 : vector<1x64x32xbf16> to vector<64x32xbf16>
    %cst_115 = arith.constant dense<0.000000e+00> : vector<1x32xf32>
    %126 = tpu.matmul %123, %125, %cst_115 {dimension_numbers = #tpu.dot_dimension_numbers<[1], [0], [0], [1], [0, 0, 1, 1], [], []>} : vector<1x64xbf16>, vector<64x32xbf16>, vector<1x32xf32> -> vector<1x32xf32>
    %127 = arith.addf %120, %126 : vector<1x32xf32>
    %c0_116 = arith.constant 0 : index
    %c2_117 = arith.constant 2 : index
    %c2_118 = arith.constant 2 : index
    %c0_119 = arith.constant 0 : index
    %128 = vector.load %arg1[%c0_116, %c2_117, %c2_118, %c0_119] : memref<1x3x3x64xbf16, #tpu.memory_space<vmem>>, vector<1x1x1x64xbf16>
    %129 = vector.shape_cast %128 : vector<1x1x1x64xbf16> to vector<1x1x64xbf16>
    %130 = vector.shape_cast %129 : vector<1x1x64xbf16> to vector<1x64xbf16>
    %c15 = arith.constant 15 : index
    %c0_120 = arith.constant 0 : index
    %c0_121 = arith.constant 0 : index
    %131 = vector.load %arg2[%c15, %c0_120, %c0_121] : memref<16x64x32xbf16, #tpu.memory_space<vmem>>, vector<1x64x32xbf16>
    %132 = vector.shape_cast %131 : vector<1x64x32xbf16> to vector<64x32xbf16>
    %cst_122 = arith.constant dense<0.000000e+00> : vector<1x32xf32>
    %133 = tpu.matmul %130, %132, %cst_122 {dimension_numbers = #tpu.dot_dimension_numbers<[1], [0], [0], [1], [0, 0, 1, 1], [], []>} : vector<1x64xbf16>, vector<64x32xbf16>, vector<1x32xf32> -> vector<1x32xf32>
    %134 = arith.addf %127, %133 : vector<1x32xf32>
    %135 = arith.addf %134, %0 : vector<1x32xf32>
    %cst_123 = arith.constant dense<0.000000e+00> : vector<32xf32>
    %136 = vector.multi_reduction <add>, %135, %cst_123 [0] : vector<1x32xf32> to vector<32xf32>
    %137 = vector.shape_cast %136 : vector<32xf32> to vector<1x32xf32>
    %138 = arith.mulf %135, %135 : vector<1x32xf32>
    %cst_124 = arith.constant dense<0.000000e+00> : vector<32xf32>
    %139 = vector.multi_reduction <add>, %138, %cst_124 [0] : vector<1x32xf32> to vector<32xf32>
    %140 = vector.shape_cast %139 : vector<32xf32> to vector<1x32xf32>
    %141 = tpu.concatenate %30, %65, %100, %135 in 1 : vector<1x32xf32>, vector<1x32xf32>, vector<1x32xf32>, vector<1x32xf32> -> vector<1x128xf32>
    %142 = vector.shape_cast %141 : vector<1x128xf32> to vector<1x1x1x128xf32>
    %143 = arith.truncf %142 : vector<1x1x1x128xf32> to vector<1x1x1x128xbf16>
    %c0_125 = arith.constant 0 : index
    %c0_126 = arith.constant 0 : index
    %c0_127 = arith.constant 0 : index
    %c0_128 = arith.constant 0 : index
    %144 = vector.load %arg4[%c0_125, %c0_126, %c0_127, %c0_128] : memref<1x1x1x128xbf16, #tpu.memory_space<vmem>>, vector<1x1x1x128xbf16>
    tpu.vector_store %arg4[%c0_125, %c0_126, %c0_127, %c0_128], %143 {strides = array<i32>} : memref<1x1x1x128xbf16, #tpu.memory_space<vmem>>, vector<1x1x1x128xbf16>,
    %145 = tpu.concatenate %32, %67, %102, %137 in 1 : vector<1x32xf32>, vector<1x32xf32>, vector<1x32xf32>, vector<1x32xf32> -> vector<1x128xf32>
    %146 = vector.shape_cast %145 : vector<1x128xf32> to vector<1x1x128xf32>
    %c0_129 = arith.constant 0 : index
    %c0_130 = arith.constant 0 : index
    %c0_131 = arith.constant 0 : index
    %147 = vector.load %arg5[%c0_129, %c0_130, %c0_131] : memref<1x1x128xf32, #tpu.memory_space<vmem>>, vector<1x1x128xf32>
    tpu.vector_store %arg5[%c0_129, %c0_130, %c0_131], %146 {strides = array<i32>} : memref<1x1x128xf32, #tpu.memory_space<vmem>>, vector<1x1x128xf32>,
    %148 = tpu.concatenate %35, %70, %105, %140 in 1 : vector<1x32xf32>, vector<1x32xf32>, vector<1x32xf32>, vector<1x32xf32> -> vector<1x128xf32>
    %149 = vector.shape_cast %148 : vector<1x128xf32> to vector<1x1x128xf32>
    %c0_132 = arith.constant 0 : index
    %c0_133 = arith.constant 0 : index
    %c0_134 = arith.constant 0 : index
    %150 = vector.load %arg6[%c0_132, %c0_133, %c0_134] : memref<1x1x128xf32, #tpu.memory_space<vmem>>, vector<1x1x128xf32>
    tpu.vector_store %arg6[%c0_132, %c0_133, %c0_134], %149 {strides = array<i32>} : memref<1x1x128xf32, #tpu.memory_space<vmem>>, vector<1x1x128xf32>,
    return
  }
  func.func @transform_0(%arg0: i32) -> (i32, i32, i32, i32) {
    %c0_i32 = arith.constant 0 : i32
    %c0_i32_0 = arith.constant 0 : i32
    %c0_i32_1 = arith.constant 0 : i32
    %c0_i32_2 = arith.constant 0 : i32
    return %arg0, %c0_i32, %c0_i32_0, %c0_i32_1 : i32, i32, i32, i32
  }
  func.func @transform_1(%arg0: i32) -> (i32, i32, i32) {
    %c0_i32 = arith.constant 0 : i32
    %c0_i32_0 = arith.constant 0 : i32
    %c0_i32_1 = arith.constant 0 : i32
    %c0_i32_2 = arith.constant 0 : i32
    return %c0_i32, %c0_i32_0, %c0_i32_1 : i32, i32, i32
  }
  func.func @transform_2(%arg0: i32) -> (i32, i32) {
    %c0_i32 = arith.constant 0 : i32
    %c0_i32_0 = arith.constant 0 : i32
    %c0_i32_1 = arith.constant 0 : i32
    return %c0_i32, %c0_i32_0 : i32, i32
  }
  func.func @transform_3(%arg0: i32) -> (i32, i32, i32, i32) {
    %c0_i32 = arith.constant 0 : i32
    %c0_i32_0 = arith.constant 0 : i32
    %c0_i32_1 = arith.constant 0 : i32
    %c0_i32_2 = arith.constant 0 : i32
    return %arg0, %c0_i32, %c0_i32_0, %c0_i32_1 : i32, i32, i32, i32
  }
  func.func @transform_4(%arg0: i32) -> (i32, i32, i32) {
    %c0_i32 = arith.constant 0 : i32
    %c0_i32_0 = arith.constant 0 : i32
    %c0_i32_1 = arith.constant 0 : i32
    return %arg0, %c0_i32, %c0_i32_0 : i32, i32, i32
  }
  func.func @transform_5(%arg0: i32) -> (i32, i32, i32) {
    %c0_i32 = arith.constant 0 : i32
    %c0_i32_0 = arith.constant 0 : i32
    %c0_i32_1 = arith.constant 0 : i32
    return %arg0, %c0_i32, %c0_i32_0 : i32, i32, i32
  }
}

module attributes {stable_mosaic.version = 11 : i64} {
  func.func @_bn_apply_lrelu_kernel(%arg0: i32, %arg1: memref<2x128xbf16, #tpu.memory_space<vmem>>, %arg2: memref<1x128xf32, #tpu.memory_space<vmem>>, %arg3: memref<1x128xf32, #tpu.memory_space<vmem>>, %arg4: memref<2x128xbf16, #tpu.memory_space<vmem>>) attributes {dimension_semantics = [#tpu.dimension_semantics<parallel>], iteration_bounds = array<i64: 1>, scalar_prefetch = 0 : i64, scratch_operands = 0 : i64, tpu.core_type = #tpu.core_type<tc>, window_params = [{transform_indices = @transform_0, window_bounds = array<i64: 2, 128>}, {pipeline_mode = #tpu.pipeline_mode<synchronous>, transform_indices = @transform_1, window_bounds = array<i64: 1, 128>}, {pipeline_mode = #tpu.pipeline_mode<synchronous>, transform_indices = @transform_2, window_bounds = array<i64: 1, 128>}, {transform_indices = @transform_3, window_bounds = array<i64: 2, 128>}]} {
    %c0 = arith.constant 0 : index
    %c0_0 = arith.constant 0 : index
    %0 = vector.load %arg1[%c0, %c0_0] : memref<2x128xbf16, #tpu.memory_space<vmem>>, vector<2x128xbf16>
    %1 = arith.extf %0 : vector<2x128xbf16> to vector<2x128xf32>
    %c0_1 = arith.constant 0 : index
    %c0_2 = arith.constant 0 : index
    %2 = vector.load %arg2[%c0_1, %c0_2] : memref<1x128xf32, #tpu.memory_space<vmem>>, vector<1x128xf32>
    %3 = vector.broadcast %2 : vector<1x128xf32> to vector<2x128xf32>
    %4 = arith.mulf %1, %3 : vector<2x128xf32>
    %c0_3 = arith.constant 0 : index
    %c0_4 = arith.constant 0 : index
    %5 = vector.load %arg3[%c0_3, %c0_4] : memref<1x128xf32, #tpu.memory_space<vmem>>, vector<1x128xf32>
    %6 = vector.broadcast %5 : vector<1x128xf32> to vector<2x128xf32>
    %7 = arith.addf %4, %6 : vector<2x128xf32>
    %cst = arith.constant 0.000000e+00 : f32
    %8 = vector.broadcast %cst : f32 to vector<2x128xf32>
    %9 = arith.cmpf oge, %7, %8 : vector<2x128xf32>
    %cst_5 = arith.constant 5.000000e-02 : f32
    %10 = vector.broadcast %cst_5 : f32 to vector<2x128xf32>
    %11 = arith.mulf %10, %7 : vector<2x128xf32>
    %12 = arith.select %9, %7, %11 : vector<2x128xi1>, vector<2x128xf32>
    %13 = arith.truncf %12 : vector<2x128xf32> to vector<2x128xbf16>
    %c0_6 = arith.constant 0 : index
    %c0_7 = arith.constant 0 : index
    %14 = vector.load %arg4[%c0_6, %c0_7] : memref<2x128xbf16, #tpu.memory_space<vmem>>, vector<2x128xbf16>
    tpu.vector_store %arg4[%c0_6, %c0_7], %13 {strides = array<i32>} : memref<2x128xbf16, #tpu.memory_space<vmem>>, vector<2x128xbf16>,
    return
  }
  func.func @transform_0(%arg0: i32) -> (i32, i32) {
    %c0_i32 = arith.constant 0 : i32
    %c0_i32_0 = arith.constant 0 : i32
    return %arg0, %c0_i32 : i32, i32
  }
  func.func @transform_1(%arg0: i32) -> (i32, i32) {
    %c0_i32 = arith.constant 0 : i32
    %c0_i32_0 = arith.constant 0 : i32
    %c0_i32_1 = arith.constant 0 : i32
    return %c0_i32, %c0_i32_0 : i32, i32
  }
  func.func @transform_2(%arg0: i32) -> (i32, i32) {
    %c0_i32 = arith.constant 0 : i32
    %c0_i32_0 = arith.constant 0 : i32
    %c0_i32_1 = arith.constant 0 : i32
    return %c0_i32, %c0_i32_0 : i32, i32
  }
  func.func @transform_3(%arg0: i32) -> (i32, i32) {
    %c0_i32 = arith.constant 0 : i32
    %c0_i32_0 = arith.constant 0 : i32
    return %arg0, %c0_i32 : i32, i32
  }
}

module attributes {stable_mosaic.version = 11 : i64} {
  func.func @_deconv_s2_kernel(%arg0: i32, %arg1: memref<1x4x4x32xbf16, #tpu.memory_space<vmem>>, %arg2: memref<16x32x16xbf16, #tpu.memory_space<vmem>>, %arg3: memref<1x16xf32, #tpu.memory_space<vmem>>, %arg4: memref<1x2x2x64xbf16, #tpu.memory_space<vmem>>, %arg5: memref<1x1x64xf32, #tpu.memory_space<vmem>>, %arg6: memref<1x1x64xf32, #tpu.memory_space<vmem>>) attributes {dimension_semantics = [#tpu.dimension_semantics<parallel>], iteration_bounds = array<i64: 2>, scalar_prefetch = 0 : i64, scratch_operands = 0 : i64, tpu.core_type = #tpu.core_type<tc>, window_params = [{transform_indices = @transform_0, window_bounds = array<i64: 1, 4, 4, 32>}, {pipeline_mode = #tpu.pipeline_mode<synchronous>, transform_indices = @transform_1, window_bounds = array<i64: 16, 32, 16>}, {pipeline_mode = #tpu.pipeline_mode<synchronous>, transform_indices = @transform_2, window_bounds = array<i64: 1, 16>}, {transform_indices = @transform_3, window_bounds = array<i64: 1, 2, 2, 64>}, {transform_indices = @transform_4, window_bounds = array<i64: 1, 1, 64>}, {transform_indices = @transform_5, window_bounds = array<i64: 1, 1, 64>}]} {
    %c0 = arith.constant 0 : index
    %c0_0 = arith.constant 0 : index
    %0 = vector.load %arg3[%c0, %c0_0] : memref<1x16xf32, #tpu.memory_space<vmem>>, vector<1x16xf32>
    %cst = arith.constant 0.000000e+00 : f32
    %1 = vector.broadcast %cst : f32 to vector<4x16xf32>
    %c0_1 = arith.constant 0 : index
    %c0_2 = arith.constant 0 : index
    %c0_3 = arith.constant 0 : index
    %c0_4 = arith.constant 0 : index
    %2 = vector.load %arg1[%c0_1, %c0_2, %c0_3, %c0_4] : memref<1x4x4x32xbf16, #tpu.memory_space<vmem>>, vector<1x2x2x32xbf16>
    %3 = vector.shape_cast %2 : vector<1x2x2x32xbf16> to vector<2x2x32xbf16>
    %4 = vector.shape_cast %3 : vector<2x2x32xbf16> to vector<4x32xbf16>
    %c0_5 = arith.constant 0 : index
    %c0_6 = arith.constant 0 : index
    %c0_7 = arith.constant 0 : index
    %5 = vector.load %arg2[%c0_5, %c0_6, %c0_7] : memref<16x32x16xbf16, #tpu.memory_space<vmem>>, vector<1x32x16xbf16>
    %6 = vector.shape_cast %5 : vector<1x32x16xbf16> to vector<32x16xbf16>
    %cst_8 = arith.constant dense<0.000000e+00> : vector<4x16xf32>
    %7 = tpu.matmul %4, %6, %cst_8 {dimension_numbers = #tpu.dot_dimension_numbers<[1], [0], [0], [1], [0, 0, 1, 1], [], []>} : vector<4x32xbf16>, vector<32x16xbf16>, vector<4x16xf32> -> vector<4x16xf32>
    %8 = arith.addf %1, %7 : vector<4x16xf32>
    %c0_9 = arith.constant 0 : index
    %c0_10 = arith.constant 0 : index
    %c1 = arith.constant 1 : index
    %c0_11 = arith.constant 0 : index
    %9 = vector.load %arg1[%c0_9, %c0_10, %c1, %c0_11] : memref<1x4x4x32xbf16, #tpu.memory_space<vmem>>, vector<1x2x2x32xbf16>
    %10 = vector.shape_cast %9 : vector<1x2x2x32xbf16> to vector<2x2x32xbf16>
    %11 = vector.shape_cast %10 : vector<2x2x32xbf16> to vector<4x32xbf16>
    %c1_12 = arith.constant 1 : index
    %c0_13 = arith.constant 0 : index
    %c0_14 = arith.constant 0 : index
    %12 = vector.load %arg2[%c1_12, %c0_13, %c0_14] : memref<16x32x16xbf16, #tpu.memory_space<vmem>>, vector<1x32x16xbf16>
    %13 = vector.shape_cast %12 : vector<1x32x16xbf16> to vector<32x16xbf16>
    %cst_15 = arith.constant dense<0.000000e+00> : vector<4x16xf32>
    %14 = tpu.matmul %11, %13, %cst_15 {dimension_numbers = #tpu.dot_dimension_numbers<[1], [0], [0], [1], [0, 0, 1, 1], [], []>} : vector<4x32xbf16>, vector<32x16xbf16>, vector<4x16xf32> -> vector<4x16xf32>
    %15 = arith.addf %8, %14 : vector<4x16xf32>
    %c0_16 = arith.constant 0 : index
    %c1_17 = arith.constant 1 : index
    %c0_18 = arith.constant 0 : index
    %c0_19 = arith.constant 0 : index
    %16 = vector.load %arg1[%c0_16, %c1_17, %c0_18, %c0_19] : memref<1x4x4x32xbf16, #tpu.memory_space<vmem>>, vector<1x2x2x32xbf16>
    %17 = vector.shape_cast %16 : vector<1x2x2x32xbf16> to vector<2x2x32xbf16>
    %18 = vector.shape_cast %17 : vector<2x2x32xbf16> to vector<4x32xbf16>
    %c2 = arith.constant 2 : index
    %c0_20 = arith.constant 0 : index
    %c0_21 = arith.constant 0 : index
    %19 = vector.load %arg2[%c2, %c0_20, %c0_21] : memref<16x32x16xbf16, #tpu.memory_space<vmem>>, vector<1x32x16xbf16>
    %20 = vector.shape_cast %19 : vector<1x32x16xbf16> to vector<32x16xbf16>
    %cst_22 = arith.constant dense<0.000000e+00> : vector<4x16xf32>
    %21 = tpu.matmul %18, %20, %cst_22 {dimension_numbers = #tpu.dot_dimension_numbers<[1], [0], [0], [1], [0, 0, 1, 1], [], []>} : vector<4x32xbf16>, vector<32x16xbf16>, vector<4x16xf32> -> vector<4x16xf32>
    %22 = arith.addf %15, %21 : vector<4x16xf32>
    %c0_23 = arith.constant 0 : index
    %c1_24 = arith.constant 1 : index
    %c1_25 = arith.constant 1 : index
    %c0_26 = arith.constant 0 : index
    %23 = vector.load %arg1[%c0_23, %c1_24, %c1_25, %c0_26] : memref<1x4x4x32xbf16, #tpu.memory_space<vmem>>, vector<1x2x2x32xbf16>
    %24 = vector.shape_cast %23 : vector<1x2x2x32xbf16> to vector<2x2x32xbf16>
    %25 = vector.shape_cast %24 : vector<2x2x32xbf16> to vector<4x32xbf16>
    %c3 = arith.constant 3 : index
    %c0_27 = arith.constant 0 : index
    %c0_28 = arith.constant 0 : index
    %26 = vector.load %arg2[%c3, %c0_27, %c0_28] : memref<16x32x16xbf16, #tpu.memory_space<vmem>>, vector<1x32x16xbf16>
    %27 = vector.shape_cast %26 : vector<1x32x16xbf16> to vector<32x16xbf16>
    %cst_29 = arith.constant dense<0.000000e+00> : vector<4x16xf32>
    %28 = tpu.matmul %25, %27, %cst_29 {dimension_numbers = #tpu.dot_dimension_numbers<[1], [0], [0], [1], [0, 0, 1, 1], [], []>} : vector<4x32xbf16>, vector<32x16xbf16>, vector<4x16xf32> -> vector<4x16xf32>
    %29 = arith.addf %22, %28 : vector<4x16xf32>
    %30 = vector.broadcast %0 : vector<1x16xf32> to vector<4x16xf32>
    %31 = arith.addf %29, %30 : vector<4x16xf32>
    %cst_30 = arith.constant dense<0.000000e+00> : vector<16xf32>
    %32 = vector.multi_reduction <add>, %31, %cst_30 [0] : vector<4x16xf32> to vector<16xf32>
    %33 = vector.shape_cast %32 : vector<16xf32> to vector<1x16xf32>
    %34 = arith.mulf %31, %31 : vector<4x16xf32>
    %cst_31 = arith.constant dense<0.000000e+00> : vector<16xf32>
    %35 = vector.multi_reduction <add>, %34, %cst_31 [0] : vector<4x16xf32> to vector<16xf32>
    %36 = vector.shape_cast %35 : vector<16xf32> to vector<1x16xf32>
    %cst_32 = arith.constant 0.000000e+00 : f32
    %37 = vector.broadcast %cst_32 : f32 to vector<4x16xf32>
    %c0_33 = arith.constant 0 : index
    %c0_34 = arith.constant 0 : index
    %c1_35 = arith.constant 1 : index
    %c0_36 = arith.constant 0 : index
    %38 = vector.load %arg1[%c0_33, %c0_34, %c1_35, %c0_36] : memref<1x4x4x32xbf16, #tpu.memory_space<vmem>>, vector<1x2x2x32xbf16>
    %39 = vector.shape_cast %38 : vector<1x2x2x32xbf16> to vector<2x2x32xbf16>
    %40 = vector.shape_cast %39 : vector<2x2x32xbf16> to vector<4x32xbf16>
    %c4 = arith.constant 4 : index
    %c0_37 = arith.constant 0 : index
    %c0_38 = arith.constant 0 : index
    %41 = vector.load %arg2[%c4, %c0_37, %c0_38] : memref<16x32x16xbf16, #tpu.memory_space<vmem>>, vector<1x32x16xbf16>
    %42 = vector.shape_cast %41 : vector<1x32x16xbf16> to vector<32x16xbf16>
    %cst_39 = arith.constant dense<0.000000e+00> : vector<4x16xf32>
    %43 = tpu.matmul %40, %42, %cst_39 {dimension_numbers = #tpu.dot_dimension_numbers<[1], [0], [0], [1], [0, 0, 1, 1], [], []>} : vector<4x32xbf16>, vector<32x16xbf16>, vector<4x16xf32> -> vector<4x16xf32>
    %44 = arith.addf %37, %43 : vector<4x16xf32>
    %c0_40 = arith.constant 0 : index
    %c0_41 = arith.constant 0 : index
    %c2_42 = arith.constant 2 : index
    %c0_43 = arith.constant 0 : index
    %45 = vector.load %arg1[%c0_40, %c0_41, %c2_42, %c0_43] : memref<1x4x4x32xbf16, #tpu.memory_space<vmem>>, vector<1x2x2x32xbf16>
    %46 = vector.shape_cast %45 : vector<1x2x2x32xbf16> to vector<2x2x32xbf16>
    %47 = vector.shape_cast %46 : vector<2x2x32xbf16> to vector<4x32xbf16>
    %c5 = arith.constant 5 : index
    %c0_44 = arith.constant 0 : index
    %c0_45 = arith.constant 0 : index
    %48 = vector.load %arg2[%c5, %c0_44, %c0_45] : memref<16x32x16xbf16, #tpu.memory_space<vmem>>, vector<1x32x16xbf16>
    %49 = vector.shape_cast %48 : vector<1x32x16xbf16> to vector<32x16xbf16>
    %cst_46 = arith.constant dense<0.000000e+00> : vector<4x16xf32>
    %50 = tpu.matmul %47, %49, %cst_46 {dimension_numbers = #tpu.dot_dimension_numbers<[1], [0], [0], [1], [0, 0, 1, 1], [], []>} : vector<4x32xbf16>, vector<32x16xbf16>, vector<4x16xf32> -> vector<4x16xf32>
    %51 = arith.addf %44, %50 : vector<4x16xf32>
    %c0_47 = arith.constant 0 : index
    %c1_48 = arith.constant 1 : index
    %c1_49 = arith.constant 1 : index
    %c0_50 = arith.constant 0 : index
    %52 = vector.load %arg1[%c0_47, %c1_48, %c1_49, %c0_50] : memref<1x4x4x32xbf16, #tpu.memory_space<vmem>>, vector<1x2x2x32xbf16>
    %53 = vector.shape_cast %52 : vector<1x2x2x32xbf16> to vector<2x2x32xbf16>
    %54 = vector.shape_cast %53 : vector<2x2x32xbf16> to vector<4x32xbf16>
    %c6 = arith.constant 6 : index
    %c0_51 = arith.constant 0 : index
    %c0_52 = arith.constant 0 : index
    %55 = vector.load %arg2[%c6, %c0_51, %c0_52] : memref<16x32x16xbf16, #tpu.memory_space<vmem>>, vector<1x32x16xbf16>
    %56 = vector.shape_cast %55 : vector<1x32x16xbf16> to vector<32x16xbf16>
    %cst_53 = arith.constant dense<0.000000e+00> : vector<4x16xf32>
    %57 = tpu.matmul %54, %56, %cst_53 {dimension_numbers = #tpu.dot_dimension_numbers<[1], [0], [0], [1], [0, 0, 1, 1], [], []>} : vector<4x32xbf16>, vector<32x16xbf16>, vector<4x16xf32> -> vector<4x16xf32>
    %58 = arith.addf %51, %57 : vector<4x16xf32>
    %c0_54 = arith.constant 0 : index
    %c1_55 = arith.constant 1 : index
    %c2_56 = arith.constant 2 : index
    %c0_57 = arith.constant 0 : index
    %59 = vector.load %arg1[%c0_54, %c1_55, %c2_56, %c0_57] : memref<1x4x4x32xbf16, #tpu.memory_space<vmem>>, vector<1x2x2x32xbf16>
    %60 = vector.shape_cast %59 : vector<1x2x2x32xbf16> to vector<2x2x32xbf16>
    %61 = vector.shape_cast %60 : vector<2x2x32xbf16> to vector<4x32xbf16>
    %c7 = arith.constant 7 : index
    %c0_58 = arith.constant 0 : index
    %c0_59 = arith.constant 0 : index
    %62 = vector.load %arg2[%c7, %c0_58, %c0_59] : memref<16x32x16xbf16, #tpu.memory_space<vmem>>, vector<1x32x16xbf16>
    %63 = vector.shape_cast %62 : vector<1x32x16xbf16> to vector<32x16xbf16>
    %cst_60 = arith.constant dense<0.000000e+00> : vector<4x16xf32>
    %64 = tpu.matmul %61, %63, %cst_60 {dimension_numbers = #tpu.dot_dimension_numbers<[1], [0], [0], [1], [0, 0, 1, 1], [], []>} : vector<4x32xbf16>, vector<32x16xbf16>, vector<4x16xf32> -> vector<4x16xf32>
    %65 = arith.addf %58, %64 : vector<4x16xf32>
    %66 = vector.broadcast %0 : vector<1x16xf32> to vector<4x16xf32>
    %67 = arith.addf %65, %66 : vector<4x16xf32>
    %cst_61 = arith.constant dense<0.000000e+00> : vector<16xf32>
    %68 = vector.multi_reduction <add>, %67, %cst_61 [0] : vector<4x16xf32> to vector<16xf32>
    %69 = vector.shape_cast %68 : vector<16xf32> to vector<1x16xf32>
    %70 = arith.mulf %67, %67 : vector<4x16xf32>
    %cst_62 = arith.constant dense<0.000000e+00> : vector<16xf32>
    %71 = vector.multi_reduction <add>, %70, %cst_62 [0] : vector<4x16xf32> to vector<16xf32>
    %72 = vector.shape_cast %71 : vector<16xf32> to vector<1x16xf32>
    %cst_63 = arith.constant 0.000000e+00 : f32
    %73 = vector.broadcast %cst_63 : f32 to vector<4x16xf32>
    %c0_64 = arith.constant 0 : index
    %c1_65 = arith.constant 1 : index
    %c0_66 = arith.constant 0 : index
    %c0_67 = arith.constant 0 : index
    %74 = vector.load %arg1[%c0_64, %c1_65, %c0_66, %c0_67] : memref<1x4x4x32xbf16, #tpu.memory_space<vmem>>, vector<1x2x2x32xbf16>
    %75 = vector.shape_cast %74 : vector<1x2x2x32xbf16> to vector<2x2x32xbf16>
    %76 = vector.shape_cast %75 : vector<2x2x32xbf16> to vector<4x32xbf16>
    %c8 = arith.constant 8 : index
    %c0_68 = arith.constant 0 : index
    %c0_69 = arith.constant 0 : index
    %77 = vector.load %arg2[%c8, %c0_68, %c0_69] : memref<16x32x16xbf16, #tpu.memory_space<vmem>>, vector<1x32x16xbf16>
    %78 = vector.shape_cast %77 : vector<1x32x16xbf16> to vector<32x16xbf16>
    %cst_70 = arith.constant dense<0.000000e+00> : vector<4x16xf32>
    %79 = tpu.matmul %76, %78, %cst_70 {dimension_numbers = #tpu.dot_dimension_numbers<[1], [0], [0], [1], [0, 0, 1, 1], [], []>} : vector<4x32xbf16>, vector<32x16xbf16>, vector<4x16xf32> -> vector<4x16xf32>
    %80 = arith.addf %73, %79 : vector<4x16xf32>
    %c0_71 = arith.constant 0 : index
    %c1_72 = arith.constant 1 : index
    %c1_73 = arith.constant 1 : index
    %c0_74 = arith.constant 0 : index
    %81 = vector.load %arg1[%c0_71, %c1_72, %c1_73, %c0_74] : memref<1x4x4x32xbf16, #tpu.memory_space<vmem>>, vector<1x2x2x32xbf16>
    %82 = vector.shape_cast %81 : vector<1x2x2x32xbf16> to vector<2x2x32xbf16>
    %83 = vector.shape_cast %82 : vector<2x2x32xbf16> to vector<4x32xbf16>
    %c9 = arith.constant 9 : index
    %c0_75 = arith.constant 0 : index
    %c0_76 = arith.constant 0 : index
    %84 = vector.load %arg2[%c9, %c0_75, %c0_76] : memref<16x32x16xbf16, #tpu.memory_space<vmem>>, vector<1x32x16xbf16>
    %85 = vector.shape_cast %84 : vector<1x32x16xbf16> to vector<32x16xbf16>
    %cst_77 = arith.constant dense<0.000000e+00> : vector<4x16xf32>
    %86 = tpu.matmul %83, %85, %cst_77 {dimension_numbers = #tpu.dot_dimension_numbers<[1], [0], [0], [1], [0, 0, 1, 1], [], []>} : vector<4x32xbf16>, vector<32x16xbf16>, vector<4x16xf32> -> vector<4x16xf32>
    %87 = arith.addf %80, %86 : vector<4x16xf32>
    %c0_78 = arith.constant 0 : index
    %c2_79 = arith.constant 2 : index
    %c0_80 = arith.constant 0 : index
    %c0_81 = arith.constant 0 : index
    %88 = vector.load %arg1[%c0_78, %c2_79, %c0_80, %c0_81] : memref<1x4x4x32xbf16, #tpu.memory_space<vmem>>, vector<1x2x2x32xbf16>
    %89 = vector.shape_cast %88 : vector<1x2x2x32xbf16> to vector<2x2x32xbf16>
    %90 = vector.shape_cast %89 : vector<2x2x32xbf16> to vector<4x32xbf16>
    %c10 = arith.constant 10 : index
    %c0_82 = arith.constant 0 : index
    %c0_83 = arith.constant 0 : index
    %91 = vector.load %arg2[%c10, %c0_82, %c0_83] : memref<16x32x16xbf16, #tpu.memory_space<vmem>>, vector<1x32x16xbf16>
    %92 = vector.shape_cast %91 : vector<1x32x16xbf16> to vector<32x16xbf16>
    %cst_84 = arith.constant dense<0.000000e+00> : vector<4x16xf32>
    %93 = tpu.matmul %90, %92, %cst_84 {dimension_numbers = #tpu.dot_dimension_numbers<[1], [0], [0], [1], [0, 0, 1, 1], [], []>} : vector<4x32xbf16>, vector<32x16xbf16>, vector<4x16xf32> -> vector<4x16xf32>
    %94 = arith.addf %87, %93 : vector<4x16xf32>
    %c0_85 = arith.constant 0 : index
    %c2_86 = arith.constant 2 : index
    %c1_87 = arith.constant 1 : index
    %c0_88 = arith.constant 0 : index
    %95 = vector.load %arg1[%c0_85, %c2_86, %c1_87, %c0_88] : memref<1x4x4x32xbf16, #tpu.memory_space<vmem>>, vector<1x2x2x32xbf16>
    %96 = vector.shape_cast %95 : vector<1x2x2x32xbf16> to vector<2x2x32xbf16>
    %97 = vector.shape_cast %96 : vector<2x2x32xbf16> to vector<4x32xbf16>
    %c11 = arith.constant 11 : index
    %c0_89 = arith.constant 0 : index
    %c0_90 = arith.constant 0 : index
    %98 = vector.load %arg2[%c11, %c0_89, %c0_90] : memref<16x32x16xbf16, #tpu.memory_space<vmem>>, vector<1x32x16xbf16>
    %99 = vector.shape_cast %98 : vector<1x32x16xbf16> to vector<32x16xbf16>
    %cst_91 = arith.constant dense<0.000000e+00> : vector<4x16xf32>
    %100 = tpu.matmul %97, %99, %cst_91 {dimension_numbers = #tpu.dot_dimension_numbers<[1], [0], [0], [1], [0, 0, 1, 1], [], []>} : vector<4x32xbf16>, vector<32x16xbf16>, vector<4x16xf32> -> vector<4x16xf32>
    %101 = arith.addf %94, %100 : vector<4x16xf32>
    %102 = vector.broadcast %0 : vector<1x16xf32> to vector<4x16xf32>
    %103 = arith.addf %101, %102 : vector<4x16xf32>
    %cst_92 = arith.constant dense<0.000000e+00> : vector<16xf32>
    %104 = vector.multi_reduction <add>, %103, %cst_92 [0] : vector<4x16xf32> to vector<16xf32>
    %105 = vector.shape_cast %104 : vector<16xf32> to vector<1x16xf32>
    %106 = arith.mulf %103, %103 : vector<4x16xf32>
    %cst_93 = arith.constant dense<0.000000e+00> : vector<16xf32>
    %107 = vector.multi_reduction <add>, %106, %cst_93 [0] : vector<4x16xf32> to vector<16xf32>
    %108 = vector.shape_cast %107 : vector<16xf32> to vector<1x16xf32>
    %cst_94 = arith.constant 0.000000e+00 : f32
    %109 = vector.broadcast %cst_94 : f32 to vector<4x16xf32>
    %c0_95 = arith.constant 0 : index
    %c1_96 = arith.constant 1 : index
    %c1_97 = arith.constant 1 : index
    %c0_98 = arith.constant 0 : index
    %110 = vector.load %arg1[%c0_95, %c1_96, %c1_97, %c0_98] : memref<1x4x4x32xbf16, #tpu.memory_space<vmem>>, vector<1x2x2x32xbf16>
    %111 = vector.shape_cast %110 : vector<1x2x2x32xbf16> to vector<2x2x32xbf16>
    %112 = vector.shape_cast %111 : vector<2x2x32xbf16> to vector<4x32xbf16>
    %c12 = arith.constant 12 : index
    %c0_99 = arith.constant 0 : index
    %c0_100 = arith.constant 0 : index
    %113 = vector.load %arg2[%c12, %c0_99, %c0_100] : memref<16x32x16xbf16, #tpu.memory_space<vmem>>, vector<1x32x16xbf16>
    %114 = vector.shape_cast %113 : vector<1x32x16xbf16> to vector<32x16xbf16>
    %cst_101 = arith.constant dense<0.000000e+00> : vector<4x16xf32>
    %115 = tpu.matmul %112, %114, %cst_101 {dimension_numbers = #tpu.dot_dimension_numbers<[1], [0], [0], [1], [0, 0, 1, 1], [], []>} : vector<4x32xbf16>, vector<32x16xbf16>, vector<4x16xf32> -> vector<4x16xf32>
    %116 = arith.addf %109, %115 : vector<4x16xf32>
    %c0_102 = arith.constant 0 : index
    %c1_103 = arith.constant 1 : index
    %c2_104 = arith.constant 2 : index
    %c0_105 = arith.constant 0 : index
    %117 = vector.load %arg1[%c0_102, %c1_103, %c2_104, %c0_105] : memref<1x4x4x32xbf16, #tpu.memory_space<vmem>>, vector<1x2x2x32xbf16>
    %118 = vector.shape_cast %117 : vector<1x2x2x32xbf16> to vector<2x2x32xbf16>
    %119 = vector.shape_cast %118 : vector<2x2x32xbf16> to vector<4x32xbf16>
    %c13 = arith.constant 13 : index
    %c0_106 = arith.constant 0 : index
    %c0_107 = arith.constant 0 : index
    %120 = vector.load %arg2[%c13, %c0_106, %c0_107] : memref<16x32x16xbf16, #tpu.memory_space<vmem>>, vector<1x32x16xbf16>
    %121 = vector.shape_cast %120 : vector<1x32x16xbf16> to vector<32x16xbf16>
    %cst_108 = arith.constant dense<0.000000e+00> : vector<4x16xf32>
    %122 = tpu.matmul %119, %121, %cst_108 {dimension_numbers = #tpu.dot_dimension_numbers<[1], [0], [0], [1], [0, 0, 1, 1], [], []>} : vector<4x32xbf16>, vector<32x16xbf16>, vector<4x16xf32> -> vector<4x16xf32>
    %123 = arith.addf %116, %122 : vector<4x16xf32>
    %c0_109 = arith.constant 0 : index
    %c2_110 = arith.constant 2 : index
    %c1_111 = arith.constant 1 : index
    %c0_112 = arith.constant 0 : index
    %124 = vector.load %arg1[%c0_109, %c2_110, %c1_111, %c0_112] : memref<1x4x4x32xbf16, #tpu.memory_space<vmem>>, vector<1x2x2x32xbf16>
    %125 = vector.shape_cast %124 : vector<1x2x2x32xbf16> to vector<2x2x32xbf16>
    %126 = vector.shape_cast %125 : vector<2x2x32xbf16> to vector<4x32xbf16>
    %c14 = arith.constant 14 : index
    %c0_113 = arith.constant 0 : index
    %c0_114 = arith.constant 0 : index
    %127 = vector.load %arg2[%c14, %c0_113, %c0_114] : memref<16x32x16xbf16, #tpu.memory_space<vmem>>, vector<1x32x16xbf16>
    %128 = vector.shape_cast %127 : vector<1x32x16xbf16> to vector<32x16xbf16>
    %cst_115 = arith.constant dense<0.000000e+00> : vector<4x16xf32>
    %129 = tpu.matmul %126, %128, %cst_115 {dimension_numbers = #tpu.dot_dimension_numbers<[1], [0], [0], [1], [0, 0, 1, 1], [], []>} : vector<4x32xbf16>, vector<32x16xbf16>, vector<4x16xf32> -> vector<4x16xf32>
    %130 = arith.addf %123, %129 : vector<4x16xf32>
    %c0_116 = arith.constant 0 : index
    %c2_117 = arith.constant 2 : index
    %c2_118 = arith.constant 2 : index
    %c0_119 = arith.constant 0 : index
    %131 = vector.load %arg1[%c0_116, %c2_117, %c2_118, %c0_119] : memref<1x4x4x32xbf16, #tpu.memory_space<vmem>>, vector<1x2x2x32xbf16>
    %132 = vector.shape_cast %131 : vector<1x2x2x32xbf16> to vector<2x2x32xbf16>
    %133 = vector.shape_cast %132 : vector<2x2x32xbf16> to vector<4x32xbf16>
    %c15 = arith.constant 15 : index
    %c0_120 = arith.constant 0 : index
    %c0_121 = arith.constant 0 : index
    %134 = vector.load %arg2[%c15, %c0_120, %c0_121] : memref<16x32x16xbf16, #tpu.memory_space<vmem>>, vector<1x32x16xbf16>
    %135 = vector.shape_cast %134 : vector<1x32x16xbf16> to vector<32x16xbf16>
    %cst_122 = arith.constant dense<0.000000e+00> : vector<4x16xf32>
    %136 = tpu.matmul %133, %135, %cst_122 {dimension_numbers = #tpu.dot_dimension_numbers<[1], [0], [0], [1], [0, 0, 1, 1], [], []>} : vector<4x32xbf16>, vector<32x16xbf16>, vector<4x16xf32> -> vector<4x16xf32>
    %137 = arith.addf %130, %136 : vector<4x16xf32>
    %138 = vector.broadcast %0 : vector<1x16xf32> to vector<4x16xf32>
    %139 = arith.addf %137, %138 : vector<4x16xf32>
    %cst_123 = arith.constant dense<0.000000e+00> : vector<16xf32>
    %140 = vector.multi_reduction <add>, %139, %cst_123 [0] : vector<4x16xf32> to vector<16xf32>
    %141 = vector.shape_cast %140 : vector<16xf32> to vector<1x16xf32>
    %142 = arith.mulf %139, %139 : vector<4x16xf32>
    %cst_124 = arith.constant dense<0.000000e+00> : vector<16xf32>
    %143 = vector.multi_reduction <add>, %142, %cst_124 [0] : vector<4x16xf32> to vector<16xf32>
    %144 = vector.shape_cast %143 : vector<16xf32> to vector<1x16xf32>
    %145 = tpu.concatenate %31, %67, %103, %139 in 1 : vector<4x16xf32>, vector<4x16xf32>, vector<4x16xf32>, vector<4x16xf32> -> vector<4x64xf32>
    %146 = vector.shape_cast %145 : vector<4x64xf32> to vector<1x2x2x64xf32>
    %147 = arith.truncf %146 : vector<1x2x2x64xf32> to vector<1x2x2x64xbf16>
    %c0_125 = arith.constant 0 : index
    %c0_126 = arith.constant 0 : index
    %c0_127 = arith.constant 0 : index
    %c0_128 = arith.constant 0 : index
    %148 = vector.load %arg4[%c0_125, %c0_126, %c0_127, %c0_128] : memref<1x2x2x64xbf16, #tpu.memory_space<vmem>>, vector<1x2x2x64xbf16>
    tpu.vector_store %arg4[%c0_125, %c0_126, %c0_127, %c0_128], %147 {strides = array<i32>} : memref<1x2x2x64xbf16, #tpu.memory_space<vmem>>, vector<1x2x2x64xbf16>,
    %149 = tpu.concatenate %33, %69, %105, %141 in 1 : vector<1x16xf32>, vector<1x16xf32>, vector<1x16xf32>, vector<1x16xf32> -> vector<1x64xf32>
    %150 = vector.shape_cast %149 : vector<1x64xf32> to vector<1x1x64xf32>
    %c0_129 = arith.constant 0 : index
    %c0_130 = arith.constant 0 : index
    %c0_131 = arith.constant 0 : index
    %151 = vector.load %arg5[%c0_129, %c0_130, %c0_131] : memref<1x1x64xf32, #tpu.memory_space<vmem>>, vector<1x1x64xf32>
    tpu.vector_store %arg5[%c0_129, %c0_130, %c0_131], %150 {strides = array<i32>} : memref<1x1x64xf32, #tpu.memory_space<vmem>>, vector<1x1x64xf32>,
    %152 = tpu.concatenate %36, %72, %108, %144 in 1 : vector<1x16xf32>, vector<1x16xf32>, vector<1x16xf32>, vector<1x16xf32> -> vector<1x64xf32>
    %153 = vector.shape_cast %152 : vector<1x64xf32> to vector<1x1x64xf32>
    %c0_132 = arith.constant 0 : index
    %c0_133 = arith.constant 0 : index
    %c0_134 = arith.constant 0 : index
    %154 = vector.load %arg6[%c0_132, %c0_133, %c0_134] : memref<1x1x64xf32, #tpu.memory_space<vmem>>, vector<1x1x64xf32>
    tpu.vector_store %arg6[%c0_132, %c0_133, %c0_134], %153 {strides = array<i32>} : memref<1x1x64xf32, #tpu.memory_space<vmem>>, vector<1x1x64xf32>,
    return
  }
  func.func @transform_0(%arg0: i32) -> (i32, i32, i32, i32) {
    %c0_i32 = arith.constant 0 : i32
    %c0_i32_0 = arith.constant 0 : i32
    %c0_i32_1 = arith.constant 0 : i32
    %c0_i32_2 = arith.constant 0 : i32
    return %arg0, %c0_i32, %c0_i32_0, %c0_i32_1 : i32, i32, i32, i32
  }
  func.func @transform_1(%arg0: i32) -> (i32, i32, i32) {
    %c0_i32 = arith.constant 0 : i32
    %c0_i32_0 = arith.constant 0 : i32
    %c0_i32_1 = arith.constant 0 : i32
    %c0_i32_2 = arith.constant 0 : i32
    return %c0_i32, %c0_i32_0, %c0_i32_1 : i32, i32, i32
  }
  func.func @transform_2(%arg0: i32) -> (i32, i32) {
    %c0_i32 = arith.constant 0 : i32
    %c0_i32_0 = arith.constant 0 : i32
    %c0_i32_1 = arith.constant 0 : i32
    return %c0_i32, %c0_i32_0 : i32, i32
  }
  func.func @transform_3(%arg0: i32) -> (i32, i32, i32, i32) {
    %c0_i32 = arith.constant 0 : i32
    %c0_i32_0 = arith.constant 0 : i32
    %c0_i32_1 = arith.constant 0 : i32
    %c0_i32_2 = arith.constant 0 : i32
    return %arg0, %c0_i32, %c0_i32_0, %c0_i32_1 : i32, i32, i32, i32
  }
  func.func @transform_4(%arg0: i32) -> (i32, i32, i32) {
    %c0_i32 = arith.constant 0 : i32
    %c0_i32_0 = arith.constant 0 : i32
    %c0_i32_1 = arith.constant 0 : i32
    return %arg0, %c0_i32, %c0_i32_0 : i32, i32, i32
  }
  func.func @transform_5(%arg0: i32) -> (i32, i32, i32) {
    %c0_i32 = arith.constant 0 : i32
    %c0_i32_0 = arith.constant 0 : i32
    %c0_i32_1 = arith.constant 0 : i32
    return %arg0, %c0_i32, %c0_i32_0 : i32, i32, i32
  }
}

module attributes {stable_mosaic.version = 11 : i64} {
  func.func @_bn_apply_lrelu_kernel(%arg0: i32, %arg1: memref<8x64xbf16, #tpu.memory_space<vmem>>, %arg2: memref<1x64xf32, #tpu.memory_space<vmem>>, %arg3: memref<1x64xf32, #tpu.memory_space<vmem>>, %arg4: memref<8x64xbf16, #tpu.memory_space<vmem>>) attributes {dimension_semantics = [#tpu.dimension_semantics<parallel>], iteration_bounds = array<i64: 1>, scalar_prefetch = 0 : i64, scratch_operands = 0 : i64, tpu.core_type = #tpu.core_type<tc>, window_params = [{transform_indices = @transform_0, window_bounds = array<i64: 8, 64>}, {pipeline_mode = #tpu.pipeline_mode<synchronous>, transform_indices = @transform_1, window_bounds = array<i64: 1, 64>}, {pipeline_mode = #tpu.pipeline_mode<synchronous>, transform_indices = @transform_2, window_bounds = array<i64: 1, 64>}, {transform_indices = @transform_3, window_bounds = array<i64: 8, 64>}]} {
    %c0 = arith.constant 0 : index
    %c0_0 = arith.constant 0 : index
    %0 = vector.load %arg1[%c0, %c0_0] : memref<8x64xbf16, #tpu.memory_space<vmem>>, vector<8x64xbf16>
    %1 = arith.extf %0 : vector<8x64xbf16> to vector<8x64xf32>
    %c0_1 = arith.constant 0 : index
    %c0_2 = arith.constant 0 : index
    %2 = vector.load %arg2[%c0_1, %c0_2] : memref<1x64xf32, #tpu.memory_space<vmem>>, vector<1x64xf32>
    %3 = vector.broadcast %2 : vector<1x64xf32> to vector<8x64xf32>
    %4 = arith.mulf %1, %3 : vector<8x64xf32>
    %c0_3 = arith.constant 0 : index
    %c0_4 = arith.constant 0 : index
    %5 = vector.load %arg3[%c0_3, %c0_4] : memref<1x64xf32, #tpu.memory_space<vmem>>, vector<1x64xf32>
    %6 = vector.broadcast %5 : vector<1x64xf32> to vector<8x64xf32>
    %7 = arith.addf %4, %6 : vector<8x64xf32>
    %cst = arith.constant 0.000000e+00 : f32
    %8 = vector.broadcast %cst : f32 to vector<8x64xf32>
    %9 = arith.cmpf oge, %7, %8 : vector<8x64xf32>
    %cst_5 = arith.constant 5.000000e-02 : f32
    %10 = vector.broadcast %cst_5 : f32 to vector<8x64xf32>
    %11 = arith.mulf %10, %7 : vector<8x64xf32>
    %12 = arith.select %9, %7, %11 : vector<8x64xi1>, vector<8x64xf32>
    %13 = arith.truncf %12 : vector<8x64xf32> to vector<8x64xbf16>
    %c0_6 = arith.constant 0 : index
    %c0_7 = arith.constant 0 : index
    %14 = vector.load %arg4[%c0_6, %c0_7] : memref<8x64xbf16, #tpu.memory_space<vmem>>, vector<8x64xbf16>
    tpu.vector_store %arg4[%c0_6, %c0_7], %13 {strides = array<i32>} : memref<8x64xbf16, #tpu.memory_space<vmem>>, vector<8x64xbf16>,
    return
  }
  func.func @transform_0(%arg0: i32) -> (i32, i32) {
    %c0_i32 = arith.constant 0 : i32
    %c0_i32_0 = arith.constant 0 : i32
    return %arg0, %c0_i32 : i32, i32
  }
  func.func @transform_1(%arg0: i32) -> (i32, i32) {
    %c0_i32 = arith.constant 0 : i32
    %c0_i32_0 = arith.constant 0 : i32
    %c0_i32_1 = arith.constant 0 : i32
    return %c0_i32, %c0_i32_0 : i32, i32
  }
  func.func @transform_2(%arg0: i32) -> (i32, i32) {
    %c0_i32 = arith.constant 0 : i32
    %c0_i32_0 = arith.constant 0 : i32
    %c0_i32_1 = arith.constant 0 : i32
    return %c0_i32, %c0_i32_0 : i32, i32
  }
  func.func @transform_3(%arg0: i32) -> (i32, i32) {
    %c0_i32 = arith.constant 0 : i32
    %c0_i32_0 = arith.constant 0 : i32
    return %arg0, %c0_i32 : i32, i32
  }
}

module attributes {stable_mosaic.version = 11 : i64} {
  func.func @_deconv_s2_kernel(%arg0: i32, %arg1: memref<1x6x6x16xbf16, #tpu.memory_space<vmem>>, %arg2: memref<16x16x8xbf16, #tpu.memory_space<vmem>>, %arg3: memref<1x8xf32, #tpu.memory_space<vmem>>, %arg4: memref<1x4x4x32xbf16, #tpu.memory_space<vmem>>, %arg5: memref<1x1x32xf32, #tpu.memory_space<vmem>>, %arg6: memref<1x1x32xf32, #tpu.memory_space<vmem>>) attributes {dimension_semantics = [#tpu.dimension_semantics<parallel>], iteration_bounds = array<i64: 2>, scalar_prefetch = 0 : i64, scratch_operands = 0 : i64, tpu.core_type = #tpu.core_type<tc>, window_params = [{transform_indices = @transform_0, window_bounds = array<i64: 1, 6, 6, 16>}, {pipeline_mode = #tpu.pipeline_mode<synchronous>, transform_indices = @transform_1, window_bounds = array<i64: 16, 16, 8>}, {pipeline_mode = #tpu.pipeline_mode<synchronous>, transform_indices = @transform_2, window_bounds = array<i64: 1, 8>}, {transform_indices = @transform_3, window_bounds = array<i64: 1, 4, 4, 32>}, {transform_indices = @transform_4, window_bounds = array<i64: 1, 1, 32>}, {transform_indices = @transform_5, window_bounds = array<i64: 1, 1, 32>}]} {
    %c0 = arith.constant 0 : index
    %c0_0 = arith.constant 0 : index
    %0 = vector.load %arg3[%c0, %c0_0] : memref<1x8xf32, #tpu.memory_space<vmem>>, vector<1x8xf32>
    %cst = arith.constant 0.000000e+00 : f32
    %1 = vector.broadcast %cst : f32 to vector<16x8xf32>
    %c0_1 = arith.constant 0 : index
    %c0_2 = arith.constant 0 : index
    %c0_3 = arith.constant 0 : index
    %c0_4 = arith.constant 0 : index
    %2 = vector.load %arg1[%c0_1, %c0_2, %c0_3, %c0_4] : memref<1x6x6x16xbf16, #tpu.memory_space<vmem>>, vector<1x4x4x16xbf16>
    %3 = vector.shape_cast %2 : vector<1x4x4x16xbf16> to vector<4x4x16xbf16>
    %4 = vector.shape_cast %3 : vector<4x4x16xbf16> to vector<16x16xbf16>
    %c0_5 = arith.constant 0 : index
    %c0_6 = arith.constant 0 : index
    %c0_7 = arith.constant 0 : index
    %5 = vector.load %arg2[%c0_5, %c0_6, %c0_7] : memref<16x16x8xbf16, #tpu.memory_space<vmem>>, vector<1x16x8xbf16>
    %6 = vector.shape_cast %5 : vector<1x16x8xbf16> to vector<16x8xbf16>
    %cst_8 = arith.constant dense<0.000000e+00> : vector<16x8xf32>
    %7 = tpu.matmul %4, %6, %cst_8 {dimension_numbers = #tpu.dot_dimension_numbers<[1], [0], [0], [1], [0, 0, 1, 1], [], []>} : vector<16x16xbf16>, vector<16x8xbf16>, vector<16x8xf32> -> vector<16x8xf32>
    %8 = arith.addf %1, %7 : vector<16x8xf32>
    %c0_9 = arith.constant 0 : index
    %c0_10 = arith.constant 0 : index
    %c1 = arith.constant 1 : index
    %c0_11 = arith.constant 0 : index
    %9 = vector.load %arg1[%c0_9, %c0_10, %c1, %c0_11] : memref<1x6x6x16xbf16, #tpu.memory_space<vmem>>, vector<1x4x4x16xbf16>
    %10 = vector.shape_cast %9 : vector<1x4x4x16xbf16> to vector<4x4x16xbf16>
    %11 = vector.shape_cast %10 : vector<4x4x16xbf16> to vector<16x16xbf16>
    %c1_12 = arith.constant 1 : index
    %c0_13 = arith.constant 0 : index
    %c0_14 = arith.constant 0 : index
    %12 = vector.load %arg2[%c1_12, %c0_13, %c0_14] : memref<16x16x8xbf16, #tpu.memory_space<vmem>>, vector<1x16x8xbf16>
    %13 = vector.shape_cast %12 : vector<1x16x8xbf16> to vector<16x8xbf16>
    %cst_15 = arith.constant dense<0.000000e+00> : vector<16x8xf32>
    %14 = tpu.matmul %11, %13, %cst_15 {dimension_numbers = #tpu.dot_dimension_numbers<[1], [0], [0], [1], [0, 0, 1, 1], [], []>} : vector<16x16xbf16>, vector<16x8xbf16>, vector<16x8xf32> -> vector<16x8xf32>
    %15 = arith.addf %8, %14 : vector<16x8xf32>
    %c0_16 = arith.constant 0 : index
    %c1_17 = arith.constant 1 : index
    %c0_18 = arith.constant 0 : index
    %c0_19 = arith.constant 0 : index
    %16 = vector.load %arg1[%c0_16, %c1_17, %c0_18, %c0_19] : memref<1x6x6x16xbf16, #tpu.memory_space<vmem>>, vector<1x4x4x16xbf16>
    %17 = vector.shape_cast %16 : vector<1x4x4x16xbf16> to vector<4x4x16xbf16>
    %18 = vector.shape_cast %17 : vector<4x4x16xbf16> to vector<16x16xbf16>
    %c2 = arith.constant 2 : index
    %c0_20 = arith.constant 0 : index
    %c0_21 = arith.constant 0 : index
    %19 = vector.load %arg2[%c2, %c0_20, %c0_21] : memref<16x16x8xbf16, #tpu.memory_space<vmem>>, vector<1x16x8xbf16>
    %20 = vector.shape_cast %19 : vector<1x16x8xbf16> to vector<16x8xbf16>
    %cst_22 = arith.constant dense<0.000000e+00> : vector<16x8xf32>
    %21 = tpu.matmul %18, %20, %cst_22 {dimension_numbers = #tpu.dot_dimension_numbers<[1], [0], [0], [1], [0, 0, 1, 1], [], []>} : vector<16x16xbf16>, vector<16x8xbf16>, vector<16x8xf32> -> vector<16x8xf32>
    %22 = arith.addf %15, %21 : vector<16x8xf32>
    %c0_23 = arith.constant 0 : index
    %c1_24 = arith.constant 1 : index
    %c1_25 = arith.constant 1 : index
    %c0_26 = arith.constant 0 : index
    %23 = vector.load %arg1[%c0_23, %c1_24, %c1_25, %c0_26] : memref<1x6x6x16xbf16, #tpu.memory_space<vmem>>, vector<1x4x4x16xbf16>
    %24 = vector.shape_cast %23 : vector<1x4x4x16xbf16> to vector<4x4x16xbf16>
    %25 = vector.shape_cast %24 : vector<4x4x16xbf16> to vector<16x16xbf16>
    %c3 = arith.constant 3 : index
    %c0_27 = arith.constant 0 : index
    %c0_28 = arith.constant 0 : index
    %26 = vector.load %arg2[%c3, %c0_27, %c0_28] : memref<16x16x8xbf16, #tpu.memory_space<vmem>>, vector<1x16x8xbf16>
    %27 = vector.shape_cast %26 : vector<1x16x8xbf16> to vector<16x8xbf16>
    %cst_29 = arith.constant dense<0.000000e+00> : vector<16x8xf32>
    %28 = tpu.matmul %25, %27, %cst_29 {dimension_numbers = #tpu.dot_dimension_numbers<[1], [0], [0], [1], [0, 0, 1, 1], [], []>} : vector<16x16xbf16>, vector<16x8xbf16>, vector<16x8xf32> -> vector<16x8xf32>
    %29 = arith.addf %22, %28 : vector<16x8xf32>
    %30 = vector.broadcast %0 : vector<1x8xf32> to vector<16x8xf32>
    %31 = arith.addf %29, %30 : vector<16x8xf32>
    %cst_30 = arith.constant dense<0.000000e+00> : vector<8xf32>
    %32 = vector.multi_reduction <add>, %31, %cst_30 [0] : vector<16x8xf32> to vector<8xf32>
    %33 = vector.shape_cast %32 : vector<8xf32> to vector<1x8xf32>
    %34 = arith.mulf %31, %31 : vector<16x8xf32>
    %cst_31 = arith.constant dense<0.000000e+00> : vector<8xf32>
    %35 = vector.multi_reduction <add>, %34, %cst_31 [0] : vector<16x8xf32> to vector<8xf32>
    %36 = vector.shape_cast %35 : vector<8xf32> to vector<1x8xf32>
    %cst_32 = arith.constant 0.000000e+00 : f32
    %37 = vector.broadcast %cst_32 : f32 to vector<16x8xf32>
    %c0_33 = arith.constant 0 : index
    %c0_34 = arith.constant 0 : index
    %c1_35 = arith.constant 1 : index
    %c0_36 = arith.constant 0 : index
    %38 = vector.load %arg1[%c0_33, %c0_34, %c1_35, %c0_36] : memref<1x6x6x16xbf16, #tpu.memory_space<vmem>>, vector<1x4x4x16xbf16>
    %39 = vector.shape_cast %38 : vector<1x4x4x16xbf16> to vector<4x4x16xbf16>
    %40 = vector.shape_cast %39 : vector<4x4x16xbf16> to vector<16x16xbf16>
    %c4 = arith.constant 4 : index
    %c0_37 = arith.constant 0 : index
    %c0_38 = arith.constant 0 : index
    %41 = vector.load %arg2[%c4, %c0_37, %c0_38] : memref<16x16x8xbf16, #tpu.memory_space<vmem>>, vector<1x16x8xbf16>
    %42 = vector.shape_cast %41 : vector<1x16x8xbf16> to vector<16x8xbf16>
    %cst_39 = arith.constant dense<0.000000e+00> : vector<16x8xf32>
    %43 = tpu.matmul %40, %42, %cst_39 {dimension_numbers = #tpu.dot_dimension_numbers<[1], [0], [0], [1], [0, 0, 1, 1], [], []>} : vector<16x16xbf16>, vector<16x8xbf16>, vector<16x8xf32> -> vector<16x8xf32>
    %44 = arith.addf %37, %43 : vector<16x8xf32>
    %c0_40 = arith.constant 0 : index
    %c0_41 = arith.constant 0 : index
    %c2_42 = arith.constant 2 : index
    %c0_43 = arith.constant 0 : index
    %45 = vector.load %arg1[%c0_40, %c0_41, %c2_42, %c0_43] : memref<1x6x6x16xbf16, #tpu.memory_space<vmem>>, vector<1x4x4x16xbf16>
    %46 = vector.shape_cast %45 : vector<1x4x4x16xbf16> to vector<4x4x16xbf16>
    %47 = vector.shape_cast %46 : vector<4x4x16xbf16> to vector<16x16xbf16>
    %c5 = arith.constant 5 : index
    %c0_44 = arith.constant 0 : index
    %c0_45 = arith.constant 0 : index
    %48 = vector.load %arg2[%c5, %c0_44, %c0_45] : memref<16x16x8xbf16, #tpu.memory_space<vmem>>, vector<1x16x8xbf16>
    %49 = vector.shape_cast %48 : vector<1x16x8xbf16> to vector<16x8xbf16>
    %cst_46 = arith.constant dense<0.000000e+00> : vector<16x8xf32>
    %50 = tpu.matmul %47, %49, %cst_46 {dimension_numbers = #tpu.dot_dimension_numbers<[1], [0], [0], [1], [0, 0, 1, 1], [], []>} : vector<16x16xbf16>, vector<16x8xbf16>, vector<16x8xf32> -> vector<16x8xf32>
    %51 = arith.addf %44, %50 : vector<16x8xf32>
    %c0_47 = arith.constant 0 : index
    %c1_48 = arith.constant 1 : index
    %c1_49 = arith.constant 1 : index
    %c0_50 = arith.constant 0 : index
    %52 = vector.load %arg1[%c0_47, %c1_48, %c1_49, %c0_50] : memref<1x6x6x16xbf16, #tpu.memory_space<vmem>>, vector<1x4x4x16xbf16>
    %53 = vector.shape_cast %52 : vector<1x4x4x16xbf16> to vector<4x4x16xbf16>
    %54 = vector.shape_cast %53 : vector<4x4x16xbf16> to vector<16x16xbf16>
    %c6 = arith.constant 6 : index
    %c0_51 = arith.constant 0 : index
    %c0_52 = arith.constant 0 : index
    %55 = vector.load %arg2[%c6, %c0_51, %c0_52] : memref<16x16x8xbf16, #tpu.memory_space<vmem>>, vector<1x16x8xbf16>
    %56 = vector.shape_cast %55 : vector<1x16x8xbf16> to vector<16x8xbf16>
    %cst_53 = arith.constant dense<0.000000e+00> : vector<16x8xf32>
    %57 = tpu.matmul %54, %56, %cst_53 {dimension_numbers = #tpu.dot_dimension_numbers<[1], [0], [0], [1], [0, 0, 1, 1], [], []>} : vector<16x16xbf16>, vector<16x8xbf16>, vector<16x8xf32> -> vector<16x8xf32>
    %58 = arith.addf %51, %57 : vector<16x8xf32>
    %c0_54 = arith.constant 0 : index
    %c1_55 = arith.constant 1 : index
    %c2_56 = arith.constant 2 : index
    %c0_57 = arith.constant 0 : index
    %59 = vector.load %arg1[%c0_54, %c1_55, %c2_56, %c0_57] : memref<1x6x6x16xbf16, #tpu.memory_space<vmem>>, vector<1x4x4x16xbf16>
    %60 = vector.shape_cast %59 : vector<1x4x4x16xbf16> to vector<4x4x16xbf16>
    %61 = vector.shape_cast %60 : vector<4x4x16xbf16> to vector<16x16xbf16>
    %c7 = arith.constant 7 : index
    %c0_58 = arith.constant 0 : index
    %c0_59 = arith.constant 0 : index
    %62 = vector.load %arg2[%c7, %c0_58, %c0_59] : memref<16x16x8xbf16, #tpu.memory_space<vmem>>, vector<1x16x8xbf16>
    %63 = vector.shape_cast %62 : vector<1x16x8xbf16> to vector<16x8xbf16>
    %cst_60 = arith.constant dense<0.000000e+00> : vector<16x8xf32>
    %64 = tpu.matmul %61, %63, %cst_60 {dimension_numbers = #tpu.dot_dimension_numbers<[1], [0], [0], [1], [0, 0, 1, 1], [], []>} : vector<16x16xbf16>, vector<16x8xbf16>, vector<16x8xf32> -> vector<16x8xf32>
    %65 = arith.addf %58, %64 : vector<16x8xf32>
    %66 = vector.broadcast %0 : vector<1x8xf32> to vector<16x8xf32>
    %67 = arith.addf %65, %66 : vector<16x8xf32>
    %cst_61 = arith.constant dense<0.000000e+00> : vector<8xf32>
    %68 = vector.multi_reduction <add>, %67, %cst_61 [0] : vector<16x8xf32> to vector<8xf32>
    %69 = vector.shape_cast %68 : vector<8xf32> to vector<1x8xf32>
    %70 = arith.mulf %67, %67 : vector<16x8xf32>
    %cst_62 = arith.constant dense<0.000000e+00> : vector<8xf32>
    %71 = vector.multi_reduction <add>, %70, %cst_62 [0] : vector<16x8xf32> to vector<8xf32>
    %72 = vector.shape_cast %71 : vector<8xf32> to vector<1x8xf32>
    %cst_63 = arith.constant 0.000000e+00 : f32
    %73 = vector.broadcast %cst_63 : f32 to vector<16x8xf32>
    %c0_64 = arith.constant 0 : index
    %c1_65 = arith.constant 1 : index
    %c0_66 = arith.constant 0 : index
    %c0_67 = arith.constant 0 : index
    %74 = vector.load %arg1[%c0_64, %c1_65, %c0_66, %c0_67] : memref<1x6x6x16xbf16, #tpu.memory_space<vmem>>, vector<1x4x4x16xbf16>
    %75 = vector.shape_cast %74 : vector<1x4x4x16xbf16> to vector<4x4x16xbf16>
    %76 = vector.shape_cast %75 : vector<4x4x16xbf16> to vector<16x16xbf16>
    %c8 = arith.constant 8 : index
    %c0_68 = arith.constant 0 : index
    %c0_69 = arith.constant 0 : index
    %77 = vector.load %arg2[%c8, %c0_68, %c0_69] : memref<16x16x8xbf16, #tpu.memory_space<vmem>>, vector<1x16x8xbf16>
    %78 = vector.shape_cast %77 : vector<1x16x8xbf16> to vector<16x8xbf16>
    %cst_70 = arith.constant dense<0.000000e+00> : vector<16x8xf32>
    %79 = tpu.matmul %76, %78, %cst_70 {dimension_numbers = #tpu.dot_dimension_numbers<[1], [0], [0], [1], [0, 0, 1, 1], [], []>} : vector<16x16xbf16>, vector<16x8xbf16>, vector<16x8xf32> -> vector<16x8xf32>
    %80 = arith.addf %73, %79 : vector<16x8xf32>
    %c0_71 = arith.constant 0 : index
    %c1_72 = arith.constant 1 : index
    %c1_73 = arith.constant 1 : index
    %c0_74 = arith.constant 0 : index
    %81 = vector.load %arg1[%c0_71, %c1_72, %c1_73, %c0_74] : memref<1x6x6x16xbf16, #tpu.memory_space<vmem>>, vector<1x4x4x16xbf16>
    %82 = vector.shape_cast %81 : vector<1x4x4x16xbf16> to vector<4x4x16xbf16>
    %83 = vector.shape_cast %82 : vector<4x4x16xbf16> to vector<16x16xbf16>
    %c9 = arith.constant 9 : index
    %c0_75 = arith.constant 0 : index
    %c0_76 = arith.constant 0 : index
    %84 = vector.load %arg2[%c9, %c0_75, %c0_76] : memref<16x16x8xbf16, #tpu.memory_space<vmem>>, vector<1x16x8xbf16>
    %85 = vector.shape_cast %84 : vector<1x16x8xbf16> to vector<16x8xbf16>
    %cst_77 = arith.constant dense<0.000000e+00> : vector<16x8xf32>
    %86 = tpu.matmul %83, %85, %cst_77 {dimension_numbers = #tpu.dot_dimension_numbers<[1], [0], [0], [1], [0, 0, 1, 1], [], []>} : vector<16x16xbf16>, vector<16x8xbf16>, vector<16x8xf32> -> vector<16x8xf32>
    %87 = arith.addf %80, %86 : vector<16x8xf32>
    %c0_78 = arith.constant 0 : index
    %c2_79 = arith.constant 2 : index
    %c0_80 = arith.constant 0 : index
    %c0_81 = arith.constant 0 : index
    %88 = vector.load %arg1[%c0_78, %c2_79, %c0_80, %c0_81] : memref<1x6x6x16xbf16, #tpu.memory_space<vmem>>, vector<1x4x4x16xbf16>
    %89 = vector.shape_cast %88 : vector<1x4x4x16xbf16> to vector<4x4x16xbf16>
    %90 = vector.shape_cast %89 : vector<4x4x16xbf16> to vector<16x16xbf16>
    %c10 = arith.constant 10 : index
    %c0_82 = arith.constant 0 : index
    %c0_83 = arith.constant 0 : index
    %91 = vector.load %arg2[%c10, %c0_82, %c0_83] : memref<16x16x8xbf16, #tpu.memory_space<vmem>>, vector<1x16x8xbf16>
    %92 = vector.shape_cast %91 : vector<1x16x8xbf16> to vector<16x8xbf16>
    %cst_84 = arith.constant dense<0.000000e+00> : vector<16x8xf32>
    %93 = tpu.matmul %90, %92, %cst_84 {dimension_numbers = #tpu.dot_dimension_numbers<[1], [0], [0], [1], [0, 0, 1, 1], [], []>} : vector<16x16xbf16>, vector<16x8xbf16>, vector<16x8xf32> -> vector<16x8xf32>
    %94 = arith.addf %87, %93 : vector<16x8xf32>
    %c0_85 = arith.constant 0 : index
    %c2_86 = arith.constant 2 : index
    %c1_87 = arith.constant 1 : index
    %c0_88 = arith.constant 0 : index
    %95 = vector.load %arg1[%c0_85, %c2_86, %c1_87, %c0_88] : memref<1x6x6x16xbf16, #tpu.memory_space<vmem>>, vector<1x4x4x16xbf16>
    %96 = vector.shape_cast %95 : vector<1x4x4x16xbf16> to vector<4x4x16xbf16>
    %97 = vector.shape_cast %96 : vector<4x4x16xbf16> to vector<16x16xbf16>
    %c11 = arith.constant 11 : index
    %c0_89 = arith.constant 0 : index
    %c0_90 = arith.constant 0 : index
    %98 = vector.load %arg2[%c11, %c0_89, %c0_90] : memref<16x16x8xbf16, #tpu.memory_space<vmem>>, vector<1x16x8xbf16>
    %99 = vector.shape_cast %98 : vector<1x16x8xbf16> to vector<16x8xbf16>
    %cst_91 = arith.constant dense<0.000000e+00> : vector<16x8xf32>
    %100 = tpu.matmul %97, %99, %cst_91 {dimension_numbers = #tpu.dot_dimension_numbers<[1], [0], [0], [1], [0, 0, 1, 1], [], []>} : vector<16x16xbf16>, vector<16x8xbf16>, vector<16x8xf32> -> vector<16x8xf32>
    %101 = arith.addf %94, %100 : vector<16x8xf32>
    %102 = vector.broadcast %0 : vector<1x8xf32> to vector<16x8xf32>
    %103 = arith.addf %101, %102 : vector<16x8xf32>
    %cst_92 = arith.constant dense<0.000000e+00> : vector<8xf32>
    %104 = vector.multi_reduction <add>, %103, %cst_92 [0] : vector<16x8xf32> to vector<8xf32>
    %105 = vector.shape_cast %104 : vector<8xf32> to vector<1x8xf32>
    %106 = arith.mulf %103, %103 : vector<16x8xf32>
    %cst_93 = arith.constant dense<0.000000e+00> : vector<8xf32>
    %107 = vector.multi_reduction <add>, %106, %cst_93 [0] : vector<16x8xf32> to vector<8xf32>
    %108 = vector.shape_cast %107 : vector<8xf32> to vector<1x8xf32>
    %cst_94 = arith.constant 0.000000e+00 : f32
    %109 = vector.broadcast %cst_94 : f32 to vector<16x8xf32>
    %c0_95 = arith.constant 0 : index
    %c1_96 = arith.constant 1 : index
    %c1_97 = arith.constant 1 : index
    %c0_98 = arith.constant 0 : index
    %110 = vector.load %arg1[%c0_95, %c1_96, %c1_97, %c0_98] : memref<1x6x6x16xbf16, #tpu.memory_space<vmem>>, vector<1x4x4x16xbf16>
    %111 = vector.shape_cast %110 : vector<1x4x4x16xbf16> to vector<4x4x16xbf16>
    %112 = vector.shape_cast %111 : vector<4x4x16xbf16> to vector<16x16xbf16>
    %c12 = arith.constant 12 : index
    %c0_99 = arith.constant 0 : index
    %c0_100 = arith.constant 0 : index
    %113 = vector.load %arg2[%c12, %c0_99, %c0_100] : memref<16x16x8xbf16, #tpu.memory_space<vmem>>, vector<1x16x8xbf16>
    %114 = vector.shape_cast %113 : vector<1x16x8xbf16> to vector<16x8xbf16>
    %cst_101 = arith.constant dense<0.000000e+00> : vector<16x8xf32>
    %115 = tpu.matmul %112, %114, %cst_101 {dimension_numbers = #tpu.dot_dimension_numbers<[1], [0], [0], [1], [0, 0, 1, 1], [], []>} : vector<16x16xbf16>, vector<16x8xbf16>, vector<16x8xf32> -> vector<16x8xf32>
    %116 = arith.addf %109, %115 : vector<16x8xf32>
    %c0_102 = arith.constant 0 : index
    %c1_103 = arith.constant 1 : index
    %c2_104 = arith.constant 2 : index
    %c0_105 = arith.constant 0 : index
    %117 = vector.load %arg1[%c0_102, %c1_103, %c2_104, %c0_105] : memref<1x6x6x16xbf16, #tpu.memory_space<vmem>>, vector<1x4x4x16xbf16>
    %118 = vector.shape_cast %117 : vector<1x4x4x16xbf16> to vector<4x4x16xbf16>
    %119 = vector.shape_cast %118 : vector<4x4x16xbf16> to vector<16x16xbf16>
    %c13 = arith.constant 13 : index
    %c0_106 = arith.constant 0 : index
    %c0_107 = arith.constant 0 : index
    %120 = vector.load %arg2[%c13, %c0_106, %c0_107] : memref<16x16x8xbf16, #tpu.memory_space<vmem>>, vector<1x16x8xbf16>
    %121 = vector.shape_cast %120 : vector<1x16x8xbf16> to vector<16x8xbf16>
    %cst_108 = arith.constant dense<0.000000e+00> : vector<16x8xf32>
    %122 = tpu.matmul %119, %121, %cst_108 {dimension_numbers = #tpu.dot_dimension_numbers<[1], [0], [0], [1], [0, 0, 1, 1], [], []>} : vector<16x16xbf16>, vector<16x8xbf16>, vector<16x8xf32> -> vector<16x8xf32>
    %123 = arith.addf %116, %122 : vector<16x8xf32>
    %c0_109 = arith.constant 0 : index
    %c2_110 = arith.constant 2 : index
    %c1_111 = arith.constant 1 : index
    %c0_112 = arith.constant 0 : index
    %124 = vector.load %arg1[%c0_109, %c2_110, %c1_111, %c0_112] : memref<1x6x6x16xbf16, #tpu.memory_space<vmem>>, vector<1x4x4x16xbf16>
    %125 = vector.shape_cast %124 : vector<1x4x4x16xbf16> to vector<4x4x16xbf16>
    %126 = vector.shape_cast %125 : vector<4x4x16xbf16> to vector<16x16xbf16>
    %c14 = arith.constant 14 : index
    %c0_113 = arith.constant 0 : index
    %c0_114 = arith.constant 0 : index
    %127 = vector.load %arg2[%c14, %c0_113, %c0_114] : memref<16x16x8xbf16, #tpu.memory_space<vmem>>, vector<1x16x8xbf16>
    %128 = vector.shape_cast %127 : vector<1x16x8xbf16> to vector<16x8xbf16>
    %cst_115 = arith.constant dense<0.000000e+00> : vector<16x8xf32>
    %129 = tpu.matmul %126, %128, %cst_115 {dimension_numbers = #tpu.dot_dimension_numbers<[1], [0], [0], [1], [0, 0, 1, 1], [], []>} : vector<16x16xbf16>, vector<16x8xbf16>, vector<16x8xf32> -> vector<16x8xf32>
    %130 = arith.addf %123, %129 : vector<16x8xf32>
    %c0_116 = arith.constant 0 : index
    %c2_117 = arith.constant 2 : index
    %c2_118 = arith.constant 2 : index
    %c0_119 = arith.constant 0 : index
    %131 = vector.load %arg1[%c0_116, %c2_117, %c2_118, %c0_119] : memref<1x6x6x16xbf16, #tpu.memory_space<vmem>>, vector<1x4x4x16xbf16>
    %132 = vector.shape_cast %131 : vector<1x4x4x16xbf16> to vector<4x4x16xbf16>
    %133 = vector.shape_cast %132 : vector<4x4x16xbf16> to vector<16x16xbf16>
    %c15 = arith.constant 15 : index
    %c0_120 = arith.constant 0 : index
    %c0_121 = arith.constant 0 : index
    %134 = vector.load %arg2[%c15, %c0_120, %c0_121] : memref<16x16x8xbf16, #tpu.memory_space<vmem>>, vector<1x16x8xbf16>
    %135 = vector.shape_cast %134 : vector<1x16x8xbf16> to vector<16x8xbf16>
    %cst_122 = arith.constant dense<0.000000e+00> : vector<16x8xf32>
    %136 = tpu.matmul %133, %135, %cst_122 {dimension_numbers = #tpu.dot_dimension_numbers<[1], [0], [0], [1], [0, 0, 1, 1], [], []>} : vector<16x16xbf16>, vector<16x8xbf16>, vector<16x8xf32> -> vector<16x8xf32>
    %137 = arith.addf %130, %136 : vector<16x8xf32>
    %138 = vector.broadcast %0 : vector<1x8xf32> to vector<16x8xf32>
    %139 = arith.addf %137, %138 : vector<16x8xf32>
    %cst_123 = arith.constant dense<0.000000e+00> : vector<8xf32>
    %140 = vector.multi_reduction <add>, %139, %cst_123 [0] : vector<16x8xf32> to vector<8xf32>
    %141 = vector.shape_cast %140 : vector<8xf32> to vector<1x8xf32>
    %142 = arith.mulf %139, %139 : vector<16x8xf32>
    %cst_124 = arith.constant dense<0.000000e+00> : vector<8xf32>
    %143 = vector.multi_reduction <add>, %142, %cst_124 [0] : vector<16x8xf32> to vector<8xf32>
    %144 = vector.shape_cast %143 : vector<8xf32> to vector<1x8xf32>
    %145 = tpu.concatenate %31, %67, %103, %139 in 1 : vector<16x8xf32>, vector<16x8xf32>, vector<16x8xf32>, vector<16x8xf32> -> vector<16x32xf32>
    %146 = vector.shape_cast %145 : vector<16x32xf32> to vector<1x4x4x32xf32>
    %147 = arith.truncf %146 : vector<1x4x4x32xf32> to vector<1x4x4x32xbf16>
    %c0_125 = arith.constant 0 : index
    %c0_126 = arith.constant 0 : index
    %c0_127 = arith.constant 0 : index
    %c0_128 = arith.constant 0 : index
    %148 = vector.load %arg4[%c0_125, %c0_126, %c0_127, %c0_128] : memref<1x4x4x32xbf16, #tpu.memory_space<vmem>>, vector<1x4x4x32xbf16>
    tpu.vector_store %arg4[%c0_125, %c0_126, %c0_127, %c0_128], %147 {strides = array<i32>} : memref<1x4x4x32xbf16, #tpu.memory_space<vmem>>, vector<1x4x4x32xbf16>,
    %149 = tpu.concatenate %33, %69, %105, %141 in 1 : vector<1x8xf32>, vector<1x8xf32>, vector<1x8xf32>, vector<1x8xf32> -> vector<1x32xf32>
    %150 = vector.shape_cast %149 : vector<1x32xf32> to vector<1x1x32xf32>
    %c0_129 = arith.constant 0 : index
    %c0_130 = arith.constant 0 : index
    %c0_131 = arith.constant 0 : index
    %151 = vector.load %arg5[%c0_129, %c0_130, %c0_131] : memref<1x1x32xf32, #tpu.memory_space<vmem>>, vector<1x1x32xf32>
    tpu.vector_store %arg5[%c0_129, %c0_130, %c0_131], %150 {strides = array<i32>} : memref<1x1x32xf32, #tpu.memory_space<vmem>>, vector<1x1x32xf32>,
    %152 = tpu.concatenate %36, %72, %108, %144 in 1 : vector<1x8xf32>, vector<1x8xf32>, vector<1x8xf32>, vector<1x8xf32> -> vector<1x32xf32>
    %153 = vector.shape_cast %152 : vector<1x32xf32> to vector<1x1x32xf32>
    %c0_132 = arith.constant 0 : index
    %c0_133 = arith.constant 0 : index
    %c0_134 = arith.constant 0 : index
    %154 = vector.load %arg6[%c0_132, %c0_133, %c0_134] : memref<1x1x32xf32, #tpu.memory_space<vmem>>, vector<1x1x32xf32>
    tpu.vector_store %arg6[%c0_132, %c0_133, %c0_134], %153 {strides = array<i32>} : memref<1x1x32xf32, #tpu.memory_space<vmem>>, vector<1x1x32xf32>,
    return
  }
  func.func @transform_0(%arg0: i32) -> (i32, i32, i32, i32) {
    %c0_i32 = arith.constant 0 : i32
    %c0_i32_0 = arith.constant 0 : i32
    %c0_i32_1 = arith.constant 0 : i32
    %c0_i32_2 = arith.constant 0 : i32
    return %arg0, %c0_i32, %c0_i32_0, %c0_i32_1 : i32, i32, i32, i32
  }
  func.func @transform_1(%arg0: i32) -> (i32, i32, i32) {
    %c0_i32 = arith.constant 0 : i32
    %c0_i32_0 = arith.constant 0 : i32
    %c0_i32_1 = arith.constant 0 : i32
    %c0_i32_2 = arith.constant 0 : i32
    return %c0_i32, %c0_i32_0, %c0_i32_1 : i32, i32, i32
  }
  func.func @transform_2(%arg0: i32) -> (i32, i32) {
    %c0_i32 = arith.constant 0 : i32
    %c0_i32_0 = arith.constant 0 : i32
    %c0_i32_1 = arith.constant 0 : i32
    return %c0_i32, %c0_i32_0 : i32, i32
  }
  func.func @transform_3(%arg0: i32) -> (i32, i32, i32, i32) {
    %c0_i32 = arith.constant 0 : i32
    %c0_i32_0 = arith.constant 0 : i32
    %c0_i32_1 = arith.constant 0 : i32
    %c0_i32_2 = arith.constant 0 : i32
    return %arg0, %c0_i32, %c0_i32_0, %c0_i32_1 : i32, i32, i32, i32
  }
  func.func @transform_4(%arg0: i32) -> (i32, i32, i32) {
    %c0_i32 = arith.constant 0 : i32
    %c0_i32_0 = arith.constant 0 : i32
    %c0_i32_1 = arith.constant 0 : i32
    return %arg0, %c0_i32, %c0_i32_0 : i32, i32, i32
  }
  func.func @transform_5(%arg0: i32) -> (i32, i32, i32) {
    %c0_i32 = arith.constant 0 : i32
    %c0_i32_0 = arith.constant 0 : i32
    %c0_i32_1 = arith.constant 0 : i32
    return %arg0, %c0_i32, %c0_i32_0 : i32, i32, i32
  }
}

module attributes {stable_mosaic.version = 11 : i64} {
  func.func @_bn_apply_lrelu_kernel(%arg0: i32, %arg1: memref<32x32xbf16, #tpu.memory_space<vmem>>, %arg2: memref<1x32xf32, #tpu.memory_space<vmem>>, %arg3: memref<1x32xf32, #tpu.memory_space<vmem>>, %arg4: memref<32x32xbf16, #tpu.memory_space<vmem>>) attributes {dimension_semantics = [#tpu.dimension_semantics<parallel>], iteration_bounds = array<i64: 1>, scalar_prefetch = 0 : i64, scratch_operands = 0 : i64, tpu.core_type = #tpu.core_type<tc>, window_params = [{transform_indices = @transform_0, window_bounds = array<i64: 32, 32>}, {pipeline_mode = #tpu.pipeline_mode<synchronous>, transform_indices = @transform_1, window_bounds = array<i64: 1, 32>}, {pipeline_mode = #tpu.pipeline_mode<synchronous>, transform_indices = @transform_2, window_bounds = array<i64: 1, 32>}, {transform_indices = @transform_3, window_bounds = array<i64: 32, 32>}]} {
    %c0 = arith.constant 0 : index
    %c0_0 = arith.constant 0 : index
    %0 = vector.load %arg1[%c0, %c0_0] : memref<32x32xbf16, #tpu.memory_space<vmem>>, vector<32x32xbf16>
    %1 = arith.extf %0 : vector<32x32xbf16> to vector<32x32xf32>
    %c0_1 = arith.constant 0 : index
    %c0_2 = arith.constant 0 : index
    %2 = vector.load %arg2[%c0_1, %c0_2] : memref<1x32xf32, #tpu.memory_space<vmem>>, vector<1x32xf32>
    %3 = vector.broadcast %2 : vector<1x32xf32> to vector<32x32xf32>
    %4 = arith.mulf %1, %3 : vector<32x32xf32>
    %c0_3 = arith.constant 0 : index
    %c0_4 = arith.constant 0 : index
    %5 = vector.load %arg3[%c0_3, %c0_4] : memref<1x32xf32, #tpu.memory_space<vmem>>, vector<1x32xf32>
    %6 = vector.broadcast %5 : vector<1x32xf32> to vector<32x32xf32>
    %7 = arith.addf %4, %6 : vector<32x32xf32>
    %cst = arith.constant 0.000000e+00 : f32
    %8 = vector.broadcast %cst : f32 to vector<32x32xf32>
    %9 = arith.cmpf oge, %7, %8 : vector<32x32xf32>
    %cst_5 = arith.constant 5.000000e-02 : f32
    %10 = vector.broadcast %cst_5 : f32 to vector<32x32xf32>
    %11 = arith.mulf %10, %7 : vector<32x32xf32>
    %12 = arith.select %9, %7, %11 : vector<32x32xi1>, vector<32x32xf32>
    %13 = arith.truncf %12 : vector<32x32xf32> to vector<32x32xbf16>
    %c0_6 = arith.constant 0 : index
    %c0_7 = arith.constant 0 : index
    %14 = vector.load %arg4[%c0_6, %c0_7] : memref<32x32xbf16, #tpu.memory_space<vmem>>, vector<32x32xbf16>
    tpu.vector_store %arg4[%c0_6, %c0_7], %13 {strides = array<i32>} : memref<32x32xbf16, #tpu.memory_space<vmem>>, vector<32x32xbf16>,
    return
  }
  func.func @transform_0(%arg0: i32) -> (i32, i32) {
    %c0_i32 = arith.constant 0 : i32
    %c0_i32_0 = arith.constant 0 : i32
    return %arg0, %c0_i32 : i32, i32
  }
  func.func @transform_1(%arg0: i32) -> (i32, i32) {
    %c0_i32 = arith.constant 0 : i32
    %c0_i32_0 = arith.constant 0 : i32
    %c0_i32_1 = arith.constant 0 : i32
    return %c0_i32, %c0_i32_0 : i32, i32
  }
  func.func @transform_2(%arg0: i32) -> (i32, i32) {
    %c0_i32 = arith.constant 0 : i32
    %c0_i32_0 = arith.constant 0 : i32
    %c0_i32_1 = arith.constant 0 : i32
    return %c0_i32, %c0_i32_0 : i32, i32
  }
  func.func @transform_3(%arg0: i32) -> (i32, i32) {
    %c0_i32 = arith.constant 0 : i32
    %c0_i32_0 = arith.constant 0 : i32
    return %arg0, %c0_i32 : i32, i32
  }
}

module attributes {stable_mosaic.version = 11 : i64} {
  func.func @_deconv_s2_kernel(%arg0: i32, %arg1: memref<1x10x10x8xbf16, #tpu.memory_space<vmem>>, %arg2: memref<16x8x3xbf16, #tpu.memory_space<vmem>>, %arg3: memref<1x3xf32, #tpu.memory_space<vmem>>, %arg4: memref<1x8x8x12xf32, #tpu.memory_space<vmem>>) attributes {dimension_semantics = [#tpu.dimension_semantics<parallel>], iteration_bounds = array<i64: 2>, scalar_prefetch = 0 : i64, scratch_operands = 0 : i64, tpu.core_type = #tpu.core_type<tc>, window_params = [{transform_indices = @transform_0, window_bounds = array<i64: 1, 10, 10, 8>}, {pipeline_mode = #tpu.pipeline_mode<synchronous>, transform_indices = @transform_1, window_bounds = array<i64: 16, 8, 3>}, {pipeline_mode = #tpu.pipeline_mode<synchronous>, transform_indices = @transform_2, window_bounds = array<i64: 1, 3>}, {transform_indices = @transform_3, window_bounds = array<i64: 1, 8, 8, 12>}]} {
    %c0 = arith.constant 0 : index
    %c0_0 = arith.constant 0 : index
    %0 = vector.load %arg3[%c0, %c0_0] : memref<1x3xf32, #tpu.memory_space<vmem>>, vector<1x3xf32>
    %cst = arith.constant 0.000000e+00 : f32
    %1 = vector.broadcast %cst : f32 to vector<64x3xf32>
    %c0_1 = arith.constant 0 : index
    %c0_2 = arith.constant 0 : index
    %c0_3 = arith.constant 0 : index
    %c0_4 = arith.constant 0 : index
    %2 = vector.load %arg1[%c0_1, %c0_2, %c0_3, %c0_4] : memref<1x10x10x8xbf16, #tpu.memory_space<vmem>>, vector<1x8x8x8xbf16>
    %3 = vector.shape_cast %2 : vector<1x8x8x8xbf16> to vector<8x8x8xbf16>
    %4 = vector.shape_cast %3 : vector<8x8x8xbf16> to vector<64x8xbf16>
    %c0_5 = arith.constant 0 : index
    %c0_6 = arith.constant 0 : index
    %c0_7 = arith.constant 0 : index
    %5 = vector.load %arg2[%c0_5, %c0_6, %c0_7] : memref<16x8x3xbf16, #tpu.memory_space<vmem>>, vector<1x8x3xbf16>
    %6 = vector.shape_cast %5 : vector<1x8x3xbf16> to vector<8x3xbf16>
    %cst_8 = arith.constant dense<0.000000e+00> : vector<64x3xf32>
    %7 = tpu.matmul %4, %6, %cst_8 {dimension_numbers = #tpu.dot_dimension_numbers<[1], [0], [0], [1], [0, 0, 1, 1], [], []>} : vector<64x8xbf16>, vector<8x3xbf16>, vector<64x3xf32> -> vector<64x3xf32>
    %8 = arith.addf %1, %7 : vector<64x3xf32>
    %c0_9 = arith.constant 0 : index
    %c0_10 = arith.constant 0 : index
    %c1 = arith.constant 1 : index
    %c0_11 = arith.constant 0 : index
    %9 = vector.load %arg1[%c0_9, %c0_10, %c1, %c0_11] : memref<1x10x10x8xbf16, #tpu.memory_space<vmem>>, vector<1x8x8x8xbf16>
    %10 = vector.shape_cast %9 : vector<1x8x8x8xbf16> to vector<8x8x8xbf16>
    %11 = vector.shape_cast %10 : vector<8x8x8xbf16> to vector<64x8xbf16>
    %c1_12 = arith.constant 1 : index
    %c0_13 = arith.constant 0 : index
    %c0_14 = arith.constant 0 : index
    %12 = vector.load %arg2[%c1_12, %c0_13, %c0_14] : memref<16x8x3xbf16, #tpu.memory_space<vmem>>, vector<1x8x3xbf16>
    %13 = vector.shape_cast %12 : vector<1x8x3xbf16> to vector<8x3xbf16>
    %cst_15 = arith.constant dense<0.000000e+00> : vector<64x3xf32>
    %14 = tpu.matmul %11, %13, %cst_15 {dimension_numbers = #tpu.dot_dimension_numbers<[1], [0], [0], [1], [0, 0, 1, 1], [], []>} : vector<64x8xbf16>, vector<8x3xbf16>, vector<64x3xf32> -> vector<64x3xf32>
    %15 = arith.addf %8, %14 : vector<64x3xf32>
    %c0_16 = arith.constant 0 : index
    %c1_17 = arith.constant 1 : index
    %c0_18 = arith.constant 0 : index
    %c0_19 = arith.constant 0 : index
    %16 = vector.load %arg1[%c0_16, %c1_17, %c0_18, %c0_19] : memref<1x10x10x8xbf16, #tpu.memory_space<vmem>>, vector<1x8x8x8xbf16>
    %17 = vector.shape_cast %16 : vector<1x8x8x8xbf16> to vector<8x8x8xbf16>
    %18 = vector.shape_cast %17 : vector<8x8x8xbf16> to vector<64x8xbf16>
    %c2 = arith.constant 2 : index
    %c0_20 = arith.constant 0 : index
    %c0_21 = arith.constant 0 : index
    %19 = vector.load %arg2[%c2, %c0_20, %c0_21] : memref<16x8x3xbf16, #tpu.memory_space<vmem>>, vector<1x8x3xbf16>
    %20 = vector.shape_cast %19 : vector<1x8x3xbf16> to vector<8x3xbf16>
    %cst_22 = arith.constant dense<0.000000e+00> : vector<64x3xf32>
    %21 = tpu.matmul %18, %20, %cst_22 {dimension_numbers = #tpu.dot_dimension_numbers<[1], [0], [0], [1], [0, 0, 1, 1], [], []>} : vector<64x8xbf16>, vector<8x3xbf16>, vector<64x3xf32> -> vector<64x3xf32>
    %22 = arith.addf %15, %21 : vector<64x3xf32>
    %c0_23 = arith.constant 0 : index
    %c1_24 = arith.constant 1 : index
    %c1_25 = arith.constant 1 : index
    %c0_26 = arith.constant 0 : index
    %23 = vector.load %arg1[%c0_23, %c1_24, %c1_25, %c0_26] : memref<1x10x10x8xbf16, #tpu.memory_space<vmem>>, vector<1x8x8x8xbf16>
    %24 = vector.shape_cast %23 : vector<1x8x8x8xbf16> to vector<8x8x8xbf16>
    %25 = vector.shape_cast %24 : vector<8x8x8xbf16> to vector<64x8xbf16>
    %c3 = arith.constant 3 : index
    %c0_27 = arith.constant 0 : index
    %c0_28 = arith.constant 0 : index
    %26 = vector.load %arg2[%c3, %c0_27, %c0_28] : memref<16x8x3xbf16, #tpu.memory_space<vmem>>, vector<1x8x3xbf16>
    %27 = vector.shape_cast %26 : vector<1x8x3xbf16> to vector<8x3xbf16>
    %cst_29 = arith.constant dense<0.000000e+00> : vector<64x3xf32>
    %28 = tpu.matmul %25, %27, %cst_29 {dimension_numbers = #tpu.dot_dimension_numbers<[1], [0], [0], [1], [0, 0, 1, 1], [], []>} : vector<64x8xbf16>, vector<8x3xbf16>, vector<64x3xf32> -> vector<64x3xf32>
    %29 = arith.addf %22, %28 : vector<64x3xf32>
    %30 = vector.broadcast %0 : vector<1x3xf32> to vector<64x3xf32>
    %31 = arith.addf %29, %30 : vector<64x3xf32>
    %32 = math.tanh %31 : vector<64x3xf32>
    %cst_30 = arith.constant 0.000000e+00 : f32
    %33 = vector.broadcast %cst_30 : f32 to vector<64x3xf32>
    %c0_31 = arith.constant 0 : index
    %c0_32 = arith.constant 0 : index
    %c1_33 = arith.constant 1 : index
    %c0_34 = arith.constant 0 : index
    %34 = vector.load %arg1[%c0_31, %c0_32, %c1_33, %c0_34] : memref<1x10x10x8xbf16, #tpu.memory_space<vmem>>, vector<1x8x8x8xbf16>
    %35 = vector.shape_cast %34 : vector<1x8x8x8xbf16> to vector<8x8x8xbf16>
    %36 = vector.shape_cast %35 : vector<8x8x8xbf16> to vector<64x8xbf16>
    %c4 = arith.constant 4 : index
    %c0_35 = arith.constant 0 : index
    %c0_36 = arith.constant 0 : index
    %37 = vector.load %arg2[%c4, %c0_35, %c0_36] : memref<16x8x3xbf16, #tpu.memory_space<vmem>>, vector<1x8x3xbf16>
    %38 = vector.shape_cast %37 : vector<1x8x3xbf16> to vector<8x3xbf16>
    %cst_37 = arith.constant dense<0.000000e+00> : vector<64x3xf32>
    %39 = tpu.matmul %36, %38, %cst_37 {dimension_numbers = #tpu.dot_dimension_numbers<[1], [0], [0], [1], [0, 0, 1, 1], [], []>} : vector<64x8xbf16>, vector<8x3xbf16>, vector<64x3xf32> -> vector<64x3xf32>
    %40 = arith.addf %33, %39 : vector<64x3xf32>
    %c0_38 = arith.constant 0 : index
    %c0_39 = arith.constant 0 : index
    %c2_40 = arith.constant 2 : index
    %c0_41 = arith.constant 0 : index
    %41 = vector.load %arg1[%c0_38, %c0_39, %c2_40, %c0_41] : memref<1x10x10x8xbf16, #tpu.memory_space<vmem>>, vector<1x8x8x8xbf16>
    %42 = vector.shape_cast %41 : vector<1x8x8x8xbf16> to vector<8x8x8xbf16>
    %43 = vector.shape_cast %42 : vector<8x8x8xbf16> to vector<64x8xbf16>
    %c5 = arith.constant 5 : index
    %c0_42 = arith.constant 0 : index
    %c0_43 = arith.constant 0 : index
    %44 = vector.load %arg2[%c5, %c0_42, %c0_43] : memref<16x8x3xbf16, #tpu.memory_space<vmem>>, vector<1x8x3xbf16>
    %45 = vector.shape_cast %44 : vector<1x8x3xbf16> to vector<8x3xbf16>
    %cst_44 = arith.constant dense<0.000000e+00> : vector<64x3xf32>
    %46 = tpu.matmul %43, %45, %cst_44 {dimension_numbers = #tpu.dot_dimension_numbers<[1], [0], [0], [1], [0, 0, 1, 1], [], []>} : vector<64x8xbf16>, vector<8x3xbf16>, vector<64x3xf32> -> vector<64x3xf32>
    %47 = arith.addf %40, %46 : vector<64x3xf32>
    %c0_45 = arith.constant 0 : index
    %c1_46 = arith.constant 1 : index
    %c1_47 = arith.constant 1 : index
    %c0_48 = arith.constant 0 : index
    %48 = vector.load %arg1[%c0_45, %c1_46, %c1_47, %c0_48] : memref<1x10x10x8xbf16, #tpu.memory_space<vmem>>, vector<1x8x8x8xbf16>
    %49 = vector.shape_cast %48 : vector<1x8x8x8xbf16> to vector<8x8x8xbf16>
    %50 = vector.shape_cast %49 : vector<8x8x8xbf16> to vector<64x8xbf16>
    %c6 = arith.constant 6 : index
    %c0_49 = arith.constant 0 : index
    %c0_50 = arith.constant 0 : index
    %51 = vector.load %arg2[%c6, %c0_49, %c0_50] : memref<16x8x3xbf16, #tpu.memory_space<vmem>>, vector<1x8x3xbf16>
    %52 = vector.shape_cast %51 : vector<1x8x3xbf16> to vector<8x3xbf16>
    %cst_51 = arith.constant dense<0.000000e+00> : vector<64x3xf32>
    %53 = tpu.matmul %50, %52, %cst_51 {dimension_numbers = #tpu.dot_dimension_numbers<[1], [0], [0], [1], [0, 0, 1, 1], [], []>} : vector<64x8xbf16>, vector<8x3xbf16>, vector<64x3xf32> -> vector<64x3xf32>
    %54 = arith.addf %47, %53 : vector<64x3xf32>
    %c0_52 = arith.constant 0 : index
    %c1_53 = arith.constant 1 : index
    %c2_54 = arith.constant 2 : index
    %c0_55 = arith.constant 0 : index
    %55 = vector.load %arg1[%c0_52, %c1_53, %c2_54, %c0_55] : memref<1x10x10x8xbf16, #tpu.memory_space<vmem>>, vector<1x8x8x8xbf16>
    %56 = vector.shape_cast %55 : vector<1x8x8x8xbf16> to vector<8x8x8xbf16>
    %57 = vector.shape_cast %56 : vector<8x8x8xbf16> to vector<64x8xbf16>
    %c7 = arith.constant 7 : index
    %c0_56 = arith.constant 0 : index
    %c0_57 = arith.constant 0 : index
    %58 = vector.load %arg2[%c7, %c0_56, %c0_57] : memref<16x8x3xbf16, #tpu.memory_space<vmem>>, vector<1x8x3xbf16>
    %59 = vector.shape_cast %58 : vector<1x8x3xbf16> to vector<8x3xbf16>
    %cst_58 = arith.constant dense<0.000000e+00> : vector<64x3xf32>
    %60 = tpu.matmul %57, %59, %cst_58 {dimension_numbers = #tpu.dot_dimension_numbers<[1], [0], [0], [1], [0, 0, 1, 1], [], []>} : vector<64x8xbf16>, vector<8x3xbf16>, vector<64x3xf32> -> vector<64x3xf32>
    %61 = arith.addf %54, %60 : vector<64x3xf32>
    %62 = vector.broadcast %0 : vector<1x3xf32> to vector<64x3xf32>
    %63 = arith.addf %61, %62 : vector<64x3xf32>
    %64 = math.tanh %63 : vector<64x3xf32>
    %cst_59 = arith.constant 0.000000e+00 : f32
    %65 = vector.broadcast %cst_59 : f32 to vector<64x3xf32>
    %c0_60 = arith.constant 0 : index
    %c1_61 = arith.constant 1 : index
    %c0_62 = arith.constant 0 : index
    %c0_63 = arith.constant 0 : index
    %66 = vector.load %arg1[%c0_60, %c1_61, %c0_62, %c0_63] : memref<1x10x10x8xbf16, #tpu.memory_space<vmem>>, vector<1x8x8x8xbf16>
    %67 = vector.shape_cast %66 : vector<1x8x8x8xbf16> to vector<8x8x8xbf16>
    %68 = vector.shape_cast %67 : vector<8x8x8xbf16> to vector<64x8xbf16>
    %c8 = arith.constant 8 : index
    %c0_64 = arith.constant 0 : index
    %c0_65 = arith.constant 0 : index
    %69 = vector.load %arg2[%c8, %c0_64, %c0_65] : memref<16x8x3xbf16, #tpu.memory_space<vmem>>, vector<1x8x3xbf16>
    %70 = vector.shape_cast %69 : vector<1x8x3xbf16> to vector<8x3xbf16>
    %cst_66 = arith.constant dense<0.000000e+00> : vector<64x3xf32>
    %71 = tpu.matmul %68, %70, %cst_66 {dimension_numbers = #tpu.dot_dimension_numbers<[1], [0], [0], [1], [0, 0, 1, 1], [], []>} : vector<64x8xbf16>, vector<8x3xbf16>, vector<64x3xf32> -> vector<64x3xf32>
    %72 = arith.addf %65, %71 : vector<64x3xf32>
    %c0_67 = arith.constant 0 : index
    %c1_68 = arith.constant 1 : index
    %c1_69 = arith.constant 1 : index
    %c0_70 = arith.constant 0 : index
    %73 = vector.load %arg1[%c0_67, %c1_68, %c1_69, %c0_70] : memref<1x10x10x8xbf16, #tpu.memory_space<vmem>>, vector<1x8x8x8xbf16>
    %74 = vector.shape_cast %73 : vector<1x8x8x8xbf16> to vector<8x8x8xbf16>
    %75 = vector.shape_cast %74 : vector<8x8x8xbf16> to vector<64x8xbf16>
    %c9 = arith.constant 9 : index
    %c0_71 = arith.constant 0 : index
    %c0_72 = arith.constant 0 : index
    %76 = vector.load %arg2[%c9, %c0_71, %c0_72] : memref<16x8x3xbf16, #tpu.memory_space<vmem>>, vector<1x8x3xbf16>
    %77 = vector.shape_cast %76 : vector<1x8x3xbf16> to vector<8x3xbf16>
    %cst_73 = arith.constant dense<0.000000e+00> : vector<64x3xf32>
    %78 = tpu.matmul %75, %77, %cst_73 {dimension_numbers = #tpu.dot_dimension_numbers<[1], [0], [0], [1], [0, 0, 1, 1], [], []>} : vector<64x8xbf16>, vector<8x3xbf16>, vector<64x3xf32> -> vector<64x3xf32>
    %79 = arith.addf %72, %78 : vector<64x3xf32>
    %c0_74 = arith.constant 0 : index
    %c2_75 = arith.constant 2 : index
    %c0_76 = arith.constant 0 : index
    %c0_77 = arith.constant 0 : index
    %80 = vector.load %arg1[%c0_74, %c2_75, %c0_76, %c0_77] : memref<1x10x10x8xbf16, #tpu.memory_space<vmem>>, vector<1x8x8x8xbf16>
    %81 = vector.shape_cast %80 : vector<1x8x8x8xbf16> to vector<8x8x8xbf16>
    %82 = vector.shape_cast %81 : vector<8x8x8xbf16> to vector<64x8xbf16>
    %c10 = arith.constant 10 : index
    %c0_78 = arith.constant 0 : index
    %c0_79 = arith.constant 0 : index
    %83 = vector.load %arg2[%c10, %c0_78, %c0_79] : memref<16x8x3xbf16, #tpu.memory_space<vmem>>, vector<1x8x3xbf16>
    %84 = vector.shape_cast %83 : vector<1x8x3xbf16> to vector<8x3xbf16>
    %cst_80 = arith.constant dense<0.000000e+00> : vector<64x3xf32>
    %85 = tpu.matmul %82, %84, %cst_80 {dimension_numbers = #tpu.dot_dimension_numbers<[1], [0], [0], [1], [0, 0, 1, 1], [], []>} : vector<64x8xbf16>, vector<8x3xbf16>, vector<64x3xf32> -> vector<64x3xf32>
    %86 = arith.addf %79, %85 : vector<64x3xf32>
    %c0_81 = arith.constant 0 : index
    %c2_82 = arith.constant 2 : index
    %c1_83 = arith.constant 1 : index
    %c0_84 = arith.constant 0 : index
    %87 = vector.load %arg1[%c0_81, %c2_82, %c1_83, %c0_84] : memref<1x10x10x8xbf16, #tpu.memory_space<vmem>>, vector<1x8x8x8xbf16>
    %88 = vector.shape_cast %87 : vector<1x8x8x8xbf16> to vector<8x8x8xbf16>
    %89 = vector.shape_cast %88 : vector<8x8x8xbf16> to vector<64x8xbf16>
    %c11 = arith.constant 11 : index
    %c0_85 = arith.constant 0 : index
    %c0_86 = arith.constant 0 : index
    %90 = vector.load %arg2[%c11, %c0_85, %c0_86] : memref<16x8x3xbf16, #tpu.memory_space<vmem>>, vector<1x8x3xbf16>
    %91 = vector.shape_cast %90 : vector<1x8x3xbf16> to vector<8x3xbf16>
    %cst_87 = arith.constant dense<0.000000e+00> : vector<64x3xf32>
    %92 = tpu.matmul %89, %91, %cst_87 {dimension_numbers = #tpu.dot_dimension_numbers<[1], [0], [0], [1], [0, 0, 1, 1], [], []>} : vector<64x8xbf16>, vector<8x3xbf16>, vector<64x3xf32> -> vector<64x3xf32>
    %93 = arith.addf %86, %92 : vector<64x3xf32>
    %94 = vector.broadcast %0 : vector<1x3xf32> to vector<64x3xf32>
    %95 = arith.addf %93, %94 : vector<64x3xf32>
    %96 = math.tanh %95 : vector<64x3xf32>
    %cst_88 = arith.constant 0.000000e+00 : f32
    %97 = vector.broadcast %cst_88 : f32 to vector<64x3xf32>
    %c0_89 = arith.constant 0 : index
    %c1_90 = arith.constant 1 : index
    %c1_91 = arith.constant 1 : index
    %c0_92 = arith.constant 0 : index
    %98 = vector.load %arg1[%c0_89, %c1_90, %c1_91, %c0_92] : memref<1x10x10x8xbf16, #tpu.memory_space<vmem>>, vector<1x8x8x8xbf16>
    %99 = vector.shape_cast %98 : vector<1x8x8x8xbf16> to vector<8x8x8xbf16>
    %100 = vector.shape_cast %99 : vector<8x8x8xbf16> to vector<64x8xbf16>
    %c12 = arith.constant 12 : index
    %c0_93 = arith.constant 0 : index
    %c0_94 = arith.constant 0 : index
    %101 = vector.load %arg2[%c12, %c0_93, %c0_94] : memref<16x8x3xbf16, #tpu.memory_space<vmem>>, vector<1x8x3xbf16>
    %102 = vector.shape_cast %101 : vector<1x8x3xbf16> to vector<8x3xbf16>
    %cst_95 = arith.constant dense<0.000000e+00> : vector<64x3xf32>
    %103 = tpu.matmul %100, %102, %cst_95 {dimension_numbers = #tpu.dot_dimension_numbers<[1], [0], [0], [1], [0, 0, 1, 1], [], []>} : vector<64x8xbf16>, vector<8x3xbf16>, vector<64x3xf32> -> vector<64x3xf32>
    %104 = arith.addf %97, %103 : vector<64x3xf32>
    %c0_96 = arith.constant 0 : index
    %c1_97 = arith.constant 1 : index
    %c2_98 = arith.constant 2 : index
    %c0_99 = arith.constant 0 : index
    %105 = vector.load %arg1[%c0_96, %c1_97, %c2_98, %c0_99] : memref<1x10x10x8xbf16, #tpu.memory_space<vmem>>, vector<1x8x8x8xbf16>
    %106 = vector.shape_cast %105 : vector<1x8x8x8xbf16> to vector<8x8x8xbf16>
    %107 = vector.shape_cast %106 : vector<8x8x8xbf16> to vector<64x8xbf16>
    %c13 = arith.constant 13 : index
    %c0_100 = arith.constant 0 : index
    %c0_101 = arith.constant 0 : index
    %108 = vector.load %arg2[%c13, %c0_100, %c0_101] : memref<16x8x3xbf16, #tpu.memory_space<vmem>>, vector<1x8x3xbf16>
    %109 = vector.shape_cast %108 : vector<1x8x3xbf16> to vector<8x3xbf16>
    %cst_102 = arith.constant dense<0.000000e+00> : vector<64x3xf32>
    %110 = tpu.matmul %107, %109, %cst_102 {dimension_numbers = #tpu.dot_dimension_numbers<[1], [0], [0], [1], [0, 0, 1, 1], [], []>} : vector<64x8xbf16>, vector<8x3xbf16>, vector<64x3xf32> -> vector<64x3xf32>
    %111 = arith.addf %104, %110 : vector<64x3xf32>
    %c0_103 = arith.constant 0 : index
    %c2_104 = arith.constant 2 : index
    %c1_105 = arith.constant 1 : index
    %c0_106 = arith.constant 0 : index
    %112 = vector.load %arg1[%c0_103, %c2_104, %c1_105, %c0_106] : memref<1x10x10x8xbf16, #tpu.memory_space<vmem>>, vector<1x8x8x8xbf16>
    %113 = vector.shape_cast %112 : vector<1x8x8x8xbf16> to vector<8x8x8xbf16>
    %114 = vector.shape_cast %113 : vector<8x8x8xbf16> to vector<64x8xbf16>
    %c14 = arith.constant 14 : index
    %c0_107 = arith.constant 0 : index
    %c0_108 = arith.constant 0 : index
    %115 = vector.load %arg2[%c14, %c0_107, %c0_108] : memref<16x8x3xbf16, #tpu.memory_space<vmem>>, vector<1x8x3xbf16>
    %116 = vector.shape_cast %115 : vector<1x8x3xbf16> to vector<8x3xbf16>
    %cst_109 = arith.constant dense<0.000000e+00> : vector<64x3xf32>
    %117 = tpu.matmul %114, %116, %cst_109 {dimension_numbers = #tpu.dot_dimension_numbers<[1], [0], [0], [1], [0, 0, 1, 1], [], []>} : vector<64x8xbf16>, vector<8x3xbf16>, vector<64x3xf32> -> vector<64x3xf32>
    %118 = arith.addf %111, %117 : vector<64x3xf32>
    %c0_110 = arith.constant 0 : index
    %c2_111 = arith.constant 2 : index
    %c2_112 = arith.constant 2 : index
    %c0_113 = arith.constant 0 : index
    %119 = vector.load %arg1[%c0_110, %c2_111, %c2_112, %c0_113] : memref<1x10x10x8xbf16, #tpu.memory_space<vmem>>, vector<1x8x8x8xbf16>
    %120 = vector.shape_cast %119 : vector<1x8x8x8xbf16> to vector<8x8x8xbf16>
    %121 = vector.shape_cast %120 : vector<8x8x8xbf16> to vector<64x8xbf16>
    %c15 = arith.constant 15 : index
    %c0_114 = arith.constant 0 : index
    %c0_115 = arith.constant 0 : index
    %122 = vector.load %arg2[%c15, %c0_114, %c0_115] : memref<16x8x3xbf16, #tpu.memory_space<vmem>>, vector<1x8x3xbf16>
    %123 = vector.shape_cast %122 : vector<1x8x3xbf16> to vector<8x3xbf16>
    %cst_116 = arith.constant dense<0.000000e+00> : vector<64x3xf32>
    %124 = tpu.matmul %121, %123, %cst_116 {dimension_numbers = #tpu.dot_dimension_numbers<[1], [0], [0], [1], [0, 0, 1, 1], [], []>} : vector<64x8xbf16>, vector<8x3xbf16>, vector<64x3xf32> -> vector<64x3xf32>
    %125 = arith.addf %118, %124 : vector<64x3xf32>
    %126 = vector.broadcast %0 : vector<1x3xf32> to vector<64x3xf32>
    %127 = arith.addf %125, %126 : vector<64x3xf32>
    %128 = math.tanh %127 : vector<64x3xf32>
    %129 = tpu.concatenate %32, %64, %96, %128 in 1 : vector<64x3xf32>, vector<64x3xf32>, vector<64x3xf32>, vector<64x3xf32> -> vector<64x12xf32>
    %130 = vector.shape_cast %129 : vector<64x12xf32> to vector<1x8x8x12xf32>
    %c0_117 = arith.constant 0 : index
    %c0_118 = arith.constant 0 : index
    %c0_119 = arith.constant 0 : index
    %c0_120 = arith.constant 0 : index
    %131 = vector.load %arg4[%c0_117, %c0_118, %c0_119, %c0_120] : memref<1x8x8x12xf32, #tpu.memory_space<vmem>>, vector<1x8x8x12xf32>
    tpu.vector_store %arg4[%c0_117, %c0_118, %c0_119, %c0_120], %130 {strides = array<i32>} : memref<1x8x8x12xf32, #tpu.memory_space<vmem>>, vector<1x8x8x12xf32>,
    return
  }
  func.func @transform_0(%arg0: i32) -> (i32, i32, i32, i32) {
    %c0_i32 = arith.constant 0 : i32
    %c0_i32_0 = arith.constant 0 : i32
    %c0_i32_1 = arith.constant 0 : i32
    %c0_i32_2 = arith.constant 0 : i32
    return %arg0, %c0_i32, %c0_i32_0, %c0_i32_1 : i32, i32, i32, i32
  }
  func.func @transform_1(%arg0: i32) -> (i32, i32, i32) {
    %c0_i32 = arith.constant 0 : i32
    %c0_i32_0 = arith.constant 0 : i32
    %c0_i32_1 = arith.constant 0 : i32
    %c0_i32_2 = arith.constant 0 : i32
    return %c0_i32, %c0_i32_0, %c0_i32_1 : i32, i32, i32
  }
  func.func @transform_2(%arg0: i32) -> (i32, i32) {
    %c0_i32 = arith.constant 0 : i32
    %c0_i32_0 = arith.constant 0 : i32
    %c0_i32_1 = arith.constant 0 : i32
    return %c0_i32, %c0_i32_0 : i32, i32
  }
  func.func @transform_3(%arg0: i32) -> (i32, i32, i32, i32) {
    %c0_i32 = arith.constant 0 : i32
    %c0_i32_0 = arith.constant 0 : i32
    %c0_i32_1 = arith.constant 0 : i32
    %c0_i32_2 = arith.constant 0 : i32
    return %arg0, %c0_i32, %c0_i32_0, %c0_i32_1 : i32, i32, i32, i32
  }
}

</mosaic_0001>

<llo_original>
// kernel: tile.33
$region0: #{tile.33}
  #allocation0 [shape = 's32[1]{0}', space=sflag, size = 0x4, scoped, tag = 'scoped memory for tile.33']
  %s0 = inlined_call_operand.vmem [shape: f32[32], index: 0, kind: input, shape index: {}]
  %s1 = inlined_call_operand.vmem [shape: f32[4,32], index: 1, kind: output, shape index: {}]
  // Predicated region
  $region2: #{tile.33} parent=0 // pred_check
    _
  $region3: #{tile.33} parent=0 // pred_check_branch
    %3 = sbr.rel (0) target = $region5
  $region4: #{tile.33} parent=0 // pred_region
    _
  $region5: #{tile.33} parent=0 // pred_fallthru
    _
  %v4 = vld [vmem:[%s0] ss:$0 sm:$0xff]
  %5 = vst [vmem:[%s1] sm:$0xf] %v4

// kernel: tile.34
$region0: #{tile.34}
  %s0 = inlined_call_operand.vmem [shape: f32[4,32], index: 0, kind: input, shape index: {}]
  %s1 = inlined_call_operand.vmem [shape: f32[1,128], index: 1, kind: output, shape index: {}]
  $region1: #{tile.34} parent=0
    #allocation0 [shape = 'u8[4096]{0}', space=vmem, size = 0x1000, scoped, tag = 'scoped mem for output reshape']
    #allocation1 [shape = 'u8[4096]{0}', space=vmem, size = 0x1000, scoped, tag = 'scoped mem for input reshape']
    %s3 = sshll.u32 1, 4
    %s4 = ssub.s32 %s3, 1
    %v5 = vld [vmem:[%s0] sm:%s4]
    %6 = vst [vmem:[#allocation1] sm:%s4] %v5
    %v7 = vld [vmem:[#allocation1] sm:$0x1]
    %vm8 = vcmask 261120
    %9 = vst.msk [vmem:[#allocation0] sm:$0x1] %vm8, %v7
    %s10 = scalar_lea.vmem [#allocation1], 3
    %v11 = vld [vmem:[%s10] sm:$0x1]
    %12 = vrot.lane.b32.xlu0 %v11, 96
    %v13 = vpop.permute.xlu0 %12
    %vm14 = vcmask 1048320
    %15 = vst.msk [vmem:[#allocation0] sm:$0x1] %vm14, %v13
    %s16 = scalar_lea.vmem [#allocation1], 2
    %v17 = vld [vmem:[%s16] sm:$0x1]
    %18 = vrot.lane.b32.xlu0 %v17, 64
    %v19 = vpop.permute.xlu0 %18
    %vm20 = vcmask 785920
    %21 = vst.msk [vmem:[#allocation0] sm:$0x1] %vm20, %v19
    %s22 = scalar_lea.vmem [#allocation1], 1
    %v23 = vld [vmem:[%s22] sm:$0x1]
    %24 = vrot.lane.b32.xlu0 %v23, 32
    %v25 = vpop.permute.xlu0 %24
    %vm26 = vcmask 523520
    %27 = vst.msk [vmem:[#allocation0] sm:$0x1] %vm26, %v25
    %s29 = sshll.u32 1, 1
    %s30 = ssub.s32 %s29, 1
    %v32 = vld [vmem:[#allocation0] sm:%s30]
    %s33 = sshll.u32 1, 1
    %s34 = ssub.s32 %s33, 1
    %35 = vst [vmem:[%s1] sm:%s34] %v32

// kernel: generator_forward.8
$region0: #{generator_forward.8}
  #allocation0 [shape = 'u32[]', space=smem, size = 0x4, offset = 0x4, fixed_abs, tag = 'smem constant byte address 0x4 - core index']
  #allocation1 [shape = 'u32[144,128]{1,0:T(1,128)}', space=vmem, size = 0x12000, scoped, tag = 'internal scratch']
  %s0 = inlined_call_operand.vmem [shape: bf16[2,16], index: 0, kind: input, shape index: {}]
  %s1 = inlined_call_operand.vmem [shape: bf16[16,64], index: 1, kind: input, shape index: {}]
  %s2 = inlined_call_operand.vmem [shape: f32[1,64], index: 2, kind: input, shape index: {}]
  %s3 = inlined_call_operand.vmem [shape: bf16[2,64], index: 3, kind: output, shape index: {}]
  %s4 = sld [smem:[#allocation0]]
  $region22: #{generator_forward.8} parent=0
    _
  %s6 = ssub.s32 1, %s4
  %s7 = scalar_select 0, %s6, %s4
  // Predicated region
  $region2: #{generator_forward.8} parent=0 // pred_check
    _
  $region3: #{generator_forward.8} parent=0 // pred_check_branch
    %9 = sbr.rel (0) target = $region5
  $region4: #{generator_forward.8} parent=0 // pred_region
    _
  $region5: #{generator_forward.8} parent=0 // pred_fallthru
    _
  // Predicated region
  $region6: #{generator_forward.8} parent=0 // pred_check
    _
  $region7: #{generator_forward.8} parent=0 // pred_check_branch
    %11 = sbr.rel (0) target = $region9
  $region8: #{generator_forward.8} parent=0 // pred_region
    _
  $region9: #{generator_forward.8} parent=0 // pred_fallthru
    _
  // Predicated region
  $region10: #{generator_forward.8} parent=0 // pred_check
    _
  $region11: #{generator_forward.8} parent=0 // pred_check_branch
    %13 = sbr.rel (0) target = $region13
  $region12: #{generator_forward.8} parent=0 // pred_region
    _
  $region13: #{generator_forward.8} parent=0 // pred_fallthru
    _
  %v15 = vld [vmem:[%s0] sm:$0x1]
  %v16 = vld [vmem:[%s1] sm:$0xf]
  %v17 = vld [vmem:[%s1 + $0x4] sm:$0xf]
  %v18 = vld [vmem:[%s2] sm:$0x1]
  %v20 = vlaneseq
  %v21 = vshrl.u32 %v20, 7
  %v22 = vsub.s32 0, %v21
  %v23 = vrot.slane %v18, %v22
  %v27 = vunpack.c.l.b16 %v16
  %v28 = vunpack.c.l.b16 %v17
  %v29 = vpack.c.b16 %v28, %v27
  %vm31 = vcmask 130048
  %v33 = vsel %vm31, %v15, 0
  %35 = vmatprep.subr.bf16.mxu0 0
  %36 = vmatpush1.bf16.msra.mxu0 0
  %37 = vmatprep.subr.bf16.mxu0 0
  %38 = vmatpush1.bf16.msra.mxu0 0
  %39 = vmatprep.subr.bf16.mxu0 0
  %40 = vmatpush1.bf16.msra.mxu0 0
  %41 = vmatprep.subr.bf16.mxu0 0
  %42 = vmatpush1.bf16.msra.mxu0 0
  %43 = vmatprep.subr.bf16.mxu0 0
  %44 = vmatpush1.bf16.msra.mxu0 0
  %45 = vmatprep.subr.bf16.mxu0 0
  %46 = vmatpush1.bf16.msra.mxu0 0
  %47 = vmatprep.subr.bf16.mxu0 0
  %48 = vmatpush1.bf16.msra.mxu0 0
  %49 = vmatprep.subr.bf16.mxu0 0
  %50 = vmatpush1.bf16.msra.mxu0 %v29
  %51 = vmatprep.subr.bf16.mxu0 0
  %52 = vmatpush2.bf16.msra.mxu0 0
  %53 = vmatprep.subr.bf16.mxu0 0
  %54 = vmatpush2.bf16.msra.mxu0 0
  %55 = vmatprep.subr.bf16.mxu0 0
  %56 = vmatpush2.bf16.msra.mxu0 0
  %57 = vmatprep.subr.bf16.mxu0 0
  %58 = vmatpush2.bf16.msra.mxu0 0
  %59 = vmatprep.subr.bf16.mxu0 0
  %60 = vmatpush2.bf16.msra.mxu0 0
  %61 = vmatprep.subr.bf16.mxu0 0
  %62 = vmatpush2.bf16.msra.mxu0 0
  %63 = vmatprep.subr.bf16.mxu0 0
  %64 = vmatpush2.bf16.msra.mxu0 0
  %65 = vmatprep.subr.bf16.mxu0 0
  %66 = vmatpush2.bf16.msra.mxu0 0
  %67 = vmatprep.mubr.bf16.mxu0 0
  %68 = vmatmul.mubr.bf16.gmra.mxu0 %v33
  %v69 = vpop.f32.mrf.mxu0
  %v70 = vadd.f32 %v23, %v69
  %v71 = vpop.f32.mrf.mxu0
  %v72 = vpop.f32.mrf.mxu0
  %v73 = vpop.f32.mrf.mxu0
  %74 = vdwg.mxu0
  %v75 = vpack.c.bf16 %v70, %v70
  %vm76 = vcmask 516096
  %77 = vst.msk [vmem:[%s3] sm:$0x1] %vm76, %v75
  // Predicated region
  $region14: #{generator_forward.8} parent=0 // pred_check
    _
  $region15: #{generator_forward.8} parent=0 // pred_check_branch
    %79 = sbr.rel (0) target = $region17
  $region16: #{generator_forward.8} parent=0 // pred_region
    _
  $region17: #{generator_forward.8} parent=0 // pred_fallthru
    _
  // Predicated region
  $region18: #{generator_forward.8} parent=0 // pred_check
    _
  $region19: #{generator_forward.8} parent=0 // pred_check_branch
    %81 = sbr.rel (0) target = $region21
  $region20: #{generator_forward.8} parent=0 // pred_region
    _
  $region21: #{generator_forward.8} parent=0 // pred_fallthru
    _

// kernel: generator_forward.10
$region0: #{generator_forward.10}
  #allocation0 [shape = 'u32[]', space=smem, size = 0x4, offset = 0x4, fixed_abs, tag = 'smem constant byte address 0x4 - core index']
  #allocation1 [shape = 'u32[144,128]{1,0:T(1,128)}', space=vmem, size = 0x12000, scoped, tag = 'internal scratch']
  %s0 = inlined_call_operand.vmem [shape: bf16[2,128], index: 0, kind: input, shape index: {}]
  %s1 = inlined_call_operand.vmem [shape: f32[1,128], index: 1, kind: input, shape index: {}]
  %s2 = inlined_call_operand.vmem [shape: f32[1,128], index: 2, kind: input, shape index: {}]
  %s3 = inlined_call_operand.vmem [shape: bf16[2,128], index: 3, kind: output, shape index: {}]
  %s4 = sld [smem:[#allocation0]]
  $region22: #{generator_forward.10} parent=0
    _
  %s6 = ssub.s32 1, %s4
  %s7 = scalar_select 0, %s6, %s4
  // Predicated region
  $region2: #{generator_forward.10} parent=0 // pred_check
    _
  $region3: #{generator_forward.10} parent=0 // pred_check_branch
    %9 = sbr.rel (0) target = $region5
  $region4: #{generator_forward.10} parent=0 // pred_region
    _
  $region5: #{generator_forward.10} parent=0 // pred_fallthru
    _
  // Predicated region
  $region6: #{generator_forward.10} parent=0 // pred_check
    _
  $region7: #{generator_forward.10} parent=0 // pred_check_branch
    %11 = sbr.rel (0) target = $region9
  $region8: #{generator_forward.10} parent=0 // pred_region
    _
  $region9: #{generator_forward.10} parent=0 // pred_fallthru
    _
  // Predicated region
  $region10: #{generator_forward.10} parent=0 // pred_check
    _
  $region11: #{generator_forward.10} parent=0 // pred_check_branch
    %13 = sbr.rel (0) target = $region13
  $region12: #{generator_forward.10} parent=0 // pred_region
    _
  $region13: #{generator_forward.10} parent=0 // pred_fallthru
    _
  %v14 = vld [vmem:[%s0] sm:$0x1]
  %v15 = vunpack.c.l.bf16 %v14
  %v16 = vld [vmem:[%s1] sm:$0x1]
  %v18 = vlaneseq
  %v19 = vshrl.u32 %v18, 7
  %v20 = vsub.s32 0, %v19
  %v21 = vrot.slane %v16, %v20
  %v23 = vmul.f32 %v15, %v21
  %v24 = vld [vmem:[%s2] sm:$0x1]
  %v26 = vlaneseq
  %v27 = vshrl.u32 %v26, 7
  %v28 = vsub.s32 0, %v27
  %v29 = vrot.slane %v24, %v28
  %v31 = vadd.f32 %v23, %v29
  %vm32 = vcmp.ge.f32.partialorder %v31, 0.0
  %v33 = vmul.f32 %v31, 0.05
  %v34 = vsel %vm32, %v31, %v33
  %v35 = vpack.c.bf16 %v34, %v34
  %36 = vst [vmem:[%s3] sm:$0x1] %v35
  // Predicated region
  $region14: #{generator_forward.10} parent=0 // pred_check
    _
  $region15: #{generator_forward.10} parent=0 // pred_check_branch
    %38 = sbr.rel (0) target = $region17
  $region16: #{generator_forward.10} parent=0 // pred_region
    _
  $region17: #{generator_forward.10} parent=0 // pred_fallthru
    _
  // Predicated region
  $region18: #{generator_forward.10} parent=0 // pred_check
    _
  $region19: #{generator_forward.10} parent=0 // pred_check_branch
    %40 = sbr.rel (0) target = $region21
  $region20: #{generator_forward.10} parent=0 // pred_region
    _
  $region21: #{generator_forward.10} parent=0 // pred_fallthru
    _

// kernel: tile.43
$region0: #{tile.43}
  #allocation0 [shape = 's32[1]{0}', space=sflag, size = 0x4, scoped, tag = 'scoped memory for tile.43']
  %s0 = inlined_call_operand.vmem [shape: f32[16], index: 0, kind: input, shape index: {}]
  %s1 = inlined_call_operand.vmem [shape: f32[4,16], index: 1, kind: output, shape index: {}]
  // Predicated region
  $region2: #{tile.43} parent=0 // pred_check
    _
  $region3: #{tile.43} parent=0 // pred_check_branch
    %3 = sbr.rel (0) target = $region5
  $region4: #{tile.43} parent=0 // pred_region
    _
  $region5: #{tile.43} parent=0 // pred_fallthru
    _
  %v4 = vld [vmem:[%s0] ss:$0 sm:$0xff]
  %5 = vst [vmem:[%s1] sm:$0xf] %v4

// kernel: tile.44
$region0: #{tile.44}
  %s0 = inlined_call_operand.vmem [shape: f32[4,16], index: 0, kind: input, shape index: {}]
  %s1 = inlined_call_operand.vmem [shape: f32[1,64], index: 1, kind: output, shape index: {}]
  $region1: #{tile.44} parent=0
    #allocation0 [shape = 'u8[4096]{0}', space=vmem, size = 0x1000, scoped, tag = 'scoped mem for output reshape']
    #allocation1 [shape = 'u8[4096]{0}', space=vmem, size = 0x1000, scoped, tag = 'scoped mem for input reshape']
    %s3 = sshll.u32 1, 4
    %s4 = ssub.s32 %s3, 1
    %v5 = vld [vmem:[%s0] sm:%s4]
    %6 = vst [vmem:[#allocation1] sm:%s4] %v5
    %v7 = vld [vmem:[#allocation1] sm:$0x1]
    %vm8 = vcmask 130048
    %9 = vst.msk [vmem:[#allocation0] sm:$0x1] %vm8, %v7
    %s10 = scalar_lea.vmem [#allocation1], 3
    %v11 = vld [vmem:[%s10] sm:$0x1]
    %12 = vrot.lane.b32.xlu0 %v11, 48
    %v13 = vpop.permute.xlu0 %12
    %vm14 = vcmask 523648
    %15 = vst.msk [vmem:[#allocation0] sm:$0x1] %vm14, %v13
    %s16 = scalar_lea.vmem [#allocation1], 2
    %v17 = vld [vmem:[%s16] sm:$0x1]
    %18 = vrot.lane.b32.xlu0 %v17, 32
    %v19 = vpop.permute.xlu0 %18
    %vm20 = vcmask 392448
    %21 = vst.msk [vmem:[#allocation0] sm:$0x1] %vm20, %v19
    %s22 = scalar_lea.vmem [#allocation1], 1
    %v23 = vld [vmem:[%s22] sm:$0x1]
    %24 = vrot.lane.b32.xlu0 %v23, 16
    %v25 = vpop.permute.xlu0 %24
    %vm26 = vcmask 261248
    %27 = vst.msk [vmem:[#allocation0] sm:$0x1] %vm26, %v25
    %s29 = sshll.u32 1, 1
    %s30 = ssub.s32 %s29, 1
    %v32 = vld [vmem:[#allocation0] sm:%s30]
    %s33 = sshll.u32 1, 1
    %s34 = ssub.s32 %s33, 1
    %35 = vst [vmem:[%s1] sm:%s34] %v32

// kernel: generator_forward.9
$region0: #{generator_forward.9}
  #allocation0 [shape = 'u32[]', space=smem, size = 0x4, offset = 0x4, fixed_abs, tag = 'smem constant byte address 0x4 - core index']
  #allocation1 [shape = 'u32[144,128]{1,0:T(1,128)}', space=vmem, size = 0x12000, scoped, tag = 'internal scratch']
  %s0 = inlined_call_operand.vmem [shape: bf16[2,3,3,64], index: 0, kind: input, shape index: {}]
  %s1 = inlined_call_operand.vmem [shape: bf16[16,64,32], index: 1, kind: input, shape index: {}]
  %s2 = inlined_call_operand.vmem [shape: f32[1,32], index: 2, kind: input, shape index: {}]
  %s3 = inlined_call_operand.vmem [shape: bf16[2,1,1,128], index: 3, kind: output, shape index: {0}]
  %s4 = inlined_call_operand.vmem [shape: f32[2,1,128], index: 4, kind: output, shape index: {1}]
  %s5 = inlined_call_operand.vmem [shape: f32[2,1,128], index: 5, kind: output, shape index: {2}]
  %6 = xla_tuple %s3, %s4, %s5
  %s7 = sld [smem:[#allocation0]]
  $region61: #{generator_forward.9} parent=0
    _
  %s9 = ssub.s32 1, %s7
  %s10 = scalar_select 0, %s9, %s7
  loop: start=0, step=1, limit=4
  $region2: #{generator_forward.9} parent=0 // loop_pre_header
    _
  $region3: #{generator_forward.9} parent=0 // loop_header
    %s12 = sphi 0, %s16
    %p13 = scmp.ge.s32.totalorder %s12, 4
    %s22 = sphi 0, %s24
    %s25 = sphi 0, %s22
    %s26 = sphi 0, %s25
    %s42 = sphi 0, %s26
    %s46 = sphi 0, %s46
    %s48 = sphi 0, %s46
    %s49 = sphi 0, %s48
    %s63 = sphi 0, %s49
    %s67 = sphi 0, %s67
    %s69 = sphi 0, %s67
    %s70 = sphi 0, %s69
    %s84 = sphi 0, %s70
    %s90 = sphi 0, %s92
    %s93 = sphi 0, %s90
    %s94 = sphi 0, %s93
    %s110 = sphi 0, %s94
    %s116 = sphi 0, %s118
    %s119 = sphi 0, %s116
    %s120 = sphi 0, %s119
    %s136 = sphi 0, %s120
    %s142 = sphi 0, %s144
    %s145 = sphi 0, %s142
    %s146 = sphi 0, %s145
    %s162 = sphi 0, %s146
  $region4: #{generator_forward.9} parent=0 // loop_header_branch
    %15 = sbr.rel (%p13) target = $region8
  $region5: #{generator_forward.9} parent=0 // loop_body
    %s17 = ssub.s32 %s12, 1
    %s18 = ssub.s32 %s12, 2
    %s19 = sadd.s32 %s12, 1
    %s20 = ssub.s32 %s12, %s19
    %p21 = scmp.eq.s32.totalorder %s20, 0
    %s23 = sadd.s32 %s22, 1
    %s24 = scalar_select %p21, %s22, %s23
    %p27 = pneg %p21
    %p28 = scmp.eq.s32.totalorder %s12, 1
    %p29 = por %p27, %p28
    %p30 = scmp.ne.s32.totalorder %s22, %s25
    %p31 = scmp.eq.s32.totalorder %s12, 0
    %p32 = por %p30, %p31
    %p33 = scmp.ne.s32.totalorder %s22, %s25
    %p34 = scmp.eq.s32.totalorder %s17, 1
    %p35 = por %p33, %p34
    %p36 = scmp.ne.s32.totalorder %s25, %s26
    %p37 = scmp.eq.s32.totalorder %s17, 0
    %p38 = por %p36, %p37
    %p39 = scmp.ne.s32.totalorder %s25, %s26
    %p40 = scmp.eq.s32.totalorder %s18, 1
    %p41 = por %p39, %p40
    %p43 = scmp.ne.s32.totalorder %s26, %s42
    %p44 = scmp.eq.s32.totalorder %s18, 0
    %p45 = por %p43, %p44
    %s47 = sadd.s32 %s46, 1
    %p50 = scmp.eq.s32.totalorder %s12, 1
    %p51 = scmp.ne.s32.totalorder %s46, %s48
    %p52 = scmp.eq.s32.totalorder %s12, 0
    %p53 = por %p51, %p52
    %p54 = scmp.ne.s32.totalorder %s46, %s48
    %p55 = scmp.eq.s32.totalorder %s17, 1
    %p56 = por %p54, %p55
    %p57 = scmp.ne.s32.totalorder %s48, %s49
    %p58 = scmp.eq.s32.totalorder %s17, 0
    %p59 = por %p57, %p58
    %p60 = scmp.ne.s32.totalorder %s48, %s49
    %p61 = scmp.eq.s32.totalorder %s18, 1
    %p62 = por %p60, %p61
    %p64 = scmp.ne.s32.totalorder %s49, %s63
    %p65 = scmp.eq.s32.totalorder %s18, 0
    %p66 = por %p64, %p65
    %s68 = sadd.s32 %s67, 1
    %p71 = scmp.eq.s32.totalorder %s12, 1
    %p72 = scmp.ne.s32.totalorder %s67, %s69
    %p73 = scmp.eq.s32.totalorder %s12, 0
    %p74 = por %p72, %p73
    %p75 = scmp.ne.s32.totalorder %s67, %s69
    %p76 = scmp.eq.s32.totalorder %s17, 1
    %p77 = por %p75, %p76
    %p78 = scmp.ne.s32.totalorder %s69, %s70
    %p79 = scmp.eq.s32.totalorder %s17, 0
    %p80 = por %p78, %p79
    %p81 = scmp.ne.s32.totalorder %s69, %s70
    %p82 = scmp.eq.s32.totalorder %s18, 1
    %p83 = por %p81, %p82
    %p85 = scmp.ne.s32.totalorder %s70, %s84
    %p86 = scmp.eq.s32.totalorder %s18, 0
    %p87 = por %p85, %p86
    %s88 = ssub.s32 %s12, %s19
    %p89 = scmp.eq.s32.totalorder %s88, 0
    %s91 = sadd.s32 %s90, 1
    %s92 = scalar_select %p89, %s90, %s91
    %p95 = pneg %p89
    %p96 = scmp.eq.s32.totalorder %s12, 1
    %p97 = por %p95, %p96
    %p98 = scmp.ne.s32.totalorder %s90, %s93
    %p99 = scmp.eq.s32.totalorder %s12, 0
    %p100 = por %p98, %p99
    %p101 = scmp.ne.s32.totalorder %s90, %s93
    %p102 = scmp.eq.s32.totalorder %s17, 1
    %p103 = por %p101, %p102
    %p104 = scmp.ne.s32.totalorder %s93, %s94
    %p105 = scmp.eq.s32.totalorder %s17, 0
    %p106 = por %p104, %p105
    %p107 = scmp.ne.s32.totalorder %s93, %s94
    %p108 = scmp.eq.s32.totalorder %s18, 1
    %p109 = por %p107, %p108
    %p111 = scmp.ne.s32.totalorder %s94, %s110
    %p112 = scmp.eq.s32.totalorder %s18, 0
    %p113 = por %p111, %p112
    %s114 = ssub.s32 %s12, %s19
    %p115 = scmp.eq.s32.totalorder %s114, 0
    %s117 = sadd.s32 %s116, 1
    %s118 = scalar_select %p115, %s116, %s117
    %p121 = pneg %p115
    %p122 = scmp.eq.s32.totalorder %s12, 1
    %p123 = por %p121, %p122
    %p124 = scmp.ne.s32.totalorder %s116, %s119
    %p125 = scmp.eq.s32.totalorder %s12, 0
    %p126 = por %p124, %p125
    %p127 = scmp.ne.s32.totalorder %s116, %s119
    %p128 = scmp.eq.s32.totalorder %s17, 1
    %p129 = por %p127, %p128
    %p130 = scmp.ne.s32.totalorder %s119, %s120
    %p131 = scmp.eq.s32.totalorder %s17, 0
    %p132 = por %p130, %p131
    %p133 = scmp.ne.s32.totalorder %s119, %s120
    %p134 = scmp.eq.s32.totalorder %s18, 1
    %p135 = por %p133, %p134
    %p137 = scmp.ne.s32.totalorder %s120, %s136
    %p138 = scmp.eq.s32.totalorder %s18, 0
    %p139 = por %p137, %p138
    %s140 = ssub.s32 %s12, %s19
    %p141 = scmp.eq.s32.totalorder %s140, 0
    %s143 = sadd.s32 %s142, 1
    %s144 = scalar_select %p141, %s142, %s143
    %p147 = pneg %p141
    %p148 = scmp.eq.s32.totalorder %s12, 1
    %p149 = por %p147, %p148
    %p150 = scmp.ne.s32.totalorder %s142, %s145
    %p151 = scmp.eq.s32.totalorder %s12, 0
    %p152 = por %p150, %p151
    %p153 = scmp.ne.s32.totalorder %s142, %s145
    %p154 = scmp.eq.s32.totalorder %s17, 1
    %p155 = por %p153, %p154
    %p156 = scmp.ne.s32.totalorder %s145, %s146
    %p157 = scmp.eq.s32.totalorder %s17, 0
    %p158 = por %p156, %p157
    %p159 = scmp.ne.s32.totalorder %s145, %s146
    %p160 = scmp.eq.s32.totalorder %s18, 1
    %p161 = por %p159, %p160
    %p163 = scmp.ne.s32.totalorder %s146, %s162
    %p164 = scmp.eq.s32.totalorder %s18, 0
    %p165 = por %p163, %p164
    %p166 = scmp.le.s32.totalorder 1, %s12
    %p167 = scmp.lt.s32.totalorder %s12, 3
    %p168 = pnand %p166, %p167
    %p169 = pneg %p168
    // Predicated region
    $region9: #{generator_forward.9} parent=5 // pred_check
      _
    $region10: #{generator_forward.9} parent=5 // pred_check_branch
      %171 = sbr.rel (%p168) target = $region12
    $region11: #{generator_forward.9} parent=5 // pred_region
      %s172 = ssub.s32 %s12, 1
      // Predicated region
      $region13: #{generator_forward.9} parent=11 // pred_check
        %p173 = pneg %p59
      $region14: #{generator_forward.9} parent=11 // pred_check_branch
        %175 = sbr.rel (%p173) target = $region16
      $region15: #{generator_forward.9} parent=11 // pred_region
        _
      $region16: #{generator_forward.9} parent=11 // pred_fallthru
        _
      // Predicated region
      $region17: #{generator_forward.9} parent=11 // pred_check
        %p176 = pneg %p80
      $region18: #{generator_forward.9} parent=11 // pred_check_branch
        %178 = sbr.rel (%p176) target = $region20
      $region19: #{generator_forward.9} parent=11 // pred_region
        _
      $region20: #{generator_forward.9} parent=11 // pred_fallthru
        _
    $region12: #{generator_forward.9} parent=5 // pred_fallthru
      _
    %p179 = scmp.lt.s32.totalorder %s12, 2
    // Predicated region
    $region21: #{generator_forward.9} parent=5 // pred_check
      %p180 = pneg %p179
    $region22: #{generator_forward.9} parent=5 // pred_check_branch
      %182 = sbr.rel (%p180) target = $region24
    $region23: #{generator_forward.9} parent=5 // pred_region
      // Predicated region
      $region25: #{generator_forward.9} parent=23 // pred_check
        %p183 = pneg %p32
      $region26: #{generator_forward.9} parent=23 // pred_check_branch
        %185 = sbr.rel (%p183) target = $region28
      $region27: #{generator_forward.9} parent=23 // pred_region
        %p186 = scmp.lt.s32.totalorder %s12, 1
        %s187 = scalar_select %p186, %s12, 1
        %s188 = smul.addr %s187, 3
        %s189 = smul.addr %s188, 2
        %s190 = scalar_lea.vmem %s0, %s189
      $region28: #{generator_forward.9} parent=23 // pred_fallthru
        _
    $region24: #{generator_forward.9} parent=5 // pred_fallthru
      _
    %p191 = scmp.le.s32.totalorder 1, %s12
    %p192 = scmp.lt.s32.totalorder %s12, 3
    %p193 = pnand %p191, %p192
    %p194 = pneg %p193
    // Predicated region
    $region29: #{generator_forward.9} parent=5 // pred_check
      _
    $region30: #{generator_forward.9} parent=5 // pred_check_branch
      %196 = sbr.rel (%p193) target = $region32
    $region31: #{generator_forward.9} parent=5 // pred_region
      %s197 = ssub.s32 %s12, 1
      %p198 = scmp.lt.s32.totalorder %s17, 1
      %s199 = scalar_select %p198, %s17, 1
      %s200 = smul.addr %s199, 3
      %s201 = smul.addr %s200, 2
      %s202 = scalar_lea.vmem %s0, %s201
      %p203 = pneg %p38
      %p204 = pneg %p35
      %p205 = pneg %p59
      %p206 = pneg %p56
      %p207 = pneg %p80
      %p208 = pneg %p77
      %p209 = pneg %p106
      %p210 = pneg %p103
      %p211 = scmp.lt.s32.totalorder %s17, 1
      %s212 = scalar_select %p211, %s17, 1
      %s213 = scalar_lea.vmem %s3, %s212
      %p214 = pneg %p132
      %p215 = pneg %p129
      %p216 = scmp.lt.s32.totalorder %s17, 1
      %s217 = scalar_select %p216, %s17, 1
      %s218 = scalar_lea.vmem %s4, %s217
      %p219 = pneg %p158
      %p220 = pneg %p155
      %p221 = scmp.lt.s32.totalorder %s17, 1
      %s222 = scalar_select %p221, %s17, 1
      %s223 = scalar_lea.vmem %s5, %s222
      %p224 = scmp.lt.s32.totalorder %s17, 1
      %s225 = scalar_select %p224, %s17, 1
      %s226 = smul.addr %s225, 3
      %s227 = smul.addr %s226, 2
      %s228 = scalar_lea.vmem %s0, %s227
      %p229 = scmp.lt.s32.totalorder %s17, 1
      %s230 = scalar_select %p229, %s17, 1
      %s231 = scalar_lea.vmem %s3, %s230
      %p232 = scmp.lt.s32.totalorder %s17, 1
      %s233 = scalar_select %p232, %s17, 1
      %s234 = scalar_lea.vmem %s4, %s233
      %p235 = scmp.lt.s32.totalorder %s17, 1
      %s236 = scalar_select %p235, %s17, 1
      %s237 = scalar_lea.vmem %s5, %s236
      %v239 = vld [vmem:[%s2] sm:$0x1]
      %v240 = vld [vmem:[%s228] sm:$0x1]
      %v241 = vld [vmem:[%s1] sm:$0xf]
      %v242 = vld [vmem:[%s1 + $0x4] sm:$0xf]
      %v243 = vld [vmem:[%s1 + $0x8] sm:$0xf]
      %v244 = vld [vmem:[%s1 + $0xc] sm:$0xf]
      %v245 = vld [vmem:[%s1 + $0x10] sm:$0xf]
      %v246 = vld [vmem:[%s1 + $0x14] sm:$0xf]
      %v247 = vld [vmem:[%s1 + $0x18] sm:$0xf]
      %v248 = vld [vmem:[%s1 + $0x1c] sm:$0xf]
      %s249 = scalar_lea.vmem %s1, 32
      %v250 = vld [vmem:[%s249] sm:$0xf]
      %v251 = vld [vmem:[%s249 + $0x4] sm:$0xf]
      %v252 = vld [vmem:[%s249 + $0x8] sm:$0xf]
      %v253 = vld [vmem:[%s249 + $0xc] sm:$0xf]
      %v254 = vld [vmem:[%s249 + $0x10] sm:$0xf]
      %v255 = vld [vmem:[%s249 + $0x14] sm:$0xf]
      %v256 = vld [vmem:[%s249 + $0x18] sm:$0xf]
      %v257 = vld [vmem:[%s249 + $0x1c] sm:$0xf]
      %v260 = vunpack.c.l.s4 1983009808
      %v261 = vunpack.c.0.s8 %v260
      %v262 = vlaneseq
      %v263 = vshrl.u32 %v262, 7
      %v264 = vsub.s32 %v261, %v263
      %v265 = vrot.slane %v240, %v264
      %v267 = vshrl.u32 %v265, 16
      %v277 = vunpack.c.l.b16 %v250
      %v278 = vunpack.c.l.b16 %v251
      %v279 = vunpack.c.l.b16 %v252
      %v280 = vunpack.c.l.b16 %v253
      %v281 = vunpack.c.l.b16 %v254
      %v282 = vunpack.c.l.b16 %v255
      %v283 = vunpack.c.l.b16 %v256
      %v284 = vunpack.c.l.b16 %v257
      %v285 = vpack.c.b16 %v278, %v277
      %v286 = vpack.c.b16 %v280, %v279
      %v287 = vpack.c.b16 %v282, %v281
      %v288 = vpack.c.b16 %v284, %v283
      %vm293 = vcmask 523264
      %v295 = vsel %vm293, %v267, 0
      %297 = vmatprep.subr.bf16.mxu0 0
      %298 = vmatpush1.bf16.msra.mxu0 0
      %299 = vmatprep.subr.bf16.mxu0 0
      %300 = vmatpush1.bf16.msra.mxu0 0
      %301 = vmatprep.subr.bf16.mxu0 0
      %302 = vmatpush1.bf16.msra.mxu0 0
      %303 = vmatprep.subr.bf16.mxu0 0
      %304 = vmatpush1.bf16.msra.mxu0 0
      %305 = vmatprep.subr.bf16.mxu0 0
      %306 = vmatpush1.bf16.msra.mxu0 %v288
      %307 = vmatprep.subr.bf16.mxu0 0
      %308 = vmatpush1.bf16.msra.mxu0 %v287
      %309 = vmatprep.subr.bf16.mxu0 0
      %310 = vmatpush1.bf16.msra.mxu0 %v286
      %311 = vmatprep.subr.bf16.mxu0 0
      %312 = vmatpush1.bf16.msra.mxu0 %v285
      %313 = vmatprep.subr.bf16.mxu0 0
      %314 = vmatpush2.bf16.msra.mxu0 0
      %315 = vmatprep.subr.bf16.mxu0 0
      %316 = vmatpush2.bf16.msra.mxu0 0
      %317 = vmatprep.subr.bf16.mxu0 0
      %318 = vmatpush2.bf16.msra.mxu0 0
      %319 = vmatprep.subr.bf16.mxu0 0
      %320 = vmatpush2.bf16.msra.mxu0 0
      %321 = vmatprep.subr.bf16.mxu0 0
      %322 = vmatpush2.bf16.msra.mxu0 0
      %323 = vmatprep.subr.bf16.mxu0 0
      %324 = vmatpush2.bf16.msra.mxu0 0
      %325 = vmatprep.subr.bf16.mxu0 0
      %326 = vmatpush2.bf16.msra.mxu0 0
      %327 = vmatprep.subr.bf16.mxu0 0
      %328 = vmatpush2.bf16.msra.mxu0 0
      %329 = vmatprep.mubr.bf16.mxu0 0
      %330 = vmatmul.mubr.bf16.gmra.mxu0 %v295
      %v331 = vpop.f32.mrf.mxu0
      %v332 = vadd.f32 0.0, %v331
      %v333 = vpop.f32.mrf.mxu0
      %v334 = vpop.f32.mrf.mxu0
      %v335 = vpop.f32.mrf.mxu0
      %336 = vdwg.mxu0
      %v345 = vunpack.c.l.b16 %v241
      %v346 = vunpack.c.l.b16 %v242
      %v347 = vunpack.c.l.b16 %v243
      %v348 = vunpack.c.l.b16 %v244
      %v349 = vunpack.c.l.b16 %v245
      %v350 = vunpack.c.l.b16 %v246
      %v351 = vunpack.c.l.b16 %v247
      %v352 = vunpack.c.l.b16 %v248
      %v353 = vpack.c.b16 %v346, %v345
      %v354 = vpack.c.b16 %v348, %v347
      %v355 = vpack.c.b16 %v350, %v349
      %v356 = vpack.c.b16 %v352, %v351
      %v362 = vsel %vm293, %v240, 0
      %364 = vmatprep.subr.bf16.mxu0 0
      %365 = vmatpush1.bf16.msra.mxu0 0
      %366 = vmatprep.subr.bf16.mxu0 0
      %367 = vmatpush1.bf16.msra.mxu0 0
      %368 = vmatprep.subr.bf16.mxu0 0
      %369 = vmatpush1.bf16.msra.mxu0 0
      %370 = vmatprep.subr.bf16.mxu0 0
      %371 = vmatpush1.bf16.msra.mxu0 0
      %372 = vmatprep.subr.bf16.mxu0 0
      %373 = vmatpush1.bf16.msra.mxu0 %v356
      %374 = vmatprep.subr.bf16.mxu0 0
      %375 = vmatpush1.bf16.msra.mxu0 %v355
      %376 = vmatprep.subr.bf16.mxu0 0
      %377 = vmatpush1.bf16.msra.mxu0 %v354
      %378 = vmatprep.subr.bf16.mxu0 0
      %379 = vmatpush1.bf16.msra.mxu0 %v353
      %380 = vmatprep.subr.bf16.mxu0 0
      %381 = vmatpush2.bf16.msra.mxu0 0
      %382 = vmatprep.subr.bf16.mxu0 0
      %383 = vmatpush2.bf16.msra.mxu0 0
      %384 = vmatprep.subr.bf16.mxu0 0
      %385 = vmatpush2.bf16.msra.mxu0 0
      %386 = vmatprep.subr.bf16.mxu0 0
      %387 = vmatpush2.bf16.msra.mxu0 0
      %388 = vmatprep.subr.bf16.mxu0 0
      %389 = vmatpush2.bf16.msra.mxu0 0
      %390 = vmatprep.subr.bf16.mxu0 0
      %391 = vmatpush2.bf16.msra.mxu0 0
      %392 = vmatprep.subr.bf16.mxu0 0
      %393 = vmatpush2.bf16.msra.mxu0 0
      %394 = vmatprep.subr.bf16.mxu0 0
      %395 = vmatpush2.bf16.msra.mxu0 0
      %396 = vmatprep.mubr.bf16.mxu0 0
      %397 = vmatmul.mubr.bf16.gmra.mxu0 %v362
      %v398 = vpop.f32.mrf.mxu0
      %v399 = vadd.f32 %v332, %v398
      %v400 = vpop.f32.mrf.mxu0
      %v401 = vpop.f32.mrf.mxu0
      %v402 = vpop.f32.mrf.mxu0
      %403 = vdwg.mxu0
      %s404 = scalar_lea.vmem %s228, 2
      %v405 = vld [vmem:[%s404] sm:$0x1]
      %s406 = scalar_lea.vmem %s1, 64
      %v407 = vld [vmem:[%s406] sm:$0xf]
      %v408 = vld [vmem:[%s406 + $0x4] sm:$0xf]
      %v409 = vld [vmem:[%s406 + $0x8] sm:$0xf]
      %v410 = vld [vmem:[%s406 + $0xc] sm:$0xf]
      %v411 = vld [vmem:[%s406 + $0x10] sm:$0xf]
      %v412 = vld [vmem:[%s406 + $0x14] sm:$0xf]
      %v413 = vld [vmem:[%s406 + $0x18] sm:$0xf]
      %v414 = vld [vmem:[%s406 + $0x1c] sm:$0xf]
      %v423 = vunpack.c.l.b16 %v407
      %v424 = vunpack.c.l.b16 %v408
      %v425 = vunpack.c.l.b16 %v409
      %v426 = vunpack.c.l.b16 %v410
      %v427 = vunpack.c.l.b16 %v411
      %v428 = vunpack.c.l.b16 %v412
      %v429 = vunpack.c.l.b16 %v413
      %v430 = vunpack.c.l.b16 %v414
      %v431 = vpack.c.b16 %v424, %v423
      %v432 = vpack.c.b16 %v426, %v425
      %v433 = vpack.c.b16 %v428, %v427
      %v434 = vpack.c.b16 %v430, %v429
      %v440 = vsel %vm293, %v405, 0
      %442 = vmatprep.subr.bf16.mxu0 0
      %443 = vmatpush1.bf16.msra.mxu0 0
      %444 = vmatprep.subr.bf16.mxu0 0
      %445 = vmatpush1.bf16.msra.mxu0 0
      %446 = vmatprep.subr.bf16.mxu0 0
      %447 = vmatpush1.bf16.msra.mxu0 0
      %448 = vmatprep.subr.bf16.mxu0 0
      %449 = vmatpush1.bf16.msra.mxu0 0
      %450 = vmatprep.subr.bf16.mxu0 0
      %451 = vmatpush1.bf16.msra.mxu0 %v434
      %452 = vmatprep.subr.bf16.mxu0 0
      %453 = vmatpush1.bf16.msra.mxu0 %v433
      %454 = vmatprep.subr.bf16.mxu0 0
      %455 = vmatpush1.bf16.msra.mxu0 %v432
      %456 = vmatprep.subr.bf16.mxu0 0
      %457 = vmatpush1.bf16.msra.mxu0 %v431
      %458 = vmatprep.subr.bf16.mxu0 0
      %459 = vmatpush2.bf16.msra.mxu0 0
      %460 = vmatprep.subr.bf16.mxu0 0
      %461 = vmatpush2.bf16.msra.mxu0 0
      %462 = vmatprep.subr.bf16.mxu0 0
      %463 = vmatpush2.bf16.msra.mxu0 0
      %464 = vmatprep.subr.bf16.mxu0 0
      %465 = vmatpush2.bf16.msra.mxu0 0
      %466 = vmatprep.subr.bf16.mxu0 0
      %467 = vmatpush2.bf16.msra.mxu0 0
      %468 = vmatprep.subr.bf16.mxu0 0
      %469 = vmatpush2.bf16.msra.mxu0 0
      %470 = vmatprep.subr.bf16.mxu0 0
      %471 = vmatpush2.bf16.msra.mxu0 0
      %472 = vmatprep.subr.bf16.mxu0 0
      %473 = vmatpush2.bf16.msra.mxu0 0
      %474 = vmatprep.mubr.bf16.mxu0 0
      %475 = vmatmul.mubr.bf16.gmra.mxu0 %v440
      %v476 = vpop.f32.mrf.mxu0
      %v477 = vadd.f32 0.0, %v476
      %v478 = vpop.f32.mrf.mxu0
      %v479 = vpop.f32.mrf.mxu0
      %v480 = vpop.f32.mrf.mxu0
      %481 = vdwg.mxu0
      %v482 = vadd.f32 %v399, %v477
      %s483 = scalar_lea.vmem %s1, 96
      %v484 = vld [vmem:[%s483] sm:$0xf]
      %v485 = vld [vmem:[%s483 + $0x4] sm:$0xf]
      %v486 = vld [vmem:[%s483 + $0x8] sm:$0xf]
      %v487 = vld [vmem:[%s483 + $0xc] sm:$0xf]
      %v488 = vld [vmem:[%s483 + $0x10] sm:$0xf]
      %v489 = vld [vmem:[%s483 + $0x14] sm:$0xf]
      %v490 = vld [vmem:[%s483 + $0x18] sm:$0xf]
      %v491 = vld [vmem:[%s483 + $0x1c] sm:$0xf]
      %v494 = vunpack.c.l.s4 1983009808
      %v495 = vunpack.c.0.s8 %v494
      %v496 = vlaneseq
      %v497 = vshrl.u32 %v496, 7
      %v498 = vsub.s32 %v495, %v497
      %v499 = vrot.slane %v405, %v498
      %v501 = vshrl.u32 %v499, 16
      %v511 = vunpack.c.l.b16 %v484
      %v512 = vunpack.c.l.b16 %v485
      %v513 = vunpack.c.l.b16 %v486
      %v514 = vunpack.c.l.b16 %v487
      %v515 = vunpack.c.l.b16 %v488
      %v516 = vunpack.c.l.b16 %v489
      %v517 = vunpack.c.l.b16 %v490
      %v518 = vunpack.c.l.b16 %v491
      %v519 = vpack.c.b16 %v512, %v511
      %v520 = vpack.c.b16 %v514, %v513
      %v521 = vpack.c.b16 %v516, %v515
      %v522 = vpack.c.b16 %v518, %v517
      %v528 = vsel %vm293, %v501, 0
      %530 = vmatprep.subr.bf16.mxu0 0
      %531 = vmatpush1.bf16.msra.mxu0 0
      %532 = vmatprep.subr.bf16.mxu0 0
      %533 = vmatpush1.bf16.msra.mxu0 0
      %534 = vmatprep.subr.bf16.mxu0 0
      %535 = vmatpush1.bf16.msra.mxu0 0
      %536 = vmatprep.subr.bf16.mxu0 0
      %537 = vmatpush1.bf16.msra.mxu0 0
      %538 = vmatprep.subr.bf16.mxu0 0
      %539 = vmatpush1.bf16.msra.mxu0 %v522
      %540 = vmatprep.subr.bf16.mxu0 0
      %541 = vmatpush1.bf16.msra.mxu0 %v521
      %542 = vmatprep.subr.bf16.mxu0 0
      %543 = vmatpush1.bf16.msra.mxu0 %v520
      %544 = vmatprep.subr.bf16.mxu0 0
      %545 = vmatpush1.bf16.msra.mxu0 %v519
      %546 = vmatprep.subr.bf16.mxu0 0
      %547 = vmatpush2.bf16.msra.mxu0 0
      %548 = vmatprep.subr.bf16.mxu0 0
      %549 = vmatpush2.bf16.msra.mxu0 0
      %550 = vmatprep.subr.bf16.mxu0 0
      %551 = vmatpush2.bf16.msra.mxu0 0
      %552 = vmatprep.subr.bf16.mxu0 0
      %553 = vmatpush2.bf16.msra.mxu0 0
      %554 = vmatprep.subr.bf16.mxu0 0
      %555 = vmatpush2.bf16.msra.mxu0 0
      %556 = vmatprep.subr.bf16.mxu0 0
      %557 = vmatpush2.bf16.msra.mxu0 0
      %558 = vmatprep.subr.bf16.mxu0 0
      %559 = vmatpush2.bf16.msra.mxu0 0
      %560 = vmatprep.subr.bf16.mxu0 0
      %561 = vmatpush2.bf16.msra.mxu0 0
      %562 = vmatprep.mubr.bf16.mxu0 0
      %563 = vmatmul.mubr.bf16.gmra.mxu0 %v528
      %v564 = vpop.f32.mrf.mxu0
      %v565 = vadd.f32 0.0, %v564
      %v566 = vpop.f32.mrf.mxu0
      %v567 = vpop.f32.mrf.mxu0
      %v568 = vpop.f32.mrf.mxu0
      %569 = vdwg.mxu0
      %v570 = vadd.f32 %v482, %v565
      %v571 = vadd.f32 %v570, %v239
      %v572 = vadd.f32 %v571, 0.0
      %v573 = vmul.f32 %v571, %v571
      %v574 = vadd.f32 %v573, 0.0
      %s575 = scalar_lea.vmem %s1, 128
      %v576 = vld [vmem:[%s575] sm:$0xf]
      %v577 = vld [vmem:[%s575 + $0x4] sm:$0xf]
      %v578 = vld [vmem:[%s575 + $0x8] sm:$0xf]
      %v579 = vld [vmem:[%s575 + $0xc] sm:$0xf]
      %v580 = vld [vmem:[%s575 + $0x10] sm:$0xf]
      %v581 = vld [vmem:[%s575 + $0x14] sm:$0xf]
      %v582 = vld [vmem:[%s575 + $0x18] sm:$0xf]
      %v583 = vld [vmem:[%s575 + $0x1c] sm:$0xf]
      %v584 = vld [vmem:[%s228] sm:$0x2]
      %s585 = scalar_lea.vmem %s1, 160
      %v586 = vld [vmem:[%s585] sm:$0xf]
      %v587 = vld [vmem:[%s585 + $0x4] sm:$0xf]
      %v588 = vld [vmem:[%s585 + $0x8] sm:$0xf]
      %v589 = vld [vmem:[%s585 + $0xc] sm:$0xf]
      %v590 = vld [vmem:[%s585 + $0x10] sm:$0xf]
      %v591 = vld [vmem:[%s585 + $0x14] sm:$0xf]
      %v592 = vld [vmem:[%s585 + $0x18] sm:$0xf]
      %v593 = vld [vmem:[%s585 + $0x1c] sm:$0xf]
      %v596 = vunpack.c.l.s4 1983009808
      %v597 = vunpack.c.0.s8 %v596
      %v598 = vlaneseq
      %v599 = vshrl.u32 %v598, 7
      %v600 = vsub.s32 %v597, %v599
      %v601 = vrot.slane %v584, %v600
      %v602 = vrot.slane %v601, 1
      %v611 = vunpack.c.l.b16 %v586
      %v612 = vunpack.c.l.b16 %v587
      %v613 = vunpack.c.l.b16 %v588
      %v614 = vunpack.c.l.b16 %v589
      %v615 = vunpack.c.l.b16 %v590
      %v616 = vunpack.c.l.b16 %v591
      %v617 = vunpack.c.l.b16 %v592
      %v618 = vunpack.c.l.b16 %v593
      %v619 = vpack.c.b16 %v612, %v611
      %v620 = vpack.c.b16 %v614, %v613
      %v621 = vpack.c.b16 %v616, %v615
      %v622 = vpack.c.b16 %v618, %v617
      %v628 = vsel %vm293, %v602, 0
      %630 = vmatprep.subr.bf16.mxu0 0
      %631 = vmatpush1.bf16.msra.mxu0 0
      %632 = vmatprep.subr.bf16.mxu0 0
      %633 = vmatpush1.bf16.msra.mxu0 0
      %634 = vmatprep.subr.bf16.mxu0 0
      %635 = vmatpush1.bf16.msra.mxu0 0
      %636 = vmatprep.subr.bf16.mxu0 0
      %637 = vmatpush1.bf16.msra.mxu0 0
      %638 = vmatprep.subr.bf16.mxu0 0
      %639 = vmatpush1.bf16.msra.mxu0 %v622
      %640 = vmatprep.subr.bf16.mxu0 0
      %641 = vmatpush1.bf16.msra.mxu0 %v621
      %642 = vmatprep.subr.bf16.mxu0 0
      %643 = vmatpush1.bf16.msra.mxu0 %v620
      %644 = vmatprep.subr.bf16.mxu0 0
      %645 = vmatpush1.bf16.msra.mxu0 %v619
      %646 = vmatprep.subr.bf16.mxu0 0
      %647 = vmatpush2.bf16.msra.mxu0 0
      %648 = vmatprep.subr.bf16.mxu0 0
      %649 = vmatpush2.bf16.msra.mxu0 0
      %650 = vmatprep.subr.bf16.mxu0 0
      %651 = vmatpush2.bf16.msra.mxu0 0
      %652 = vmatprep.subr.bf16.mxu0 0
      %653 = vmatpush2.bf16.msra.mxu0 0
      %654 = vmatprep.subr.bf16.mxu0 0
      %655 = vmatpush2.bf16.msra.mxu0 0
      %656 = vmatprep.subr.bf16.mxu0 0
      %657 = vmatpush2.bf16.msra.mxu0 0
      %658 = vmatprep.subr.bf16.mxu0 0
      %659 = vmatpush2.bf16.msra.mxu0 0
      %660 = vmatprep.subr.bf16.mxu0 0
      %661 = vmatpush2.bf16.msra.mxu0 0
      %662 = vmatprep.mubr.bf16.mxu0 0
      %663 = vmatmul.mubr.bf16.gmra.mxu0 %v628
      %v664 = vpop.f32.mrf.mxu0
      %v665 = vadd.f32 0.0, %v664
      %v666 = vpop.f32.mrf.mxu0
      %v667 = vpop.f32.mrf.mxu0
      %v668 = vpop.f32.mrf.mxu0
      %669 = vdwg.mxu0
      %v678 = vunpack.c.l.b16 %v576
      %v679 = vunpack.c.l.b16 %v577
      %v680 = vunpack.c.l.b16 %v578
      %v681 = vunpack.c.l.b16 %v579
      %v682 = vunpack.c.l.b16 %v580
      %v683 = vunpack.c.l.b16 %v581
      %v684 = vunpack.c.l.b16 %v582
      %v685 = vunpack.c.l.b16 %v583
      %v686 = vpack.c.b16 %v679, %v678
      %v687 = vpack.c.b16 %v681, %v680
      %v688 = vpack.c.b16 %v683, %v682
      %v689 = vpack.c.b16 %v685, %v684
      %694 = vmatprep.subr.bf16.mxu0 0
      %695 = vmatpush1.bf16.msra.mxu0 0
      %696 = vmatprep.subr.bf16.mxu0 0
      %697 = vmatpush1.bf16.msra.mxu0 0
      %698 = vmatprep.subr.bf16.mxu0 0
      %699 = vmatpush1.bf16.msra.mxu0 0
      %700 = vmatprep.subr.bf16.mxu0 0
      %701 = vmatpush1.bf16.msra.mxu0 0
      %702 = vmatprep.subr.bf16.mxu0 0
      %703 = vmatpush1.bf16.msra.mxu0 %v689
      %704 = vmatprep.subr.bf16.mxu0 0
      %705 = vmatpush1.bf16.msra.mxu0 %v688
      %706 = vmatprep.subr.bf16.mxu0 0
      %707 = vmatpush1.bf16.msra.mxu0 %v687
      %708 = vmatprep.subr.bf16.mxu0 0
      %709 = vmatpush1.bf16.msra.mxu0 %v686
      %710 = vmatprep.subr.bf16.mxu0 0
      %711 = vmatpush2.bf16.msra.mxu0 0
      %712 = vmatprep.subr.bf16.mxu0 0
      %713 = vmatpush2.bf16.msra.mxu0 0
      %714 = vmatprep.subr.bf16.mxu0 0
      %715 = vmatpush2.bf16.msra.mxu0 0
      %716 = vmatprep.subr.bf16.mxu0 0
      %717 = vmatpush2.bf16.msra.mxu0 0
      %718 = vmatprep.subr.bf16.mxu0 0
      %719 = vmatpush2.bf16.msra.mxu0 0
      %720 = vmatprep.subr.bf16.mxu0 0
      %721 = vmatpush2.bf16.msra.mxu0 0
      %722 = vmatprep.subr.bf16.mxu0 0
      %723 = vmatpush2.bf16.msra.mxu0 0
      %724 = vmatprep.subr.bf16.mxu0 0
      %725 = vmatpush2.bf16.msra.mxu0 0
      %726 = vmatprep.mubr.bf16.mxu0 0
      %727 = vmatmul.mubr.bf16.gmra.mxu0 %v295
      %v728 = vpop.f32.mrf.mxu0
      %v729 = vadd.f32 %v665, %v728
      %v730 = vpop.f32.mrf.mxu0
      %v731 = vpop.f32.mrf.mxu0
      %v732 = vpop.f32.mrf.mxu0
      %733 = vdwg.mxu0
      %s734 = scalar_lea.vmem %s1, 192
      %v735 = vld [vmem:[%s734] sm:$0xf]
      %v736 = vld [vmem:[%s734 + $0x4] sm:$0xf]
      %v737 = vld [vmem:[%s734 + $0x8] sm:$0xf]
      %v738 = vld [vmem:[%s734 + $0xc] sm:$0xf]
      %v739 = vld [vmem:[%s734 + $0x10] sm:$0xf]
      %v740 = vld [vmem:[%s734 + $0x14] sm:$0xf]
      %v741 = vld [vmem:[%s734 + $0x18] sm:$0xf]
      %v742 = vld [vmem:[%s734 + $0x1c] sm:$0xf]
      %v751 = vunpack.c.l.b16 %v735
      %v752 = vunpack.c.l.b16 %v736
      %v753 = vunpack.c.l.b16 %v737
      %v754 = vunpack.c.l.b16 %v738
      %v755 = vunpack.c.l.b16 %v739
      %v756 = vunpack.c.l.b16 %v740
      %v757 = vunpack.c.l.b16 %v741
      %v758 = vunpack.c.l.b16 %v742
      %v759 = vpack.c.b16 %v752, %v751
      %v760 = vpack.c.b16 %v754, %v753
      %v761 = vpack.c.b16 %v756, %v755
      %v762 = vpack.c.b16 %v758, %v757
      %767 = vmatprep.subr.bf16.mxu0 0
      %768 = vmatpush1.bf16.msra.mxu0 0
      %769 = vmatprep.subr.bf16.mxu0 0
      %770 = vmatpush1.bf16.msra.mxu0 0
      %771 = vmatprep.subr.bf16.mxu0 0
      %772 = vmatpush1.bf16.msra.mxu0 0
      %773 = vmatprep.subr.bf16.mxu0 0
      %774 = vmatpush1.bf16.msra.mxu0 0
      %775 = vmatprep.subr.bf16.mxu0 0
      %776 = vmatpush1.bf16.msra.mxu0 %v762
      %777 = vmatprep.subr.bf16.mxu0 0
      %778 = vmatpush1.bf16.msra.mxu0 %v761
      %779 = vmatprep.subr.bf16.mxu0 0
      %780 = vmatpush1.bf16.msra.mxu0 %v760
      %781 = vmatprep.subr.bf16.mxu0 0
      %782 = vmatpush1.bf16.msra.mxu0 %v759
      %783 = vmatprep.subr.bf16.mxu0 0
      %784 = vmatpush2.bf16.msra.mxu0 0
      %785 = vmatprep.subr.bf16.mxu0 0
      %786 = vmatpush2.bf16.msra.mxu0 0
      %787 = vmatprep.subr.bf16.mxu0 0
      %788 = vmatpush2.bf16.msra.mxu0 0
      %789 = vmatprep.subr.bf16.mxu0 0
      %790 = vmatpush2.bf16.msra.mxu0 0
      %791 = vmatprep.subr.bf16.mxu0 0
      %792 = vmatpush2.bf16.msra.mxu0 0
      %793 = vmatprep.subr.bf16.mxu0 0
      %794 = vmatpush2.bf16.msra.mxu0 0
      %795 = vmatprep.subr.bf16.mxu0 0
      %796 = vmatpush2.bf16.msra.mxu0 0
      %797 = vmatprep.subr.bf16.mxu0 0
      %798 = vmatpush2.bf16.msra.mxu0 0
      %799 = vmatprep.mubr.bf16.mxu0 0
      %800 = vmatmul.mubr.bf16.gmra.mxu0 %v528
      %v801 = vpop.f32.mrf.mxu0
      %v802 = vadd.f32 0.0, %v801
      %v803 = vpop.f32.mrf.mxu0
      %v804 = vpop.f32.mrf.mxu0
      %v805 = vpop.f32.mrf.mxu0
      %806 = vdwg.mxu0
      %v807 = vadd.f32 %v729, %v802
      %v808 = vld [vmem:[%s404] sm:$0x2]
      %s809 = scalar_lea.vmem %s1, 224
      %v810 = vld [vmem:[%s809] sm:$0xf]
      %v811 = vld [vmem:[%s809 + $0x4] sm:$0xf]
      %v812 = vld [vmem:[%s809 + $0x8] sm:$0xf]
      %v813 = vld [vmem:[%s809 + $0xc] sm:$0xf]
      %v814 = vld [vmem:[%s809 + $0x10] sm:$0xf]
      %v815 = vld [vmem:[%s809 + $0x14] sm:$0xf]
      %v816 = vld [vmem:[%s809 + $0x18] sm:$0xf]
      %v817 = vld [vmem:[%s809 + $0x1c] sm:$0xf]
      %v820 = vunpack.c.l.s4 1983009808
      %v821 = vunpack.c.0.s8 %v820
      %v822 = vlaneseq
      %v823 = vshrl.u32 %v822, 7
      %v824 = vsub.s32 %v821, %v823
      %v825 = vrot.slane %v808, %v824
      %v826 = vrot.slane %v825, 1
      %v835 = vunpack.c.l.b16 %v810
      %v836 = vunpack.c.l.b16 %v811
      %v837 = vunpack.c.l.b16 %v812
      %v838 = vunpack.c.l.b16 %v813
      %v839 = vunpack.c.l.b16 %v814
      %v840 = vunpack.c.l.b16 %v815
      %v841 = vunpack.c.l.b16 %v816
      %v842 = vunpack.c.l.b16 %v817
      %v843 = vpack.c.b16 %v836, %v835
      %v844 = vpack.c.b16 %v838, %v837
      %v845 = vpack.c.b16 %v840, %v839
      %v846 = vpack.c.b16 %v842, %v841
      %v852 = vsel %vm293, %v826, 0
      %854 = vmatprep.subr.bf16.mxu0 0
      %855 = vmatpush1.bf16.msra.mxu0 0
      %856 = vmatprep.subr.bf16.mxu0 0
      %857 = vmatpush1.bf16.msra.mxu0 0
      %858 = vmatprep.subr.bf16.mxu0 0
      %859 = vmatpush1.bf16.msra.mxu0 0
      %860 = vmatprep.subr.bf16.mxu0 0
      %861 = vmatpush1.bf16.msra.mxu0 0
      %862 = vmatprep.subr.bf16.mxu0 0
      %863 = vmatpush1.bf16.msra.mxu0 %v846
      %864 = vmatprep.subr.bf16.mxu0 0
      %865 = vmatpush1.bf16.msra.mxu0 %v845
      %866 = vmatprep.subr.bf16.mxu0 0
      %867 = vmatpush1.bf16.msra.mxu0 %v844
      %868 = vmatprep.subr.bf16.mxu0 0
      %869 = vmatpush1.bf16.msra.mxu0 %v843
      %870 = vmatprep.subr.bf16.mxu0 0
      %871 = vmatpush2.bf16.msra.mxu0 0
      %872 = vmatprep.subr.bf16.mxu0 0
      %873 = vmatpush2.bf16.msra.mxu0 0
      %874 = vmatprep.subr.bf16.mxu0 0
      %875 = vmatpush2.bf16.msra.mxu0 0
      %876 = vmatprep.subr.bf16.mxu0 0
      %877 = vmatpush2.bf16.msra.mxu0 0
      %878 = vmatprep.subr.bf16.mxu0 0
      %879 = vmatpush2.bf16.msra.mxu0 0
      %880 = vmatprep.subr.bf16.mxu0 0
      %881 = vmatpush2.bf16.msra.mxu0 0
      %882 = vmatprep.subr.bf16.mxu0 0
      %883 = vmatpush2.bf16.msra.mxu0 0
      %884 = vmatprep.subr.bf16.mxu0 0
      %885 = vmatpush2.bf16.msra.mxu0 0
      %886 = vmatprep.mubr.bf16.mxu0 0
      %887 = vmatmul.mubr.bf16.gmra.mxu0 %v852
      %v888 = vpop.f32.mrf.mxu0
      %v889 = vadd.f32 0.0, %v888
      %v890 = vpop.f32.mrf.mxu0
      %v891 = vpop.f32.mrf.mxu0
      %v892 = vpop.f32.mrf.mxu0
      %893 = vdwg.mxu0
      %v894 = vadd.f32 %v807, %v889
      %v895 = vadd.f32 %v894, %v239
      %v896 = vadd.f32 %v895, 0.0
      %v897 = vmul.f32 %v895, %v895
      %v898 = vadd.f32 %v897, 0.0
      %s899 = scalar_lea.vmem %s1, 256
      %v900 = vld [vmem:[%s899] sm:$0xf]
      %v901 = vld [vmem:[%s899 + $0x4] sm:$0xf]
      %v902 = vld [vmem:[%s899 + $0x8] sm:$0xf]
      %v903 = vld [vmem:[%s899 + $0xc] sm:$0xf]
      %v904 = vld [vmem:[%s899 + $0x10] sm:$0xf]
      %v905 = vld [vmem:[%s899 + $0x14] sm:$0xf]
      %v906 = vld [vmem:[%s899 + $0x18] sm:$0xf]
      %v907 = vld [vmem:[%s899 + $0x1c] sm:$0xf]
      %s908 = scalar_lea.vmem %s1, 288
      %v909 = vld [vmem:[%s908] sm:$0xf]
      %v910 = vld [vmem:[%s908 + $0x4] sm:$0xf]
      %v911 = vld [vmem:[%s908 + $0x8] sm:$0xf]
      %v912 = vld [vmem:[%s908 + $0xc] sm:$0xf]
      %v913 = vld [vmem:[%s908 + $0x10] sm:$0xf]
      %v914 = vld [vmem:[%s908 + $0x14] sm:$0xf]
      %v915 = vld [vmem:[%s908 + $0x18] sm:$0xf]
      %v916 = vld [vmem:[%s908 + $0x1c] sm:$0xf]
      %v925 = vunpack.c.l.b16 %v909
      %v926 = vunpack.c.l.b16 %v910
      %v927 = vunpack.c.l.b16 %v911
      %v928 = vunpack.c.l.b16 %v912
      %v929 = vunpack.c.l.b16 %v913
      %v930 = vunpack.c.l.b16 %v914
      %v931 = vunpack.c.l.b16 %v915
      %v932 = vunpack.c.l.b16 %v916
      %v933 = vpack.c.b16 %v926, %v925
      %v934 = vpack.c.b16 %v928, %v927
      %v935 = vpack.c.b16 %v930, %v929
      %v936 = vpack.c.b16 %v932, %v931
      %941 = vmatprep.subr.bf16.mxu0 0
      %942 = vmatpush1.bf16.msra.mxu0 0
      %943 = vmatprep.subr.bf16.mxu0 0
      %944 = vmatpush1.bf16.msra.mxu0 0
      %945 = vmatprep.subr.bf16.mxu0 0
      %946 = vmatpush1.bf16.msra.mxu0 0
      %947 = vmatprep.subr.bf16.mxu0 0
      %948 = vmatpush1.bf16.msra.mxu0 0
      %949 = vmatprep.subr.bf16.mxu0 0
      %950 = vmatpush1.bf16.msra.mxu0 %v936
      %951 = vmatprep.subr.bf16.mxu0 0
      %952 = vmatpush1.bf16.msra.mxu0 %v935
      %953 = vmatprep.subr.bf16.mxu0 0
      %954 = vmatpush1.bf16.msra.mxu0 %v934
      %955 = vmatprep.subr.bf16.mxu0 0
      %956 = vmatpush1.bf16.msra.mxu0 %v933
      %957 = vmatprep.subr.bf16.mxu0 0
      %958 = vmatpush2.bf16.msra.mxu0 0
      %959 = vmatprep.subr.bf16.mxu0 0
      %960 = vmatpush2.bf16.msra.mxu0 0
      %961 = vmatprep.subr.bf16.mxu0 0
      %962 = vmatpush2.bf16.msra.mxu0 0
      %963 = vmatprep.subr.bf16.mxu0 0
      %964 = vmatpush2.bf16.msra.mxu0 0
      %965 = vmatprep.subr.bf16.mxu0 0
      %966 = vmatpush2.bf16.msra.mxu0 0
      %967 = vmatprep.subr.bf16.mxu0 0
      %968 = vmatpush2.bf16.msra.mxu0 0
      %969 = vmatprep.subr.bf16.mxu0 0
      %970 = vmatpush2.bf16.msra.mxu0 0
      %971 = vmatprep.subr.bf16.mxu0 0
      %972 = vmatpush2.bf16.msra.mxu0 0
      %973 = vmatprep.mubr.bf16.mxu0 0
      %974 = vmatmul.mubr.bf16.gmra.mxu0 %v528
      %v975 = vpop.f32.mrf.mxu0
      %v976 = vadd.f32 0.0, %v975
      %v977 = vpop.f32.mrf.mxu0
      %v978 = vpop.f32.mrf.mxu0
      %v979 = vpop.f32.mrf.mxu0
      %980 = vdwg.mxu0
      %v989 = vunpack.c.l.b16 %v900
      %v990 = vunpack.c.l.b16 %v901
      %v991 = vunpack.c.l.b16 %v902
      %v992 = vunpack.c.l.b16 %v903
      %v993 = vunpack.c.l.b16 %v904
      %v994 = vunpack.c.l.b16 %v905
      %v995 = vunpack.c.l.b16 %v906
      %v996 = vunpack.c.l.b16 %v907
      %v997 = vpack.c.b16 %v990, %v989
      %v998 = vpack.c.b16 %v992, %v991
      %v999 = vpack.c.b16 %v994, %v993
      %v1000 = vpack.c.b16 %v996, %v995
      %1005 = vmatprep.subr.bf16.mxu0 0
      %1006 = vmatpush1.bf16.msra.mxu0 0
      %1007 = vmatprep.subr.bf16.mxu0 0
      %1008 = vmatpush1.bf16.msra.mxu0 0
      %1009 = vmatprep.subr.bf16.mxu0 0
      %1010 = vmatpush1.bf16.msra.mxu0 0
      %1011 = vmatprep.subr.bf16.mxu0 0
      %1012 = vmatpush1.bf16.msra.mxu0 0
      %1013 = vmatprep.subr.bf16.mxu0 0
      %1014 = vmatpush1.bf16.msra.mxu0 %v1000
      %1015 = vmatprep.subr.bf16.mxu0 0
      %1016 = vmatpush1.bf16.msra.mxu0 %v999
      %1017 = vmatprep.subr.bf16.mxu0 0
      %1018 = vmatpush1.bf16.msra.mxu0 %v998
      %1019 = vmatprep.subr.bf16.mxu0 0
      %1020 = vmatpush1.bf16.msra.mxu0 %v997
      %1021 = vmatprep.subr.bf16.mxu0 0
      %1022 = vmatpush2.bf16.msra.mxu0 0
      %1023 = vmatprep.subr.bf16.mxu0 0
      %1024 = vmatpush2.bf16.msra.mxu0 0
      %1025 = vmatprep.subr.bf16.mxu0 0
      %1026 = vmatpush2.bf16.msra.mxu0 0
      %1027 = vmatprep.subr.bf16.mxu0 0
      %1028 = vmatpush2.bf16.msra.mxu0 0
      %1029 = vmatprep.subr.bf16.mxu0 0
      %1030 = vmatpush2.bf16.msra.mxu0 0
      %1031 = vmatprep.subr.bf16.mxu0 0
      %1032 = vmatpush2.bf16.msra.mxu0 0
      %1033 = vmatprep.subr.bf16.mxu0 0
      %1034 = vmatpush2.bf16.msra.mxu0 0
      %1035 = vmatprep.subr.bf16.mxu0 0
      %1036 = vmatpush2.bf16.msra.mxu0 0
      %1037 = vmatprep.mubr.bf16.mxu0 0
      %1038 = vmatmul.mubr.bf16.gmra.mxu0 %v440
      %v1039 = vpop.f32.mrf.mxu0
      %v1040 = vadd.f32 %v976, %v1039
      %v1041 = vpop.f32.mrf.mxu0
      %v1042 = vpop.f32.mrf.mxu0
      %v1043 = vpop.f32.mrf.mxu0
      %1044 = vdwg.mxu0
      %s1045 = scalar_lea.vmem %s228, 4
      %v1046 = vld [vmem:[%s1045] sm:$0x1]
      %s1047 = scalar_lea.vmem %s1, 320
      %v1048 = vld [vmem:[%s1047] sm:$0xf]
      %v1049 = vld [vmem:[%s1047 + $0x4] sm:$0xf]
      %v1050 = vld [vmem:[%s1047 + $0x8] sm:$0xf]
      %v1051 = vld [vmem:[%s1047 + $0xc] sm:$0xf]
      %v1052 = vld [vmem:[%s1047 + $0x10] sm:$0xf]
      %v1053 = vld [vmem:[%s1047 + $0x14] sm:$0xf]
      %v1054 = vld [vmem:[%s1047 + $0x18] sm:$0xf]
      %v1055 = vld [vmem:[%s1047 + $0x1c] sm:$0xf]
      %v1064 = vunpack.c.l.b16 %v1048
      %v1065 = vunpack.c.l.b16 %v1049
      %v1066 = vunpack.c.l.b16 %v1050
      %v1067 = vunpack.c.l.b16 %v1051
      %v1068 = vunpack.c.l.b16 %v1052
      %v1069 = vunpack.c.l.b16 %v1053
      %v1070 = vunpack.c.l.b16 %v1054
      %v1071 = vunpack.c.l.b16 %v1055
      %v1072 = vpack.c.b16 %v1065, %v1064
      %v1073 = vpack.c.b16 %v1067, %v1066
      %v1074 = vpack.c.b16 %v1069, %v1068
      %v1075 = vpack.c.b16 %v1071, %v1070
      %v1081 = vsel %vm293, %v1046, 0
      %1083 = vmatprep.subr.bf16.mxu0 0
      %1084 = vmatpush1.bf16.msra.mxu0 0
      %1085 = vmatprep.subr.bf16.mxu0 0
      %1086 = vmatpush1.bf16.msra.mxu0 0
      %1087 = vmatprep.subr.bf16.mxu0 0
      %1088 = vmatpush1.bf16.msra.mxu0 0
      %1089 = vmatprep.subr.bf16.mxu0 0
      %1090 = vmatpush1.bf16.msra.mxu0 0
      %1091 = vmatprep.subr.bf16.mxu0 0
      %1092 = vmatpush1.bf16.msra.mxu0 %v1075
      %1093 = vmatprep.subr.bf16.mxu0 0
      %1094 = vmatpush1.bf16.msra.mxu0 %v1074
      %1095 = vmatprep.subr.bf16.mxu0 0
      %1096 = vmatpush1.bf16.msra.mxu0 %v1073
      %1097 = vmatprep.subr.bf16.mxu0 0
      %1098 = vmatpush1.bf16.msra.mxu0 %v1072
      %1099 = vmatprep.subr.bf16.mxu0 0
      %1100 = vmatpush2.bf16.msra.mxu0 0
      %1101 = vmatprep.subr.bf16.mxu0 0
      %1102 = vmatpush2.bf16.msra.mxu0 0
      %1103 = vmatprep.subr.bf16.mxu0 0
      %1104 = vmatpush2.bf16.msra.mxu0 0
      %1105 = vmatprep.subr.bf16.mxu0 0
      %1106 = vmatpush2.bf16.msra.mxu0 0
      %1107 = vmatprep.subr.bf16.mxu0 0
      %1108 = vmatpush2.bf16.msra.mxu0 0
      %1109 = vmatprep.subr.bf16.mxu0 0
      %1110 = vmatpush2.bf16.msra.mxu0 0
      %1111 = vmatprep.subr.bf16.mxu0 0
      %1112 = vmatpush2.bf16.msra.mxu0 0
      %1113 = vmatprep.subr.bf16.mxu0 0
      %1114 = vmatpush2.bf16.msra.mxu0 0
      %1115 = vmatprep.mubr.bf16.mxu0 0
      %1116 = vmatmul.mubr.bf16.gmra.mxu0 %v1081
      %v1117 = vpop.f32.mrf.mxu0
      %v1118 = vadd.f32 0.0, %v1117
      %v1119 = vpop.f32.mrf.mxu0
      %v1120 = vpop.f32.mrf.mxu0
      %v1121 = vpop.f32.mrf.mxu0
      %1122 = vdwg.mxu0
      %v1123 = vadd.f32 %v1040, %v1118
      %s1124 = scalar_lea.vmem %s1, 352
      %v1125 = vld [vmem:[%s1124] sm:$0xf]
      %v1126 = vld [vmem:[%s1124 + $0x4] sm:$0xf]
      %v1127 = vld [vmem:[%s1124 + $0x8] sm:$0xf]
      %v1128 = vld [vmem:[%s1124 + $0xc] sm:$0xf]
      %v1129 = vld [vmem:[%s1124 + $0x10] sm:$0xf]
      %v1130 = vld [vmem:[%s1124 + $0x14] sm:$0xf]
      %v1131 = vld [vmem:[%s1124 + $0x18] sm:$0xf]
      %v1132 = vld [vmem:[%s1124 + $0x1c] sm:$0xf]
      %v1135 = vunpack.c.l.s4 1983009808
      %v1136 = vunpack.c.0.s8 %v1135
      %v1137 = vlaneseq
      %v1138 = vshrl.u32 %v1137, 7
      %v1139 = vsub.s32 %v1136, %v1138
      %v1140 = vrot.slane %v1046, %v1139
      %v1142 = vshrl.u32 %v1140, 16
      %v1152 = vunpack.c.l.b16 %v1125
      %v1153 = vunpack.c.l.b16 %v1126
      %v1154 = vunpack.c.l.b16 %v1127
      %v1155 = vunpack.c.l.b16 %v1128
      %v1156 = vunpack.c.l.b16 %v1129
      %v1157 = vunpack.c.l.b16 %v1130
      %v1158 = vunpack.c.l.b16 %v1131
      %v1159 = vunpack.c.l.b16 %v1132
      %v1160 = vpack.c.b16 %v1153, %v1152
      %v1161 = vpack.c.b16 %v1155, %v1154
      %v1162 = vpack.c.b16 %v1157, %v1156
      %v1163 = vpack.c.b16 %v1159, %v1158
      %v1169 = vsel %vm293, %v1142, 0
      %1171 = vmatprep.subr.bf16.mxu0 0
      %1172 = vmatpush1.bf16.msra.mxu0 0
      %1173 = vmatprep.subr.bf16.mxu0 0
      %1174 = vmatpush1.bf16.msra.mxu0 0
      %1175 = vmatprep.subr.bf16.mxu0 0
      %1176 = vmatpush1.bf16.msra.mxu0 0
      %1177 = vmatprep.subr.bf16.mxu0 0
      %1178 = vmatpush1.bf16.msra.mxu0 0
      %1179 = vmatprep.subr.bf16.mxu0 0
      %1180 = vmatpush1.bf16.msra.mxu0 %v1163
      %1181 = vmatprep.subr.bf16.mxu0 0
      %1182 = vmatpush1.bf16.msra.mxu0 %v1162
      %1183 = vmatprep.subr.bf16.mxu0 0
      %1184 = vmatpush1.bf16.msra.mxu0 %v1161
      %1185 = vmatprep.subr.bf16.mxu0 0
      %1186 = vmatpush1.bf16.msra.mxu0 %v1160
      %1187 = vmatprep.subr.bf16.mxu0 0
      %1188 = vmatpush2.bf16.msra.mxu0 0
      %1189 = vmatprep.subr.bf16.mxu0 0
      %1190 = vmatpush2.bf16.msra.mxu0 0
      %1191 = vmatprep.subr.bf16.mxu0 0
      %1192 = vmatpush2.bf16.msra.mxu0 0
      %1193 = vmatprep.subr.bf16.mxu0 0
      %1194 = vmatpush2.bf16.msra.mxu0 0
      %1195 = vmatprep.subr.bf16.mxu0 0
      %1196 = vmatpush2.bf16.msra.mxu0 0
      %1197 = vmatprep.subr.bf16.mxu0 0
      %1198 = vmatpush2.bf16.msra.mxu0 0
      %1199 = vmatprep.subr.bf16.mxu0 0
      %1200 = vmatpush2.bf16.msra.mxu0 0
      %1201 = vmatprep.subr.bf16.mxu0 0
      %1202 = vmatpush2.bf16.msra.mxu0 0
      %1203 = vmatprep.mubr.bf16.mxu0 0
      %1204 = vmatmul.mubr.bf16.gmra.mxu0 %v1169
      %v1205 = vpop.f32.mrf.mxu0
      %v1206 = vadd.f32 0.0, %v1205
      %v1207 = vpop.f32.mrf.mxu0
      %v1208 = vpop.f32.mrf.mxu0
      %v1209 = vpop.f32.mrf.mxu0
      %1210 = vdwg.mxu0
      %v1211 = vadd.f32 %v1123, %v1206
      %v1212 = vadd.f32 %v1211, %v239
      %v1213 = vadd.f32 %v1212, 0.0
      %v1214 = vmul.f32 %v1212, %v1212
      %v1215 = vadd.f32 %v1214, 0.0
      %s1216 = scalar_lea.vmem %s1, 384
      %v1217 = vld [vmem:[%s1216] sm:$0xf]
      %v1218 = vld [vmem:[%s1216 + $0x4] sm:$0xf]
      %v1219 = vld [vmem:[%s1216 + $0x8] sm:$0xf]
      %v1220 = vld [vmem:[%s1216 + $0xc] sm:$0xf]
      %v1221 = vld [vmem:[%s1216 + $0x10] sm:$0xf]
      %v1222 = vld [vmem:[%s1216 + $0x14] sm:$0xf]
      %v1223 = vld [vmem:[%s1216 + $0x18] sm:$0xf]
      %v1224 = vld [vmem:[%s1216 + $0x1c] sm:$0xf]
      %s1225 = scalar_lea.vmem %s1, 416
      %v1226 = vld [vmem:[%s1225] sm:$0xf]
      %v1227 = vld [vmem:[%s1225 + $0x4] sm:$0xf]
      %v1228 = vld [vmem:[%s1225 + $0x8] sm:$0xf]
      %v1229 = vld [vmem:[%s1225 + $0xc] sm:$0xf]
      %v1230 = vld [vmem:[%s1225 + $0x10] sm:$0xf]
      %v1231 = vld [vmem:[%s1225 + $0x14] sm:$0xf]
      %v1232 = vld [vmem:[%s1225 + $0x18] sm:$0xf]
      %v1233 = vld [vmem:[%s1225 + $0x1c] sm:$0xf]
      %v1242 = vunpack.c.l.b16 %v1226
      %v1243 = vunpack.c.l.b16 %v1227
      %v1244 = vunpack.c.l.b16 %v1228
      %v1245 = vunpack.c.l.b16 %v1229
      %v1246 = vunpack.c.l.b16 %v1230
      %v1247 = vunpack.c.l.b16 %v1231
      %v1248 = vunpack.c.l.b16 %v1232
      %v1249 = vunpack.c.l.b16 %v1233
      %v1250 = vpack.c.b16 %v1243, %v1242
      %v1251 = vpack.c.b16 %v1245, %v1244
      %v1252 = vpack.c.b16 %v1247, %v1246
      %v1253 = vpack.c.b16 %v1249, %v1248
      %1258 = vmatprep.subr.bf16.mxu0 0
      %1259 = vmatpush1.bf16.msra.mxu0 0
      %1260 = vmatprep.subr.bf16.mxu0 0
      %1261 = vmatpush1.bf16.msra.mxu0 0
      %1262 = vmatprep.subr.bf16.mxu0 0
      %1263 = vmatpush1.bf16.msra.mxu0 0
      %1264 = vmatprep.subr.bf16.mxu0 0
      %1265 = vmatpush1.bf16.msra.mxu0 0
      %1266 = vmatprep.subr.bf16.mxu0 0
      %1267 = vmatpush1.bf16.msra.mxu0 %v1253
      %1268 = vmatprep.subr.bf16.mxu0 0
      %1269 = vmatpush1.bf16.msra.mxu0 %v1252
      %1270 = vmatprep.subr.bf16.mxu0 0
      %1271 = vmatpush1.bf16.msra.mxu0 %v1251
      %1272 = vmatprep.subr.bf16.mxu0 0
      %1273 = vmatpush1.bf16.msra.mxu0 %v1250
      %1274 = vmatprep.subr.bf16.mxu0 0
      %1275 = vmatpush2.bf16.msra.mxu0 0
      %1276 = vmatprep.subr.bf16.mxu0 0
      %1277 = vmatpush2.bf16.msra.mxu0 0
      %1278 = vmatprep.subr.bf16.mxu0 0
      %1279 = vmatpush2.bf16.msra.mxu0 0
      %1280 = vmatprep.subr.bf16.mxu0 0
      %1281 = vmatpush2.bf16.msra.mxu0 0
      %1282 = vmatprep.subr.bf16.mxu0 0
      %1283 = vmatpush2.bf16.msra.mxu0 0
      %1284 = vmatprep.subr.bf16.mxu0 0
      %1285 = vmatpush2.bf16.msra.mxu0 0
      %1286 = vmatprep.subr.bf16.mxu0 0
      %1287 = vmatpush2.bf16.msra.mxu0 0
      %1288 = vmatprep.subr.bf16.mxu0 0
      %1289 = vmatpush2.bf16.msra.mxu0 0
      %1290 = vmatprep.mubr.bf16.mxu0 0
      %1291 = vmatmul.mubr.bf16.gmra.mxu0 %v852
      %v1292 = vpop.f32.mrf.mxu0
      %v1293 = vadd.f32 0.0, %v1292
      %v1294 = vpop.f32.mrf.mxu0
      %v1295 = vpop.f32.mrf.mxu0
      %v1296 = vpop.f32.mrf.mxu0
      %1297 = vdwg.mxu0
      %v1306 = vunpack.c.l.b16 %v1217
      %v1307 = vunpack.c.l.b16 %v1218
      %v1308 = vunpack.c.l.b16 %v1219
      %v1309 = vunpack.c.l.b16 %v1220
      %v1310 = vunpack.c.l.b16 %v1221
      %v1311 = vunpack.c.l.b16 %v1222
      %v1312 = vunpack.c.l.b16 %v1223
      %v1313 = vunpack.c.l.b16 %v1224
      %v1314 = vpack.c.b16 %v1307, %v1306
      %v1315 = vpack.c.b16 %v1309, %v1308
      %v1316 = vpack.c.b16 %v1311, %v1310
      %v1317 = vpack.c.b16 %v1313, %v1312
      %1322 = vmatprep.subr.bf16.mxu0 0
      %1323 = vmatpush1.bf16.msra.mxu0 0
      %1324 = vmatprep.subr.bf16.mxu0 0
      %1325 = vmatpush1.bf16.msra.mxu0 0
      %1326 = vmatprep.subr.bf16.mxu0 0
      %1327 = vmatpush1.bf16.msra.mxu0 0
      %1328 = vmatprep.subr.bf16.mxu0 0
      %1329 = vmatpush1.bf16.msra.mxu0 0
      %1330 = vmatprep.subr.bf16.mxu0 0
      %1331 = vmatpush1.bf16.msra.mxu0 %v1317
      %1332 = vmatprep.subr.bf16.mxu0 0
      %1333 = vmatpush1.bf16.msra.mxu0 %v1316
      %1334 = vmatprep.subr.bf16.mxu0 0
      %1335 = vmatpush1.bf16.msra.mxu0 %v1315
      %1336 = vmatprep.subr.bf16.mxu0 0
      %1337 = vmatpush1.bf16.msra.mxu0 %v1314
      %1338 = vmatprep.subr.bf16.mxu0 0
      %1339 = vmatpush2.bf16.msra.mxu0 0
      %1340 = vmatprep.subr.bf16.mxu0 0
      %1341 = vmatpush2.bf16.msra.mxu0 0
      %1342 = vmatprep.subr.bf16.mxu0 0
      %1343 = vmatpush2.bf16.msra.mxu0 0
      %1344 = vmatprep.subr.bf16.mxu0 0
      %1345 = vmatpush2.bf16.msra.mxu0 0
      %1346 = vmatprep.subr.bf16.mxu0 0
      %1347 = vmatpush2.bf16.msra.mxu0 0
      %1348 = vmatprep.subr.bf16.mxu0 0
      %1349 = vmatpush2.bf16.msra.mxu0 0
      %1350 = vmatprep.subr.bf16.mxu0 0
      %1351 = vmatpush2.bf16.msra.mxu0 0
      %1352 = vmatprep.subr.bf16.mxu0 0
      %1353 = vmatpush2.bf16.msra.mxu0 0
      %1354 = vmatprep.mubr.bf16.mxu0 0
      %1355 = vmatmul.mubr.bf16.gmra.mxu0 %v528
      %v1356 = vpop.f32.mrf.mxu0
      %v1357 = vadd.f32 %v1293, %v1356
      %v1358 = vpop.f32.mrf.mxu0
      %v1359 = vpop.f32.mrf.mxu0
      %v1360 = vpop.f32.mrf.mxu0
      %1361 = vdwg.mxu0
      %s1362 = scalar_lea.vmem %s1, 448
      %v1363 = vld [vmem:[%s1362] sm:$0xf]
      %v1364 = vld [vmem:[%s1362 + $0x4] sm:$0xf]
      %v1365 = vld [vmem:[%s1362 + $0x8] sm:$0xf]
      %v1366 = vld [vmem:[%s1362 + $0xc] sm:$0xf]
      %v1367 = vld [vmem:[%s1362 + $0x10] sm:$0xf]
      %v1368 = vld [vmem:[%s1362 + $0x14] sm:$0xf]
      %v1369 = vld [vmem:[%s1362 + $0x18] sm:$0xf]
      %v1370 = vld [vmem:[%s1362 + $0x1c] sm:$0xf]
      %v1379 = vunpack.c.l.b16 %v1363
      %v1380 = vunpack.c.l.b16 %v1364
      %v1381 = vunpack.c.l.b16 %v1365
      %v1382 = vunpack.c.l.b16 %v1366
      %v1383 = vunpack.c.l.b16 %v1367
      %v1384 = vunpack.c.l.b16 %v1368
      %v1385 = vunpack.c.l.b16 %v1369
      %v1386 = vunpack.c.l.b16 %v1370
      %v1387 = vpack.c.b16 %v1380, %v1379
      %v1388 = vpack.c.b16 %v1382, %v1381
      %v1389 = vpack.c.b16 %v1384, %v1383
      %v1390 = vpack.c.b16 %v1386, %v1385
      %1395 = vmatprep.subr.bf16.mxu0 0
      %1396 = vmatpush1.bf16.msra.mxu0 0
      %1397 = vmatprep.subr.bf16.mxu0 0
      %1398 = vmatpush1.bf16.msra.mxu0 0
      %1399 = vmatprep.subr.bf16.mxu0 0
      %1400 = vmatpush1.bf16.msra.mxu0 0
      %1401 = vmatprep.subr.bf16.mxu0 0
      %1402 = vmatpush1.bf16.msra.mxu0 0
      %1403 = vmatprep.subr.bf16.mxu0 0
      %1404 = vmatpush1.bf16.msra.mxu0 %v1390
      %1405 = vmatprep.subr.bf16.mxu0 0
      %1406 = vmatpush1.bf16.msra.mxu0 %v1389
      %1407 = vmatprep.subr.bf16.mxu0 0
      %1408 = vmatpush1.bf16.msra.mxu0 %v1388
      %1409 = vmatprep.subr.bf16.mxu0 0
      %1410 = vmatpush1.bf16.msra.mxu0 %v1387
      %1411 = vmatprep.subr.bf16.mxu0 0
      %1412 = vmatpush2.bf16.msra.mxu0 0
      %1413 = vmatprep.subr.bf16.mxu0 0
      %1414 = vmatpush2.bf16.msra.mxu0 0
      %1415 = vmatprep.subr.bf16.mxu0 0
      %1416 = vmatpush2.bf16.msra.mxu0 0
      %1417 = vmatprep.subr.bf16.mxu0 0
      %1418 = vmatpush2.bf16.msra.mxu0 0
      %1419 = vmatprep.subr.bf16.mxu0 0
      %1420 = vmatpush2.bf16.msra.mxu0 0
      %1421 = vmatprep.subr.bf16.mxu0 0
      %1422 = vmatpush2.bf16.msra.mxu0 0
      %1423 = vmatprep.subr.bf16.mxu0 0
      %1424 = vmatpush2.bf16.msra.mxu0 0
      %1425 = vmatprep.subr.bf16.mxu0 0
      %1426 = vmatpush2.bf16.msra.mxu0 0
      %1427 = vmatprep.mubr.bf16.mxu0 0
      %1428 = vmatmul.mubr.bf16.gmra.mxu0 %v1169
      %v1429 = vpop.f32.mrf.mxu0
      %v1430 = vadd.f32 0.0, %v1429
      %v1431 = vpop.f32.mrf.mxu0
      %v1432 = vpop.f32.mrf.mxu0
      %v1433 = vpop.f32.mrf.mxu0
      %1434 = vdwg.mxu0
      %v1435 = vadd.f32 %v1357, %v1430
      %v1436 = vld [vmem:[%s1045] sm:$0x2]
      %s1437 = scalar_lea.vmem %s1, 480
      %v1438 = vld [vmem:[%s1437] sm:$0xf]
      %v1439 = vld [vmem:[%s1437 + $0x4] sm:$0xf]
      %v1440 = vld [vmem:[%s1437 + $0x8] sm:$0xf]
      %v1441 = vld [vmem:[%s1437 + $0xc] sm:$0xf]
      %v1442 = vld [vmem:[%s1437 + $0x10] sm:$0xf]
      %v1443 = vld [vmem:[%s1437 + $0x14] sm:$0xf]
      %v1444 = vld [vmem:[%s1437 + $0x18] sm:$0xf]
      %v1445 = vld [vmem:[%s1437 + $0x1c] sm:$0xf]
      %v1448 = vunpack.c.l.s4 1983009808
      %v1449 = vunpack.c.0.s8 %v1448
      %v1450 = vlaneseq
      %v1451 = vshrl.u32 %v1450, 7
      %v1452 = vsub.s32 %v1449, %v1451
      %v1453 = vrot.slane %v1436, %v1452
      %v1454 = vrot.slane %v1453, 1
      %v1463 = vunpack.c.l.b16 %v1438
      %v1464 = vunpack.c.l.b16 %v1439
      %v1465 = vunpack.c.l.b16 %v1440
      %v1466 = vunpack.c.l.b16 %v1441
      %v1467 = vunpack.c.l.b16 %v1442
      %v1468 = vunpack.c.l.b16 %v1443
      %v1469 = vunpack.c.l.b16 %v1444
      %v1470 = vunpack.c.l.b16 %v1445
      %v1471 = vpack.c.b16 %v1464, %v1463
      %v1472 = vpack.c.b16 %v1466, %v1465
      %v1473 = vpack.c.b16 %v1468, %v1467
      %v1474 = vpack.c.b16 %v1470, %v1469
      %v1480 = vsel %vm293, %v1454, 0
      %1482 = vmatprep.subr.bf16.mxu0 0
      %1483 = vmatpush1.bf16.msra.mxu0 0
      %1484 = vmatprep.subr.bf16.mxu0 0
      %1485 = vmatpush1.bf16.msra.mxu0 0
      %1486 = vmatprep.subr.bf16.mxu0 0
      %1487 = vmatpush1.bf16.msra.mxu0 0
      %1488 = vmatprep.subr.bf16.mxu0 0
      %1489 = vmatpush1.bf16.msra.mxu0 0
      %1490 = vmatprep.subr.bf16.mxu0 0
      %1491 = vmatpush1.bf16.msra.mxu0 %v1474
      %1492 = vmatprep.subr.bf16.mxu0 0
      %1493 = vmatpush1.bf16.msra.mxu0 %v1473
      %1494 = vmatprep.subr.bf16.mxu0 0
      %1495 = vmatpush1.bf16.msra.mxu0 %v1472
      %1496 = vmatprep.subr.bf16.mxu0 0
      %1497 = vmatpush1.bf16.msra.mxu0 %v1471
      %1498 = vmatprep.subr.bf16.mxu0 0
      %1499 = vmatpush2.bf16.msra.mxu0 0
      %1500 = vmatprep.subr.bf16.mxu0 0
      %1501 = vmatpush2.bf16.msra.mxu0 0
      %1502 = vmatprep.subr.bf16.mxu0 0
      %1503 = vmatpush2.bf16.msra.mxu0 0
      %1504 = vmatprep.subr.bf16.mxu0 0
      %1505 = vmatpush2.bf16.msra.mxu0 0
      %1506 = vmatprep.subr.bf16.mxu0 0
      %1507 = vmatpush2.bf16.msra.mxu0 0
      %1508 = vmatprep.subr.bf16.mxu0 0
      %1509 = vmatpush2.bf16.msra.mxu0 0
      %1510 = vmatprep.subr.bf16.mxu0 0
      %1511 = vmatpush2.bf16.msra.mxu0 0
      %1512 = vmatprep.subr.bf16.mxu0 0
      %1513 = vmatpush2.bf16.msra.mxu0 0
      %1514 = vmatprep.mubr.bf16.mxu0 0
      %1515 = vmatmul.mubr.bf16.gmra.mxu0 %v1480
      %v1516 = vpop.f32.mrf.mxu0
      %v1517 = vadd.f32 0.0, %v1516
      %v1518 = vpop.f32.mrf.mxu0
      %v1519 = vpop.f32.mrf.mxu0
      %v1520 = vpop.f32.mrf.mxu0
      %1521 = vdwg.mxu0
      %v1522 = vadd.f32 %v1435, %v1517
      %v1523 = vadd.f32 %v1522, %v239
      %v1524 = vadd.f32 %v1523, 0.0
      %v1525 = vmul.f32 %v1523, %v1523
      %v1526 = vadd.f32 %v1525, 0.0
      %1528 = vrot.lane.b32.xlu0 %v895, 32
      %v1529 = vpop.permute.xlu0 %1528
      %1532 = vrot.lane.b32.xlu0 %v1212, 64
      %v1533 = vpop.permute.xlu0 %1532
      %1536 = vrot.lane.b32.xlu0 %v1523, 96
      %v1537 = vpop.permute.xlu0 %1536
      %vm1539 = vcmask 261120
      %v1540 = vsel %vm1539, %v571, %v1529
      %v1541 = vsel %vm293, %v1540, %v1533
      %vm1542 = vcmask 785408
      %v1543 = vsel %vm1542, %v1541, %v1537
      %v1544 = vpack.c.bf16 %v1543, %v1543
      %vm1545 = vcmask 1040384
      %vm1546 = vsmask.f32 256
      %vm1547 = vmand %vm1545, %vm1546
      %v1548 = vld [vmem:[%s231] sm:$0x1]
      %v1549 = vsel %vm1547, %v1544, %v1548
      %1550 = vst [vmem:[%s231] sm:$0x1] %v1549
      %1552 = vrot.lane.b32.xlu0 %v896, 32
      %v1553 = vpop.permute.xlu0 %1552
      %1556 = vrot.lane.b32.xlu0 %v1213, 64
      %v1557 = vpop.permute.xlu0 %1556
      %1560 = vrot.lane.b32.xlu0 %v1524, 96
      %v1561 = vpop.permute.xlu0 %1560
      %v1563 = vsel %vm1539, %v572, %v1553
      %v1564 = vsel %vm293, %v1563, %v1557
      %v1565 = vsel %vm1542, %v1564, %v1561
      %1566 = vst [vmem:[%s234] sm:$0x1] %v1565
      %1568 = vrot.lane.b32.xlu0 %v898, 32
      %v1569 = vpop.permute.xlu0 %1568
      %1572 = vrot.lane.b32.xlu0 %v1215, 64
      %v1573 = vpop.permute.xlu0 %1572
      %1576 = vrot.lane.b32.xlu0 %v1526, 96
      %v1577 = vpop.permute.xlu0 %1576
      %v1579 = vsel %vm1539, %v574, %v1569
      %v1580 = vsel %vm293, %v1579, %v1573
      %v1581 = vsel %vm1542, %v1580, %v1577
      %1582 = vst [vmem:[%s237] sm:$0x1] %v1581
      %p1583 = scmp.lt.s32.totalorder %s17, 1
      %s1584 = scalar_select %p1583, %s17, 1
      %s1585 = scalar_lea.vmem %s3, %s1584
      %p1586 = scmp.lt.s32.totalorder %s17, 1
      %s1587 = scalar_select %p1586, %s17, 1
      %s1588 = scalar_lea.vmem %s4, %s1587
      %p1589 = scmp.lt.s32.totalorder %s17, 1
      %s1590 = scalar_select %p1589, %s17, 1
      %s1591 = scalar_lea.vmem %s5, %s1590
      // Predicated region
      $region33: #{generator_forward.9} parent=31 // pred_check
        %p1592 = pneg %p103
      $region34: #{generator_forward.9} parent=31 // pred_check_branch
        %1594 = sbr.rel (%p1592) target = $region36
      $region35: #{generator_forward.9} parent=31 // pred_region
        _
      $region36: #{generator_forward.9} parent=31 // pred_fallthru
        _
      // Predicated region
      $region37: #{generator_forward.9} parent=31 // pred_check
        %p1595 = pneg %p129
      $region38: #{generator_forward.9} parent=31 // pred_check_branch
        %1597 = sbr.rel (%p1595) target = $region40
      $region39: #{generator_forward.9} parent=31 // pred_region
        _
      $region40: #{generator_forward.9} parent=31 // pred_fallthru
        _
      // Predicated region
      $region41: #{generator_forward.9} parent=31 // pred_check
        %p1598 = pneg %p155
      $region42: #{generator_forward.9} parent=31 // pred_check_branch
        %1600 = sbr.rel (%p1598) target = $region44
      $region43: #{generator_forward.9} parent=31 // pred_region
        _
      $region44: #{generator_forward.9} parent=31 // pred_fallthru
        _
    $region32: #{generator_forward.9} parent=5 // pred_fallthru
      _
    %p1601 = scmp.le.s32.totalorder 2, %s12
    // Predicated region
    $region45: #{generator_forward.9} parent=5 // pred_check
      %p1602 = pneg %p1601
    $region46: #{generator_forward.9} parent=5 // pred_check_branch
      %1604 = sbr.rel (%p1602) target = $region48
    $region47: #{generator_forward.9} parent=5 // pred_region
      %s1605 = ssub.s32 %s12, 2
      // Predicated region
      $region49: #{generator_forward.9} parent=47 // pred_check
        %p1606 = pneg %p109
      $region50: #{generator_forward.9} parent=47 // pred_check_branch
        %1608 = sbr.rel (%p1606) target = $region52
      $region51: #{generator_forward.9} parent=47 // pred_region
        %p1609 = scmp.lt.s32.totalorder %s18, 1
        %s1610 = scalar_select %p1609, %s18, 1
        %s1611 = scalar_lea.vmem %s3, %s1610
      $region52: #{generator_forward.9} parent=47 // pred_fallthru
        _
      // Predicated region
      $region53: #{generator_forward.9} parent=47 // pred_check
        %p1612 = pneg %p135
      $region54: #{generator_forward.9} parent=47 // pred_check_branch
        %1614 = sbr.rel (%p1612) target = $region56
      $region55: #{generator_forward.9} parent=47 // pred_region
        %p1615 = scmp.lt.s32.totalorder %s18, 1
        %s1616 = scalar_select %p1615, %s18, 1
        %s1617 = scalar_lea.vmem %s4, %s1616
      $region56: #{generator_forward.9} parent=47 // pred_fallthru
        _
      // Predicated region
      $region57: #{generator_forward.9} parent=47 // pred_check
        %p1618 = pneg %p161
      $region58: #{generator_forward.9} parent=47 // pred_check_branch
        %1620 = sbr.rel (%p1618) target = $region60
      $region59: #{generator_forward.9} parent=47 // pred_region
        %p1621 = scmp.lt.s32.totalorder %s18, 1
        %s1622 = scalar_select %p1621, %s18, 1
        %s1623 = scalar_lea.vmem %s5, %s1622
      $region60: #{generator_forward.9} parent=47 // pred_fallthru
        _
    $region48: #{generator_forward.9} parent=5 // pred_fallthru
      _
  $region6: #{generator_forward.9} parent=0 // loop_footer
    %s16 = sadd.s32 1, %s12
  $region7: #{generator_forward.9} parent=0 // loop_footer_branch
    %11 = sbr.rel target = $region3
  $region8: #{generator_forward.9} parent=0 // loop_exit
    _

// kernel: generator_forward.12
$region0: #{generator_forward.12}
  #allocation0 [shape = 'u32[]', space=smem, size = 0x4, offset = 0x4, fixed_abs, tag = 'smem constant byte address 0x4 - core index']
  #allocation1 [shape = 'u32[144,128]{1,0:T(1,128)}', space=vmem, size = 0x12000, scoped, tag = 'internal scratch']
  %s0 = inlined_call_operand.vmem [shape: bf16[8,64], index: 0, kind: input, shape index: {}]
  %s1 = inlined_call_operand.vmem [shape: f32[1,64], index: 1, kind: input, shape index: {}]
  %s2 = inlined_call_operand.vmem [shape: f32[1,64], index: 2, kind: input, shape index: {}]
  %s3 = inlined_call_operand.vmem [shape: bf16[8,64], index: 3, kind: output, shape index: {}]
  %s4 = sld [smem:[#allocation0]]
  $region22: #{generator_forward.12} parent=0
    _
  %s6 = ssub.s32 1, %s4
  %s7 = scalar_select 0, %s6, %s4
  // Predicated region
  $region2: #{generator_forward.12} parent=0 // pred_check
    _
  $region3: #{generator_forward.12} parent=0 // pred_check_branch
    %9 = sbr.rel (0) target = $region5
  $region4: #{generator_forward.12} parent=0 // pred_region
    _
  $region5: #{generator_forward.12} parent=0 // pred_fallthru
    _
  // Predicated region
  $region6: #{generator_forward.12} parent=0 // pred_check
    _
  $region7: #{generator_forward.12} parent=0 // pred_check_branch
    %11 = sbr.rel (0) target = $region9
  $region8: #{generator_forward.12} parent=0 // pred_region
    _
  $region9: #{generator_forward.12} parent=0 // pred_fallthru
    _
  // Predicated region
  $region10: #{generator_forward.12} parent=0 // pred_check
    _
  $region11: #{generator_forward.12} parent=0 // pred_check_branch
    %13 = sbr.rel (0) target = $region13
  $region12: #{generator_forward.12} parent=0 // pred_region
    _
  $region13: #{generator_forward.12} parent=0 // pred_fallthru
    _
  %v14 = vld [vmem:[%s0] sm:$0xf]
  %v15 = vunpack.c.l.bf16 %v14
  %v16 = vld [vmem:[%s1] sm:$0x1]
  %v18 = vlaneseq
  %v19 = vshrl.u32 %v18, 7
  %v20 = vsub.s32 0, %v19
  %v21 = vrot.slane %v16, %v20
  %v23 = vmul.f32 %v15, %v21
  %v24 = vld [vmem:[%s2] sm:$0x1]
  %v26 = vlaneseq
  %v27 = vshrl.u32 %v26, 7
  %v28 = vsub.s32 0, %v27
  %v29 = vrot.slane %v24, %v28
  %v31 = vadd.f32 %v23, %v29
  %vm32 = vcmp.ge.f32.partialorder %v31, 0.0
  %v33 = vmul.f32 %v31, 0.05
  %v34 = vsel %vm32, %v31, %v33
  %v35 = vpack.c.bf16 %v34, %v34
  %vm36 = vcmask 519168
  %37 = vst.msk [vmem:[%s3] sm:$0xf] %vm36, %v35
  // Predicated region
  $region14: #{generator_forward.12} parent=0 // pred_check
    _
  $region15: #{generator_forward.12} parent=0 // pred_check_branch
    %39 = sbr.rel (0) target = $region17
  $region16: #{generator_forward.12} parent=0 // pred_region
    _
  $region17: #{generator_forward.12} parent=0 // pred_fallthru
    _
  // Predicated region
  $region18: #{generator_forward.12} parent=0 // pred_check
    _
  $region19: #{generator_forward.12} parent=0 // pred_check_branch
    %41 = sbr.rel (0) target = $region21
  $region20: #{generator_forward.12} parent=0 // pred_region
    _
  $region21: #{generator_forward.12} parent=0 // pred_fallthru
    _

// kernel: tile.53
$region0: #{tile.53}
  #allocation0 [shape = 's32[1]{0}', space=sflag, size = 0x4, scoped, tag = 'scoped memory for tile.53']
  %s0 = inlined_call_operand.vmem [shape: f32[8], index: 0, kind: input, shape index: {}]
  %s1 = inlined_call_operand.vmem [shape: f32[4,8], index: 1, kind: output, shape index: {}]
  // Predicated region
  $region2: #{tile.53} parent=0 // pred_check
    _
  $region3: #{tile.53} parent=0 // pred_check_branch
    %3 = sbr.rel (0) target = $region5
  $region4: #{tile.53} parent=0 // pred_region
    _
  $region5: #{tile.53} parent=0 // pred_fallthru
    _
  %v4 = vld [vmem:[%s0] ss:$0 sm:$0xff]
  %5 = vst [vmem:[%s1] sm:$0xf] %v4

// kernel: tile.54
$region0: #{tile.54}
  %s0 = inlined_call_operand.vmem [shape: f32[4,8], index: 0, kind: input, shape index: {}]
  %s1 = inlined_call_operand.vmem [shape: f32[1,32], index: 1, kind: output, shape index: {}]
  $region1: #{tile.54} parent=0
    #allocation0 [shape = 'u8[4096]{0}', space=vmem, size = 0x1000, scoped, tag = 'scoped mem for output reshape']
    #allocation1 [shape = 'u8[4096]{0}', space=vmem, size = 0x1000, scoped, tag = 'scoped mem for input reshape']
    %s3 = sshll.u32 1, 4
    %s4 = ssub.s32 %s3, 1
    %v5 = vld [vmem:[%s0] sm:%s4]
    %6 = vst [vmem:[#allocation1] sm:%s4] %v5
    %v7 = vld [vmem:[#allocation1] sm:$0x1]
    %vm8 = vcmask 64512
    %9 = vst.msk [vmem:[#allocation0] sm:$0x1] %vm8, %v7
    %s10 = scalar_lea.vmem [#allocation1], 3
    %v11 = vld [vmem:[%s10] sm:$0x1]
    %12 = vrot.lane.b32.xlu0 %v11, 24
    %v13 = vpop.permute.xlu0 %12
    %vm14 = vcmask 261312
    %15 = vst.msk [vmem:[#allocation0] sm:$0x1] %vm14, %v13
    %s16 = scalar_lea.vmem [#allocation1], 2
    %v17 = vld [vmem:[%s16] sm:$0x1]
    %18 = vrot.lane.b32.xlu0 %v17, 16
    %v19 = vpop.permute.xlu0 %18
    %vm20 = vcmask 195712
    %21 = vst.msk [vmem:[#allocation0] sm:$0x1] %vm20, %v19
    %s22 = scalar_lea.vmem [#allocation1], 1
    %v23 = vld [vmem:[%s22] sm:$0x1]
    %24 = vrot.lane.b32.xlu0 %v23, 8
    %v25 = vpop.permute.xlu0 %24
    %vm26 = vcmask 130112
    %27 = vst.msk [vmem:[#allocation0] sm:$0x1] %vm26, %v25
    %s29 = sshll.u32 1, 1
    %s30 = ssub.s32 %s29, 1
    %v32 = vld [vmem:[#allocation0] sm:%s30]
    %s33 = sshll.u32 1, 1
    %s34 = ssub.s32 %s33, 1
    %35 = vst [vmem:[%s1] sm:%s34] %v32

// kernel: generator_forward.11
$region0: #{generator_forward.11}
  #allocation0 [shape = 'u32[]', space=smem, size = 0x4, offset = 0x4, fixed_abs, tag = 'smem constant byte address 0x4 - core index']
  #allocation1 [shape = 'u32[144,128]{1,0:T(1,128)}', space=vmem, size = 0x12000, scoped, tag = 'internal scratch']
  %s0 = inlined_call_operand.vmem [shape: bf16[2,4,4,32], index: 0, kind: input, shape index: {}]
  %s1 = inlined_call_operand.vmem [shape: bf16[16,32,16], index: 1, kind: input, shape index: {}]
  %s2 = inlined_call_operand.vmem [shape: f32[1,16], index: 2, kind: input, shape index: {}]
  %s3 = inlined_call_operand.vmem [shape: bf16[2,2,2,64], index: 3, kind: output, shape index: {0}]
  %s4 = inlined_call_operand.vmem [shape: f32[2,1,64], index: 4, kind: output, shape index: {1}]
  %s5 = inlined_call_operand.vmem [shape: f32[2,1,64], index: 5, kind: output, shape index: {2}]
  %6 = xla_tuple %s3, %s4, %s5
  %s7 = sld [smem:[#allocation0]]
  $region61: #{generator_forward.11} parent=0
    _
  %s9 = ssub.s32 1, %s7
  %s10 = scalar_select 0, %s9, %s7
  loop: start=0, step=1, limit=4
  $region2: #{generator_forward.11} parent=0 // loop_pre_header
    _
  $region3: #{generator_forward.11} parent=0 // loop_header
    %s12 = sphi 0, %s16
    %p13 = scmp.ge.s32.totalorder %s12, 4
    %s22 = sphi 0, %s24
    %s25 = sphi 0, %s22
    %s26 = sphi 0, %s25
    %s42 = sphi 0, %s26
    %s46 = sphi 0, %s46
    %s48 = sphi 0, %s46
    %s49 = sphi 0, %s48
    %s63 = sphi 0, %s49
    %s67 = sphi 0, %s67
    %s69 = sphi 0, %s67
    %s70 = sphi 0, %s69
    %s84 = sphi 0, %s70
    %s90 = sphi 0, %s92
    %s93 = sphi 0, %s90
    %s94 = sphi 0, %s93
    %s110 = sphi 0, %s94
    %s116 = sphi 0, %s118
    %s119 = sphi 0, %s116
    %s120 = sphi 0, %s119
    %s136 = sphi 0, %s120
    %s142 = sphi 0, %s144
    %s145 = sphi 0, %s142
    %s146 = sphi 0, %s145
    %s162 = sphi 0, %s146
  $region4: #{generator_forward.11} parent=0 // loop_header_branch
    %15 = sbr.rel (%p13) target = $region8
  $region5: #{generator_forward.11} parent=0 // loop_body
    %s17 = ssub.s32 %s12, 1
    %s18 = ssub.s32 %s12, 2
    %s19 = sadd.s32 %s12, 1
    %s20 = ssub.s32 %s12, %s19
    %p21 = scmp.eq.s32.totalorder %s20, 0
    %s23 = sadd.s32 %s22, 1
    %s24 = scalar_select %p21, %s22, %s23
    %p27 = pneg %p21
    %p28 = scmp.eq.s32.totalorder %s12, 1
    %p29 = por %p27, %p28
    %p30 = scmp.ne.s32.totalorder %s22, %s25
    %p31 = scmp.eq.s32.totalorder %s12, 0
    %p32 = por %p30, %p31
    %p33 = scmp.ne.s32.totalorder %s22, %s25
    %p34 = scmp.eq.s32.totalorder %s17, 1
    %p35 = por %p33, %p34
    %p36 = scmp.ne.s32.totalorder %s25, %s26
    %p37 = scmp.eq.s32.totalorder %s17, 0
    %p38 = por %p36, %p37
    %p39 = scmp.ne.s32.totalorder %s25, %s26
    %p40 = scmp.eq.s32.totalorder %s18, 1
    %p41 = por %p39, %p40
    %p43 = scmp.ne.s32.totalorder %s26, %s42
    %p44 = scmp.eq.s32.totalorder %s18, 0
    %p45 = por %p43, %p44
    %s47 = sadd.s32 %s46, 1
    %p50 = scmp.eq.s32.totalorder %s12, 1
    %p51 = scmp.ne.s32.totalorder %s46, %s48
    %p52 = scmp.eq.s32.totalorder %s12, 0
    %p53 = por %p51, %p52
    %p54 = scmp.ne.s32.totalorder %s46, %s48
    %p55 = scmp.eq.s32.totalorder %s17, 1
    %p56 = por %p54, %p55
    %p57 = scmp.ne.s32.totalorder %s48, %s49
    %p58 = scmp.eq.s32.totalorder %s17, 0
    %p59 = por %p57, %p58
    %p60 = scmp.ne.s32.totalorder %s48, %s49
    %p61 = scmp.eq.s32.totalorder %s18, 1
    %p62 = por %p60, %p61
    %p64 = scmp.ne.s32.totalorder %s49, %s63
    %p65 = scmp.eq.s32.totalorder %s18, 0
    %p66 = por %p64, %p65
    %s68 = sadd.s32 %s67, 1
    %p71 = scmp.eq.s32.totalorder %s12, 1
    %p72 = scmp.ne.s32.totalorder %s67, %s69
    %p73 = scmp.eq.s32.totalorder %s12, 0
    %p74 = por %p72, %p73
    %p75 = scmp.ne.s32.totalorder %s67, %s69
    %p76 = scmp.eq.s32.totalorder %s17, 1
    %p77 = por %p75, %p76
    %p78 = scmp.ne.s32.totalorder %s69, %s70
    %p79 = scmp.eq.s32.totalorder %s17, 0
    %p80 = por %p78, %p79
    %p81 = scmp.ne.s32.totalorder %s69, %s70
    %p82 = scmp.eq.s32.totalorder %s18, 1
    %p83 = por %p81, %p82
    %p85 = scmp.ne.s32.totalorder %s70, %s84
    %p86 = scmp.eq.s32.totalorder %s18, 0
    %p87 = por %p85, %p86
    %s88 = ssub.s32 %s12, %s19
    %p89 = scmp.eq.s32.totalorder %s88, 0
    %s91 = sadd.s32 %s90, 1
    %s92 = scalar_select %p89, %s90, %s91
    %p95 = pneg %p89
    %p96 = scmp.eq.s32.totalorder %s12, 1
    %p97 = por %p95, %p96
    %p98 = scmp.ne.s32.totalorder %s90, %s93
    %p99 = scmp.eq.s32.totalorder %s12, 0
    %p100 = por %p98, %p99
    %p101 = scmp.ne.s32.totalorder %s90, %s93
    %p102 = scmp.eq.s32.totalorder %s17, 1
    %p103 = por %p101, %p102
    %p104 = scmp.ne.s32.totalorder %s93, %s94
    %p105 = scmp.eq.s32.totalorder %s17, 0
    %p106 = por %p104, %p105
    %p107 = scmp.ne.s32.totalorder %s93, %s94
    %p108 = scmp.eq.s32.totalorder %s18, 1
    %p109 = por %p107, %p108
    %p111 = scmp.ne.s32.totalorder %s94, %s110
    %p112 = scmp.eq.s32.totalorder %s18, 0
    %p113 = por %p111, %p112
    %s114 = ssub.s32 %s12, %s19
    %p115 = scmp.eq.s32.totalorder %s114, 0
    %s117 = sadd.s32 %s116, 1
    %s118 = scalar_select %p115, %s116, %s117
    %p121 = pneg %p115
    %p122 = scmp.eq.s32.totalorder %s12, 1
    %p123 = por %p121, %p122
    %p124 = scmp.ne.s32.totalorder %s116, %s119
    %p125 = scmp.eq.s32.totalorder %s12, 0
    %p126 = por %p124, %p125
    %p127 = scmp.ne.s32.totalorder %s116, %s119
    %p128 = scmp.eq.s32.totalorder %s17, 1
    %p129 = por %p127, %p128
    %p130 = scmp.ne.s32.totalorder %s119, %s120
    %p131 = scmp.eq.s32.totalorder %s17, 0
    %p132 = por %p130, %p131
    %p133 = scmp.ne.s32.totalorder %s119, %s120
    %p134 = scmp.eq.s32.totalorder %s18, 1
    %p135 = por %p133, %p134
    %p137 = scmp.ne.s32.totalorder %s120, %s136
    %p138 = scmp.eq.s32.totalorder %s18, 0
    %p139 = por %p137, %p138
    %s140 = ssub.s32 %s12, %s19
    %p141 = scmp.eq.s32.totalorder %s140, 0
    %s143 = sadd.s32 %s142, 1
    %s144 = scalar_select %p141, %s142, %s143
    %p147 = pneg %p141
    %p148 = scmp.eq.s32.totalorder %s12, 1
    %p149 = por %p147, %p148
    %p150 = scmp.ne.s32.totalorder %s142, %s145
    %p151 = scmp.eq.s32.totalorder %s12, 0
    %p152 = por %p150, %p151
    %p153 = scmp.ne.s32.totalorder %s142, %s145
    %p154 = scmp.eq.s32.totalorder %s17, 1
    %p155 = por %p153, %p154
    %p156 = scmp.ne.s32.totalorder %s145, %s146
    %p157 = scmp.eq.s32.totalorder %s17, 0
    %p158 = por %p156, %p157
    %p159 = scmp.ne.s32.totalorder %s145, %s146
    %p160 = scmp.eq.s32.totalorder %s18, 1
    %p161 = por %p159, %p160
    %p163 = scmp.ne.s32.totalorder %s146, %s162
    %p164 = scmp.eq.s32.totalorder %s18, 0
    %p165 = por %p163, %p164
    %p166 = scmp.le.s32.totalorder 1, %s12
    %p167 = scmp.lt.s32.totalorder %s12, 3
    %p168 = pnand %p166, %p167
    %p169 = pneg %p168
    // Predicated region
    $region9: #{generator_forward.11} parent=5 // pred_check
      _
    $region10: #{generator_forward.11} parent=5 // pred_check_branch
      %171 = sbr.rel (%p168) target = $region12
    $region11: #{generator_forward.11} parent=5 // pred_region
      %s172 = ssub.s32 %s12, 1
      // Predicated region
      $region13: #{generator_forward.11} parent=11 // pred_check
        %p173 = pneg %p59
      $region14: #{generator_forward.11} parent=11 // pred_check_branch
        %175 = sbr.rel (%p173) target = $region16
      $region15: #{generator_forward.11} parent=11 // pred_region
        _
      $region16: #{generator_forward.11} parent=11 // pred_fallthru
        _
      // Predicated region
      $region17: #{generator_forward.11} parent=11 // pred_check
        %p176 = pneg %p80
      $region18: #{generator_forward.11} parent=11 // pred_check_branch
        %178 = sbr.rel (%p176) target = $region20
      $region19: #{generator_forward.11} parent=11 // pred_region
        _
      $region20: #{generator_forward.11} parent=11 // pred_fallthru
        _
    $region12: #{generator_forward.11} parent=5 // pred_fallthru
      _
    %p179 = scmp.lt.s32.totalorder %s12, 2
    // Predicated region
    $region21: #{generator_forward.11} parent=5 // pred_check
      %p180 = pneg %p179
    $region22: #{generator_forward.11} parent=5 // pred_check_branch
      %182 = sbr.rel (%p180) target = $region24
    $region23: #{generator_forward.11} parent=5 // pred_region
      // Predicated region
      $region25: #{generator_forward.11} parent=23 // pred_check
        %p183 = pneg %p32
      $region26: #{generator_forward.11} parent=23 // pred_check_branch
        %185 = sbr.rel (%p183) target = $region28
      $region27: #{generator_forward.11} parent=23 // pred_region
        %p186 = scmp.lt.s32.totalorder %s12, 1
        %s187 = scalar_select %p186, %s12, 1
        %s188 = smul.addr %s187, 4
        %s189 = smul.addr %s188, 2
        %s190 = scalar_lea.vmem %s0, %s189
      $region28: #{generator_forward.11} parent=23 // pred_fallthru
        _
    $region24: #{generator_forward.11} parent=5 // pred_fallthru
      _
    %p191 = scmp.le.s32.totalorder 1, %s12
    %p192 = scmp.lt.s32.totalorder %s12, 3
    %p193 = pnand %p191, %p192
    %p194 = pneg %p193
    // Predicated region
    $region29: #{generator_forward.11} parent=5 // pred_check
      _
    $region30: #{generator_forward.11} parent=5 // pred_check_branch
      %196 = sbr.rel (%p193) target = $region32
    $region31: #{generator_forward.11} parent=5 // pred_region
      %s197 = ssub.s32 %s12, 1
      %p198 = scmp.lt.s32.totalorder %s17, 1
      %s199 = scalar_select %p198, %s17, 1
      %s200 = smul.addr %s199, 4
      %s201 = smul.addr %s200, 2
      %s202 = scalar_lea.vmem %s0, %s201
      %p203 = pneg %p38
      %p204 = pneg %p35
      %p205 = pneg %p59
      %p206 = pneg %p56
      %p207 = pneg %p80
      %p208 = pneg %p77
      %p209 = pneg %p106
      %p210 = pneg %p103
      %p211 = scmp.lt.s32.totalorder %s17, 1
      %s212 = scalar_select %p211, %s17, 1
      %s213 = smul.addr %s212, 2
      %s214 = scalar_lea.vmem %s3, %s213
      %p215 = pneg %p132
      %p216 = pneg %p129
      %p217 = scmp.lt.s32.totalorder %s17, 1
      %s218 = scalar_select %p217, %s17, 1
      %s219 = scalar_lea.vmem %s4, %s218
      %p220 = pneg %p158
      %p221 = pneg %p155
      %p222 = scmp.lt.s32.totalorder %s17, 1
      %s223 = scalar_select %p222, %s17, 1
      %s224 = scalar_lea.vmem %s5, %s223
      %p225 = scmp.lt.s32.totalorder %s17, 1
      %s226 = scalar_select %p225, %s17, 1
      %s227 = smul.addr %s226, 4
      %s228 = smul.addr %s227, 2
      %s229 = scalar_lea.vmem %s0, %s228
      %p230 = scmp.lt.s32.totalorder %s17, 1
      %s231 = scalar_select %p230, %s17, 1
      %s232 = smul.addr %s231, 2
      %s233 = scalar_lea.vmem %s3, %s232
      %p234 = scmp.lt.s32.totalorder %s17, 1
      %s235 = scalar_select %p234, %s17, 1
      %s236 = scalar_lea.vmem %s4, %s235
      %p237 = scmp.lt.s32.totalorder %s17, 1
      %s238 = scalar_select %p237, %s17, 1
      %s239 = scalar_lea.vmem %s5, %s238
      %v241 = vld [vmem:[%s2] sm:$0x1]
      %v242 = vld [vmem:[%s229] sm:$0x1]
      %v243 = vld [vmem:[%s229 + $0x2] sm:$0x1]
      %v244 = vld [vmem:[%s1] sm:$0xf]
      %v245 = vld [vmem:[%s1 + $0x4] sm:$0xf]
      %v246 = vld [vmem:[%s1 + $0x8] sm:$0xf]
      %v247 = vld [vmem:[%s1 + $0xc] sm:$0xf]
      %v248 = vld [vmem:[%s229] sm:$0x3]
      %v249 = vld [vmem:[%s229 + $0x2] sm:$0x3]
      %v253 = vunpack.c.l.s4 1966171168
      %v254 = vunpack.c.0.s8 %v253
      %v255 = vlaneseq
      %v256 = vshrl.u32 %v255, 7
      %v257 = vsub.s32 %v254, %v256
      %v258 = vrot.slane %v248, %v257
      %v259 = vcombine.high %v258, %v258
      %v261 = vunpack.c.l.s4 1966171168
      %v262 = vunpack.c.0.s8 %v261
      %v263 = vlaneseq
      %v264 = vshrl.u32 %v263, 7
      %v265 = vsub.s32 %v262, %v264
      %v266 = vrot.slane %v249, %v265
      %v267 = vcombine.high %v266, %v266
      %vm268 = vsmask.f32 256
      %vm269 = vsmask.f32 1284
      %vm270 = vmor %vm268, %vm269
      %vm271 = vsmask.f32 2312
      %vm272 = vmor %vm270, %vm271
      %vm273 = vsmask.f32 3340
      %vm274 = vmor %vm272, %vm273
      %vm275 = vsmask.f32 4368
      %vm276 = vmor %vm274, %vm275
      %vm277 = vsmask.f32 5396
      %vm278 = vmor %vm276, %vm277
      %vm279 = vsmask.f32 6424
      %vm280 = vmor %vm278, %vm279
      %vm281 = vsmask.f32 7452
      %vm282 = vmor %vm280, %vm281
      %v284 = vshrl.u32 %v258, 16
      %v286 = vrot.slane %v284, 7
      %v287 = vrot.slane %v286, 1
      %v289 = vshll.u32 %v259, 16
      %v291 = vsel %vm282, %v287, %v289
      %v293 = vshrl.u32 %v266, 16
      %v295 = vrot.slane %v293, 7
      %v296 = vrot.slane %v295, 1
      %v298 = vshll.u32 %v267, 16
      %v300 = vsel %vm282, %v296, %v298
      %s301 = scalar_lea.vmem %s1, 16
      %v302 = vld [vmem:[%s301] sm:$0xf]
      %v303 = vld [vmem:[%s301 + $0x4] sm:$0xf]
      %v304 = vld [vmem:[%s301 + $0x8] sm:$0xf]
      %v305 = vld [vmem:[%s301 + $0xc] sm:$0xf]
      %v306 = vcombine.low %v291, %v300
      %v308 = vunpack.c.l.s4 1966171168
      %v309 = vunpack.c.0.s8 %v308
      %v310 = vlaneseq
      %v311 = vshrl.u32 %v310, 7
      %v312 = vsub.s32 %v309, %v311
      %v313 = vrot.slane %v306, %v312
      %v315 = vunpack.c.l.s4 1966171168
      %v316 = vunpack.c.0.s8 %v315
      %v317 = vlaneseq
      %v318 = vshrl.u32 %v317, 7
      %v319 = vsub.s32 %v316, %v318
      %v320 = vrot.slane %v313, %v319
      %v325 = vunpack.c.l.b16 %v302
      %v326 = vunpack.c.l.b16 %v303
      %v327 = vunpack.c.l.b16 %v304
      %v328 = vunpack.c.l.b16 %v305
      %v329 = vpack.c.b16 %v326, %v325
      %v330 = vpack.c.b16 %v328, %v327
      %vm333 = vcmask 261120
      %v335 = vsel %vm333, %v320, 0
      %337 = vmatprep.subr.bf16.mxu0 0
      %338 = vmatpush1.bf16.msra.mxu0 0
      %339 = vmatprep.subr.bf16.mxu0 0
      %340 = vmatpush1.bf16.msra.mxu0 0
      %341 = vmatprep.subr.bf16.mxu0 0
      %342 = vmatpush1.bf16.msra.mxu0 0
      %343 = vmatprep.subr.bf16.mxu0 0
      %344 = vmatpush1.bf16.msra.mxu0 0
      %345 = vmatprep.subr.bf16.mxu0 0
      %346 = vmatpush1.bf16.msra.mxu0 0
      %347 = vmatprep.subr.bf16.mxu0 0
      %348 = vmatpush1.bf16.msra.mxu0 0
      %349 = vmatprep.subr.bf16.mxu0 0
      %350 = vmatpush1.bf16.msra.mxu0 %v330
      %351 = vmatprep.subr.bf16.mxu0 0
      %352 = vmatpush1.bf16.msra.mxu0 %v329
      %353 = vmatprep.subr.bf16.mxu0 0
      %354 = vmatpush2.bf16.msra.mxu0 0
      %355 = vmatprep.subr.bf16.mxu0 0
      %356 = vmatpush2.bf16.msra.mxu0 0
      %357 = vmatprep.subr.bf16.mxu0 0
      %358 = vmatpush2.bf16.msra.mxu0 0
      %359 = vmatprep.subr.bf16.mxu0 0
      %360 = vmatpush2.bf16.msra.mxu0 0
      %361 = vmatprep.subr.bf16.mxu0 0
      %362 = vmatpush2.bf16.msra.mxu0 0
      %363 = vmatprep.subr.bf16.mxu0 0
      %364 = vmatpush2.bf16.msra.mxu0 0
      %365 = vmatprep.subr.bf16.mxu0 0
      %366 = vmatpush2.bf16.msra.mxu0 0
      %367 = vmatprep.subr.bf16.mxu0 0
      %368 = vmatpush2.bf16.msra.mxu0 0
      %369 = vmatprep.mubr.bf16.mxu0 0
      %370 = vmatmul.mubr.bf16.gmra.mxu0 %v335
      %v371 = vpop.f32.mrf.mxu0
      %v372 = vadd.f32 0.0, %v371
      %v373 = vpop.f32.mrf.mxu0
      %v374 = vpop.f32.mrf.mxu0
      %v375 = vpop.f32.mrf.mxu0
      %376 = vdwg.mxu0
      %v379 = vcombine.low %v242, %v243
      %v381 = vunpack.c.l.s4 1966171168
      %v382 = vunpack.c.0.s8 %v381
      %v383 = vlaneseq
      %v384 = vshrl.u32 %v383, 7
      %v385 = vsub.s32 %v382, %v384
      %v386 = vrot.slane %v379, %v385
      %v388 = vunpack.c.l.s4 1966171168
      %v389 = vunpack.c.0.s8 %v388
      %v390 = vlaneseq
      %v391 = vshrl.u32 %v390, 7
      %v392 = vsub.s32 %v389, %v391
      %v393 = vrot.slane %v386, %v392
      %v398 = vunpack.c.l.b16 %v244
      %v399 = vunpack.c.l.b16 %v245
      %v400 = vunpack.c.l.b16 %v246
      %v401 = vunpack.c.l.b16 %v247
      %v402 = vpack.c.b16 %v399, %v398
      %v403 = vpack.c.b16 %v401, %v400
      %v407 = vsel %vm333, %v393, 0
      %409 = vmatprep.subr.bf16.mxu0 0
      %410 = vmatpush1.bf16.msra.mxu0 0
      %411 = vmatprep.subr.bf16.mxu0 0
      %412 = vmatpush1.bf16.msra.mxu0 0
      %413 = vmatprep.subr.bf16.mxu0 0
      %414 = vmatpush1.bf16.msra.mxu0 0
      %415 = vmatprep.subr.bf16.mxu0 0
      %416 = vmatpush1.bf16.msra.mxu0 0
      %417 = vmatprep.subr.bf16.mxu0 0
      %418 = vmatpush1.bf16.msra.mxu0 0
      %419 = vmatprep.subr.bf16.mxu0 0
      %420 = vmatpush1.bf16.msra.mxu0 0
      %421 = vmatprep.subr.bf16.mxu0 0
      %422 = vmatpush1.bf16.msra.mxu0 %v403
      %423 = vmatprep.subr.bf16.mxu0 0
      %424 = vmatpush1.bf16.msra.mxu0 %v402
      %425 = vmatprep.subr.bf16.mxu0 0
      %426 = vmatpush2.bf16.msra.mxu0 0
      %427 = vmatprep.subr.bf16.mxu0 0
      %428 = vmatpush2.bf16.msra.mxu0 0
      %429 = vmatprep.subr.bf16.mxu0 0
      %430 = vmatpush2.bf16.msra.mxu0 0
      %431 = vmatprep.subr.bf16.mxu0 0
      %432 = vmatpush2.bf16.msra.mxu0 0
      %433 = vmatprep.subr.bf16.mxu0 0
      %434 = vmatpush2.bf16.msra.mxu0 0
      %435 = vmatprep.subr.bf16.mxu0 0
      %436 = vmatpush2.bf16.msra.mxu0 0
      %437 = vmatprep.subr.bf16.mxu0 0
      %438 = vmatpush2.bf16.msra.mxu0 0
      %439 = vmatprep.subr.bf16.mxu0 0
      %440 = vmatpush2.bf16.msra.mxu0 0
      %441 = vmatprep.mubr.bf16.mxu0 0
      %442 = vmatmul.mubr.bf16.gmra.mxu0 %v407
      %v443 = vpop.f32.mrf.mxu0
      %v444 = vadd.f32 %v372, %v443
      %v445 = vpop.f32.mrf.mxu0
      %v446 = vpop.f32.mrf.mxu0
      %v447 = vpop.f32.mrf.mxu0
      %448 = vdwg.mxu0
      %s449 = scalar_lea.vmem %s229, 2
      %v450 = vld [vmem:[%s449] sm:$0x1]
      %v451 = vld [vmem:[%s449 + $0x2] sm:$0x1]
      %s452 = scalar_lea.vmem %s1, 32
      %v453 = vld [vmem:[%s452] sm:$0xf]
      %v454 = vld [vmem:[%s452 + $0x4] sm:$0xf]
      %v455 = vld [vmem:[%s452 + $0x8] sm:$0xf]
      %v456 = vld [vmem:[%s452 + $0xc] sm:$0xf]
      %v459 = vcombine.low %v450, %v451
      %v461 = vunpack.c.l.s4 1966171168
      %v462 = vunpack.c.0.s8 %v461
      %v463 = vlaneseq
      %v464 = vshrl.u32 %v463, 7
      %v465 = vsub.s32 %v462, %v464
      %v466 = vrot.slane %v459, %v465
      %v468 = vunpack.c.l.s4 1966171168
      %v469 = vunpack.c.0.s8 %v468
      %v470 = vlaneseq
      %v471 = vshrl.u32 %v470, 7
      %v472 = vsub.s32 %v469, %v471
      %v473 = vrot.slane %v466, %v472
      %v478 = vunpack.c.l.b16 %v453
      %v479 = vunpack.c.l.b16 %v454
      %v480 = vunpack.c.l.b16 %v455
      %v481 = vunpack.c.l.b16 %v456
      %v482 = vpack.c.b16 %v479, %v478
      %v483 = vpack.c.b16 %v481, %v480
      %v487 = vsel %vm333, %v473, 0
      %489 = vmatprep.subr.bf16.mxu0 0
      %490 = vmatpush1.bf16.msra.mxu0 0
      %491 = vmatprep.subr.bf16.mxu0 0
      %492 = vmatpush1.bf16.msra.mxu0 0
      %493 = vmatprep.subr.bf16.mxu0 0
      %494 = vmatpush1.bf16.msra.mxu0 0
      %495 = vmatprep.subr.bf16.mxu0 0
      %496 = vmatpush1.bf16.msra.mxu0 0
      %497 = vmatprep.subr.bf16.mxu0 0
      %498 = vmatpush1.bf16.msra.mxu0 0
      %499 = vmatprep.subr.bf16.mxu0 0
      %500 = vmatpush1.bf16.msra.mxu0 0
      %501 = vmatprep.subr.bf16.mxu0 0
      %502 = vmatpush1.bf16.msra.mxu0 %v483
      %503 = vmatprep.subr.bf16.mxu0 0
      %504 = vmatpush1.bf16.msra.mxu0 %v482
      %505 = vmatprep.subr.bf16.mxu0 0
      %506 = vmatpush2.bf16.msra.mxu0 0
      %507 = vmatprep.subr.bf16.mxu0 0
      %508 = vmatpush2.bf16.msra.mxu0 0
      %509 = vmatprep.subr.bf16.mxu0 0
      %510 = vmatpush2.bf16.msra.mxu0 0
      %511 = vmatprep.subr.bf16.mxu0 0
      %512 = vmatpush2.bf16.msra.mxu0 0
      %513 = vmatprep.subr.bf16.mxu0 0
      %514 = vmatpush2.bf16.msra.mxu0 0
      %515 = vmatprep.subr.bf16.mxu0 0
      %516 = vmatpush2.bf16.msra.mxu0 0
      %517 = vmatprep.subr.bf16.mxu0 0
      %518 = vmatpush2.bf16.msra.mxu0 0
      %519 = vmatprep.subr.bf16.mxu0 0
      %520 = vmatpush2.bf16.msra.mxu0 0
      %521 = vmatprep.mubr.bf16.mxu0 0
      %522 = vmatmul.mubr.bf16.gmra.mxu0 %v487
      %v523 = vpop.f32.mrf.mxu0
      %v524 = vadd.f32 0.0, %v523
      %v525 = vpop.f32.mrf.mxu0
      %v526 = vpop.f32.mrf.mxu0
      %v527 = vpop.f32.mrf.mxu0
      %528 = vdwg.mxu0
      %v529 = vadd.f32 %v444, %v524
      %v530 = vld [vmem:[%s449] sm:$0x3]
      %v531 = vld [vmem:[%s449 + $0x2] sm:$0x3]
      %v535 = vunpack.c.l.s4 1966171168
      %v536 = vunpack.c.0.s8 %v535
      %v537 = vlaneseq
      %v538 = vshrl.u32 %v537, 7
      %v539 = vsub.s32 %v536, %v538
      %v540 = vrot.slane %v530, %v539
      %v541 = vcombine.high %v540, %v540
      %v543 = vunpack.c.l.s4 1966171168
      %v544 = vunpack.c.0.s8 %v543
      %v545 = vlaneseq
      %v546 = vshrl.u32 %v545, 7
      %v547 = vsub.s32 %v544, %v546
      %v548 = vrot.slane %v531, %v547
      %v549 = vcombine.high %v548, %v548
      %v551 = vshrl.u32 %v540, 16
      %v553 = vrot.slane %v551, 7
      %v554 = vrot.slane %v553, 1
      %v556 = vshll.u32 %v541, 16
      %v558 = vsel %vm282, %v554, %v556
      %v560 = vshrl.u32 %v548, 16
      %v562 = vrot.slane %v560, 7
      %v563 = vrot.slane %v562, 1
      %v565 = vshll.u32 %v549, 16
      %v567 = vsel %vm282, %v563, %v565
      %s568 = scalar_lea.vmem %s1, 48
      %v569 = vld [vmem:[%s568] sm:$0xf]
      %v570 = vld [vmem:[%s568 + $0x4] sm:$0xf]
      %v571 = vld [vmem:[%s568 + $0x8] sm:$0xf]
      %v572 = vld [vmem:[%s568 + $0xc] sm:$0xf]
      %v573 = vcombine.low %v558, %v567
      %v575 = vunpack.c.l.s4 1966171168
      %v576 = vunpack.c.0.s8 %v575
      %v577 = vlaneseq
      %v578 = vshrl.u32 %v577, 7
      %v579 = vsub.s32 %v576, %v578
      %v580 = vrot.slane %v573, %v579
      %v582 = vunpack.c.l.s4 1966171168
      %v583 = vunpack.c.0.s8 %v582
      %v584 = vlaneseq
      %v585 = vshrl.u32 %v584, 7
      %v586 = vsub.s32 %v583, %v585
      %v587 = vrot.slane %v580, %v586
      %v592 = vunpack.c.l.b16 %v569
      %v593 = vunpack.c.l.b16 %v570
      %v594 = vunpack.c.l.b16 %v571
      %v595 = vunpack.c.l.b16 %v572
      %v596 = vpack.c.b16 %v593, %v592
      %v597 = vpack.c.b16 %v595, %v594
      %v601 = vsel %vm333, %v587, 0
      %603 = vmatprep.subr.bf16.mxu0 0
      %604 = vmatpush1.bf16.msra.mxu0 0
      %605 = vmatprep.subr.bf16.mxu0 0
      %606 = vmatpush1.bf16.msra.mxu0 0
      %607 = vmatprep.subr.bf16.mxu0 0
      %608 = vmatpush1.bf16.msra.mxu0 0
      %609 = vmatprep.subr.bf16.mxu0 0
      %610 = vmatpush1.bf16.msra.mxu0 0
      %611 = vmatprep.subr.bf16.mxu0 0
      %612 = vmatpush1.bf16.msra.mxu0 0
      %613 = vmatprep.subr.bf16.mxu0 0
      %614 = vmatpush1.bf16.msra.mxu0 0
      %615 = vmatprep.subr.bf16.mxu0 0
      %616 = vmatpush1.bf16.msra.mxu0 %v597
      %617 = vmatprep.subr.bf16.mxu0 0
      %618 = vmatpush1.bf16.msra.mxu0 %v596
      %619 = vmatprep.subr.bf16.mxu0 0
      %620 = vmatpush2.bf16.msra.mxu0 0
      %621 = vmatprep.subr.bf16.mxu0 0
      %622 = vmatpush2.bf16.msra.mxu0 0
      %623 = vmatprep.subr.bf16.mxu0 0
      %624 = vmatpush2.bf16.msra.mxu0 0
      %625 = vmatprep.subr.bf16.mxu0 0
      %626 = vmatpush2.bf16.msra.mxu0 0
      %627 = vmatprep.subr.bf16.mxu0 0
      %628 = vmatpush2.bf16.msra.mxu0 0
      %629 = vmatprep.subr.bf16.mxu0 0
      %630 = vmatpush2.bf16.msra.mxu0 0
      %631 = vmatprep.subr.bf16.mxu0 0
      %632 = vmatpush2.bf16.msra.mxu0 0
      %633 = vmatprep.subr.bf16.mxu0 0
      %634 = vmatpush2.bf16.msra.mxu0 0
      %635 = vmatprep.mubr.bf16.mxu0 0
      %636 = vmatmul.mubr.bf16.gmra.mxu0 %v601
      %v637 = vpop.f32.mrf.mxu0
      %v638 = vadd.f32 0.0, %v637
      %v639 = vpop.f32.mrf.mxu0
      %v640 = vpop.f32.mrf.mxu0
      %v641 = vpop.f32.mrf.mxu0
      %642 = vdwg.mxu0
      %v643 = vadd.f32 %v529, %v638
      %v645 = vlaneseq
      %v646 = vshrl.u32 %v645, 7
      %v647 = vsub.s32 0, %v646
      %v648 = vrot.slane %v241, %v647
      %v650 = vadd.f32 %v643, %v648
      %vm651 = vcmask 125952
      %v652 = vsel %vm651, %v650, 0.0
      %v653 = vrot.slane %v652, 4
      %v654 = vadd.f32 %v652, %v653
      %v655 = vrot.slane %v654, 2
      %v656 = vadd.f32 %v654, %v655
      %v657 = vrot.slane %v656, 1
      %v658 = vadd.f32 %v656, %v657
      %v659 = vmul.f32 %v650, %v650
      %v660 = vsel %vm651, %v659, 0.0
      %v661 = vrot.slane %v660, 4
      %v662 = vadd.f32 %v660, %v661
      %v663 = vrot.slane %v662, 2
      %v664 = vadd.f32 %v662, %v663
      %v665 = vrot.slane %v664, 1
      %v666 = vadd.f32 %v664, %v665
      %s667 = scalar_lea.vmem %s1, 64
      %v668 = vld [vmem:[%s667] sm:$0xf]
      %v669 = vld [vmem:[%s667 + $0x4] sm:$0xf]
      %v670 = vld [vmem:[%s667 + $0x8] sm:$0xf]
      %v671 = vld [vmem:[%s667 + $0xc] sm:$0xf]
      %v672 = vld [vmem:[%s229] sm:$0x2]
      %v673 = vld [vmem:[%s229 + $0x2] sm:$0x2]
      %v677 = vunpack.c.l.s4 1966171168
      %v678 = vunpack.c.0.s8 %v677
      %v679 = vlaneseq
      %v680 = vshrl.u32 %v679, 7
      %v681 = vsub.s32 %v678, %v680
      %v682 = vrot.slane %v672, %v681
      %v683 = vcombine.high %v682, %v682
      %v685 = vunpack.c.l.s4 1966171168
      %v686 = vunpack.c.0.s8 %v685
      %v687 = vlaneseq
      %v688 = vshrl.u32 %v687, 7
      %v689 = vsub.s32 %v686, %v688
      %v690 = vrot.slane %v673, %v689
      %v691 = vcombine.high %v690, %v690
      %s692 = scalar_lea.vmem %s1, 80
      %v693 = vld [vmem:[%s692] sm:$0xf]
      %v694 = vld [vmem:[%s692 + $0x4] sm:$0xf]
      %v695 = vld [vmem:[%s692 + $0x8] sm:$0xf]
      %v696 = vld [vmem:[%s692 + $0xc] sm:$0xf]
      %v697 = vcombine.low %v683, %v691
      %v699 = vunpack.c.l.s4 1966171168
      %v700 = vunpack.c.0.s8 %v699
      %v701 = vlaneseq
      %v702 = vshrl.u32 %v701, 7
      %v703 = vsub.s32 %v700, %v702
      %v704 = vrot.slane %v697, %v703
      %v706 = vunpack.c.l.s4 1966171168
      %v707 = vunpack.c.0.s8 %v706
      %v708 = vlaneseq
      %v709 = vshrl.u32 %v708, 7
      %v710 = vsub.s32 %v707, %v709
      %v711 = vrot.slane %v704, %v710
      %v716 = vunpack.c.l.b16 %v693
      %v717 = vunpack.c.l.b16 %v694
      %v718 = vunpack.c.l.b16 %v695
      %v719 = vunpack.c.l.b16 %v696
      %v720 = vpack.c.b16 %v717, %v716
      %v721 = vpack.c.b16 %v719, %v718
      %v725 = vsel %vm333, %v711, 0
      %727 = vmatprep.subr.bf16.mxu0 0
      %728 = vmatpush1.bf16.msra.mxu0 0
      %729 = vmatprep.subr.bf16.mxu0 0
      %730 = vmatpush1.bf16.msra.mxu0 0
      %731 = vmatprep.subr.bf16.mxu0 0
      %732 = vmatpush1.bf16.msra.mxu0 0
      %733 = vmatprep.subr.bf16.mxu0 0
      %734 = vmatpush1.bf16.msra.mxu0 0
      %735 = vmatprep.subr.bf16.mxu0 0
      %736 = vmatpush1.bf16.msra.mxu0 0
      %737 = vmatprep.subr.bf16.mxu0 0
      %738 = vmatpush1.bf16.msra.mxu0 0
      %739 = vmatprep.subr.bf16.mxu0 0
      %740 = vmatpush1.bf16.msra.mxu0 %v721
      %741 = vmatprep.subr.bf16.mxu0 0
      %742 = vmatpush1.bf16.msra.mxu0 %v720
      %743 = vmatprep.subr.bf16.mxu0 0
      %744 = vmatpush2.bf16.msra.mxu0 0
      %745 = vmatprep.subr.bf16.mxu0 0
      %746 = vmatpush2.bf16.msra.mxu0 0
      %747 = vmatprep.subr.bf16.mxu0 0
      %748 = vmatpush2.bf16.msra.mxu0 0
      %749 = vmatprep.subr.bf16.mxu0 0
      %750 = vmatpush2.bf16.msra.mxu0 0
      %751 = vmatprep.subr.bf16.mxu0 0
      %752 = vmatpush2.bf16.msra.mxu0 0
      %753 = vmatprep.subr.bf16.mxu0 0
      %754 = vmatpush2.bf16.msra.mxu0 0
      %755 = vmatprep.subr.bf16.mxu0 0
      %756 = vmatpush2.bf16.msra.mxu0 0
      %757 = vmatprep.subr.bf16.mxu0 0
      %758 = vmatpush2.bf16.msra.mxu0 0
      %759 = vmatprep.mubr.bf16.mxu0 0
      %760 = vmatmul.mubr.bf16.gmra.mxu0 %v725
      %v761 = vpop.f32.mrf.mxu0
      %v762 = vadd.f32 0.0, %v761
      %v763 = vpop.f32.mrf.mxu0
      %v764 = vpop.f32.mrf.mxu0
      %v765 = vpop.f32.mrf.mxu0
      %766 = vdwg.mxu0
      %v771 = vunpack.c.l.b16 %v668
      %v772 = vunpack.c.l.b16 %v669
      %v773 = vunpack.c.l.b16 %v670
      %v774 = vunpack.c.l.b16 %v671
      %v775 = vpack.c.b16 %v772, %v771
      %v776 = vpack.c.b16 %v774, %v773
      %779 = vmatprep.subr.bf16.mxu0 0
      %780 = vmatpush1.bf16.msra.mxu0 0
      %781 = vmatprep.subr.bf16.mxu0 0
      %782 = vmatpush1.bf16.msra.mxu0 0
      %783 = vmatprep.subr.bf16.mxu0 0
      %784 = vmatpush1.bf16.msra.mxu0 0
      %785 = vmatprep.subr.bf16.mxu0 0
      %786 = vmatpush1.bf16.msra.mxu0 0
      %787 = vmatprep.subr.bf16.mxu0 0
      %788 = vmatpush1.bf16.msra.mxu0 0
      %789 = vmatprep.subr.bf16.mxu0 0
      %790 = vmatpush1.bf16.msra.mxu0 0
      %791 = vmatprep.subr.bf16.mxu0 0
      %792 = vmatpush1.bf16.msra.mxu0 %v776
      %793 = vmatprep.subr.bf16.mxu0 0
      %794 = vmatpush1.bf16.msra.mxu0 %v775
      %795 = vmatprep.subr.bf16.mxu0 0
      %796 = vmatpush2.bf16.msra.mxu0 0
      %797 = vmatprep.subr.bf16.mxu0 0
      %798 = vmatpush2.bf16.msra.mxu0 0
      %799 = vmatprep.subr.bf16.mxu0 0
      %800 = vmatpush2.bf16.msra.mxu0 0
      %801 = vmatprep.subr.bf16.mxu0 0
      %802 = vmatpush2.bf16.msra.mxu0 0
      %803 = vmatprep.subr.bf16.mxu0 0
      %804 = vmatpush2.bf16.msra.mxu0 0
      %805 = vmatprep.subr.bf16.mxu0 0
      %806 = vmatpush2.bf16.msra.mxu0 0
      %807 = vmatprep.subr.bf16.mxu0 0
      %808 = vmatpush2.bf16.msra.mxu0 0
      %809 = vmatprep.subr.bf16.mxu0 0
      %810 = vmatpush2.bf16.msra.mxu0 0
      %811 = vmatprep.mubr.bf16.mxu0 0
      %812 = vmatmul.mubr.bf16.gmra.mxu0 %v335
      %v813 = vpop.f32.mrf.mxu0
      %v814 = vadd.f32 %v762, %v813
      %v815 = vpop.f32.mrf.mxu0
      %v816 = vpop.f32.mrf.mxu0
      %v817 = vpop.f32.mrf.mxu0
      %818 = vdwg.mxu0
      %s819 = scalar_lea.vmem %s1, 96
      %v820 = vld [vmem:[%s819] sm:$0xf]
      %v821 = vld [vmem:[%s819 + $0x4] sm:$0xf]
      %v822 = vld [vmem:[%s819 + $0x8] sm:$0xf]
      %v823 = vld [vmem:[%s819 + $0xc] sm:$0xf]
      %v828 = vunpack.c.l.b16 %v820
      %v829 = vunpack.c.l.b16 %v821
      %v830 = vunpack.c.l.b16 %v822
      %v831 = vunpack.c.l.b16 %v823
      %v832 = vpack.c.b16 %v829, %v828
      %v833 = vpack.c.b16 %v831, %v830
      %836 = vmatprep.subr.bf16.mxu0 0
      %837 = vmatpush1.bf16.msra.mxu0 0
      %838 = vmatprep.subr.bf16.mxu0 0
      %839 = vmatpush1.bf16.msra.mxu0 0
      %840 = vmatprep.subr.bf16.mxu0 0
      %841 = vmatpush1.bf16.msra.mxu0 0
      %842 = vmatprep.subr.bf16.mxu0 0
      %843 = vmatpush1.bf16.msra.mxu0 0
      %844 = vmatprep.subr.bf16.mxu0 0
      %845 = vmatpush1.bf16.msra.mxu0 0
      %846 = vmatprep.subr.bf16.mxu0 0
      %847 = vmatpush1.bf16.msra.mxu0 0
      %848 = vmatprep.subr.bf16.mxu0 0
      %849 = vmatpush1.bf16.msra.mxu0 %v833
      %850 = vmatprep.subr.bf16.mxu0 0
      %851 = vmatpush1.bf16.msra.mxu0 %v832
      %852 = vmatprep.subr.bf16.mxu0 0
      %853 = vmatpush2.bf16.msra.mxu0 0
      %854 = vmatprep.subr.bf16.mxu0 0
      %855 = vmatpush2.bf16.msra.mxu0 0
      %856 = vmatprep.subr.bf16.mxu0 0
      %857 = vmatpush2.bf16.msra.mxu0 0
      %858 = vmatprep.subr.bf16.mxu0 0
      %859 = vmatpush2.bf16.msra.mxu0 0
      %860 = vmatprep.subr.bf16.mxu0 0
      %861 = vmatpush2.bf16.msra.mxu0 0
      %862 = vmatprep.subr.bf16.mxu0 0
      %863 = vmatpush2.bf16.msra.mxu0 0
      %864 = vmatprep.subr.bf16.mxu0 0
      %865 = vmatpush2.bf16.msra.mxu0 0
      %866 = vmatprep.subr.bf16.mxu0 0
      %867 = vmatpush2.bf16.msra.mxu0 0
      %868 = vmatprep.mubr.bf16.mxu0 0
      %869 = vmatmul.mubr.bf16.gmra.mxu0 %v601
      %v870 = vpop.f32.mrf.mxu0
      %v871 = vadd.f32 0.0, %v870
      %v872 = vpop.f32.mrf.mxu0
      %v873 = vpop.f32.mrf.mxu0
      %v874 = vpop.f32.mrf.mxu0
      %875 = vdwg.mxu0
      %v876 = vadd.f32 %v814, %v871
      %v877 = vld [vmem:[%s449] sm:$0x2]
      %v878 = vld [vmem:[%s449 + $0x2] sm:$0x2]
      %v882 = vunpack.c.l.s4 1966171168
      %v883 = vunpack.c.0.s8 %v882
      %v884 = vlaneseq
      %v885 = vshrl.u32 %v884, 7
      %v886 = vsub.s32 %v883, %v885
      %v887 = vrot.slane %v877, %v886
      %v888 = vcombine.high %v887, %v887
      %v890 = vunpack.c.l.s4 1966171168
      %v891 = vunpack.c.0.s8 %v890
      %v892 = vlaneseq
      %v893 = vshrl.u32 %v892, 7
      %v894 = vsub.s32 %v891, %v893
      %v895 = vrot.slane %v878, %v894
      %v896 = vcombine.high %v895, %v895
      %s897 = scalar_lea.vmem %s1, 112
      %v898 = vld [vmem:[%s897] sm:$0xf]
      %v899 = vld [vmem:[%s897 + $0x4] sm:$0xf]
      %v900 = vld [vmem:[%s897 + $0x8] sm:$0xf]
      %v901 = vld [vmem:[%s897 + $0xc] sm:$0xf]
      %v902 = vcombine.low %v888, %v896
      %v904 = vunpack.c.l.s4 1966171168
      %v905 = vunpack.c.0.s8 %v904
      %v906 = vlaneseq
      %v907 = vshrl.u32 %v906, 7
      %v908 = vsub.s32 %v905, %v907
      %v909 = vrot.slane %v902, %v908
      %v911 = vunpack.c.l.s4 1966171168
      %v912 = vunpack.c.0.s8 %v911
      %v913 = vlaneseq
      %v914 = vshrl.u32 %v913, 7
      %v915 = vsub.s32 %v912, %v914
      %v916 = vrot.slane %v909, %v915
      %v921 = vunpack.c.l.b16 %v898
      %v922 = vunpack.c.l.b16 %v899
      %v923 = vunpack.c.l.b16 %v900
      %v924 = vunpack.c.l.b16 %v901
      %v925 = vpack.c.b16 %v922, %v921
      %v926 = vpack.c.b16 %v924, %v923
      %v930 = vsel %vm333, %v916, 0
      %932 = vmatprep.subr.bf16.mxu0 0
      %933 = vmatpush1.bf16.msra.mxu0 0
      %934 = vmatprep.subr.bf16.mxu0 0
      %935 = vmatpush1.bf16.msra.mxu0 0
      %936 = vmatprep.subr.bf16.mxu0 0
      %937 = vmatpush1.bf16.msra.mxu0 0
      %938 = vmatprep.subr.bf16.mxu0 0
      %939 = vmatpush1.bf16.msra.mxu0 0
      %940 = vmatprep.subr.bf16.mxu0 0
      %941 = vmatpush1.bf16.msra.mxu0 0
      %942 = vmatprep.subr.bf16.mxu0 0
      %943 = vmatpush1.bf16.msra.mxu0 0
      %944 = vmatprep.subr.bf16.mxu0 0
      %945 = vmatpush1.bf16.msra.mxu0 %v926
      %946 = vmatprep.subr.bf16.mxu0 0
      %947 = vmatpush1.bf16.msra.mxu0 %v925
      %948 = vmatprep.subr.bf16.mxu0 0
      %949 = vmatpush2.bf16.msra.mxu0 0
      %950 = vmatprep.subr.bf16.mxu0 0
      %951 = vmatpush2.bf16.msra.mxu0 0
      %952 = vmatprep.subr.bf16.mxu0 0
      %953 = vmatpush2.bf16.msra.mxu0 0
      %954 = vmatprep.subr.bf16.mxu0 0
      %955 = vmatpush2.bf16.msra.mxu0 0
      %956 = vmatprep.subr.bf16.mxu0 0
      %957 = vmatpush2.bf16.msra.mxu0 0
      %958 = vmatprep.subr.bf16.mxu0 0
      %959 = vmatpush2.bf16.msra.mxu0 0
      %960 = vmatprep.subr.bf16.mxu0 0
      %961 = vmatpush2.bf16.msra.mxu0 0
      %962 = vmatprep.subr.bf16.mxu0 0
      %963 = vmatpush2.bf16.msra.mxu0 0
      %964 = vmatprep.mubr.bf16.mxu0 0
      %965 = vmatmul.mubr.bf16.gmra.mxu0 %v930
      %v966 = vpop.f32.mrf.mxu0
      %v967 = vadd.f32 0.0, %v966
      %v968 = vpop.f32.mrf.mxu0
      %v969 = vpop.f32.mrf.mxu0
      %v970 = vpop.f32.mrf.mxu0
      %971 = vdwg.mxu0
      %v972 = vadd.f32 %v876, %v967
      %v973 = vadd.f32 %v972, %v648
      %v974 = vsel %vm651, %v973, 0.0
      %v975 = vrot.slane %v974, 4
      %v976 = vadd.f32 %v974, %v975
      %v977 = vrot.slane %v976, 2
      %v978 = vadd.f32 %v976, %v977
      %v979 = vrot.slane %v978, 1
      %v980 = vadd.f32 %v978, %v979
      %v981 = vmul.f32 %v973, %v973
      %v982 = vsel %vm651, %v981, 0.0
      %v983 = vrot.slane %v982, 4
      %v984 = vadd.f32 %v982, %v983
      %v985 = vrot.slane %v984, 2
      %v986 = vadd.f32 %v984, %v985
      %v987 = vrot.slane %v986, 1
      %v988 = vadd.f32 %v986, %v987
      %s989 = scalar_lea.vmem %s1, 128
      %v990 = vld [vmem:[%s989] sm:$0xf]
      %v991 = vld [vmem:[%s989 + $0x4] sm:$0xf]
      %v992 = vld [vmem:[%s989 + $0x8] sm:$0xf]
      %v993 = vld [vmem:[%s989 + $0xc] sm:$0xf]
      %s994 = scalar_lea.vmem %s1, 144
      %v995 = vld [vmem:[%s994] sm:$0xf]
      %v996 = vld [vmem:[%s994 + $0x4] sm:$0xf]
      %v997 = vld [vmem:[%s994 + $0x8] sm:$0xf]
      %v998 = vld [vmem:[%s994 + $0xc] sm:$0xf]
      %v1003 = vunpack.c.l.b16 %v995
      %v1004 = vunpack.c.l.b16 %v996
      %v1005 = vunpack.c.l.b16 %v997
      %v1006 = vunpack.c.l.b16 %v998
      %v1007 = vpack.c.b16 %v1004, %v1003
      %v1008 = vpack.c.b16 %v1006, %v1005
      %1011 = vmatprep.subr.bf16.mxu0 0
      %1012 = vmatpush1.bf16.msra.mxu0 0
      %1013 = vmatprep.subr.bf16.mxu0 0
      %1014 = vmatpush1.bf16.msra.mxu0 0
      %1015 = vmatprep.subr.bf16.mxu0 0
      %1016 = vmatpush1.bf16.msra.mxu0 0
      %1017 = vmatprep.subr.bf16.mxu0 0
      %1018 = vmatpush1.bf16.msra.mxu0 0
      %1019 = vmatprep.subr.bf16.mxu0 0
      %1020 = vmatpush1.bf16.msra.mxu0 0
      %1021 = vmatprep.subr.bf16.mxu0 0
      %1022 = vmatpush1.bf16.msra.mxu0 0
      %1023 = vmatprep.subr.bf16.mxu0 0
      %1024 = vmatpush1.bf16.msra.mxu0 %v1008
      %1025 = vmatprep.subr.bf16.mxu0 0
      %1026 = vmatpush1.bf16.msra.mxu0 %v1007
      %1027 = vmatprep.subr.bf16.mxu0 0
      %1028 = vmatpush2.bf16.msra.mxu0 0
      %1029 = vmatprep.subr.bf16.mxu0 0
      %1030 = vmatpush2.bf16.msra.mxu0 0
      %1031 = vmatprep.subr.bf16.mxu0 0
      %1032 = vmatpush2.bf16.msra.mxu0 0
      %1033 = vmatprep.subr.bf16.mxu0 0
      %1034 = vmatpush2.bf16.msra.mxu0 0
      %1035 = vmatprep.subr.bf16.mxu0 0
      %1036 = vmatpush2.bf16.msra.mxu0 0
      %1037 = vmatprep.subr.bf16.mxu0 0
      %1038 = vmatpush2.bf16.msra.mxu0 0
      %1039 = vmatprep.subr.bf16.mxu0 0
      %1040 = vmatpush2.bf16.msra.mxu0 0
      %1041 = vmatprep.subr.bf16.mxu0 0
      %1042 = vmatpush2.bf16.msra.mxu0 0
      %1043 = vmatprep.mubr.bf16.mxu0 0
      %1044 = vmatmul.mubr.bf16.gmra.mxu0 %v601
      %v1045 = vpop.f32.mrf.mxu0
      %v1046 = vadd.f32 0.0, %v1045
      %v1047 = vpop.f32.mrf.mxu0
      %v1048 = vpop.f32.mrf.mxu0
      %v1049 = vpop.f32.mrf.mxu0
      %1050 = vdwg.mxu0
      %v1055 = vunpack.c.l.b16 %v990
      %v1056 = vunpack.c.l.b16 %v991
      %v1057 = vunpack.c.l.b16 %v992
      %v1058 = vunpack.c.l.b16 %v993
      %v1059 = vpack.c.b16 %v1056, %v1055
      %v1060 = vpack.c.b16 %v1058, %v1057
      %1063 = vmatprep.subr.bf16.mxu0 0
      %1064 = vmatpush1.bf16.msra.mxu0 0
      %1065 = vmatprep.subr.bf16.mxu0 0
      %1066 = vmatpush1.bf16.msra.mxu0 0
      %1067 = vmatprep.subr.bf16.mxu0 0
      %1068 = vmatpush1.bf16.msra.mxu0 0
      %1069 = vmatprep.subr.bf16.mxu0 0
      %1070 = vmatpush1.bf16.msra.mxu0 0
      %1071 = vmatprep.subr.bf16.mxu0 0
      %1072 = vmatpush1.bf16.msra.mxu0 0
      %1073 = vmatprep.subr.bf16.mxu0 0
      %1074 = vmatpush1.bf16.msra.mxu0 0
      %1075 = vmatprep.subr.bf16.mxu0 0
      %1076 = vmatpush1.bf16.msra.mxu0 %v1060
      %1077 = vmatprep.subr.bf16.mxu0 0
      %1078 = vmatpush1.bf16.msra.mxu0 %v1059
      %1079 = vmatprep.subr.bf16.mxu0 0
      %1080 = vmatpush2.bf16.msra.mxu0 0
      %1081 = vmatprep.subr.bf16.mxu0 0
      %1082 = vmatpush2.bf16.msra.mxu0 0
      %1083 = vmatprep.subr.bf16.mxu0 0
      %1084 = vmatpush2.bf16.msra.mxu0 0
      %1085 = vmatprep.subr.bf16.mxu0 0
      %1086 = vmatpush2.bf16.msra.mxu0 0
      %1087 = vmatprep.subr.bf16.mxu0 0
      %1088 = vmatpush2.bf16.msra.mxu0 0
      %1089 = vmatprep.subr.bf16.mxu0 0
      %1090 = vmatpush2.bf16.msra.mxu0 0
      %1091 = vmatprep.subr.bf16.mxu0 0
      %1092 = vmatpush2.bf16.msra.mxu0 0
      %1093 = vmatprep.subr.bf16.mxu0 0
      %1094 = vmatpush2.bf16.msra.mxu0 0
      %1095 = vmatprep.mubr.bf16.mxu0 0
      %1096 = vmatmul.mubr.bf16.gmra.mxu0 %v487
      %v1097 = vpop.f32.mrf.mxu0
      %v1098 = vadd.f32 %v1046, %v1097
      %v1099 = vpop.f32.mrf.mxu0
      %v1100 = vpop.f32.mrf.mxu0
      %v1101 = vpop.f32.mrf.mxu0
      %1102 = vdwg.mxu0
      %s1103 = scalar_lea.vmem %s229, 4
      %v1104 = vld [vmem:[%s1103] sm:$0x1]
      %v1105 = vld [vmem:[%s1103 + $0x2] sm:$0x1]
      %s1106 = scalar_lea.vmem %s1, 160
      %v1107 = vld [vmem:[%s1106] sm:$0xf]
      %v1108 = vld [vmem:[%s1106 + $0x4] sm:$0xf]
      %v1109 = vld [vmem:[%s1106 + $0x8] sm:$0xf]
      %v1110 = vld [vmem:[%s1106 + $0xc] sm:$0xf]
      %v1113 = vcombine.low %v1104, %v1105
      %v1115 = vunpack.c.l.s4 1966171168
      %v1116 = vunpack.c.0.s8 %v1115
      %v1117 = vlaneseq
      %v1118 = vshrl.u32 %v1117, 7
      %v1119 = vsub.s32 %v1116, %v1118
      %v1120 = vrot.slane %v1113, %v1119
      %v1122 = vunpack.c.l.s4 1966171168
      %v1123 = vunpack.c.0.s8 %v1122
      %v1124 = vlaneseq
      %v1125 = vshrl.u32 %v1124, 7
      %v1126 = vsub.s32 %v1123, %v1125
      %v1127 = vrot.slane %v1120, %v1126
      %v1132 = vunpack.c.l.b16 %v1107
      %v1133 = vunpack.c.l.b16 %v1108
      %v1134 = vunpack.c.l.b16 %v1109
      %v1135 = vunpack.c.l.b16 %v1110
      %v1136 = vpack.c.b16 %v1133, %v1132
      %v1137 = vpack.c.b16 %v1135, %v1134
      %v1141 = vsel %vm333, %v1127, 0
      %1143 = vmatprep.subr.bf16.mxu0 0
      %1144 = vmatpush1.bf16.msra.mxu0 0
      %1145 = vmatprep.subr.bf16.mxu0 0
      %1146 = vmatpush1.bf16.msra.mxu0 0
      %1147 = vmatprep.subr.bf16.mxu0 0
      %1148 = vmatpush1.bf16.msra.mxu0 0
      %1149 = vmatprep.subr.bf16.mxu0 0
      %1150 = vmatpush1.bf16.msra.mxu0 0
      %1151 = vmatprep.subr.bf16.mxu0 0
      %1152 = vmatpush1.bf16.msra.mxu0 0
      %1153 = vmatprep.subr.bf16.mxu0 0
      %1154 = vmatpush1.bf16.msra.mxu0 0
      %1155 = vmatprep.subr.bf16.mxu0 0
      %1156 = vmatpush1.bf16.msra.mxu0 %v1137
      %1157 = vmatprep.subr.bf16.mxu0 0
      %1158 = vmatpush1.bf16.msra.mxu0 %v1136
      %1159 = vmatprep.subr.bf16.mxu0 0
      %1160 = vmatpush2.bf16.msra.mxu0 0
      %1161 = vmatprep.subr.bf16.mxu0 0
      %1162 = vmatpush2.bf16.msra.mxu0 0
      %1163 = vmatprep.subr.bf16.mxu0 0
      %1164 = vmatpush2.bf16.msra.mxu0 0
      %1165 = vmatprep.subr.bf16.mxu0 0
      %1166 = vmatpush2.bf16.msra.mxu0 0
      %1167 = vmatprep.subr.bf16.mxu0 0
      %1168 = vmatpush2.bf16.msra.mxu0 0
      %1169 = vmatprep.subr.bf16.mxu0 0
      %1170 = vmatpush2.bf16.msra.mxu0 0
      %1171 = vmatprep.subr.bf16.mxu0 0
      %1172 = vmatpush2.bf16.msra.mxu0 0
      %1173 = vmatprep.subr.bf16.mxu0 0
      %1174 = vmatpush2.bf16.msra.mxu0 0
      %1175 = vmatprep.mubr.bf16.mxu0 0
      %1176 = vmatmul.mubr.bf16.gmra.mxu0 %v1141
      %v1177 = vpop.f32.mrf.mxu0
      %v1178 = vadd.f32 0.0, %v1177
      %v1179 = vpop.f32.mrf.mxu0
      %v1180 = vpop.f32.mrf.mxu0
      %v1181 = vpop.f32.mrf.mxu0
      %1182 = vdwg.mxu0
      %v1183 = vadd.f32 %v1098, %v1178
      %v1184 = vld [vmem:[%s1103] sm:$0x3]
      %v1185 = vld [vmem:[%s1103 + $0x2] sm:$0x3]
      %v1189 = vunpack.c.l.s4 1966171168
      %v1190 = vunpack.c.0.s8 %v1189
      %v1191 = vlaneseq
      %v1192 = vshrl.u32 %v1191, 7
      %v1193 = vsub.s32 %v1190, %v1192
      %v1194 = vrot.slane %v1184, %v1193
      %v1195 = vcombine.high %v1194, %v1194
      %v1197 = vunpack.c.l.s4 1966171168
      %v1198 = vunpack.c.0.s8 %v1197
      %v1199 = vlaneseq
      %v1200 = vshrl.u32 %v1199, 7
      %v1201 = vsub.s32 %v1198, %v1200
      %v1202 = vrot.slane %v1185, %v1201
      %v1203 = vcombine.high %v1202, %v1202
      %v1205 = vshrl.u32 %v1194, 16
      %v1207 = vrot.slane %v1205, 7
      %v1208 = vrot.slane %v1207, 1
      %v1210 = vshll.u32 %v1195, 16
      %v1212 = vsel %vm282, %v1208, %v1210
      %v1214 = vshrl.u32 %v1202, 16
      %v1216 = vrot.slane %v1214, 7
      %v1217 = vrot.slane %v1216, 1
      %v1219 = vshll.u32 %v1203, 16
      %v1221 = vsel %vm282, %v1217, %v1219
      %s1222 = scalar_lea.vmem %s1, 176
      %v1223 = vld [vmem:[%s1222] sm:$0xf]
      %v1224 = vld [vmem:[%s1222 + $0x4] sm:$0xf]
      %v1225 = vld [vmem:[%s1222 + $0x8] sm:$0xf]
      %v1226 = vld [vmem:[%s1222 + $0xc] sm:$0xf]
      %v1227 = vcombine.low %v1212, %v1221
      %v1229 = vunpack.c.l.s4 1966171168
      %v1230 = vunpack.c.0.s8 %v1229
      %v1231 = vlaneseq
      %v1232 = vshrl.u32 %v1231, 7
      %v1233 = vsub.s32 %v1230, %v1232
      %v1234 = vrot.slane %v1227, %v1233
      %v1236 = vunpack.c.l.s4 1966171168
      %v1237 = vunpack.c.0.s8 %v1236
      %v1238 = vlaneseq
      %v1239 = vshrl.u32 %v1238, 7
      %v1240 = vsub.s32 %v1237, %v1239
      %v1241 = vrot.slane %v1234, %v1240
      %v1246 = vunpack.c.l.b16 %v1223
      %v1247 = vunpack.c.l.b16 %v1224
      %v1248 = vunpack.c.l.b16 %v1225
      %v1249 = vunpack.c.l.b16 %v1226
      %v1250 = vpack.c.b16 %v1247, %v1246
      %v1251 = vpack.c.b16 %v1249, %v1248
      %v1255 = vsel %vm333, %v1241, 0
      %1257 = vmatprep.subr.bf16.mxu0 0
      %1258 = vmatpush1.bf16.msra.mxu0 0
      %1259 = vmatprep.subr.bf16.mxu0 0
      %1260 = vmatpush1.bf16.msra.mxu0 0
      %1261 = vmatprep.subr.bf16.mxu0 0
      %1262 = vmatpush1.bf16.msra.mxu0 0
      %1263 = vmatprep.subr.bf16.mxu0 0
      %1264 = vmatpush1.bf16.msra.mxu0 0
      %1265 = vmatprep.subr.bf16.mxu0 0
      %1266 = vmatpush1.bf16.msra.mxu0 0
      %1267 = vmatprep.subr.bf16.mxu0 0
      %1268 = vmatpush1.bf16.msra.mxu0 0
      %1269 = vmatprep.subr.bf16.mxu0 0
      %1270 = vmatpush1.bf16.msra.mxu0 %v1251
      %1271 = vmatprep.subr.bf16.mxu0 0
      %1272 = vmatpush1.bf16.msra.mxu0 %v1250
      %1273 = vmatprep.subr.bf16.mxu0 0
      %1274 = vmatpush2.bf16.msra.mxu0 0
      %1275 = vmatprep.subr.bf16.mxu0 0
      %1276 = vmatpush2.bf16.msra.mxu0 0
      %1277 = vmatprep.subr.bf16.mxu0 0
      %1278 = vmatpush2.bf16.msra.mxu0 0
      %1279 = vmatprep.subr.bf16.mxu0 0
      %1280 = vmatpush2.bf16.msra.mxu0 0
      %1281 = vmatprep.subr.bf16.mxu0 0
      %1282 = vmatpush2.bf16.msra.mxu0 0
      %1283 = vmatprep.subr.bf16.mxu0 0
      %1284 = vmatpush2.bf16.msra.mxu0 0
      %1285 = vmatprep.subr.bf16.mxu0 0
      %1286 = vmatpush2.bf16.msra.mxu0 0
      %1287 = vmatprep.subr.bf16.mxu0 0
      %1288 = vmatpush2.bf16.msra.mxu0 0
      %1289 = vmatprep.mubr.bf16.mxu0 0
      %1290 = vmatmul.mubr.bf16.gmra.mxu0 %v1255
      %v1291 = vpop.f32.mrf.mxu0
      %v1292 = vadd.f32 0.0, %v1291
      %v1293 = vpop.f32.mrf.mxu0
      %v1294 = vpop.f32.mrf.mxu0
      %v1295 = vpop.f32.mrf.mxu0
      %1296 = vdwg.mxu0
      %v1297 = vadd.f32 %v1183, %v1292
      %v1298 = vadd.f32 %v1297, %v648
      %v1299 = vsel %vm651, %v1298, 0.0
      %v1300 = vrot.slane %v1299, 4
      %v1301 = vadd.f32 %v1299, %v1300
      %v1302 = vrot.slane %v1301, 2
      %v1303 = vadd.f32 %v1301, %v1302
      %v1304 = vrot.slane %v1303, 1
      %v1305 = vadd.f32 %v1303, %v1304
      %v1306 = vmul.f32 %v1298, %v1298
      %v1307 = vsel %vm651, %v1306, 0.0
      %v1308 = vrot.slane %v1307, 4
      %v1309 = vadd.f32 %v1307, %v1308
      %v1310 = vrot.slane %v1309, 2
      %v1311 = vadd.f32 %v1309, %v1310
      %v1312 = vrot.slane %v1311, 1
      %v1313 = vadd.f32 %v1311, %v1312
      %s1314 = scalar_lea.vmem %s1, 192
      %v1315 = vld [vmem:[%s1314] sm:$0xf]
      %v1316 = vld [vmem:[%s1314 + $0x4] sm:$0xf]
      %v1317 = vld [vmem:[%s1314 + $0x8] sm:$0xf]
      %v1318 = vld [vmem:[%s1314 + $0xc] sm:$0xf]
      %s1319 = scalar_lea.vmem %s1, 208
      %v1320 = vld [vmem:[%s1319] sm:$0xf]
      %v1321 = vld [vmem:[%s1319 + $0x4] sm:$0xf]
      %v1322 = vld [vmem:[%s1319 + $0x8] sm:$0xf]
      %v1323 = vld [vmem:[%s1319 + $0xc] sm:$0xf]
      %v1328 = vunpack.c.l.b16 %v1320
      %v1329 = vunpack.c.l.b16 %v1321
      %v1330 = vunpack.c.l.b16 %v1322
      %v1331 = vunpack.c.l.b16 %v1323
      %v1332 = vpack.c.b16 %v1329, %v1328
      %v1333 = vpack.c.b16 %v1331, %v1330
      %1336 = vmatprep.subr.bf16.mxu0 0
      %1337 = vmatpush1.bf16.msra.mxu0 0
      %1338 = vmatprep.subr.bf16.mxu0 0
      %1339 = vmatpush1.bf16.msra.mxu0 0
      %1340 = vmatprep.subr.bf16.mxu0 0
      %1341 = vmatpush1.bf16.msra.mxu0 0
      %1342 = vmatprep.subr.bf16.mxu0 0
      %1343 = vmatpush1.bf16.msra.mxu0 0
      %1344 = vmatprep.subr.bf16.mxu0 0
      %1345 = vmatpush1.bf16.msra.mxu0 0
      %1346 = vmatprep.subr.bf16.mxu0 0
      %1347 = vmatpush1.bf16.msra.mxu0 0
      %1348 = vmatprep.subr.bf16.mxu0 0
      %1349 = vmatpush1.bf16.msra.mxu0 %v1333
      %1350 = vmatprep.subr.bf16.mxu0 0
      %1351 = vmatpush1.bf16.msra.mxu0 %v1332
      %1352 = vmatprep.subr.bf16.mxu0 0
      %1353 = vmatpush2.bf16.msra.mxu0 0
      %1354 = vmatprep.subr.bf16.mxu0 0
      %1355 = vmatpush2.bf16.msra.mxu0 0
      %1356 = vmatprep.subr.bf16.mxu0 0
      %1357 = vmatpush2.bf16.msra.mxu0 0
      %1358 = vmatprep.subr.bf16.mxu0 0
      %1359 = vmatpush2.bf16.msra.mxu0 0
      %1360 = vmatprep.subr.bf16.mxu0 0
      %1361 = vmatpush2.bf16.msra.mxu0 0
      %1362 = vmatprep.subr.bf16.mxu0 0
      %1363 = vmatpush2.bf16.msra.mxu0 0
      %1364 = vmatprep.subr.bf16.mxu0 0
      %1365 = vmatpush2.bf16.msra.mxu0 0
      %1366 = vmatprep.subr.bf16.mxu0 0
      %1367 = vmatpush2.bf16.msra.mxu0 0
      %1368 = vmatprep.mubr.bf16.mxu0 0
      %1369 = vmatmul.mubr.bf16.gmra.mxu0 %v930
      %v1370 = vpop.f32.mrf.mxu0
      %v1371 = vadd.f32 0.0, %v1370
      %v1372 = vpop.f32.mrf.mxu0
      %v1373 = vpop.f32.mrf.mxu0
      %v1374 = vpop.f32.mrf.mxu0
      %1375 = vdwg.mxu0
      %v1380 = vunpack.c.l.b16 %v1315
      %v1381 = vunpack.c.l.b16 %v1316
      %v1382 = vunpack.c.l.b16 %v1317
      %v1383 = vunpack.c.l.b16 %v1318
      %v1384 = vpack.c.b16 %v1381, %v1380
      %v1385 = vpack.c.b16 %v1383, %v1382
      %1388 = vmatprep.subr.bf16.mxu0 0
      %1389 = vmatpush1.bf16.msra.mxu0 0
      %1390 = vmatprep.subr.bf16.mxu0 0
      %1391 = vmatpush1.bf16.msra.mxu0 0
      %1392 = vmatprep.subr.bf16.mxu0 0
      %1393 = vmatpush1.bf16.msra.mxu0 0
      %1394 = vmatprep.subr.bf16.mxu0 0
      %1395 = vmatpush1.bf16.msra.mxu0 0
      %1396 = vmatprep.subr.bf16.mxu0 0
      %1397 = vmatpush1.bf16.msra.mxu0 0
      %1398 = vmatprep.subr.bf16.mxu0 0
      %1399 = vmatpush1.bf16.msra.mxu0 0
      %1400 = vmatprep.subr.bf16.mxu0 0
      %1401 = vmatpush1.bf16.msra.mxu0 %v1385
      %1402 = vmatprep.subr.bf16.mxu0 0
      %1403 = vmatpush1.bf16.msra.mxu0 %v1384
      %1404 = vmatprep.subr.bf16.mxu0 0
      %1405 = vmatpush2.bf16.msra.mxu0 0
      %1406 = vmatprep.subr.bf16.mxu0 0
      %1407 = vmatpush2.bf16.msra.mxu0 0
      %1408 = vmatprep.subr.bf16.mxu0 0
      %1409 = vmatpush2.bf16.msra.mxu0 0
      %1410 = vmatprep.subr.bf16.mxu0 0
      %1411 = vmatpush2.bf16.msra.mxu0 0
      %1412 = vmatprep.subr.bf16.mxu0 0
      %1413 = vmatpush2.bf16.msra.mxu0 0
      %1414 = vmatprep.subr.bf16.mxu0 0
      %1415 = vmatpush2.bf16.msra.mxu0 0
      %1416 = vmatprep.subr.bf16.mxu0 0
      %1417 = vmatpush2.bf16.msra.mxu0 0
      %1418 = vmatprep.subr.bf16.mxu0 0
      %1419 = vmatpush2.bf16.msra.mxu0 0
      %1420 = vmatprep.mubr.bf16.mxu0 0
      %1421 = vmatmul.mubr.bf16.gmra.mxu0 %v601
      %v1422 = vpop.f32.mrf.mxu0
      %v1423 = vadd.f32 %v1371, %v1422
      %v1424 = vpop.f32.mrf.mxu0
      %v1425 = vpop.f32.mrf.mxu0
      %v1426 = vpop.f32.mrf.mxu0
      %1427 = vdwg.mxu0
      %s1428 = scalar_lea.vmem %s1, 224
      %v1429 = vld [vmem:[%s1428] sm:$0xf]
      %v1430 = vld [vmem:[%s1428 + $0x4] sm:$0xf]
      %v1431 = vld [vmem:[%s1428 + $0x8] sm:$0xf]
      %v1432 = vld [vmem:[%s1428 + $0xc] sm:$0xf]
      %v1437 = vunpack.c.l.b16 %v1429
      %v1438 = vunpack.c.l.b16 %v1430
      %v1439 = vunpack.c.l.b16 %v1431
      %v1440 = vunpack.c.l.b16 %v1432
      %v1441 = vpack.c.b16 %v1438, %v1437
      %v1442 = vpack.c.b16 %v1440, %v1439
      %1445 = vmatprep.subr.bf16.mxu0 0
      %1446 = vmatpush1.bf16.msra.mxu0 0
      %1447 = vmatprep.subr.bf16.mxu0 0
      %1448 = vmatpush1.bf16.msra.mxu0 0
      %1449 = vmatprep.subr.bf16.mxu0 0
      %1450 = vmatpush1.bf16.msra.mxu0 0
      %1451 = vmatprep.subr.bf16.mxu0 0
      %1452 = vmatpush1.bf16.msra.mxu0 0
      %1453 = vmatprep.subr.bf16.mxu0 0
      %1454 = vmatpush1.bf16.msra.mxu0 0
      %1455 = vmatprep.subr.bf16.mxu0 0
      %1456 = vmatpush1.bf16.msra.mxu0 0
      %1457 = vmatprep.subr.bf16.mxu0 0
      %1458 = vmatpush1.bf16.msra.mxu0 %v1442
      %1459 = vmatprep.subr.bf16.mxu0 0
      %1460 = vmatpush1.bf16.msra.mxu0 %v1441
      %1461 = vmatprep.subr.bf16.mxu0 0
      %1462 = vmatpush2.bf16.msra.mxu0 0
      %1463 = vmatprep.subr.bf16.mxu0 0
      %1464 = vmatpush2.bf16.msra.mxu0 0
      %1465 = vmatprep.subr.bf16.mxu0 0
      %1466 = vmatpush2.bf16.msra.mxu0 0
      %1467 = vmatprep.subr.bf16.mxu0 0
      %1468 = vmatpush2.bf16.msra.mxu0 0
      %1469 = vmatprep.subr.bf16.mxu0 0
      %1470 = vmatpush2.bf16.msra.mxu0 0
      %1471 = vmatprep.subr.bf16.mxu0 0
      %1472 = vmatpush2.bf16.msra.mxu0 0
      %1473 = vmatprep.subr.bf16.mxu0 0
      %1474 = vmatpush2.bf16.msra.mxu0 0
      %1475 = vmatprep.subr.bf16.mxu0 0
      %1476 = vmatpush2.bf16.msra.mxu0 0
      %1477 = vmatprep.mubr.bf16.mxu0 0
      %1478 = vmatmul.mubr.bf16.gmra.mxu0 %v1255
      %v1479 = vpop.f32.mrf.mxu0
      %v1480 = vadd.f32 0.0, %v1479
      %v1481 = vpop.f32.mrf.mxu0
      %v1482 = vpop.f32.mrf.mxu0
      %v1483 = vpop.f32.mrf.mxu0
      %1484 = vdwg.mxu0
      %v1485 = vadd.f32 %v1423, %v1480
      %v1486 = vld [vmem:[%s1103] sm:$0x2]
      %v1487 = vld [vmem:[%s1103 + $0x2] sm:$0x2]
      %v1491 = vunpack.c.l.s4 1966171168
      %v1492 = vunpack.c.0.s8 %v1491
      %v1493 = vlaneseq
      %v1494 = vshrl.u32 %v1493, 7
      %v1495 = vsub.s32 %v1492, %v1494
      %v1496 = vrot.slane %v1486, %v1495
      %v1497 = vcombine.high %v1496, %v1496
      %v1499 = vunpack.c.l.s4 1966171168
      %v1500 = vunpack.c.0.s8 %v1499
      %v1501 = vlaneseq
      %v1502 = vshrl.u32 %v1501, 7
      %v1503 = vsub.s32 %v1500, %v1502
      %v1504 = vrot.slane %v1487, %v1503
      %v1505 = vcombine.high %v1504, %v1504
      %s1506 = scalar_lea.vmem %s1, 240
      %v1507 = vld [vmem:[%s1506] sm:$0xf]
      %v1508 = vld [vmem:[%s1506 + $0x4] sm:$0xf]
      %v1509 = vld [vmem:[%s1506 + $0x8] sm:$0xf]
      %v1510 = vld [vmem:[%s1506 + $0xc] sm:$0xf]
      %v1511 = vcombine.low %v1497, %v1505
      %v1513 = vunpack.c.l.s4 1966171168
      %v1514 = vunpack.c.0.s8 %v1513
      %v1515 = vlaneseq
      %v1516 = vshrl.u32 %v1515, 7
      %v1517 = vsub.s32 %v1514, %v1516
      %v1518 = vrot.slane %v1511, %v1517
      %v1520 = vunpack.c.l.s4 1966171168
      %v1521 = vunpack.c.0.s8 %v1520
      %v1522 = vlaneseq
      %v1523 = vshrl.u32 %v1522, 7
      %v1524 = vsub.s32 %v1521, %v1523
      %v1525 = vrot.slane %v1518, %v1524
      %v1530 = vunpack.c.l.b16 %v1507
      %v1531 = vunpack.c.l.b16 %v1508
      %v1532 = vunpack.c.l.b16 %v1509
      %v1533 = vunpack.c.l.b16 %v1510
      %v1534 = vpack.c.b16 %v1531, %v1530
      %v1535 = vpack.c.b16 %v1533, %v1532
      %v1539 = vsel %vm333, %v1525, 0
      %1541 = vmatprep.subr.bf16.mxu0 0
      %1542 = vmatpush1.bf16.msra.mxu0 0
      %1543 = vmatprep.subr.bf16.mxu0 0
      %1544 = vmatpush1.bf16.msra.mxu0 0
      %1545 = vmatprep.subr.bf16.mxu0 0
      %1546 = vmatpush1.bf16.msra.mxu0 0
      %1547 = vmatprep.subr.bf16.mxu0 0
      %1548 = vmatpush1.bf16.msra.mxu0 0
      %1549 = vmatprep.subr.bf16.mxu0 0
      %1550 = vmatpush1.bf16.msra.mxu0 0
      %1551 = vmatprep.subr.bf16.mxu0 0
      %1552 = vmatpush1.bf16.msra.mxu0 0
      %1553 = vmatprep.subr.bf16.mxu0 0
      %1554 = vmatpush1.bf16.msra.mxu0 %v1535
      %1555 = vmatprep.subr.bf16.mxu0 0
      %1556 = vmatpush1.bf16.msra.mxu0 %v1534
      %1557 = vmatprep.subr.bf16.mxu0 0
      %1558 = vmatpush2.bf16.msra.mxu0 0
      %1559 = vmatprep.subr.bf16.mxu0 0
      %1560 = vmatpush2.bf16.msra.mxu0 0
      %1561 = vmatprep.subr.bf16.mxu0 0
      %1562 = vmatpush2.bf16.msra.mxu0 0
      %1563 = vmatprep.subr.bf16.mxu0 0
      %1564 = vmatpush2.bf16.msra.mxu0 0
      %1565 = vmatprep.subr.bf16.mxu0 0
      %1566 = vmatpush2.bf16.msra.mxu0 0
      %1567 = vmatprep.subr.bf16.mxu0 0
      %1568 = vmatpush2.bf16.msra.mxu0 0
      %1569 = vmatprep.subr.bf16.mxu0 0
      %1570 = vmatpush2.bf16.msra.mxu0 0
      %1571 = vmatprep.subr.bf16.mxu0 0
      %1572 = vmatpush2.bf16.msra.mxu0 0
      %1573 = vmatprep.mubr.bf16.mxu0 0
      %1574 = vmatmul.mubr.bf16.gmra.mxu0 %v1539
      %v1575 = vpop.f32.mrf.mxu0
      %v1576 = vadd.f32 0.0, %v1575
      %v1577 = vpop.f32.mrf.mxu0
      %v1578 = vpop.f32.mrf.mxu0
      %v1579 = vpop.f32.mrf.mxu0
      %1580 = vdwg.mxu0
      %v1581 = vadd.f32 %v1485, %v1576
      %v1582 = vadd.f32 %v1581, %v648
      %v1583 = vsel %vm651, %v1582, 0.0
      %v1584 = vrot.slane %v1583, 4
      %v1585 = vadd.f32 %v1583, %v1584
      %v1586 = vrot.slane %v1585, 2
      %v1587 = vadd.f32 %v1585, %v1586
      %v1588 = vrot.slane %v1587, 1
      %v1589 = vadd.f32 %v1587, %v1588
      %v1590 = vmul.f32 %v1582, %v1582
      %v1591 = vsel %vm651, %v1590, 0.0
      %v1592 = vrot.slane %v1591, 4
      %v1593 = vadd.f32 %v1591, %v1592
      %v1594 = vrot.slane %v1593, 2
      %v1595 = vadd.f32 %v1593, %v1594
      %v1596 = vrot.slane %v1595, 1
      %v1597 = vadd.f32 %v1595, %v1596
      %1599 = vrot.lane.b32.xlu0 %v973, 16
      %v1600 = vpop.permute.xlu0 %1599
      %1603 = vrot.lane.b32.xlu0 %v1298, 32
      %v1604 = vpop.permute.xlu0 %1603
      %1607 = vrot.lane.b32.xlu0 %v1582, 48
      %v1608 = vpop.permute.xlu0 %1607
      %vm1610 = vcmask 130048
      %v1611 = vsel %vm1610, %v650, %v1600
      %v1612 = vsel %vm333, %v1611, %v1604
      %vm1613 = vcmask 392192
      %v1614 = vsel %vm1613, %v1612, %v1608
      %v1617 = vunpack.c.l.s4 1983009808
      %v1618 = vunpack.c.0.s8 %v1617
      %v1619 = vlaneseq
      %v1620 = vshrl.u32 %v1619, 7
      %v1621 = vsub.s32 %v1618, %v1620
      %v1622 = vrot.slane %v1614, %v1621
      %v1623 = vcombine.high %v1622, %v1622
      %v1626 = vpack.c.bf16 %v1622, %v1622
      %v1627 = vpack.c.bf16 %v1623, %v1623
      %vm1628 = vcmask 516096
      %1629 = vst.msk [vmem:[%s233] sm:$0x1] %vm1628, %v1626
      %1630 = vst.msk [vmem:[%s233 + $0x1] sm:$0x1] %vm1628, %v1627
      %1632 = vrot.lane.b32.xlu0 %v980, 16
      %v1633 = vpop.permute.xlu0 %1632
      %1636 = vrot.lane.b32.xlu0 %v1305, 32
      %v1637 = vpop.permute.xlu0 %1636
      %1640 = vrot.lane.b32.xlu0 %v1589, 48
      %v1641 = vpop.permute.xlu0 %1640
      %v1643 = vsel %vm1610, %v658, %v1633
      %v1644 = vsel %vm333, %v1643, %v1637
      %v1645 = vsel %vm1613, %v1644, %v1641
      %1646 = vst.msk [vmem:[%s236] sm:$0x1] %vm1628, %v1645
      %1648 = vrot.lane.b32.xlu0 %v988, 16
      %v1649 = vpop.permute.xlu0 %1648
      %1652 = vrot.lane.b32.xlu0 %v1313, 32
      %v1653 = vpop.permute.xlu0 %1652
      %1656 = vrot.lane.b32.xlu0 %v1597, 48
      %v1657 = vpop.permute.xlu0 %1656
      %v1659 = vsel %vm1610, %v666, %v1649
      %v1660 = vsel %vm333, %v1659, %v1653
      %v1661 = vsel %vm1613, %v1660, %v1657
      %1662 = vst.msk [vmem:[%s239] sm:$0x1] %vm1628, %v1661
      %p1663 = scmp.lt.s32.totalorder %s17, 1
      %s1664 = scalar_select %p1663, %s17, 1
      %s1665 = smul.addr %s1664, 2
      %s1666 = scalar_lea.vmem %s3, %s1665
      %p1667 = scmp.lt.s32.totalorder %s17, 1
      %s1668 = scalar_select %p1667, %s17, 1
      %s1669 = scalar_lea.vmem %s4, %s1668
      %p1670 = scmp.lt.s32.totalorder %s17, 1
      %s1671 = scalar_select %p1670, %s17, 1
      %s1672 = scalar_lea.vmem %s5, %s1671
      // Predicated region
      $region33: #{generator_forward.11} parent=31 // pred_check
        %p1673 = pneg %p103
      $region34: #{generator_forward.11} parent=31 // pred_check_branch
        %1675 = sbr.rel (%p1673) target = $region36
      $region35: #{generator_forward.11} parent=31 // pred_region
        _
      $region36: #{generator_forward.11} parent=31 // pred_fallthru
        _
      // Predicated region
      $region37: #{generator_forward.11} parent=31 // pred_check
        %p1676 = pneg %p129
      $region38: #{generator_forward.11} parent=31 // pred_check_branch
        %1678 = sbr.rel (%p1676) target = $region40
      $region39: #{generator_forward.11} parent=31 // pred_region
        _
      $region40: #{generator_forward.11} parent=31 // pred_fallthru
        _
      // Predicated region
      $region41: #{generator_forward.11} parent=31 // pred_check
        %p1679 = pneg %p155
      $region42: #{generator_forward.11} parent=31 // pred_check_branch
        %1681 = sbr.rel (%p1679) target = $region44
      $region43: #{generator_forward.11} parent=31 // pred_region
        _
      $region44: #{generator_forward.11} parent=31 // pred_fallthru
        _
    $region32: #{generator_forward.11} parent=5 // pred_fallthru
      _
    %p1682 = scmp.le.s32.totalorder 2, %s12
    // Predicated region
    $region45: #{generator_forward.11} parent=5 // pred_check
      %p1683 = pneg %p1682
    $region46: #{generator_forward.11} parent=5 // pred_check_branch
      %1685 = sbr.rel (%p1683) target = $region48
    $region47: #{generator_forward.11} parent=5 // pred_region
      %s1686 = ssub.s32 %s12, 2
      // Predicated region
      $region49: #{generator_forward.11} parent=47 // pred_check
        %p1687 = pneg %p109
      $region50: #{generator_forward.11} parent=47 // pred_check_branch
        %1689 = sbr.rel (%p1687) target = $region52
      $region51: #{generator_forward.11} parent=47 // pred_region
        %p1690 = scmp.lt.s32.totalorder %s18, 1
        %s1691 = scalar_select %p1690, %s18, 1
        %s1692 = smul.addr %s1691, 2
        %s1693 = scalar_lea.vmem %s3, %s1692
      $region52: #{generator_forward.11} parent=47 // pred_fallthru
        _
      // Predicated region
      $region53: #{generator_forward.11} parent=47 // pred_check
        %p1694 = pneg %p135
      $region54: #{generator_forward.11} parent=47 // pred_check_branch
        %1696 = sbr.rel (%p1694) target = $region56
      $region55: #{generator_forward.11} parent=47 // pred_region
        %p1697 = scmp.lt.s32.totalorder %s18, 1
        %s1698 = scalar_select %p1697, %s18, 1
        %s1699 = scalar_lea.vmem %s4, %s1698
      $region56: #{generator_forward.11} parent=47 // pred_fallthru
        _
      // Predicated region
      $region57: #{generator_forward.11} parent=47 // pred_check
        %p1700 = pneg %p161
      $region58: #{generator_forward.11} parent=47 // pred_check_branch
        %1702 = sbr.rel (%p1700) target = $region60
      $region59: #{generator_forward.11} parent=47 // pred_region
        %p1703 = scmp.lt.s32.totalorder %s18, 1
        %s1704 = scalar_select %p1703, %s18, 1
        %s1705 = scalar_lea.vmem %s5, %s1704
      $region60: #{generator_forward.11} parent=47 // pred_fallthru
        _
    $region48: #{generator_forward.11} parent=5 // pred_fallthru
      _
  $region6: #{generator_forward.11} parent=0 // loop_footer
    %s16 = sadd.s32 1, %s12
  $region7: #{generator_forward.11} parent=0 // loop_footer_branch
    %11 = sbr.rel target = $region3
  $region8: #{generator_forward.11} parent=0 // loop_exit
    _

// kernel: generator_forward.13
$region0: #{generator_forward.13}
  #allocation0 [shape = 'u32[]', space=smem, size = 0x4, offset = 0x4, fixed_abs, tag = 'smem constant byte address 0x4 - core index']
  #allocation1 [shape = 'u32[144,128]{1,0:T(1,128)}', space=vmem, size = 0x12000, scoped, tag = 'internal scratch']
  %s0 = inlined_call_operand.vmem [shape: bf16[2,6,6,16], index: 0, kind: input, shape index: {}]
  %s1 = inlined_call_operand.vmem [shape: bf16[16,16,8], index: 1, kind: input, shape index: {}]
  %s2 = inlined_call_operand.vmem [shape: f32[1,8], index: 2, kind: input, shape index: {}]
  %s3 = inlined_call_operand.vmem [shape: bf16[2,4,4,32], index: 3, kind: output, shape index: {0}]
  %s4 = inlined_call_operand.vmem [shape: f32[2,1,32], index: 4, kind: output, shape index: {1}]
  %s5 = inlined_call_operand.vmem [shape: f32[2,1,32], index: 5, kind: output, shape index: {2}]
  %6 = xla_tuple %s3, %s4, %s5
  %s7 = sld [smem:[#allocation0]]
  $region61: #{generator_forward.13} parent=0
    _
  %s9 = ssub.s32 1, %s7
  %s10 = scalar_select 0, %s9, %s7
  loop: start=0, step=1, limit=4
  $region2: #{generator_forward.13} parent=0 // loop_pre_header
    _
  $region3: #{generator_forward.13} parent=0 // loop_header
    %s12 = sphi 0, %s16
    %p13 = scmp.ge.s32.totalorder %s12, 4
    %s22 = sphi 0, %s24
    %s25 = sphi 0, %s22
    %s26 = sphi 0, %s25
    %s42 = sphi 0, %s26
    %s46 = sphi 0, %s46
    %s48 = sphi 0, %s46
    %s49 = sphi 0, %s48
    %s63 = sphi 0, %s49
    %s67 = sphi 0, %s67
    %s69 = sphi 0, %s67
    %s70 = sphi 0, %s69
    %s84 = sphi 0, %s70
    %s90 = sphi 0, %s92
    %s93 = sphi 0, %s90
    %s94 = sphi 0, %s93
    %s110 = sphi 0, %s94
    %s116 = sphi 0, %s118
    %s119 = sphi 0, %s116
    %s120 = sphi 0, %s119
    %s136 = sphi 0, %s120
    %s142 = sphi 0, %s144
    %s145 = sphi 0, %s142
    %s146 = sphi 0, %s145
    %s162 = sphi 0, %s146
  $region4: #{generator_forward.13} parent=0 // loop_header_branch
    %15 = sbr.rel (%p13) target = $region8
  $region5: #{generator_forward.13} parent=0 // loop_body
    %s17 = ssub.s32 %s12, 1
    %s18 = ssub.s32 %s12, 2
    %s19 = sadd.s32 %s12, 1
    %s20 = ssub.s32 %s12, %s19
    %p21 = scmp.eq.s32.totalorder %s20, 0
    %s23 = sadd.s32 %s22, 1
    %s24 = scalar_select %p21, %s22, %s23
    %p27 = pneg %p21
    %p28 = scmp.eq.s32.totalorder %s12, 1
    %p29 = por %p27, %p28
    %p30 = scmp.ne.s32.totalorder %s22, %s25
    %p31 = scmp.eq.s32.totalorder %s12, 0
    %p32 = por %p30, %p31
    %p33 = scmp.ne.s32.totalorder %s22, %s25
    %p34 = scmp.eq.s32.totalorder %s17, 1
    %p35 = por %p33, %p34
    %p36 = scmp.ne.s32.totalorder %s25, %s26
    %p37 = scmp.eq.s32.totalorder %s17, 0
    %p38 = por %p36, %p37
    %p39 = scmp.ne.s32.totalorder %s25, %s26
    %p40 = scmp.eq.s32.totalorder %s18, 1
    %p41 = por %p39, %p40
    %p43 = scmp.ne.s32.totalorder %s26, %s42
    %p44 = scmp.eq.s32.totalorder %s18, 0
    %p45 = por %p43, %p44
    %s47 = sadd.s32 %s46, 1
    %p50 = scmp.eq.s32.totalorder %s12, 1
    %p51 = scmp.ne.s32.totalorder %s46, %s48
    %p52 = scmp.eq.s32.totalorder %s12, 0
    %p53 = por %p51, %p52
    %p54 = scmp.ne.s32.totalorder %s46, %s48
    %p55 = scmp.eq.s32.totalorder %s17, 1
    %p56 = por %p54, %p55
    %p57 = scmp.ne.s32.totalorder %s48, %s49
    %p58 = scmp.eq.s32.totalorder %s17, 0
    %p59 = por %p57, %p58
    %p60 = scmp.ne.s32.totalorder %s48, %s49
    %p61 = scmp.eq.s32.totalorder %s18, 1
    %p62 = por %p60, %p61
    %p64 = scmp.ne.s32.totalorder %s49, %s63
    %p65 = scmp.eq.s32.totalorder %s18, 0
    %p66 = por %p64, %p65
    %s68 = sadd.s32 %s67, 1
    %p71 = scmp.eq.s32.totalorder %s12, 1
    %p72 = scmp.ne.s32.totalorder %s67, %s69
    %p73 = scmp.eq.s32.totalorder %s12, 0
    %p74 = por %p72, %p73
    %p75 = scmp.ne.s32.totalorder %s67, %s69
    %p76 = scmp.eq.s32.totalorder %s17, 1
    %p77 = por %p75, %p76
    %p78 = scmp.ne.s32.totalorder %s69, %s70
    %p79 = scmp.eq.s32.totalorder %s17, 0
    %p80 = por %p78, %p79
    %p81 = scmp.ne.s32.totalorder %s69, %s70
    %p82 = scmp.eq.s32.totalorder %s18, 1
    %p83 = por %p81, %p82
    %p85 = scmp.ne.s32.totalorder %s70, %s84
    %p86 = scmp.eq.s32.totalorder %s18, 0
    %p87 = por %p85, %p86
    %s88 = ssub.s32 %s12, %s19
    %p89 = scmp.eq.s32.totalorder %s88, 0
    %s91 = sadd.s32 %s90, 1
    %s92 = scalar_select %p89, %s90, %s91
    %p95 = pneg %p89
    %p96 = scmp.eq.s32.totalorder %s12, 1
    %p97 = por %p95, %p96
    %p98 = scmp.ne.s32.totalorder %s90, %s93
    %p99 = scmp.eq.s32.totalorder %s12, 0
    %p100 = por %p98, %p99
    %p101 = scmp.ne.s32.totalorder %s90, %s93
    %p102 = scmp.eq.s32.totalorder %s17, 1
    %p103 = por %p101, %p102
    %p104 = scmp.ne.s32.totalorder %s93, %s94
    %p105 = scmp.eq.s32.totalorder %s17, 0
    %p106 = por %p104, %p105
    %p107 = scmp.ne.s32.totalorder %s93, %s94
    %p108 = scmp.eq.s32.totalorder %s18, 1
    %p109 = por %p107, %p108
    %p111 = scmp.ne.s32.totalorder %s94, %s110
    %p112 = scmp.eq.s32.totalorder %s18, 0
    %p113 = por %p111, %p112
    %s114 = ssub.s32 %s12, %s19
    %p115 = scmp.eq.s32.totalorder %s114, 0
    %s117 = sadd.s32 %s116, 1
    %s118 = scalar_select %p115, %s116, %s117
    %p121 = pneg %p115
    %p122 = scmp.eq.s32.totalorder %s12, 1
    %p123 = por %p121, %p122
    %p124 = scmp.ne.s32.totalorder %s116, %s119
    %p125 = scmp.eq.s32.totalorder %s12, 0
    %p126 = por %p124, %p125
    %p127 = scmp.ne.s32.totalorder %s116, %s119
    %p128 = scmp.eq.s32.totalorder %s17, 1
    %p129 = por %p127, %p128
    %p130 = scmp.ne.s32.totalorder %s119, %s120
    %p131 = scmp.eq.s32.totalorder %s17, 0
    %p132 = por %p130, %p131
    %p133 = scmp.ne.s32.totalorder %s119, %s120
    %p134 = scmp.eq.s32.totalorder %s18, 1
    %p135 = por %p133, %p134
    %p137 = scmp.ne.s32.totalorder %s120, %s136
    %p138 = scmp.eq.s32.totalorder %s18, 0
    %p139 = por %p137, %p138
    %s140 = ssub.s32 %s12, %s19
    %p141 = scmp.eq.s32.totalorder %s140, 0
    %s143 = sadd.s32 %s142, 1
    %s144 = scalar_select %p141, %s142, %s143
    %p147 = pneg %p141
    %p148 = scmp.eq.s32.totalorder %s12, 1
    %p149 = por %p147, %p148
    %p150 = scmp.ne.s32.totalorder %s142, %s145
    %p151 = scmp.eq.s32.totalorder %s12, 0
    %p152 = por %p150, %p151
    %p153 = scmp.ne.s32.totalorder %s142, %s145
    %p154 = scmp.eq.s32.totalorder %s17, 1
    %p155 = por %p153, %p154
    %p156 = scmp.ne.s32.totalorder %s145, %s146
    %p157 = scmp.eq.s32.totalorder %s17, 0
    %p158 = por %p156, %p157
    %p159 = scmp.ne.s32.totalorder %s145, %s146
    %p160 = scmp.eq.s32.totalorder %s18, 1
    %p161 = por %p159, %p160
    %p163 = scmp.ne.s32.totalorder %s146, %s162
    %p164 = scmp.eq.s32.totalorder %s18, 0
    %p165 = por %p163, %p164
    %p166 = scmp.le.s32.totalorder 1, %s12
    %p167 = scmp.lt.s32.totalorder %s12, 3
    %p168 = pnand %p166, %p167
    %p169 = pneg %p168
    // Predicated region
    $region9: #{generator_forward.13} parent=5 // pred_check
      _
    $region10: #{generator_forward.13} parent=5 // pred_check_branch
      %171 = sbr.rel (%p168) target = $region12
    $region11: #{generator_forward.13} parent=5 // pred_region
      %s172 = ssub.s32 %s12, 1
      // Predicated region
      $region13: #{generator_forward.13} parent=11 // pred_check
        %p173 = pneg %p59
      $region14: #{generator_forward.13} parent=11 // pred_check_branch
        %175 = sbr.rel (%p173) target = $region16
      $region15: #{generator_forward.13} parent=11 // pred_region
        _
      $region16: #{generator_forward.13} parent=11 // pred_fallthru
        _
      // Predicated region
      $region17: #{generator_forward.13} parent=11 // pred_check
        %p176 = pneg %p80
      $region18: #{generator_forward.13} parent=11 // pred_check_branch
        %178 = sbr.rel (%p176) target = $region20
      $region19: #{generator_forward.13} parent=11 // pred_region
        _
      $region20: #{generator_forward.13} parent=11 // pred_fallthru
        _
    $region12: #{generator_forward.13} parent=5 // pred_fallthru
      _
    %p179 = scmp.lt.s32.totalorder %s12, 2
    // Predicated region
    $region21: #{generator_forward.13} parent=5 // pred_check
      %p180 = pneg %p179
    $region22: #{generator_forward.13} parent=5 // pred_check_branch
      %182 = sbr.rel (%p180) target = $region24
    $region23: #{generator_forward.13} parent=5 // pred_region
      // Predicated region
      $region25: #{generator_forward.13} parent=23 // pred_check
        %p183 = pneg %p32
      $region26: #{generator_forward.13} parent=23 // pred_check_branch
        %185 = sbr.rel (%p183) target = $region28
      $region27: #{generator_forward.13} parent=23 // pred_region
        %p186 = scmp.lt.s32.totalorder %s12, 1
        %s187 = scalar_select %p186, %s12, 1
        %s188 = smul.addr %s187, 6
        %s189 = smul.addr %s188, 4
        %s190 = scalar_lea.vmem %s0, %s189
      $region28: #{generator_forward.13} parent=23 // pred_fallthru
        _
    $region24: #{generator_forward.13} parent=5 // pred_fallthru
      _
    %p191 = scmp.le.s32.totalorder 1, %s12
    %p192 = scmp.lt.s32.totalorder %s12, 3
    %p193 = pnand %p191, %p192
    %p194 = pneg %p193
    // Predicated region
    $region29: #{generator_forward.13} parent=5 // pred_check
      _
    $region30: #{generator_forward.13} parent=5 // pred_check_branch
      %196 = sbr.rel (%p193) target = $region32
    $region31: #{generator_forward.13} parent=5 // pred_region
      %s197 = ssub.s32 %s12, 1
      %p198 = scmp.lt.s32.totalorder %s17, 1
      %s199 = scalar_select %p198, %s17, 1
      %s200 = smul.addr %s199, 6
      %s201 = smul.addr %s200, 4
      %s202 = scalar_lea.vmem %s0, %s201
      %p203 = pneg %p38
      %p204 = pneg %p35
      %p205 = pneg %p59
      %p206 = pneg %p56
      %p207 = pneg %p80
      %p208 = pneg %p77
      %p209 = pneg %p106
      %p210 = pneg %p103
      %p211 = scmp.lt.s32.totalorder %s17, 1
      %s212 = scalar_select %p211, %s17, 1
      %s213 = smul.addr %s212, 4
      %s214 = smul.addr %s213, 2
      %s215 = scalar_lea.vmem %s3, %s214
      %p216 = pneg %p132
      %p217 = pneg %p129
      %p218 = scmp.lt.s32.totalorder %s17, 1
      %s219 = scalar_select %p218, %s17, 1
      %s220 = scalar_lea.vmem %s4, %s219
      %p221 = pneg %p158
      %p222 = pneg %p155
      %p223 = scmp.lt.s32.totalorder %s17, 1
      %s224 = scalar_select %p223, %s17, 1
      %s225 = scalar_lea.vmem %s5, %s224
      %p226 = scmp.lt.s32.totalorder %s17, 1
      %s227 = scalar_select %p226, %s17, 1
      %s228 = smul.addr %s227, 6
      %s229 = smul.addr %s228, 4
      %s230 = scalar_lea.vmem %s0, %s229
      %p231 = scmp.lt.s32.totalorder %s17, 1
      %s232 = scalar_select %p231, %s17, 1
      %s233 = smul.addr %s232, 4
      %s234 = smul.addr %s233, 2
      %s235 = scalar_lea.vmem %s3, %s234
      %p236 = scmp.lt.s32.totalorder %s17, 1
      %s237 = scalar_select %p236, %s17, 1
      %s238 = scalar_lea.vmem %s4, %s237
      %p239 = scmp.lt.s32.totalorder %s17, 1
      %s240 = scalar_select %p239, %s17, 1
      %s241 = scalar_lea.vmem %s5, %s240
      %v243 = vld [vmem:[%s2] sm:$0x1]
      %v244 = vld [vmem:[%s230] sm:$0x3]
      %v245 = vld [vmem:[%s230 + $0x4] sm:$0x3]
      %v246 = vld [vmem:[%s230 + $0x8] sm:$0x3]
      %v247 = vld [vmem:[%s230 + $0xc] sm:$0x3]
      %v248 = vld [vmem:[%s1] sm:$0xf]
      %v249 = vld [vmem:[%s1 + $0x4] sm:$0xf]
      %v250 = vld [vmem:[%s230] sm:$0x7]
      %v251 = vld [vmem:[%s230 + $0x4] sm:$0x7]
      %v252 = vld [vmem:[%s230 + $0x8] sm:$0x7]
      %v253 = vld [vmem:[%s230 + $0xc] sm:$0x7]
      %v259 = vunpack.c.l.s4 1983009808
      %v260 = vunpack.c.0.s8 %v259
      %v261 = vlaneseq
      %v262 = vshrl.u32 %v261, 7
      %v263 = vsub.s32 %v260, %v262
      %v264 = vrot.slane %v250, %v263
      %v265 = vcombine.high %v264, %v264
      %v267 = vunpack.c.l.s4 1983009808
      %v268 = vunpack.c.0.s8 %v267
      %v269 = vlaneseq
      %v270 = vshrl.u32 %v269, 7
      %v271 = vsub.s32 %v268, %v270
      %v272 = vrot.slane %v251, %v271
      %v273 = vcombine.high %v272, %v272
      %v275 = vunpack.c.l.s4 1983009808
      %v276 = vunpack.c.0.s8 %v275
      %v277 = vlaneseq
      %v278 = vshrl.u32 %v277, 7
      %v279 = vsub.s32 %v276, %v278
      %v280 = vrot.slane %v252, %v279
      %v281 = vcombine.high %v280, %v280
      %v283 = vunpack.c.l.s4 1983009808
      %v284 = vunpack.c.0.s8 %v283
      %v285 = vlaneseq
      %v286 = vshrl.u32 %v285, 7
      %v287 = vsub.s32 %v284, %v286
      %v288 = vrot.slane %v253, %v287
      %v289 = vcombine.high %v288, %v288
      %vm290 = vsmask.f32 1280
      %vm291 = vsmask.f32 3336
      %vm292 = vmor %vm290, %vm291
      %vm293 = vsmask.f32 5392
      %vm294 = vmor %vm292, %vm293
      %vm295 = vsmask.f32 7448
      %vm296 = vmor %vm294, %vm295
      %v298 = vshrl.u32 %v264, 16
      %v300 = vrot.slane %v298, 6
      %v301 = vshll.u32 %v264, 16
      %v303 = vrot.slane %v301, 7
      %v304 = vor.u32 %v300, %v303
      %v305 = vrot.slane %v304, 2
      %v307 = vshll.u32 %v265, 16
      %v309 = vrot.slane %v307, 7
      %v310 = vsel %vm296, %v305, %v309
      %v312 = vshrl.u32 %v272, 16
      %v314 = vrot.slane %v312, 6
      %v315 = vshll.u32 %v272, 16
      %v317 = vrot.slane %v315, 7
      %v318 = vor.u32 %v314, %v317
      %v319 = vrot.slane %v318, 2
      %v321 = vshll.u32 %v273, 16
      %v323 = vrot.slane %v321, 7
      %v324 = vsel %vm296, %v319, %v323
      %v326 = vshrl.u32 %v280, 16
      %v328 = vrot.slane %v326, 6
      %v329 = vshll.u32 %v280, 16
      %v331 = vrot.slane %v329, 7
      %v332 = vor.u32 %v328, %v331
      %v333 = vrot.slane %v332, 2
      %v335 = vshll.u32 %v281, 16
      %v337 = vrot.slane %v335, 7
      %v338 = vsel %vm296, %v333, %v337
      %v340 = vshrl.u32 %v288, 16
      %v342 = vrot.slane %v340, 6
      %v343 = vshll.u32 %v288, 16
      %v345 = vrot.slane %v343, 7
      %v346 = vor.u32 %v342, %v345
      %v347 = vrot.slane %v346, 2
      %v349 = vshll.u32 %v289, 16
      %v351 = vrot.slane %v349, 7
      %v352 = vsel %vm296, %v347, %v351
      %s353 = scalar_lea.vmem %s1, 8
      %v354 = vld [vmem:[%s353] sm:$0xf]
      %v355 = vld [vmem:[%s353 + $0x4] sm:$0xf]
      %v356 = vcombine.low %v310, %v324
      %v357 = vcombine.low %v338, %v352
      %v359 = vunpack.c.l.s4 1983009808
      %v360 = vunpack.c.0.s8 %v359
      %v361 = vlaneseq
      %v362 = vshrl.u32 %v361, 7
      %v363 = vsub.s32 %v360, %v362
      %v364 = vrot.slane %v356, %v363
      %v366 = vunpack.c.l.s4 1983009808
      %v367 = vunpack.c.0.s8 %v366
      %v368 = vlaneseq
      %v369 = vshrl.u32 %v368, 7
      %v370 = vsub.s32 %v367, %v369
      %v371 = vrot.slane %v357, %v370
      %v372 = vcombine.low %v364, %v371
      %v375 = vunpack.c.l.b16 %v354
      %v376 = vunpack.c.l.b16 %v355
      %v377 = vpack.c.b16 %v376, %v375
      %vm379 = vcmask 130048
      %v381 = vsel %vm379, %v372, 0
      %383 = vmatprep.subr.bf16.mxu0 0
      %384 = vmatpush1.bf16.msra.mxu0 0
      %385 = vmatprep.subr.bf16.mxu0 0
      %386 = vmatpush1.bf16.msra.mxu0 0
      %387 = vmatprep.subr.bf16.mxu0 0
      %388 = vmatpush1.bf16.msra.mxu0 0
      %389 = vmatprep.subr.bf16.mxu0 0
      %390 = vmatpush1.bf16.msra.mxu0 0
      %391 = vmatprep.subr.bf16.mxu0 0
      %392 = vmatpush1.bf16.msra.mxu0 0
      %393 = vmatprep.subr.bf16.mxu0 0
      %394 = vmatpush1.bf16.msra.mxu0 0
      %395 = vmatprep.subr.bf16.mxu0 0
      %396 = vmatpush1.bf16.msra.mxu0 0
      %397 = vmatprep.subr.bf16.mxu0 0
      %398 = vmatpush1.bf16.msra.mxu0 %v377
      %399 = vmatprep.subr.bf16.mxu0 0
      %400 = vmatpush2.bf16.msra.mxu0 0
      %401 = vmatprep.subr.bf16.mxu0 0
      %402 = vmatpush2.bf16.msra.mxu0 0
      %403 = vmatprep.subr.bf16.mxu0 0
      %404 = vmatpush2.bf16.msra.mxu0 0
      %405 = vmatprep.subr.bf16.mxu0 0
      %406 = vmatpush2.bf16.msra.mxu0 0
      %407 = vmatprep.subr.bf16.mxu0 0
      %408 = vmatpush2.bf16.msra.mxu0 0
      %409 = vmatprep.subr.bf16.mxu0 0
      %410 = vmatpush2.bf16.msra.mxu0 0
      %411 = vmatprep.subr.bf16.mxu0 0
      %412 = vmatpush2.bf16.msra.mxu0 0
      %413 = vmatprep.subr.bf16.mxu0 0
      %414 = vmatpush2.bf16.msra.mxu0 0
      %415 = vmatprep.mubr.bf16.mxu0 0
      %416 = vmatmul.mubr.bf16.gmra.mxu0 %v381
      %v417 = vpop.f32.mrf.mxu0
      %v418 = vadd.f32 0.0, %v417
      %v419 = vpop.f32.mrf.mxu0
      %v420 = vpop.f32.mrf.mxu0
      %v421 = vadd.f32 0.0, %v420
      %v422 = vpop.f32.mrf.mxu0
      %423 = vdwg.mxu0
      %v428 = vcombine.low %v244, %v245
      %v429 = vcombine.low %v246, %v247
      %v431 = vunpack.c.l.s4 1983009808
      %v432 = vunpack.c.0.s8 %v431
      %v433 = vlaneseq
      %v434 = vshrl.u32 %v433, 7
      %v435 = vsub.s32 %v432, %v434
      %v436 = vrot.slane %v428, %v435
      %v438 = vunpack.c.l.s4 1983009808
      %v439 = vunpack.c.0.s8 %v438
      %v440 = vlaneseq
      %v441 = vshrl.u32 %v440, 7
      %v442 = vsub.s32 %v439, %v441
      %v443 = vrot.slane %v429, %v442
      %v444 = vcombine.low %v436, %v443
      %v447 = vunpack.c.l.b16 %v248
      %v448 = vunpack.c.l.b16 %v249
      %v449 = vpack.c.b16 %v448, %v447
      %v452 = vsel %vm379, %v444, 0
      %454 = vmatprep.subr.bf16.mxu0 0
      %455 = vmatpush1.bf16.msra.mxu0 0
      %456 = vmatprep.subr.bf16.mxu0 0
      %457 = vmatpush1.bf16.msra.mxu0 0
      %458 = vmatprep.subr.bf16.mxu0 0
      %459 = vmatpush1.bf16.msra.mxu0 0
      %460 = vmatprep.subr.bf16.mxu0 0
      %461 = vmatpush1.bf16.msra.mxu0 0
      %462 = vmatprep.subr.bf16.mxu0 0
      %463 = vmatpush1.bf16.msra.mxu0 0
      %464 = vmatprep.subr.bf16.mxu0 0
      %465 = vmatpush1.bf16.msra.mxu0 0
      %466 = vmatprep.subr.bf16.mxu0 0
      %467 = vmatpush1.bf16.msra.mxu0 0
      %468 = vmatprep.subr.bf16.mxu0 0
      %469 = vmatpush1.bf16.msra.mxu0 %v449
      %470 = vmatprep.subr.bf16.mxu0 0
      %471 = vmatpush2.bf16.msra.mxu0 0
      %472 = vmatprep.subr.bf16.mxu0 0
      %473 = vmatpush2.bf16.msra.mxu0 0
      %474 = vmatprep.subr.bf16.mxu0 0
      %475 = vmatpush2.bf16.msra.mxu0 0
      %476 = vmatprep.subr.bf16.mxu0 0
      %477 = vmatpush2.bf16.msra.mxu0 0
      %478 = vmatprep.subr.bf16.mxu0 0
      %479 = vmatpush2.bf16.msra.mxu0 0
      %480 = vmatprep.subr.bf16.mxu0 0
      %481 = vmatpush2.bf16.msra.mxu0 0
      %482 = vmatprep.subr.bf16.mxu0 0
      %483 = vmatpush2.bf16.msra.mxu0 0
      %484 = vmatprep.subr.bf16.mxu0 0
      %485 = vmatpush2.bf16.msra.mxu0 0
      %486 = vmatprep.mubr.bf16.mxu0 0
      %487 = vmatmul.mubr.bf16.gmra.mxu0 %v452
      %v488 = vpop.f32.mrf.mxu0
      %v489 = vadd.f32 %v418, %v488
      %v490 = vpop.f32.mrf.mxu0
      %v491 = vpop.f32.mrf.mxu0
      %v492 = vadd.f32 %v421, %v491
      %v493 = vpop.f32.mrf.mxu0
      %494 = vdwg.mxu0
      %s495 = scalar_lea.vmem %s230, 4
      %v496 = vld [vmem:[%s495] sm:$0x3]
      %v497 = vld [vmem:[%s495 + $0x4] sm:$0x3]
      %v498 = vld [vmem:[%s495 + $0x8] sm:$0x3]
      %v499 = vld [vmem:[%s495 + $0xc] sm:$0x3]
      %s500 = scalar_lea.vmem %s1, 16
      %v501 = vld [vmem:[%s500] sm:$0xf]
      %v502 = vld [vmem:[%s500 + $0x4] sm:$0xf]
      %v507 = vcombine.low %v496, %v497
      %v508 = vcombine.low %v498, %v499
      %v510 = vunpack.c.l.s4 1983009808
      %v511 = vunpack.c.0.s8 %v510
      %v512 = vlaneseq
      %v513 = vshrl.u32 %v512, 7
      %v514 = vsub.s32 %v511, %v513
      %v515 = vrot.slane %v507, %v514
      %v517 = vunpack.c.l.s4 1983009808
      %v518 = vunpack.c.0.s8 %v517
      %v519 = vlaneseq
      %v520 = vshrl.u32 %v519, 7
      %v521 = vsub.s32 %v518, %v520
      %v522 = vrot.slane %v508, %v521
      %v523 = vcombine.low %v515, %v522
      %v526 = vunpack.c.l.b16 %v501
      %v527 = vunpack.c.l.b16 %v502
      %v528 = vpack.c.b16 %v527, %v526
      %v531 = vsel %vm379, %v523, 0
      %533 = vmatprep.subr.bf16.mxu0 0
      %534 = vmatpush1.bf16.msra.mxu0 0
      %535 = vmatprep.subr.bf16.mxu0 0
      %536 = vmatpush1.bf16.msra.mxu0 0
      %537 = vmatprep.subr.bf16.mxu0 0
      %538 = vmatpush1.bf16.msra.mxu0 0
      %539 = vmatprep.subr.bf16.mxu0 0
      %540 = vmatpush1.bf16.msra.mxu0 0
      %541 = vmatprep.subr.bf16.mxu0 0
      %542 = vmatpush1.bf16.msra.mxu0 0
      %543 = vmatprep.subr.bf16.mxu0 0
      %544 = vmatpush1.bf16.msra.mxu0 0
      %545 = vmatprep.subr.bf16.mxu0 0
      %546 = vmatpush1.bf16.msra.mxu0 0
      %547 = vmatprep.subr.bf16.mxu0 0
      %548 = vmatpush1.bf16.msra.mxu0 %v528
      %549 = vmatprep.subr.bf16.mxu0 0
      %550 = vmatpush2.bf16.msra.mxu0 0
      %551 = vmatprep.subr.bf16.mxu0 0
      %552 = vmatpush2.bf16.msra.mxu0 0
      %553 = vmatprep.subr.bf16.mxu0 0
      %554 = vmatpush2.bf16.msra.mxu0 0
      %555 = vmatprep.subr.bf16.mxu0 0
      %556 = vmatpush2.bf16.msra.mxu0 0
      %557 = vmatprep.subr.bf16.mxu0 0
      %558 = vmatpush2.bf16.msra.mxu0 0
      %559 = vmatprep.subr.bf16.mxu0 0
      %560 = vmatpush2.bf16.msra.mxu0 0
      %561 = vmatprep.subr.bf16.mxu0 0
      %562 = vmatpush2.bf16.msra.mxu0 0
      %563 = vmatprep.subr.bf16.mxu0 0
      %564 = vmatpush2.bf16.msra.mxu0 0
      %565 = vmatprep.mubr.bf16.mxu0 0
      %566 = vmatmul.mubr.bf16.gmra.mxu0 %v531
      %v567 = vpop.f32.mrf.mxu0
      %v568 = vadd.f32 0.0, %v567
      %v569 = vpop.f32.mrf.mxu0
      %v570 = vpop.f32.mrf.mxu0
      %v571 = vadd.f32 0.0, %v570
      %v572 = vpop.f32.mrf.mxu0
      %573 = vdwg.mxu0
      %v574 = vadd.f32 %v489, %v568
      %v575 = vadd.f32 %v492, %v571
      %v576 = vld [vmem:[%s495] sm:$0x7]
      %v577 = vld [vmem:[%s495 + $0x4] sm:$0x7]
      %v578 = vld [vmem:[%s495 + $0x8] sm:$0x7]
      %v579 = vld [vmem:[%s495 + $0xc] sm:$0x7]
      %v585 = vunpack.c.l.s4 1983009808
      %v586 = vunpack.c.0.s8 %v585
      %v587 = vlaneseq
      %v588 = vshrl.u32 %v587, 7
      %v589 = vsub.s32 %v586, %v588
      %v590 = vrot.slane %v576, %v589
      %v591 = vcombine.high %v590, %v590
      %v593 = vunpack.c.l.s4 1983009808
      %v594 = vunpack.c.0.s8 %v593
      %v595 = vlaneseq
      %v596 = vshrl.u32 %v595, 7
      %v597 = vsub.s32 %v594, %v596
      %v598 = vrot.slane %v577, %v597
      %v599 = vcombine.high %v598, %v598
      %v601 = vunpack.c.l.s4 1983009808
      %v602 = vunpack.c.0.s8 %v601
      %v603 = vlaneseq
      %v604 = vshrl.u32 %v603, 7
      %v605 = vsub.s32 %v602, %v604
      %v606 = vrot.slane %v578, %v605
      %v607 = vcombine.high %v606, %v606
      %v609 = vunpack.c.l.s4 1983009808
      %v610 = vunpack.c.0.s8 %v609
      %v611 = vlaneseq
      %v612 = vshrl.u32 %v611, 7
      %v613 = vsub.s32 %v610, %v612
      %v614 = vrot.slane %v579, %v613
      %v615 = vcombine.high %v614, %v614
      %v617 = vshrl.u32 %v590, 16
      %v619 = vrot.slane %v617, 6
      %v620 = vshll.u32 %v590, 16
      %v622 = vrot.slane %v620, 7
      %v623 = vor.u32 %v619, %v622
      %v624 = vrot.slane %v623, 2
      %v626 = vshll.u32 %v591, 16
      %v628 = vrot.slane %v626, 7
      %v629 = vsel %vm296, %v624, %v628
      %v631 = vshrl.u32 %v598, 16
      %v633 = vrot.slane %v631, 6
      %v634 = vshll.u32 %v598, 16
      %v636 = vrot.slane %v634, 7
      %v637 = vor.u32 %v633, %v636
      %v638 = vrot.slane %v637, 2
      %v640 = vshll.u32 %v599, 16
      %v642 = vrot.slane %v640, 7
      %v643 = vsel %vm296, %v638, %v642
      %v645 = vshrl.u32 %v606, 16
      %v647 = vrot.slane %v645, 6
      %v648 = vshll.u32 %v606, 16
      %v650 = vrot.slane %v648, 7
      %v651 = vor.u32 %v647, %v650
      %v652 = vrot.slane %v651, 2
      %v654 = vshll.u32 %v607, 16
      %v656 = vrot.slane %v654, 7
      %v657 = vsel %vm296, %v652, %v656
      %v659 = vshrl.u32 %v614, 16
      %v661 = vrot.slane %v659, 6
      %v662 = vshll.u32 %v614, 16
      %v664 = vrot.slane %v662, 7
      %v665 = vor.u32 %v661, %v664
      %v666 = vrot.slane %v665, 2
      %v668 = vshll.u32 %v615, 16
      %v670 = vrot.slane %v668, 7
      %v671 = vsel %vm296, %v666, %v670
      %s672 = scalar_lea.vmem %s1, 24
      %v673 = vld [vmem:[%s672] sm:$0xf]
      %v674 = vld [vmem:[%s672 + $0x4] sm:$0xf]
      %v675 = vcombine.low %v629, %v643
      %v676 = vcombine.low %v657, %v671
      %v678 = vunpack.c.l.s4 1983009808
      %v679 = vunpack.c.0.s8 %v678
      %v680 = vlaneseq
      %v681 = vshrl.u32 %v680, 7
      %v682 = vsub.s32 %v679, %v681
      %v683 = vrot.slane %v675, %v682
      %v685 = vunpack.c.l.s4 1983009808
      %v686 = vunpack.c.0.s8 %v685
      %v687 = vlaneseq
      %v688 = vshrl.u32 %v687, 7
      %v689 = vsub.s32 %v686, %v688
      %v690 = vrot.slane %v676, %v689
      %v691 = vcombine.low %v683, %v690
      %v694 = vunpack.c.l.b16 %v673
      %v695 = vunpack.c.l.b16 %v674
      %v696 = vpack.c.b16 %v695, %v694
      %v699 = vsel %vm379, %v691, 0
      %701 = vmatprep.subr.bf16.mxu0 0
      %702 = vmatpush1.bf16.msra.mxu0 0
      %703 = vmatprep.subr.bf16.mxu0 0
      %704 = vmatpush1.bf16.msra.mxu0 0
      %705 = vmatprep.subr.bf16.mxu0 0
      %706 = vmatpush1.bf16.msra.mxu0 0
      %707 = vmatprep.subr.bf16.mxu0 0
      %708 = vmatpush1.bf16.msra.mxu0 0
      %709 = vmatprep.subr.bf16.mxu0 0
      %710 = vmatpush1.bf16.msra.mxu0 0
      %711 = vmatprep.subr.bf16.mxu0 0
      %712 = vmatpush1.bf16.msra.mxu0 0
      %713 = vmatprep.subr.bf16.mxu0 0
      %714 = vmatpush1.bf16.msra.mxu0 0
      %715 = vmatprep.subr.bf16.mxu0 0
      %716 = vmatpush1.bf16.msra.mxu0 %v696
      %717 = vmatprep.subr.bf16.mxu0 0
      %718 = vmatpush2.bf16.msra.mxu0 0
      %719 = vmatprep.subr.bf16.mxu0 0
      %720 = vmatpush2.bf16.msra.mxu0 0
      %721 = vmatprep.subr.bf16.mxu0 0
      %722 = vmatpush2.bf16.msra.mxu0 0
      %723 = vmatprep.subr.bf16.mxu0 0
      %724 = vmatpush2.bf16.msra.mxu0 0
      %725 = vmatprep.subr.bf16.mxu0 0
      %726 = vmatpush2.bf16.msra.mxu0 0
      %727 = vmatprep.subr.bf16.mxu0 0
      %728 = vmatpush2.bf16.msra.mxu0 0
      %729 = vmatprep.subr.bf16.mxu0 0
      %730 = vmatpush2.bf16.msra.mxu0 0
      %731 = vmatprep.subr.bf16.mxu0 0
      %732 = vmatpush2.bf16.msra.mxu0 0
      %733 = vmatprep.mubr.bf16.mxu0 0
      %734 = vmatmul.mubr.bf16.gmra.mxu0 %v699
      %v735 = vpop.f32.mrf.mxu0
      %v736 = vadd.f32 0.0, %v735
      %v737 = vpop.f32.mrf.mxu0
      %v738 = vpop.f32.mrf.mxu0
      %v739 = vadd.f32 0.0, %v738
      %v740 = vpop.f32.mrf.mxu0
      %741 = vdwg.mxu0
      %v742 = vadd.f32 %v574, %v736
      %v743 = vadd.f32 %v575, %v739
      %v745 = vlaneseq
      %v746 = vshrl.u32 %v745, 7
      %v747 = vsub.s32 0, %v746
      %v748 = vrot.slane %v243, %v747
      %v750 = vadd.f32 %v742, %v748
      %v751 = vadd.f32 %v743, %v748
      %vm752 = vcmask 64512
      %v753 = vsel %vm752, %v750, 0.0
      %v754 = vsel %vm752, %v751, 0.0
      %v755 = vadd.f32 %v753, %v754
      %v756 = vrot.slane %v755, 4
      %v757 = vadd.f32 %v755, %v756
      %v758 = vrot.slane %v757, 2
      %v759 = vadd.f32 %v757, %v758
      %v760 = vrot.slane %v759, 1
      %v761 = vadd.f32 %v759, %v760
      %v762 = vmul.f32 %v750, %v750
      %v763 = vmul.f32 %v751, %v751
      %v764 = vsel %vm752, %v762, 0.0
      %v765 = vsel %vm752, %v763, 0.0
      %v766 = vadd.f32 %v764, %v765
      %v767 = vrot.slane %v766, 4
      %v768 = vadd.f32 %v766, %v767
      %v769 = vrot.slane %v768, 2
      %v770 = vadd.f32 %v768, %v769
      %v771 = vrot.slane %v770, 1
      %v772 = vadd.f32 %v770, %v771
      %s773 = scalar_lea.vmem %s1, 32
      %v774 = vld [vmem:[%s773] sm:$0xf]
      %v775 = vld [vmem:[%s773 + $0x4] sm:$0xf]
      %v776 = vld [vmem:[%s230] sm:$0x6]
      %v777 = vld [vmem:[%s230 + $0x4] sm:$0x6]
      %v778 = vld [vmem:[%s230 + $0x8] sm:$0x6]
      %v779 = vld [vmem:[%s230 + $0xc] sm:$0x6]
      %v785 = vunpack.c.l.s4 1983009808
      %v786 = vunpack.c.0.s8 %v785
      %v787 = vlaneseq
      %v788 = vshrl.u32 %v787, 7
      %v789 = vsub.s32 %v786, %v788
      %v790 = vrot.slane %v776, %v789
      %v791 = vcombine.high %v790, %v790
      %v793 = vunpack.c.l.s4 1983009808
      %v794 = vunpack.c.0.s8 %v793
      %v795 = vlaneseq
      %v796 = vshrl.u32 %v795, 7
      %v797 = vsub.s32 %v794, %v796
      %v798 = vrot.slane %v777, %v797
      %v799 = vcombine.high %v798, %v798
      %v801 = vunpack.c.l.s4 1983009808
      %v802 = vunpack.c.0.s8 %v801
      %v803 = vlaneseq
      %v804 = vshrl.u32 %v803, 7
      %v805 = vsub.s32 %v802, %v804
      %v806 = vrot.slane %v778, %v805
      %v807 = vcombine.high %v806, %v806
      %v809 = vunpack.c.l.s4 1983009808
      %v810 = vunpack.c.0.s8 %v809
      %v811 = vlaneseq
      %v812 = vshrl.u32 %v811, 7
      %v813 = vsub.s32 %v810, %v812
      %v814 = vrot.slane %v779, %v813
      %v815 = vcombine.high %v814, %v814
      %vm816 = vcmask 1040384
      %vm817 = vcmask 1042434
      %vm818 = vmor %vm816, %vm817
      %vm819 = vcmask 1044484
      %vm820 = vmor %vm818, %vm819
      %vm821 = vcmask 1046534
      %vm822 = vmor %vm820, %vm821
      %v823 = vrot.slane %v790, 7
      %v824 = vrot.slane %v823, 2
      %v825 = vrot.slane %v791, 7
      %v826 = vsel %vm822, %v824, %v825
      %v827 = vrot.slane %v798, 7
      %v828 = vrot.slane %v827, 2
      %v829 = vrot.slane %v799, 7
      %v830 = vsel %vm822, %v828, %v829
      %v831 = vrot.slane %v806, 7
      %v832 = vrot.slane %v831, 2
      %v833 = vrot.slane %v807, 7
      %v834 = vsel %vm822, %v832, %v833
      %v835 = vrot.slane %v814, 7
      %v836 = vrot.slane %v835, 2
      %v837 = vrot.slane %v815, 7
      %v838 = vsel %vm822, %v836, %v837
      %s839 = scalar_lea.vmem %s1, 40
      %v840 = vld [vmem:[%s839] sm:$0xf]
      %v841 = vld [vmem:[%s839 + $0x4] sm:$0xf]
      %v842 = vcombine.low %v826, %v830
      %v843 = vcombine.low %v834, %v838
      %v845 = vunpack.c.l.s4 1983009808
      %v846 = vunpack.c.0.s8 %v845
      %v847 = vlaneseq
      %v848 = vshrl.u32 %v847, 7
      %v849 = vsub.s32 %v846, %v848
      %v850 = vrot.slane %v842, %v849
      %v852 = vunpack.c.l.s4 1983009808
      %v853 = vunpack.c.0.s8 %v852
      %v854 = vlaneseq
      %v855 = vshrl.u32 %v854, 7
      %v856 = vsub.s32 %v853, %v855
      %v857 = vrot.slane %v843, %v856
      %v858 = vcombine.low %v850, %v857
      %v861 = vunpack.c.l.b16 %v840
      %v862 = vunpack.c.l.b16 %v841
      %v863 = vpack.c.b16 %v862, %v861
      %v866 = vsel %vm379, %v858, 0
      %868 = vmatprep.subr.bf16.mxu0 0
      %869 = vmatpush1.bf16.msra.mxu0 0
      %870 = vmatprep.subr.bf16.mxu0 0
      %871 = vmatpush1.bf16.msra.mxu0 0
      %872 = vmatprep.subr.bf16.mxu0 0
      %873 = vmatpush1.bf16.msra.mxu0 0
      %874 = vmatprep.subr.bf16.mxu0 0
      %875 = vmatpush1.bf16.msra.mxu0 0
      %876 = vmatprep.subr.bf16.mxu0 0
      %877 = vmatpush1.bf16.msra.mxu0 0
      %878 = vmatprep.subr.bf16.mxu0 0
      %879 = vmatpush1.bf16.msra.mxu0 0
      %880 = vmatprep.subr.bf16.mxu0 0
      %881 = vmatpush1.bf16.msra.mxu0 0
      %882 = vmatprep.subr.bf16.mxu0 0
      %883 = vmatpush1.bf16.msra.mxu0 %v863
      %884 = vmatprep.subr.bf16.mxu0 0
      %885 = vmatpush2.bf16.msra.mxu0 0
      %886 = vmatprep.subr.bf16.mxu0 0
      %887 = vmatpush2.bf16.msra.mxu0 0
      %888 = vmatprep.subr.bf16.mxu0 0
      %889 = vmatpush2.bf16.msra.mxu0 0
      %890 = vmatprep.subr.bf16.mxu0 0
      %891 = vmatpush2.bf16.msra.mxu0 0
      %892 = vmatprep.subr.bf16.mxu0 0
      %893 = vmatpush2.bf16.msra.mxu0 0
      %894 = vmatprep.subr.bf16.mxu0 0
      %895 = vmatpush2.bf16.msra.mxu0 0
      %896 = vmatprep.subr.bf16.mxu0 0
      %897 = vmatpush2.bf16.msra.mxu0 0
      %898 = vmatprep.subr.bf16.mxu0 0
      %899 = vmatpush2.bf16.msra.mxu0 0
      %900 = vmatprep.mubr.bf16.mxu0 0
      %901 = vmatmul.mubr.bf16.gmra.mxu0 %v866
      %v902 = vpop.f32.mrf.mxu0
      %v903 = vadd.f32 0.0, %v902
      %v904 = vpop.f32.mrf.mxu0
      %v905 = vpop.f32.mrf.mxu0
      %v906 = vadd.f32 0.0, %v905
      %v907 = vpop.f32.mrf.mxu0
      %908 = vdwg.mxu0
      %v911 = vunpack.c.l.b16 %v774
      %v912 = vunpack.c.l.b16 %v775
      %v913 = vpack.c.b16 %v912, %v911
      %915 = vmatprep.subr.bf16.mxu0 0
      %916 = vmatpush1.bf16.msra.mxu0 0
      %917 = vmatprep.subr.bf16.mxu0 0
      %918 = vmatpush1.bf16.msra.mxu0 0
      %919 = vmatprep.subr.bf16.mxu0 0
      %920 = vmatpush1.bf16.msra.mxu0 0
      %921 = vmatprep.subr.bf16.mxu0 0
      %922 = vmatpush1.bf16.msra.mxu0 0
      %923 = vmatprep.subr.bf16.mxu0 0
      %924 = vmatpush1.bf16.msra.mxu0 0
      %925 = vmatprep.subr.bf16.mxu0 0
      %926 = vmatpush1.bf16.msra.mxu0 0
      %927 = vmatprep.subr.bf16.mxu0 0
      %928 = vmatpush1.bf16.msra.mxu0 0
      %929 = vmatprep.subr.bf16.mxu0 0
      %930 = vmatpush1.bf16.msra.mxu0 %v913
      %931 = vmatprep.subr.bf16.mxu0 0
      %932 = vmatpush2.bf16.msra.mxu0 0
      %933 = vmatprep.subr.bf16.mxu0 0
      %934 = vmatpush2.bf16.msra.mxu0 0
      %935 = vmatprep.subr.bf16.mxu0 0
      %936 = vmatpush2.bf16.msra.mxu0 0
      %937 = vmatprep.subr.bf16.mxu0 0
      %938 = vmatpush2.bf16.msra.mxu0 0
      %939 = vmatprep.subr.bf16.mxu0 0
      %940 = vmatpush2.bf16.msra.mxu0 0
      %941 = vmatprep.subr.bf16.mxu0 0
      %942 = vmatpush2.bf16.msra.mxu0 0
      %943 = vmatprep.subr.bf16.mxu0 0
      %944 = vmatpush2.bf16.msra.mxu0 0
      %945 = vmatprep.subr.bf16.mxu0 0
      %946 = vmatpush2.bf16.msra.mxu0 0
      %947 = vmatprep.mubr.bf16.mxu0 0
      %948 = vmatmul.mubr.bf16.gmra.mxu0 %v381
      %v949 = vpop.f32.mrf.mxu0
      %v950 = vadd.f32 %v903, %v949
      %v951 = vpop.f32.mrf.mxu0
      %v952 = vpop.f32.mrf.mxu0
      %v953 = vadd.f32 %v906, %v952
      %v954 = vpop.f32.mrf.mxu0
      %955 = vdwg.mxu0
      %s956 = scalar_lea.vmem %s1, 48
      %v957 = vld [vmem:[%s956] sm:$0xf]
      %v958 = vld [vmem:[%s956 + $0x4] sm:$0xf]
      %v961 = vunpack.c.l.b16 %v957
      %v962 = vunpack.c.l.b16 %v958
      %v963 = vpack.c.b16 %v962, %v961
      %965 = vmatprep.subr.bf16.mxu0 0
      %966 = vmatpush1.bf16.msra.mxu0 0
      %967 = vmatprep.subr.bf16.mxu0 0
      %968 = vmatpush1.bf16.msra.mxu0 0
      %969 = vmatprep.subr.bf16.mxu0 0
      %970 = vmatpush1.bf16.msra.mxu0 0
      %971 = vmatprep.subr.bf16.mxu0 0
      %972 = vmatpush1.bf16.msra.mxu0 0
      %973 = vmatprep.subr.bf16.mxu0 0
      %974 = vmatpush1.bf16.msra.mxu0 0
      %975 = vmatprep.subr.bf16.mxu0 0
      %976 = vmatpush1.bf16.msra.mxu0 0
      %977 = vmatprep.subr.bf16.mxu0 0
      %978 = vmatpush1.bf16.msra.mxu0 0
      %979 = vmatprep.subr.bf16.mxu0 0
      %980 = vmatpush1.bf16.msra.mxu0 %v963
      %981 = vmatprep.subr.bf16.mxu0 0
      %982 = vmatpush2.bf16.msra.mxu0 0
      %983 = vmatprep.subr.bf16.mxu0 0
      %984 = vmatpush2.bf16.msra.mxu0 0
      %985 = vmatprep.subr.bf16.mxu0 0
      %986 = vmatpush2.bf16.msra.mxu0 0
      %987 = vmatprep.subr.bf16.mxu0 0
      %988 = vmatpush2.bf16.msra.mxu0 0
      %989 = vmatprep.subr.bf16.mxu0 0
      %990 = vmatpush2.bf16.msra.mxu0 0
      %991 = vmatprep.subr.bf16.mxu0 0
      %992 = vmatpush2.bf16.msra.mxu0 0
      %993 = vmatprep.subr.bf16.mxu0 0
      %994 = vmatpush2.bf16.msra.mxu0 0
      %995 = vmatprep.subr.bf16.mxu0 0
      %996 = vmatpush2.bf16.msra.mxu0 0
      %997 = vmatprep.mubr.bf16.mxu0 0
      %998 = vmatmul.mubr.bf16.gmra.mxu0 %v699
      %v999 = vpop.f32.mrf.mxu0
      %v1000 = vadd.f32 0.0, %v999
      %v1001 = vpop.f32.mrf.mxu0
      %v1002 = vpop.f32.mrf.mxu0
      %v1003 = vadd.f32 0.0, %v1002
      %v1004 = vpop.f32.mrf.mxu0
      %1005 = vdwg.mxu0
      %v1006 = vadd.f32 %v950, %v1000
      %v1007 = vadd.f32 %v953, %v1003
      %v1008 = vld [vmem:[%s495] sm:$0x6]
      %v1009 = vld [vmem:[%s495 + $0x4] sm:$0x6]
      %v1010 = vld [vmem:[%s495 + $0x8] sm:$0x6]
      %v1011 = vld [vmem:[%s495 + $0xc] sm:$0x6]
      %v1017 = vunpack.c.l.s4 1983009808
      %v1018 = vunpack.c.0.s8 %v1017
      %v1019 = vlaneseq
      %v1020 = vshrl.u32 %v1019, 7
      %v1021 = vsub.s32 %v1018, %v1020
      %v1022 = vrot.slane %v1008, %v1021
      %v1023 = vcombine.high %v1022, %v1022
      %v1025 = vunpack.c.l.s4 1983009808
      %v1026 = vunpack.c.0.s8 %v1025
      %v1027 = vlaneseq
      %v1028 = vshrl.u32 %v1027, 7
      %v1029 = vsub.s32 %v1026, %v1028
      %v1030 = vrot.slane %v1009, %v1029
      %v1031 = vcombine.high %v1030, %v1030
      %v1033 = vunpack.c.l.s4 1983009808
      %v1034 = vunpack.c.0.s8 %v1033
      %v1035 = vlaneseq
      %v1036 = vshrl.u32 %v1035, 7
      %v1037 = vsub.s32 %v1034, %v1036
      %v1038 = vrot.slane %v1010, %v1037
      %v1039 = vcombine.high %v1038, %v1038
      %v1041 = vunpack.c.l.s4 1983009808
      %v1042 = vunpack.c.0.s8 %v1041
      %v1043 = vlaneseq
      %v1044 = vshrl.u32 %v1043, 7
      %v1045 = vsub.s32 %v1042, %v1044
      %v1046 = vrot.slane %v1011, %v1045
      %v1047 = vcombine.high %v1046, %v1046
      %v1048 = vrot.slane %v1022, 7
      %v1049 = vrot.slane %v1048, 2
      %v1050 = vrot.slane %v1023, 7
      %v1051 = vsel %vm822, %v1049, %v1050
      %v1052 = vrot.slane %v1030, 7
      %v1053 = vrot.slane %v1052, 2
      %v1054 = vrot.slane %v1031, 7
      %v1055 = vsel %vm822, %v1053, %v1054
      %v1056 = vrot.slane %v1038, 7
      %v1057 = vrot.slane %v1056, 2
      %v1058 = vrot.slane %v1039, 7
      %v1059 = vsel %vm822, %v1057, %v1058
      %v1060 = vrot.slane %v1046, 7
      %v1061 = vrot.slane %v1060, 2
      %v1062 = vrot.slane %v1047, 7
      %v1063 = vsel %vm822, %v1061, %v1062
      %s1064 = scalar_lea.vmem %s1, 56
      %v1065 = vld [vmem:[%s1064] sm:$0xf]
      %v1066 = vld [vmem:[%s1064 + $0x4] sm:$0xf]
      %v1067 = vcombine.low %v1051, %v1055
      %v1068 = vcombine.low %v1059, %v1063
      %v1070 = vunpack.c.l.s4 1983009808
      %v1071 = vunpack.c.0.s8 %v1070
      %v1072 = vlaneseq
      %v1073 = vshrl.u32 %v1072, 7
      %v1074 = vsub.s32 %v1071, %v1073
      %v1075 = vrot.slane %v1067, %v1074
      %v1077 = vunpack.c.l.s4 1983009808
      %v1078 = vunpack.c.0.s8 %v1077
      %v1079 = vlaneseq
      %v1080 = vshrl.u32 %v1079, 7
      %v1081 = vsub.s32 %v1078, %v1080
      %v1082 = vrot.slane %v1068, %v1081
      %v1083 = vcombine.low %v1075, %v1082
      %v1086 = vunpack.c.l.b16 %v1065
      %v1087 = vunpack.c.l.b16 %v1066
      %v1088 = vpack.c.b16 %v1087, %v1086
      %v1091 = vsel %vm379, %v1083, 0
      %1093 = vmatprep.subr.bf16.mxu0 0
      %1094 = vmatpush1.bf16.msra.mxu0 0
      %1095 = vmatprep.subr.bf16.mxu0 0
      %1096 = vmatpush1.bf16.msra.mxu0 0
      %1097 = vmatprep.subr.bf16.mxu0 0
      %1098 = vmatpush1.bf16.msra.mxu0 0
      %1099 = vmatprep.subr.bf16.mxu0 0
      %1100 = vmatpush1.bf16.msra.mxu0 0
      %1101 = vmatprep.subr.bf16.mxu0 0
      %1102 = vmatpush1.bf16.msra.mxu0 0
      %1103 = vmatprep.subr.bf16.mxu0 0
      %1104 = vmatpush1.bf16.msra.mxu0 0
      %1105 = vmatprep.subr.bf16.mxu0 0
      %1106 = vmatpush1.bf16.msra.mxu0 0
      %1107 = vmatprep.subr.bf16.mxu0 0
      %1108 = vmatpush1.bf16.msra.mxu0 %v1088
      %1109 = vmatprep.subr.bf16.mxu0 0
      %1110 = vmatpush2.bf16.msra.mxu0 0
      %1111 = vmatprep.subr.bf16.mxu0 0
      %1112 = vmatpush2.bf16.msra.mxu0 0
      %1113 = vmatprep.subr.bf16.mxu0 0
      %1114 = vmatpush2.bf16.msra.mxu0 0
      %1115 = vmatprep.subr.bf16.mxu0 0
      %1116 = vmatpush2.bf16.msra.mxu0 0
      %1117 = vmatprep.subr.bf16.mxu0 0
      %1118 = vmatpush2.bf16.msra.mxu0 0
      %1119 = vmatprep.subr.bf16.mxu0 0
      %1120 = vmatpush2.bf16.msra.mxu0 0
      %1121 = vmatprep.subr.bf16.mxu0 0
      %1122 = vmatpush2.bf16.msra.mxu0 0
      %1123 = vmatprep.subr.bf16.mxu0 0
      %1124 = vmatpush2.bf16.msra.mxu0 0
      %1125 = vmatprep.mubr.bf16.mxu0 0
      %1126 = vmatmul.mubr.bf16.gmra.mxu0 %v1091
      %v1127 = vpop.f32.mrf.mxu0
      %v1128 = vadd.f32 0.0, %v1127
      %v1129 = vpop.f32.mrf.mxu0
      %v1130 = vpop.f32.mrf.mxu0
      %v1131 = vadd.f32 0.0, %v1130
      %v1132 = vpop.f32.mrf.mxu0
      %1133 = vdwg.mxu0
      %v1134 = vadd.f32 %v1006, %v1128
      %v1135 = vadd.f32 %v1007, %v1131
      %v1136 = vadd.f32 %v1134, %v748
      %v1137 = vadd.f32 %v1135, %v748
      %v1138 = vsel %vm752, %v1136, 0.0
      %v1139 = vsel %vm752, %v1137, 0.0
      %v1140 = vadd.f32 %v1138, %v1139
      %v1141 = vrot.slane %v1140, 4
      %v1142 = vadd.f32 %v1140, %v1141
      %v1143 = vrot.slane %v1142, 2
      %v1144 = vadd.f32 %v1142, %v1143
      %v1145 = vrot.slane %v1144, 1
      %v1146 = vadd.f32 %v1144, %v1145
      %v1147 = vmul.f32 %v1136, %v1136
      %v1148 = vmul.f32 %v1137, %v1137
      %v1149 = vsel %vm752, %v1147, 0.0
      %v1150 = vsel %vm752, %v1148, 0.0
      %v1151 = vadd.f32 %v1149, %v1150
      %v1152 = vrot.slane %v1151, 4
      %v1153 = vadd.f32 %v1151, %v1152
      %v1154 = vrot.slane %v1153, 2
      %v1155 = vadd.f32 %v1153, %v1154
      %v1156 = vrot.slane %v1155, 1
      %v1157 = vadd.f32 %v1155, %v1156
      %s1158 = scalar_lea.vmem %s1, 64
      %v1159 = vld [vmem:[%s1158] sm:$0xf]
      %v1160 = vld [vmem:[%s1158 + $0x4] sm:$0xf]
      %s1161 = scalar_lea.vmem %s1, 72
      %v1162 = vld [vmem:[%s1161] sm:$0xf]
      %v1163 = vld [vmem:[%s1161 + $0x4] sm:$0xf]
      %v1166 = vunpack.c.l.b16 %v1162
      %v1167 = vunpack.c.l.b16 %v1163
      %v1168 = vpack.c.b16 %v1167, %v1166
      %1170 = vmatprep.subr.bf16.mxu0 0
      %1171 = vmatpush1.bf16.msra.mxu0 0
      %1172 = vmatprep.subr.bf16.mxu0 0
      %1173 = vmatpush1.bf16.msra.mxu0 0
      %1174 = vmatprep.subr.bf16.mxu0 0
      %1175 = vmatpush1.bf16.msra.mxu0 0
      %1176 = vmatprep.subr.bf16.mxu0 0
      %1177 = vmatpush1.bf16.msra.mxu0 0
      %1178 = vmatprep.subr.bf16.mxu0 0
      %1179 = vmatpush1.bf16.msra.mxu0 0
      %1180 = vmatprep.subr.bf16.mxu0 0
      %1181 = vmatpush1.bf16.msra.mxu0 0
      %1182 = vmatprep.subr.bf16.mxu0 0
      %1183 = vmatpush1.bf16.msra.mxu0 0
      %1184 = vmatprep.subr.bf16.mxu0 0
      %1185 = vmatpush1.bf16.msra.mxu0 %v1168
      %1186 = vmatprep.subr.bf16.mxu0 0
      %1187 = vmatpush2.bf16.msra.mxu0 0
      %1188 = vmatprep.subr.bf16.mxu0 0
      %1189 = vmatpush2.bf16.msra.mxu0 0
      %1190 = vmatprep.subr.bf16.mxu0 0
      %1191 = vmatpush2.bf16.msra.mxu0 0
      %1192 = vmatprep.subr.bf16.mxu0 0
      %1193 = vmatpush2.bf16.msra.mxu0 0
      %1194 = vmatprep.subr.bf16.mxu0 0
      %1195 = vmatpush2.bf16.msra.mxu0 0
      %1196 = vmatprep.subr.bf16.mxu0 0
      %1197 = vmatpush2.bf16.msra.mxu0 0
      %1198 = vmatprep.subr.bf16.mxu0 0
      %1199 = vmatpush2.bf16.msra.mxu0 0
      %1200 = vmatprep.subr.bf16.mxu0 0
      %1201 = vmatpush2.bf16.msra.mxu0 0
      %1202 = vmatprep.mubr.bf16.mxu0 0
      %1203 = vmatmul.mubr.bf16.gmra.mxu0 %v699
      %v1204 = vpop.f32.mrf.mxu0
      %v1205 = vadd.f32 0.0, %v1204
      %v1206 = vpop.f32.mrf.mxu0
      %v1207 = vpop.f32.mrf.mxu0
      %v1208 = vadd.f32 0.0, %v1207
      %v1209 = vpop.f32.mrf.mxu0
      %1210 = vdwg.mxu0
      %v1213 = vunpack.c.l.b16 %v1159
      %v1214 = vunpack.c.l.b16 %v1160
      %v1215 = vpack.c.b16 %v1214, %v1213
      %1217 = vmatprep.subr.bf16.mxu0 0
      %1218 = vmatpush1.bf16.msra.mxu0 0
      %1219 = vmatprep.subr.bf16.mxu0 0
      %1220 = vmatpush1.bf16.msra.mxu0 0
      %1221 = vmatprep.subr.bf16.mxu0 0
      %1222 = vmatpush1.bf16.msra.mxu0 0
      %1223 = vmatprep.subr.bf16.mxu0 0
      %1224 = vmatpush1.bf16.msra.mxu0 0
      %1225 = vmatprep.subr.bf16.mxu0 0
      %1226 = vmatpush1.bf16.msra.mxu0 0
      %1227 = vmatprep.subr.bf16.mxu0 0
      %1228 = vmatpush1.bf16.msra.mxu0 0
      %1229 = vmatprep.subr.bf16.mxu0 0
      %1230 = vmatpush1.bf16.msra.mxu0 0
      %1231 = vmatprep.subr.bf16.mxu0 0
      %1232 = vmatpush1.bf16.msra.mxu0 %v1215
      %1233 = vmatprep.subr.bf16.mxu0 0
      %1234 = vmatpush2.bf16.msra.mxu0 0
      %1235 = vmatprep.subr.bf16.mxu0 0
      %1236 = vmatpush2.bf16.msra.mxu0 0
      %1237 = vmatprep.subr.bf16.mxu0 0
      %1238 = vmatpush2.bf16.msra.mxu0 0
      %1239 = vmatprep.subr.bf16.mxu0 0
      %1240 = vmatpush2.bf16.msra.mxu0 0
      %1241 = vmatprep.subr.bf16.mxu0 0
      %1242 = vmatpush2.bf16.msra.mxu0 0
      %1243 = vmatprep.subr.bf16.mxu0 0
      %1244 = vmatpush2.bf16.msra.mxu0 0
      %1245 = vmatprep.subr.bf16.mxu0 0
      %1246 = vmatpush2.bf16.msra.mxu0 0
      %1247 = vmatprep.subr.bf16.mxu0 0
      %1248 = vmatpush2.bf16.msra.mxu0 0
      %1249 = vmatprep.mubr.bf16.mxu0 0
      %1250 = vmatmul.mubr.bf16.gmra.mxu0 %v531
      %v1251 = vpop.f32.mrf.mxu0
      %v1252 = vadd.f32 %v1205, %v1251
      %v1253 = vpop.f32.mrf.mxu0
      %v1254 = vpop.f32.mrf.mxu0
      %v1255 = vadd.f32 %v1208, %v1254
      %v1256 = vpop.f32.mrf.mxu0
      %1257 = vdwg.mxu0
      %s1258 = scalar_lea.vmem %s230, 8
      %v1259 = vld [vmem:[%s1258] sm:$0x3]
      %v1260 = vld [vmem:[%s1258 + $0x4] sm:$0x3]
      %v1261 = vld [vmem:[%s1258 + $0x8] sm:$0x3]
      %v1262 = vld [vmem:[%s1258 + $0xc] sm:$0x3]
      %s1263 = scalar_lea.vmem %s1, 80
      %v1264 = vld [vmem:[%s1263] sm:$0xf]
      %v1265 = vld [vmem:[%s1263 + $0x4] sm:$0xf]
      %v1270 = vcombine.low %v1259, %v1260
      %v1271 = vcombine.low %v1261, %v1262
      %v1273 = vunpack.c.l.s4 1983009808
      %v1274 = vunpack.c.0.s8 %v1273
      %v1275 = vlaneseq
      %v1276 = vshrl.u32 %v1275, 7
      %v1277 = vsub.s32 %v1274, %v1276
      %v1278 = vrot.slane %v1270, %v1277
      %v1280 = vunpack.c.l.s4 1983009808
      %v1281 = vunpack.c.0.s8 %v1280
      %v1282 = vlaneseq
      %v1283 = vshrl.u32 %v1282, 7
      %v1284 = vsub.s32 %v1281, %v1283
      %v1285 = vrot.slane %v1271, %v1284
      %v1286 = vcombine.low %v1278, %v1285
      %v1289 = vunpack.c.l.b16 %v1264
      %v1290 = vunpack.c.l.b16 %v1265
      %v1291 = vpack.c.b16 %v1290, %v1289
      %v1294 = vsel %vm379, %v1286, 0
      %1296 = vmatprep.subr.bf16.mxu0 0
      %1297 = vmatpush1.bf16.msra.mxu0 0
      %1298 = vmatprep.subr.bf16.mxu0 0
      %1299 = vmatpush1.bf16.msra.mxu0 0
      %1300 = vmatprep.subr.bf16.mxu0 0
      %1301 = vmatpush1.bf16.msra.mxu0 0
      %1302 = vmatprep.subr.bf16.mxu0 0
      %1303 = vmatpush1.bf16.msra.mxu0 0
      %1304 = vmatprep.subr.bf16.mxu0 0
      %1305 = vmatpush1.bf16.msra.mxu0 0
      %1306 = vmatprep.subr.bf16.mxu0 0
      %1307 = vmatpush1.bf16.msra.mxu0 0
      %1308 = vmatprep.subr.bf16.mxu0 0
      %1309 = vmatpush1.bf16.msra.mxu0 0
      %1310 = vmatprep.subr.bf16.mxu0 0
      %1311 = vmatpush1.bf16.msra.mxu0 %v1291
      %1312 = vmatprep.subr.bf16.mxu0 0
      %1313 = vmatpush2.bf16.msra.mxu0 0
      %1314 = vmatprep.subr.bf16.mxu0 0
      %1315 = vmatpush2.bf16.msra.mxu0 0
      %1316 = vmatprep.subr.bf16.mxu0 0
      %1317 = vmatpush2.bf16.msra.mxu0 0
      %1318 = vmatprep.subr.bf16.mxu0 0
      %1319 = vmatpush2.bf16.msra.mxu0 0
      %1320 = vmatprep.subr.bf16.mxu0 0
      %1321 = vmatpush2.bf16.msra.mxu0 0
      %1322 = vmatprep.subr.bf16.mxu0 0
      %1323 = vmatpush2.bf16.msra.mxu0 0
      %1324 = vmatprep.subr.bf16.mxu0 0
      %1325 = vmatpush2.bf16.msra.mxu0 0
      %1326 = vmatprep.subr.bf16.mxu0 0
      %1327 = vmatpush2.bf16.msra.mxu0 0
      %1328 = vmatprep.mubr.bf16.mxu0 0
      %1329 = vmatmul.mubr.bf16.gmra.mxu0 %v1294
      %v1330 = vpop.f32.mrf.mxu0
      %v1331 = vadd.f32 0.0, %v1330
      %v1332 = vpop.f32.mrf.mxu0
      %v1333 = vpop.f32.mrf.mxu0
      %v1334 = vadd.f32 0.0, %v1333
      %v1335 = vpop.f32.mrf.mxu0
      %1336 = vdwg.mxu0
      %v1337 = vadd.f32 %v1252, %v1331
      %v1338 = vadd.f32 %v1255, %v1334
      %v1339 = vld [vmem:[%s1258] sm:$0x7]
      %v1340 = vld [vmem:[%s1258 + $0x4] sm:$0x7]
      %v1341 = vld [vmem:[%s1258 + $0x8] sm:$0x7]
      %v1342 = vld [vmem:[%s1258 + $0xc] sm:$0x7]
      %v1348 = vunpack.c.l.s4 1983009808
      %v1349 = vunpack.c.0.s8 %v1348
      %v1350 = vlaneseq
      %v1351 = vshrl.u32 %v1350, 7
      %v1352 = vsub.s32 %v1349, %v1351
      %v1353 = vrot.slane %v1339, %v1352
      %v1354 = vcombine.high %v1353, %v1353
      %v1356 = vunpack.c.l.s4 1983009808
      %v1357 = vunpack.c.0.s8 %v1356
      %v1358 = vlaneseq
      %v1359 = vshrl.u32 %v1358, 7
      %v1360 = vsub.s32 %v1357, %v1359
      %v1361 = vrot.slane %v1340, %v1360
      %v1362 = vcombine.high %v1361, %v1361
      %v1364 = vunpack.c.l.s4 1983009808
      %v1365 = vunpack.c.0.s8 %v1364
      %v1366 = vlaneseq
      %v1367 = vshrl.u32 %v1366, 7
      %v1368 = vsub.s32 %v1365, %v1367
      %v1369 = vrot.slane %v1341, %v1368
      %v1370 = vcombine.high %v1369, %v1369
      %v1372 = vunpack.c.l.s4 1983009808
      %v1373 = vunpack.c.0.s8 %v1372
      %v1374 = vlaneseq
      %v1375 = vshrl.u32 %v1374, 7
      %v1376 = vsub.s32 %v1373, %v1375
      %v1377 = vrot.slane %v1342, %v1376
      %v1378 = vcombine.high %v1377, %v1377
      %v1380 = vshrl.u32 %v1353, 16
      %v1382 = vrot.slane %v1380, 6
      %v1383 = vshll.u32 %v1353, 16
      %v1385 = vrot.slane %v1383, 7
      %v1386 = vor.u32 %v1382, %v1385
      %v1387 = vrot.slane %v1386, 2
      %v1389 = vshll.u32 %v1354, 16
      %v1391 = vrot.slane %v1389, 7
      %v1392 = vsel %vm296, %v1387, %v1391
      %v1394 = vshrl.u32 %v1361, 16
      %v1396 = vrot.slane %v1394, 6
      %v1397 = vshll.u32 %v1361, 16
      %v1399 = vrot.slane %v1397, 7
      %v1400 = vor.u32 %v1396, %v1399
      %v1401 = vrot.slane %v1400, 2
      %v1403 = vshll.u32 %v1362, 16
      %v1405 = vrot.slane %v1403, 7
      %v1406 = vsel %vm296, %v1401, %v1405
      %v1408 = vshrl.u32 %v1369, 16
      %v1410 = vrot.slane %v1408, 6
      %v1411 = vshll.u32 %v1369, 16
      %v1413 = vrot.slane %v1411, 7
      %v1414 = vor.u32 %v1410, %v1413
      %v1415 = vrot.slane %v1414, 2
      %v1417 = vshll.u32 %v1370, 16
      %v1419 = vrot.slane %v1417, 7
      %v1420 = vsel %vm296, %v1415, %v1419
      %v1422 = vshrl.u32 %v1377, 16
      %v1424 = vrot.slane %v1422, 6
      %v1425 = vshll.u32 %v1377, 16
      %v1427 = vrot.slane %v1425, 7
      %v1428 = vor.u32 %v1424, %v1427
      %v1429 = vrot.slane %v1428, 2
      %v1431 = vshll.u32 %v1378, 16
      %v1433 = vrot.slane %v1431, 7
      %v1434 = vsel %vm296, %v1429, %v1433
      %s1435 = scalar_lea.vmem %s1, 88
      %v1436 = vld [vmem:[%s1435] sm:$0xf]
      %v1437 = vld [vmem:[%s1435 + $0x4] sm:$0xf]
      %v1438 = vcombine.low %v1392, %v1406
      %v1439 = vcombine.low %v1420, %v1434
      %v1441 = vunpack.c.l.s4 1983009808
      %v1442 = vunpack.c.0.s8 %v1441
      %v1443 = vlaneseq
      %v1444 = vshrl.u32 %v1443, 7
      %v1445 = vsub.s32 %v1442, %v1444
      %v1446 = vrot.slane %v1438, %v1445
      %v1448 = vunpack.c.l.s4 1983009808
      %v1449 = vunpack.c.0.s8 %v1448
      %v1450 = vlaneseq
      %v1451 = vshrl.u32 %v1450, 7
      %v1452 = vsub.s32 %v1449, %v1451
      %v1453 = vrot.slane %v1439, %v1452
      %v1454 = vcombine.low %v1446, %v1453
      %v1457 = vunpack.c.l.b16 %v1436
      %v1458 = vunpack.c.l.b16 %v1437
      %v1459 = vpack.c.b16 %v1458, %v1457
      %v1462 = vsel %vm379, %v1454, 0
      %1464 = vmatprep.subr.bf16.mxu0 0
      %1465 = vmatpush1.bf16.msra.mxu0 0
      %1466 = vmatprep.subr.bf16.mxu0 0
      %1467 = vmatpush1.bf16.msra.mxu0 0
      %1468 = vmatprep.subr.bf16.mxu0 0
      %1469 = vmatpush1.bf16.msra.mxu0 0
      %1470 = vmatprep.subr.bf16.mxu0 0
      %1471 = vmatpush1.bf16.msra.mxu0 0
      %1472 = vmatprep.subr.bf16.mxu0 0
      %1473 = vmatpush1.bf16.msra.mxu0 0
      %1474 = vmatprep.subr.bf16.mxu0 0
      %1475 = vmatpush1.bf16.msra.mxu0 0
      %1476 = vmatprep.subr.bf16.mxu0 0
      %1477 = vmatpush1.bf16.msra.mxu0 0
      %1478 = vmatprep.subr.bf16.mxu0 0
      %1479 = vmatpush1.bf16.msra.mxu0 %v1459
      %1480 = vmatprep.subr.bf16.mxu0 0
      %1481 = vmatpush2.bf16.msra.mxu0 0
      %1482 = vmatprep.subr.bf16.mxu0 0
      %1483 = vmatpush2.bf16.msra.mxu0 0
      %1484 = vmatprep.subr.bf16.mxu0 0
      %1485 = vmatpush2.bf16.msra.mxu0 0
      %1486 = vmatprep.subr.bf16.mxu0 0
      %1487 = vmatpush2.bf16.msra.mxu0 0
      %1488 = vmatprep.subr.bf16.mxu0 0
      %1489 = vmatpush2.bf16.msra.mxu0 0
      %1490 = vmatprep.subr.bf16.mxu0 0
      %1491 = vmatpush2.bf16.msra.mxu0 0
      %1492 = vmatprep.subr.bf16.mxu0 0
      %1493 = vmatpush2.bf16.msra.mxu0 0
      %1494 = vmatprep.subr.bf16.mxu0 0
      %1495 = vmatpush2.bf16.msra.mxu0 0
      %1496 = vmatprep.mubr.bf16.mxu0 0
      %1497 = vmatmul.mubr.bf16.gmra.mxu0 %v1462
      %v1498 = vpop.f32.mrf.mxu0
      %v1499 = vadd.f32 0.0, %v1498
      %v1500 = vpop.f32.mrf.mxu0
      %v1501 = vpop.f32.mrf.mxu0
      %v1502 = vadd.f32 0.0, %v1501
      %v1503 = vpop.f32.mrf.mxu0
      %1504 = vdwg.mxu0
      %v1505 = vadd.f32 %v1337, %v1499
      %v1506 = vadd.f32 %v1338, %v1502
      %v1507 = vadd.f32 %v1505, %v748
      %v1508 = vadd.f32 %v1506, %v748
      %v1509 = vsel %vm752, %v1507, 0.0
      %v1510 = vsel %vm752, %v1508, 0.0
      %v1511 = vadd.f32 %v1509, %v1510
      %v1512 = vrot.slane %v1511, 4
      %v1513 = vadd.f32 %v1511, %v1512
      %v1514 = vrot.slane %v1513, 2
      %v1515 = vadd.f32 %v1513, %v1514
      %v1516 = vrot.slane %v1515, 1
      %v1517 = vadd.f32 %v1515, %v1516
      %v1518 = vmul.f32 %v1507, %v1507
      %v1519 = vmul.f32 %v1508, %v1508
      %v1520 = vsel %vm752, %v1518, 0.0
      %v1521 = vsel %vm752, %v1519, 0.0
      %v1522 = vadd.f32 %v1520, %v1521
      %v1523 = vrot.slane %v1522, 4
      %v1524 = vadd.f32 %v1522, %v1523
      %v1525 = vrot.slane %v1524, 2
      %v1526 = vadd.f32 %v1524, %v1525
      %v1527 = vrot.slane %v1526, 1
      %v1528 = vadd.f32 %v1526, %v1527
      %s1529 = scalar_lea.vmem %s1, 96
      %v1530 = vld [vmem:[%s1529] sm:$0xf]
      %v1531 = vld [vmem:[%s1529 + $0x4] sm:$0xf]
      %s1532 = scalar_lea.vmem %s1, 104
      %v1533 = vld [vmem:[%s1532] sm:$0xf]
      %v1534 = vld [vmem:[%s1532 + $0x4] sm:$0xf]
      %v1537 = vunpack.c.l.b16 %v1533
      %v1538 = vunpack.c.l.b16 %v1534
      %v1539 = vpack.c.b16 %v1538, %v1537
      %1541 = vmatprep.subr.bf16.mxu0 0
      %1542 = vmatpush1.bf16.msra.mxu0 0
      %1543 = vmatprep.subr.bf16.mxu0 0
      %1544 = vmatpush1.bf16.msra.mxu0 0
      %1545 = vmatprep.subr.bf16.mxu0 0
      %1546 = vmatpush1.bf16.msra.mxu0 0
      %1547 = vmatprep.subr.bf16.mxu0 0
      %1548 = vmatpush1.bf16.msra.mxu0 0
      %1549 = vmatprep.subr.bf16.mxu0 0
      %1550 = vmatpush1.bf16.msra.mxu0 0
      %1551 = vmatprep.subr.bf16.mxu0 0
      %1552 = vmatpush1.bf16.msra.mxu0 0
      %1553 = vmatprep.subr.bf16.mxu0 0
      %1554 = vmatpush1.bf16.msra.mxu0 0
      %1555 = vmatprep.subr.bf16.mxu0 0
      %1556 = vmatpush1.bf16.msra.mxu0 %v1539
      %1557 = vmatprep.subr.bf16.mxu0 0
      %1558 = vmatpush2.bf16.msra.mxu0 0
      %1559 = vmatprep.subr.bf16.mxu0 0
      %1560 = vmatpush2.bf16.msra.mxu0 0
      %1561 = vmatprep.subr.bf16.mxu0 0
      %1562 = vmatpush2.bf16.msra.mxu0 0
      %1563 = vmatprep.subr.bf16.mxu0 0
      %1564 = vmatpush2.bf16.msra.mxu0 0
      %1565 = vmatprep.subr.bf16.mxu0 0
      %1566 = vmatpush2.bf16.msra.mxu0 0
      %1567 = vmatprep.subr.bf16.mxu0 0
      %1568 = vmatpush2.bf16.msra.mxu0 0
      %1569 = vmatprep.subr.bf16.mxu0 0
      %1570 = vmatpush2.bf16.msra.mxu0 0
      %1571 = vmatprep.subr.bf16.mxu0 0
      %1572 = vmatpush2.bf16.msra.mxu0 0
      %1573 = vmatprep.mubr.bf16.mxu0 0
      %1574 = vmatmul.mubr.bf16.gmra.mxu0 %v1091
      %v1575 = vpop.f32.mrf.mxu0
      %v1576 = vadd.f32 0.0, %v1575
      %v1577 = vpop.f32.mrf.mxu0
      %v1578 = vpop.f32.mrf.mxu0
      %v1579 = vadd.f32 0.0, %v1578
      %v1580 = vpop.f32.mrf.mxu0
      %1581 = vdwg.mxu0
      %v1584 = vunpack.c.l.b16 %v1530
      %v1585 = vunpack.c.l.b16 %v1531
      %v1586 = vpack.c.b16 %v1585, %v1584
      %1588 = vmatprep.subr.bf16.mxu0 0
      %1589 = vmatpush1.bf16.msra.mxu0 0
      %1590 = vmatprep.subr.bf16.mxu0 0
      %1591 = vmatpush1.bf16.msra.mxu0 0
      %1592 = vmatprep.subr.bf16.mxu0 0
      %1593 = vmatpush1.bf16.msra.mxu0 0
      %1594 = vmatprep.subr.bf16.mxu0 0
      %1595 = vmatpush1.bf16.msra.mxu0 0
      %1596 = vmatprep.subr.bf16.mxu0 0
      %1597 = vmatpush1.bf16.msra.mxu0 0
      %1598 = vmatprep.subr.bf16.mxu0 0
      %1599 = vmatpush1.bf16.msra.mxu0 0
      %1600 = vmatprep.subr.bf16.mxu0 0
      %1601 = vmatpush1.bf16.msra.mxu0 0
      %1602 = vmatprep.subr.bf16.mxu0 0
      %1603 = vmatpush1.bf16.msra.mxu0 %v1586
      %1604 = vmatprep.subr.bf16.mxu0 0
      %1605 = vmatpush2.bf16.msra.mxu0 0
      %1606 = vmatprep.subr.bf16.mxu0 0
      %1607 = vmatpush2.bf16.msra.mxu0 0
      %1608 = vmatprep.subr.bf16.mxu0 0
      %1609 = vmatpush2.bf16.msra.mxu0 0
      %1610 = vmatprep.subr.bf16.mxu0 0
      %1611 = vmatpush2.bf16.msra.mxu0 0
      %1612 = vmatprep.subr.bf16.mxu0 0
      %1613 = vmatpush2.bf16.msra.mxu0 0
      %1614 = vmatprep.subr.bf16.mxu0 0
      %1615 = vmatpush2.bf16.msra.mxu0 0
      %1616 = vmatprep.subr.bf16.mxu0 0
      %1617 = vmatpush2.bf16.msra.mxu0 0
      %1618 = vmatprep.subr.bf16.mxu0 0
      %1619 = vmatpush2.bf16.msra.mxu0 0
      %1620 = vmatprep.mubr.bf16.mxu0 0
      %1621 = vmatmul.mubr.bf16.gmra.mxu0 %v699
      %v1622 = vpop.f32.mrf.mxu0
      %v1623 = vadd.f32 %v1576, %v1622
      %v1624 = vpop.f32.mrf.mxu0
      %v1625 = vpop.f32.mrf.mxu0
      %v1626 = vadd.f32 %v1579, %v1625
      %v1627 = vpop.f32.mrf.mxu0
      %1628 = vdwg.mxu0
      %s1629 = scalar_lea.vmem %s1, 112
      %v1630 = vld [vmem:[%s1629] sm:$0xf]
      %v1631 = vld [vmem:[%s1629 + $0x4] sm:$0xf]
      %v1634 = vunpack.c.l.b16 %v1630
      %v1635 = vunpack.c.l.b16 %v1631
      %v1636 = vpack.c.b16 %v1635, %v1634
      %1638 = vmatprep.subr.bf16.mxu0 0
      %1639 = vmatpush1.bf16.msra.mxu0 0
      %1640 = vmatprep.subr.bf16.mxu0 0
      %1641 = vmatpush1.bf16.msra.mxu0 0
      %1642 = vmatprep.subr.bf16.mxu0 0
      %1643 = vmatpush1.bf16.msra.mxu0 0
      %1644 = vmatprep.subr.bf16.mxu0 0
      %1645 = vmatpush1.bf16.msra.mxu0 0
      %1646 = vmatprep.subr.bf16.mxu0 0
      %1647 = vmatpush1.bf16.msra.mxu0 0
      %1648 = vmatprep.subr.bf16.mxu0 0
      %1649 = vmatpush1.bf16.msra.mxu0 0
      %1650 = vmatprep.subr.bf16.mxu0 0
      %1651 = vmatpush1.bf16.msra.mxu0 0
      %1652 = vmatprep.subr.bf16.mxu0 0
      %1653 = vmatpush1.bf16.msra.mxu0 %v1636
      %1654 = vmatprep.subr.bf16.mxu0 0
      %1655 = vmatpush2.bf16.msra.mxu0 0
      %1656 = vmatprep.subr.bf16.mxu0 0
      %1657 = vmatpush2.bf16.msra.mxu0 0
      %1658 = vmatprep.subr.bf16.mxu0 0
      %1659 = vmatpush2.bf16.msra.mxu0 0
      %1660 = vmatprep.subr.bf16.mxu0 0
      %1661 = vmatpush2.bf16.msra.mxu0 0
      %1662 = vmatprep.subr.bf16.mxu0 0
      %1663 = vmatpush2.bf16.msra.mxu0 0
      %1664 = vmatprep.subr.bf16.mxu0 0
      %1665 = vmatpush2.bf16.msra.mxu0 0
      %1666 = vmatprep.subr.bf16.mxu0 0
      %1667 = vmatpush2.bf16.msra.mxu0 0
      %1668 = vmatprep.subr.bf16.mxu0 0
      %1669 = vmatpush2.bf16.msra.mxu0 0
      %1670 = vmatprep.mubr.bf16.mxu0 0
      %1671 = vmatmul.mubr.bf16.gmra.mxu0 %v1462
      %v1672 = vpop.f32.mrf.mxu0
      %v1673 = vadd.f32 0.0, %v1672
      %v1674 = vpop.f32.mrf.mxu0
      %v1675 = vpop.f32.mrf.mxu0
      %v1676 = vadd.f32 0.0, %v1675
      %v1677 = vpop.f32.mrf.mxu0
      %1678 = vdwg.mxu0
      %v1679 = vadd.f32 %v1623, %v1673
      %v1680 = vadd.f32 %v1626, %v1676
      %v1681 = vld [vmem:[%s1258] sm:$0x6]
      %v1682 = vld [vmem:[%s1258 + $0x4] sm:$0x6]
      %v1683 = vld [vmem:[%s1258 + $0x8] sm:$0x6]
      %v1684 = vld [vmem:[%s1258 + $0xc] sm:$0x6]
      %v1690 = vunpack.c.l.s4 1983009808
      %v1691 = vunpack.c.0.s8 %v1690
      %v1692 = vlaneseq
      %v1693 = vshrl.u32 %v1692, 7
      %v1694 = vsub.s32 %v1691, %v1693
      %v1695 = vrot.slane %v1681, %v1694
      %v1696 = vcombine.high %v1695, %v1695
      %v1698 = vunpack.c.l.s4 1983009808
      %v1699 = vunpack.c.0.s8 %v1698
      %v1700 = vlaneseq
      %v1701 = vshrl.u32 %v1700, 7
      %v1702 = vsub.s32 %v1699, %v1701
      %v1703 = vrot.slane %v1682, %v1702
      %v1704 = vcombine.high %v1703, %v1703
      %v1706 = vunpack.c.l.s4 1983009808
      %v1707 = vunpack.c.0.s8 %v1706
      %v1708 = vlaneseq
      %v1709 = vshrl.u32 %v1708, 7
      %v1710 = vsub.s32 %v1707, %v1709
      %v1711 = vrot.slane %v1683, %v1710
      %v1712 = vcombine.high %v1711, %v1711
      %v1714 = vunpack.c.l.s4 1983009808
      %v1715 = vunpack.c.0.s8 %v1714
      %v1716 = vlaneseq
      %v1717 = vshrl.u32 %v1716, 7
      %v1718 = vsub.s32 %v1715, %v1717
      %v1719 = vrot.slane %v1684, %v1718
      %v1720 = vcombine.high %v1719, %v1719
      %v1721 = vrot.slane %v1695, 7
      %v1722 = vrot.slane %v1721, 2
      %v1723 = vrot.slane %v1696, 7
      %v1724 = vsel %vm822, %v1722, %v1723
      %v1725 = vrot.slane %v1703, 7
      %v1726 = vrot.slane %v1725, 2
      %v1727 = vrot.slane %v1704, 7
      %v1728 = vsel %vm822, %v1726, %v1727
      %v1729 = vrot.slane %v1711, 7
      %v1730 = vrot.slane %v1729, 2
      %v1731 = vrot.slane %v1712, 7
      %v1732 = vsel %vm822, %v1730, %v1731
      %v1733 = vrot.slane %v1719, 7
      %v1734 = vrot.slane %v1733, 2
      %v1735 = vrot.slane %v1720, 7
      %v1736 = vsel %vm822, %v1734, %v1735
      %s1737 = scalar_lea.vmem %s1, 120
      %v1738 = vld [vmem:[%s1737] sm:$0xf]
      %v1739 = vld [vmem:[%s1737 + $0x4] sm:$0xf]
      %v1740 = vcombine.low %v1724, %v1728
      %v1741 = vcombine.low %v1732, %v1736
      %v1743 = vunpack.c.l.s4 1983009808
      %v1744 = vunpack.c.0.s8 %v1743
      %v1745 = vlaneseq
      %v1746 = vshrl.u32 %v1745, 7
      %v1747 = vsub.s32 %v1744, %v1746
      %v1748 = vrot.slane %v1740, %v1747
      %v1750 = vunpack.c.l.s4 1983009808
      %v1751 = vunpack.c.0.s8 %v1750
      %v1752 = vlaneseq
      %v1753 = vshrl.u32 %v1752, 7
      %v1754 = vsub.s32 %v1751, %v1753
      %v1755 = vrot.slane %v1741, %v1754
      %v1756 = vcombine.low %v1748, %v1755
      %v1759 = vunpack.c.l.b16 %v1738
      %v1760 = vunpack.c.l.b16 %v1739
      %v1761 = vpack.c.b16 %v1760, %v1759
      %v1764 = vsel %vm379, %v1756, 0
      %1766 = vmatprep.subr.bf16.mxu0 0
      %1767 = vmatpush1.bf16.msra.mxu0 0
      %1768 = vmatprep.subr.bf16.mxu0 0
      %1769 = vmatpush1.bf16.msra.mxu0 0
      %1770 = vmatprep.subr.bf16.mxu0 0
      %1771 = vmatpush1.bf16.msra.mxu0 0
      %1772 = vmatprep.subr.bf16.mxu0 0
      %1773 = vmatpush1.bf16.msra.mxu0 0
      %1774 = vmatprep.subr.bf16.mxu0 0
      %1775 = vmatpush1.bf16.msra.mxu0 0
      %1776 = vmatprep.subr.bf16.mxu0 0
      %1777 = vmatpush1.bf16.msra.mxu0 0
      %1778 = vmatprep.subr.bf16.mxu0 0
      %1779 = vmatpush1.bf16.msra.mxu0 0
      %1780 = vmatprep.subr.bf16.mxu0 0
      %1781 = vmatpush1.bf16.msra.mxu0 %v1761
      %1782 = vmatprep.subr.bf16.mxu0 0
      %1783 = vmatpush2.bf16.msra.mxu0 0
      %1784 = vmatprep.subr.bf16.mxu0 0
      %1785 = vmatpush2.bf16.msra.mxu0 0
      %1786 = vmatprep.subr.bf16.mxu0 0
      %1787 = vmatpush2.bf16.msra.mxu0 0
      %1788 = vmatprep.subr.bf16.mxu0 0
      %1789 = vmatpush2.bf16.msra.mxu0 0
      %1790 = vmatprep.subr.bf16.mxu0 0
      %1791 = vmatpush2.bf16.msra.mxu0 0
      %1792 = vmatprep.subr.bf16.mxu0 0
      %1793 = vmatpush2.bf16.msra.mxu0 0
      %1794 = vmatprep.subr.bf16.mxu0 0
      %1795 = vmatpush2.bf16.msra.mxu0 0
      %1796 = vmatprep.subr.bf16.mxu0 0
      %1797 = vmatpush2.bf16.msra.mxu0 0
      %1798 = vmatprep.mubr.bf16.mxu0 0
      %1799 = vmatmul.mubr.bf16.gmra.mxu0 %v1764
      %v1800 = vpop.f32.mrf.mxu0
      %v1801 = vadd.f32 0.0, %v1800
      %v1802 = vpop.f32.mrf.mxu0
      %v1803 = vpop.f32.mrf.mxu0
      %v1804 = vadd.f32 0.0, %v1803
      %v1805 = vpop.f32.mrf.mxu0
      %1806 = vdwg.mxu0
      %v1807 = vadd.f32 %v1679, %v1801
      %v1808 = vadd.f32 %v1680, %v1804
      %v1809 = vadd.f32 %v1807, %v748
      %v1810 = vadd.f32 %v1808, %v748
      %v1811 = vsel %vm752, %v1809, 0.0
      %v1812 = vsel %vm752, %v1810, 0.0
      %v1813 = vadd.f32 %v1811, %v1812
      %v1814 = vrot.slane %v1813, 4
      %v1815 = vadd.f32 %v1813, %v1814
      %v1816 = vrot.slane %v1815, 2
      %v1817 = vadd.f32 %v1815, %v1816
      %v1818 = vrot.slane %v1817, 1
      %v1819 = vadd.f32 %v1817, %v1818
      %v1820 = vmul.f32 %v1809, %v1809
      %v1821 = vmul.f32 %v1810, %v1810
      %v1822 = vsel %vm752, %v1820, 0.0
      %v1823 = vsel %vm752, %v1821, 0.0
      %v1824 = vadd.f32 %v1822, %v1823
      %v1825 = vrot.slane %v1824, 4
      %v1826 = vadd.f32 %v1824, %v1825
      %v1827 = vrot.slane %v1826, 2
      %v1828 = vadd.f32 %v1826, %v1827
      %v1829 = vrot.slane %v1828, 1
      %v1830 = vadd.f32 %v1828, %v1829
      %1833 = vrot.lane.b32.xlu0 %v1136, 8
      %v1834 = vpop.permute.xlu0 %1833
      %1835 = vrot.lane.b32.xlu0 %v1137, 8
      %v1836 = vpop.permute.xlu0 %1835
      %1841 = vrot.lane.b32.xlu0 %v1507, 16
      %v1842 = vpop.permute.xlu0 %1841
      %1843 = vrot.lane.b32.xlu0 %v1508, 16
      %v1844 = vpop.permute.xlu0 %1843
      %1849 = vrot.lane.b32.xlu0 %v1809, 24
      %v1850 = vpop.permute.xlu0 %1849
      %1851 = vrot.lane.b32.xlu0 %v1810, 24
      %v1852 = vpop.permute.xlu0 %1851
      %v1855 = vsel %vm752, %v750, %v1834
      %v1856 = vsel %vm752, %v751, %v1836
      %v1857 = vsel %vm379, %v1855, %v1842
      %v1858 = vsel %vm379, %v1856, %v1844
      %vm1859 = vcmask 195584
      %v1860 = vsel %vm1859, %v1857, %v1850
      %v1861 = vsel %vm1859, %v1858, %v1852
      %v1864 = vcombine.high %v1860, %v1860
      %v1865 = vcombine.high %v1861, %v1861
      %v1868 = vpack.c.bf16 %v1860, %v1860
      %v1869 = vpack.c.bf16 %v1864, %v1864
      %v1870 = vpack.c.bf16 %v1861, %v1861
      %v1871 = vpack.c.bf16 %v1865, %v1865
      %vm1872 = vcmask 254976
      %1873 = vst.msk [vmem:[%s235] sm:$0x3] %vm1872, %v1868
      %1874 = vst.msk [vmem:[%s235 + $0x2] sm:$0x3] %vm1872, %v1869
      %1875 = vst.msk [vmem:[%s235 + $0x4] sm:$0x3] %vm1872, %v1870
      %1876 = vst.msk [vmem:[%s235 + $0x6] sm:$0x3] %vm1872, %v1871
      %1878 = vrot.lane.b32.xlu0 %v1146, 8
      %v1879 = vpop.permute.xlu0 %1878
      %1882 = vrot.lane.b32.xlu0 %v1517, 16
      %v1883 = vpop.permute.xlu0 %1882
      %1886 = vrot.lane.b32.xlu0 %v1819, 24
      %v1887 = vpop.permute.xlu0 %1886
      %v1889 = vsel %vm752, %v761, %v1879
      %v1890 = vsel %vm379, %v1889, %v1883
      %v1891 = vsel %vm1859, %v1890, %v1887
      %vm1892 = vcmask 253952
      %1893 = vst.msk [vmem:[%s238] sm:$0x1] %vm1892, %v1891
      %1895 = vrot.lane.b32.xlu0 %v1157, 8
      %v1896 = vpop.permute.xlu0 %1895
      %1899 = vrot.lane.b32.xlu0 %v1528, 16
      %v1900 = vpop.permute.xlu0 %1899
      %1903 = vrot.lane.b32.xlu0 %v1830, 24
      %v1904 = vpop.permute.xlu0 %1903
      %v1906 = vsel %vm752, %v772, %v1896
      %v1907 = vsel %vm379, %v1906, %v1900
      %v1908 = vsel %vm1859, %v1907, %v1904
      %1909 = vst.msk [vmem:[%s241] sm:$0x1] %vm1892, %v1908
      %p1910 = scmp.lt.s32.totalorder %s17, 1
      %s1911 = scalar_select %p1910, %s17, 1
      %s1912 = smul.addr %s1911, 4
      %s1913 = smul.addr %s1912, 2
      %s1914 = scalar_lea.vmem %s3, %s1913
      %p1915 = scmp.lt.s32.totalorder %s17, 1
      %s1916 = scalar_select %p1915, %s17, 1
      %s1917 = scalar_lea.vmem %s4, %s1916
      %p1918 = scmp.lt.s32.totalorder %s17, 1
      %s1919 = scalar_select %p1918, %s17, 1
      %s1920 = scalar_lea.vmem %s5, %s1919
      // Predicated region
      $region33: #{generator_forward.13} parent=31 // pred_check
        %p1921 = pneg %p103
      $region34: #{generator_forward.13} parent=31 // pred_check_branch
        %1923 = sbr.rel (%p1921) target = $region36
      $region35: #{generator_forward.13} parent=31 // pred_region
        _
      $region36: #{generator_forward.13} parent=31 // pred_fallthru
        _
      // Predicated region
      $region37: #{generator_forward.13} parent=31 // pred_check
        %p1924 = pneg %p129
      $region38: #{generator_forward.13} parent=31 // pred_check_branch
        %1926 = sbr.rel (%p1924) target = $region40
      $region39: #{generator_forward.13} parent=31 // pred_region
        _
      $region40: #{generator_forward.13} parent=31 // pred_fallthru
        _
      // Predicated region
      $region41: #{generator_forward.13} parent=31 // pred_check
        %p1927 = pneg %p155
      $region42: #{generator_forward.13} parent=31 // pred_check_branch
        %1929 = sbr.rel (%p1927) target = $region44
      $region43: #{generator_forward.13} parent=31 // pred_region
        _
      $region44: #{generator_forward.13} parent=31 // pred_fallthru
        _
    $region32: #{generator_forward.13} parent=5 // pred_fallthru
      _
    %p1930 = scmp.le.s32.totalorder 2, %s12
    // Predicated region
    $region45: #{generator_forward.13} parent=5 // pred_check
      %p1931 = pneg %p1930
    $region46: #{generator_forward.13} parent=5 // pred_check_branch
      %1933 = sbr.rel (%p1931) target = $region48
    $region47: #{generator_forward.13} parent=5 // pred_region
      %s1934 = ssub.s32 %s12, 2
      // Predicated region
      $region49: #{generator_forward.13} parent=47 // pred_check
        %p1935 = pneg %p109
      $region50: #{generator_forward.13} parent=47 // pred_check_branch
        %1937 = sbr.rel (%p1935) target = $region52
      $region51: #{generator_forward.13} parent=47 // pred_region
        %p1938 = scmp.lt.s32.totalorder %s18, 1
        %s1939 = scalar_select %p1938, %s18, 1
        %s1940 = smul.addr %s1939, 4
        %s1941 = smul.addr %s1940, 2
        %s1942 = scalar_lea.vmem %s3, %s1941
      $region52: #{generator_forward.13} parent=47 // pred_fallthru
        _
      // Predicated region
      $region53: #{generator_forward.13} parent=47 // pred_check
        %p1943 = pneg %p135
      $region54: #{generator_forward.13} parent=47 // pred_check_branch
        %1945 = sbr.rel (%p1943) target = $region56
      $region55: #{generator_forward.13} parent=47 // pred_region
        %p1946 = scmp.lt.s32.totalorder %s18, 1
        %s1947 = scalar_select %p1946, %s18, 1
        %s1948 = scalar_lea.vmem %s4, %s1947
      $region56: #{generator_forward.13} parent=47 // pred_fallthru
        _
      // Predicated region
      $region57: #{generator_forward.13} parent=47 // pred_check
        %p1949 = pneg %p161
      $region58: #{generator_forward.13} parent=47 // pred_check_branch
        %1951 = sbr.rel (%p1949) target = $region60
      $region59: #{generator_forward.13} parent=47 // pred_region
        %p1952 = scmp.lt.s32.totalorder %s18, 1
        %s1953 = scalar_select %p1952, %s18, 1
        %s1954 = scalar_lea.vmem %s5, %s1953
      $region60: #{generator_forward.13} parent=47 // pred_fallthru
        _
    $region48: #{generator_forward.13} parent=5 // pred_fallthru
      _
  $region6: #{generator_forward.13} parent=0 // loop_footer
    %s16 = sadd.s32 1, %s12
  $region7: #{generator_forward.13} parent=0 // loop_footer_branch
    %11 = sbr.rel target = $region3
  $region8: #{generator_forward.13} parent=0 // loop_exit
    _

// kernel: generator_forward.14
$region0: #{generator_forward.14}
  #allocation0 [shape = 'u32[]', space=smem, size = 0x4, offset = 0x4, fixed_abs, tag = 'smem constant byte address 0x4 - core index']
  #allocation1 [shape = 'u32[144,128]{1,0:T(1,128)}', space=vmem, size = 0x12000, scoped, tag = 'internal scratch']
  %s0 = inlined_call_operand.vmem [shape: bf16[32,32], index: 0, kind: input, shape index: {}]
  %s1 = inlined_call_operand.vmem [shape: f32[1,32], index: 1, kind: input, shape index: {}]
  %s2 = inlined_call_operand.vmem [shape: f32[1,32], index: 2, kind: input, shape index: {}]
  %s3 = inlined_call_operand.vmem [shape: bf16[32,32], index: 3, kind: output, shape index: {}]
  %s4 = sld [smem:[#allocation0]]
  $region22: #{generator_forward.14} parent=0
    _
  %s6 = ssub.s32 1, %s4
  %s7 = scalar_select 0, %s6, %s4
  // Predicated region
  $region2: #{generator_forward.14} parent=0 // pred_check
    _
  $region3: #{generator_forward.14} parent=0 // pred_check_branch
    %9 = sbr.rel (0) target = $region5
  $region4: #{generator_forward.14} parent=0 // pred_region
    _
  $region5: #{generator_forward.14} parent=0 // pred_fallthru
    _
  // Predicated region
  $region6: #{generator_forward.14} parent=0 // pred_check
    _
  $region7: #{generator_forward.14} parent=0 // pred_check_branch
    %11 = sbr.rel (0) target = $region9
  $region8: #{generator_forward.14} parent=0 // pred_region
    _
  $region9: #{generator_forward.14} parent=0 // pred_fallthru
    _
  // Predicated region
  $region10: #{generator_forward.14} parent=0 // pred_check
    _
  $region11: #{generator_forward.14} parent=0 // pred_check_branch
    %13 = sbr.rel (0) target = $region13
  $region12: #{generator_forward.14} parent=0 // pred_region
    _
  $region13: #{generator_forward.14} parent=0 // pred_fallthru
    _
  %v14 = vld [vmem:[%s0] sm:$0xf]
  %v15 = vld [vmem:[%s0 + $0x4] sm:$0xf]
  %v16 = vld [vmem:[%s0 + $0x8] sm:$0xf]
  %v17 = vld [vmem:[%s0 + $0xc] sm:$0xf]
  %v18 = vunpack.c.l.bf16 %v14
  %v19 = vunpack.c.l.bf16 %v15
  %v20 = vunpack.c.l.bf16 %v16
  %v21 = vunpack.c.l.bf16 %v17
  %v22 = vld [vmem:[%s1] sm:$0x1]
  %v24 = vlaneseq
  %v25 = vshrl.u32 %v24, 7
  %v26 = vsub.s32 0, %v25
  %v27 = vrot.slane %v22, %v26
  %v29 = vmul.f32 %v18, %v27
  %v30 = vmul.f32 %v19, %v27
  %v31 = vmul.f32 %v20, %v27
  %v32 = vmul.f32 %v21, %v27
  %v33 = vld [vmem:[%s2] sm:$0x1]
  %v35 = vlaneseq
  %v36 = vshrl.u32 %v35, 7
  %v37 = vsub.s32 0, %v36
  %v38 = vrot.slane %v33, %v37
  %v40 = vadd.f32 %v29, %v38
  %v41 = vadd.f32 %v30, %v38
  %v42 = vadd.f32 %v31, %v38
  %v43 = vadd.f32 %v32, %v38
  %vm44 = vcmp.ge.f32.partialorder %v40, 0.0
  %vm45 = vcmp.ge.f32.partialorder %v41, 0.0
  %vm46 = vcmp.ge.f32.partialorder %v42, 0.0
  %vm47 = vcmp.ge.f32.partialorder %v43, 0.0
  %v48 = vmul.f32 %v40, 0.05
  %v49 = vmul.f32 %v41, 0.05
  %v50 = vmul.f32 %v42, 0.05
  %v51 = vmul.f32 %v43, 0.05
  %v52 = vsel %vm44, %v40, %v48
  %v53 = vsel %vm45, %v41, %v49
  %v54 = vsel %vm46, %v42, %v50
  %v55 = vsel %vm47, %v43, %v51
  %v56 = vpack.c.bf16 %v53, %v52
  %v57 = vpack.c.bf16 %v55, %v54
  %v60 = vunpack.c.l.b16 %v56
  %v61 = vunpack.c.h.b16 %v56
  %v62 = vunpack.c.l.b16 %v57
  %v63 = vunpack.c.h.b16 %v57
  %v64 = vpack.c.b16 %v60, %v60
  %v65 = vpack.c.b16 %v61, %v61
  %v66 = vpack.c.b16 %v62, %v62
  %v67 = vpack.c.b16 %v63, %v63
  %vm72 = vcmask 257024
  %73 = vst.msk [vmem:[%s3] sm:$0xf] %vm72, %v64
  %74 = vst.msk [vmem:[%s3 + $0x4] sm:$0xf] %vm72, %v65
  %75 = vst.msk [vmem:[%s3 + $0x8] sm:$0xf] %vm72, %v66
  %76 = vst.msk [vmem:[%s3 + $0xc] sm:$0xf] %vm72, %v67
  // Predicated region
  $region14: #{generator_forward.14} parent=0 // pred_check
    _
  $region15: #{generator_forward.14} parent=0 // pred_check_branch
    %78 = sbr.rel (0) target = $region17
  $region16: #{generator_forward.14} parent=0 // pred_region
    _
  $region17: #{generator_forward.14} parent=0 // pred_fallthru
    _
  // Predicated region
  $region18: #{generator_forward.14} parent=0 // pred_check
    _
  $region19: #{generator_forward.14} parent=0 // pred_check_branch
    %80 = sbr.rel (0) target = $region21
  $region20: #{generator_forward.14} parent=0 // pred_region
    _
  $region21: #{generator_forward.14} parent=0 // pred_fallthru
    _

// kernel: generator_forward.15
$region0: #{generator_forward.15}
  #allocation0 [shape = 'u32[]', space=smem, size = 0x4, offset = 0x4, fixed_abs, tag = 'smem constant byte address 0x4 - core index']
  #allocation1 [shape = 'u32[144,128]{1,0:T(1,128)}', space=vmem, size = 0x12000, scoped, tag = 'internal scratch']
  %s0 = inlined_call_operand.vmem [shape: bf16[2,10,10,8], index: 0, kind: input, shape index: {}]
  %s1 = inlined_call_operand.vmem [shape: bf16[16,8,3], index: 1, kind: input, shape index: {}]
  %s2 = inlined_call_operand.vmem [shape: f32[1,3], index: 2, kind: input, shape index: {}]
  %s3 = inlined_call_operand.vmem [shape: f32[2,8,8,12], index: 3, kind: output, shape index: {}]
  %s4 = sld [smem:[#allocation0]]
  $region45: #{generator_forward.15} parent=0
    _
  %s6 = ssub.s32 1, %s4
  %s7 = scalar_select 0, %s6, %s4
  loop: start=0, step=1, limit=4
  $region2: #{generator_forward.15} parent=0 // loop_pre_header
    _
  $region3: #{generator_forward.15} parent=0 // loop_header
    %s9 = sphi 0, %s13
    %p10 = scmp.ge.s32.totalorder %s9, 4
    %s19 = sphi 0, %s21
    %s22 = sphi 0, %s19
    %s23 = sphi 0, %s22
    %s39 = sphi 0, %s23
    %s43 = sphi 0, %s43
    %s45 = sphi 0, %s43
    %s46 = sphi 0, %s45
    %s60 = sphi 0, %s46
    %s64 = sphi 0, %s64
    %s66 = sphi 0, %s64
    %s67 = sphi 0, %s66
    %s81 = sphi 0, %s67
    %s87 = sphi 0, %s89
    %s90 = sphi 0, %s87
    %s91 = sphi 0, %s90
    %s107 = sphi 0, %s91
  $region4: #{generator_forward.15} parent=0 // loop_header_branch
    %12 = sbr.rel (%p10) target = $region8
  $region5: #{generator_forward.15} parent=0 // loop_body
    %s14 = ssub.s32 %s9, 1
    %s15 = ssub.s32 %s9, 2
    %s16 = sadd.s32 %s9, 1
    %s17 = ssub.s32 %s9, %s16
    %p18 = scmp.eq.s32.totalorder %s17, 0
    %s20 = sadd.s32 %s19, 1
    %s21 = scalar_select %p18, %s19, %s20
    %p24 = pneg %p18
    %p25 = scmp.eq.s32.totalorder %s9, 1
    %p26 = por %p24, %p25
    %p27 = scmp.ne.s32.totalorder %s19, %s22
    %p28 = scmp.eq.s32.totalorder %s9, 0
    %p29 = por %p27, %p28
    %p30 = scmp.ne.s32.totalorder %s19, %s22
    %p31 = scmp.eq.s32.totalorder %s14, 1
    %p32 = por %p30, %p31
    %p33 = scmp.ne.s32.totalorder %s22, %s23
    %p34 = scmp.eq.s32.totalorder %s14, 0
    %p35 = por %p33, %p34
    %p36 = scmp.ne.s32.totalorder %s22, %s23
    %p37 = scmp.eq.s32.totalorder %s15, 1
    %p38 = por %p36, %p37
    %p40 = scmp.ne.s32.totalorder %s23, %s39
    %p41 = scmp.eq.s32.totalorder %s15, 0
    %p42 = por %p40, %p41
    %s44 = sadd.s32 %s43, 1
    %p47 = scmp.eq.s32.totalorder %s9, 1
    %p48 = scmp.ne.s32.totalorder %s43, %s45
    %p49 = scmp.eq.s32.totalorder %s9, 0
    %p50 = por %p48, %p49
    %p51 = scmp.ne.s32.totalorder %s43, %s45
    %p52 = scmp.eq.s32.totalorder %s14, 1
    %p53 = por %p51, %p52
    %p54 = scmp.ne.s32.totalorder %s45, %s46
    %p55 = scmp.eq.s32.totalorder %s14, 0
    %p56 = por %p54, %p55
    %p57 = scmp.ne.s32.totalorder %s45, %s46
    %p58 = scmp.eq.s32.totalorder %s15, 1
    %p59 = por %p57, %p58
    %p61 = scmp.ne.s32.totalorder %s46, %s60
    %p62 = scmp.eq.s32.totalorder %s15, 0
    %p63 = por %p61, %p62
    %s65 = sadd.s32 %s64, 1
    %p68 = scmp.eq.s32.totalorder %s9, 1
    %p69 = scmp.ne.s32.totalorder %s64, %s66
    %p70 = scmp.eq.s32.totalorder %s9, 0
    %p71 = por %p69, %p70
    %p72 = scmp.ne.s32.totalorder %s64, %s66
    %p73 = scmp.eq.s32.totalorder %s14, 1
    %p74 = por %p72, %p73
    %p75 = scmp.ne.s32.totalorder %s66, %s67
    %p76 = scmp.eq.s32.totalorder %s14, 0
    %p77 = por %p75, %p76
    %p78 = scmp.ne.s32.totalorder %s66, %s67
    %p79 = scmp.eq.s32.totalorder %s15, 1
    %p80 = por %p78, %p79
    %p82 = scmp.ne.s32.totalorder %s67, %s81
    %p83 = scmp.eq.s32.totalorder %s15, 0
    %p84 = por %p82, %p83
    %s85 = ssub.s32 %s9, %s16
    %p86 = scmp.eq.s32.totalorder %s85, 0
    %s88 = sadd.s32 %s87, 1
    %s89 = scalar_select %p86, %s87, %s88
    %p92 = pneg %p86
    %p93 = scmp.eq.s32.totalorder %s9, 1
    %p94 = por %p92, %p93
    %p95 = scmp.ne.s32.totalorder %s87, %s90
    %p96 = scmp.eq.s32.totalorder %s9, 0
    %p97 = por %p95, %p96
    %p98 = scmp.ne.s32.totalorder %s87, %s90
    %p99 = scmp.eq.s32.totalorder %s14, 1
    %p100 = por %p98, %p99
    %p101 = scmp.ne.s32.totalorder %s90, %s91
    %p102 = scmp.eq.s32.totalorder %s14, 0
    %p103 = por %p101, %p102
    %p104 = scmp.ne.s32.totalorder %s90, %s91
    %p105 = scmp.eq.s32.totalorder %s15, 1
    %p106 = por %p104, %p105
    %p108 = scmp.ne.s32.totalorder %s91, %s107
    %p109 = scmp.eq.s32.totalorder %s15, 0
    %p110 = por %p108, %p109
    %p111 = scmp.le.s32.totalorder 1, %s9
    %p112 = scmp.lt.s32.totalorder %s9, 3
    %p113 = pnand %p111, %p112
    %p114 = pneg %p113
    // Predicated region
    $region9: #{generator_forward.15} parent=5 // pred_check
      _
    $region10: #{generator_forward.15} parent=5 // pred_check_branch
      %116 = sbr.rel (%p113) target = $region12
    $region11: #{generator_forward.15} parent=5 // pred_region
      %s117 = ssub.s32 %s9, 1
      // Predicated region
      $region13: #{generator_forward.15} parent=11 // pred_check
        %p118 = pneg %p56
      $region14: #{generator_forward.15} parent=11 // pred_check_branch
        %120 = sbr.rel (%p118) target = $region16
      $region15: #{generator_forward.15} parent=11 // pred_region
        _
      $region16: #{generator_forward.15} parent=11 // pred_fallthru
        _
      // Predicated region
      $region17: #{generator_forward.15} parent=11 // pred_check
        %p121 = pneg %p77
      $region18: #{generator_forward.15} parent=11 // pred_check_branch
        %123 = sbr.rel (%p121) target = $region20
      $region19: #{generator_forward.15} parent=11 // pred_region
        _
      $region20: #{generator_forward.15} parent=11 // pred_fallthru
        _
    $region12: #{generator_forward.15} parent=5 // pred_fallthru
      _
    %p124 = scmp.lt.s32.totalorder %s9, 2
    // Predicated region
    $region21: #{generator_forward.15} parent=5 // pred_check
      %p125 = pneg %p124
    $region22: #{generator_forward.15} parent=5 // pred_check_branch
      %127 = sbr.rel (%p125) target = $region24
    $region23: #{generator_forward.15} parent=5 // pred_region
      // Predicated region
      $region25: #{generator_forward.15} parent=23 // pred_check
        %p128 = pneg %p29
      $region26: #{generator_forward.15} parent=23 // pred_check_branch
        %130 = sbr.rel (%p128) target = $region28
      $region27: #{generator_forward.15} parent=23 // pred_region
        %p131 = scmp.lt.s32.totalorder %s9, 1
        %s132 = scalar_select %p131, %s9, 1
        %s133 = smul.addr %s132, 20
        %s134 = smul.addr %s133, 4
        %s135 = scalar_lea.vmem %s0, %s134
      $region28: #{generator_forward.15} parent=23 // pred_fallthru
        _
    $region24: #{generator_forward.15} parent=5 // pred_fallthru
      _
    %p136 = scmp.le.s32.totalorder 1, %s9
    %p137 = scmp.lt.s32.totalorder %s9, 3
    %p138 = pnand %p136, %p137
    %p139 = pneg %p138
    // Predicated region
    $region29: #{generator_forward.15} parent=5 // pred_check
      _
    $region30: #{generator_forward.15} parent=5 // pred_check_branch
      %141 = sbr.rel (%p138) target = $region32
    $region31: #{generator_forward.15} parent=5 // pred_region
      %s142 = ssub.s32 %s9, 1
      %p143 = scmp.lt.s32.totalorder %s14, 1
      %s144 = scalar_select %p143, %s14, 1
      %s145 = smul.addr %s144, 20
      %s146 = smul.addr %s145, 4
      %s147 = scalar_lea.vmem %s0, %s146
      %p148 = pneg %p35
      %p149 = pneg %p32
      %p150 = pneg %p56
      %p151 = pneg %p53
      %p152 = pneg %p77
      %p153 = pneg %p74
      %p154 = pneg %p103
      %p155 = pneg %p100
      %p156 = scmp.lt.s32.totalorder %s14, 1
      %s157 = scalar_select %p156, %s14, 1
      %s158 = smul.addr %s157, 8
      %s159 = smul.addr %s158, 8
      %s160 = scalar_lea.vmem %s3, %s159
      %p161 = scmp.lt.s32.totalorder %s14, 1
      %s162 = scalar_select %p161, %s14, 1
      %s163 = smul.addr %s162, 20
      %s164 = smul.addr %s163, 4
      %s165 = scalar_lea.vmem %s0, %s164
      %p166 = scmp.lt.s32.totalorder %s14, 1
      %s167 = scalar_select %p166, %s14, 1
      %s168 = smul.addr %s167, 8
      %s169 = smul.addr %s168, 8
      %s170 = scalar_lea.vmem %s3, %s169
      %v172 = vld [vmem:[%s2] sm:$0x1]
      %v173 = vld [vmem:[%s165] sm:$0xf]
      %v174 = vld [vmem:[%s165 + $0x8] sm:$0xf]
      %v175 = vld [vmem:[%s165 + $0x10] sm:$0xf]
      %v176 = vld [vmem:[%s165 + $0x18] sm:$0xf]
      %v177 = vld [vmem:[%s165 + $0x20] sm:$0xf]
      %v178 = vld [vmem:[%s165 + $0x28] sm:$0xf]
      %v179 = vld [vmem:[%s165 + $0x30] sm:$0xf]
      %v180 = vld [vmem:[%s165 + $0x38] sm:$0xf]
      %v181 = vld [vmem:[%s1] sm:$0xf]
      %v182 = vld [vmem:[%s165 + $0x4] sm:$0x1]
      %v183 = vld [vmem:[%s165 + $0xc] sm:$0x1]
      %v184 = vld [vmem:[%s165 + $0x14] sm:$0x1]
      %v185 = vld [vmem:[%s165 + $0x1c] sm:$0x1]
      %v186 = vld [vmem:[%s165 + $0x24] sm:$0x1]
      %v187 = vld [vmem:[%s165 + $0x2c] sm:$0x1]
      %v188 = vld [vmem:[%s165 + $0x34] sm:$0x1]
      %v189 = vld [vmem:[%s165 + $0x3c] sm:$0x1]
      %vm190 = vsmask.f32 3328
      %vm191 = vsmask.f32 7440
      %vm192 = vmor %vm190, %vm191
      %v194 = vshrl.u32 %v173, 16
      %v196 = vrot.slane %v194, 4
      %v197 = vshll.u32 %v173, 16
      %v199 = vrot.slane %v197, 5
      %v200 = vor.u32 %v196, %v199
      %v201 = vrot.slane %v200, 4
      %v203 = vshll.u32 %v182, 16
      %v205 = vrot.slane %v203, 5
      %v206 = vsel %vm192, %v201, %v205
      %v208 = vshrl.u32 %v174, 16
      %v210 = vrot.slane %v208, 4
      %v211 = vshll.u32 %v174, 16
      %v213 = vrot.slane %v211, 5
      %v214 = vor.u32 %v210, %v213
      %v215 = vrot.slane %v214, 4
      %v217 = vshll.u32 %v183, 16
      %v219 = vrot.slane %v217, 5
      %v220 = vsel %vm192, %v215, %v219
      %v222 = vshrl.u32 %v175, 16
      %v224 = vrot.slane %v222, 4
      %v225 = vshll.u32 %v175, 16
      %v227 = vrot.slane %v225, 5
      %v228 = vor.u32 %v224, %v227
      %v229 = vrot.slane %v228, 4
      %v231 = vshll.u32 %v184, 16
      %v233 = vrot.slane %v231, 5
      %v234 = vsel %vm192, %v229, %v233
      %v236 = vshrl.u32 %v176, 16
      %v238 = vrot.slane %v236, 4
      %v239 = vshll.u32 %v176, 16
      %v241 = vrot.slane %v239, 5
      %v242 = vor.u32 %v238, %v241
      %v243 = vrot.slane %v242, 4
      %v245 = vshll.u32 %v185, 16
      %v247 = vrot.slane %v245, 5
      %v248 = vsel %vm192, %v243, %v247
      %v250 = vshrl.u32 %v177, 16
      %v252 = vrot.slane %v250, 4
      %v253 = vshll.u32 %v177, 16
      %v255 = vrot.slane %v253, 5
      %v256 = vor.u32 %v252, %v255
      %v257 = vrot.slane %v256, 4
      %v259 = vshll.u32 %v186, 16
      %v261 = vrot.slane %v259, 5
      %v262 = vsel %vm192, %v257, %v261
      %v264 = vshrl.u32 %v178, 16
      %v266 = vrot.slane %v264, 4
      %v267 = vshll.u32 %v178, 16
      %v269 = vrot.slane %v267, 5
      %v270 = vor.u32 %v266, %v269
      %v271 = vrot.slane %v270, 4
      %v273 = vshll.u32 %v187, 16
      %v275 = vrot.slane %v273, 5
      %v276 = vsel %vm192, %v271, %v275
      %v278 = vshrl.u32 %v179, 16
      %v280 = vrot.slane %v278, 4
      %v281 = vshll.u32 %v179, 16
      %v283 = vrot.slane %v281, 5
      %v284 = vor.u32 %v280, %v283
      %v285 = vrot.slane %v284, 4
      %v287 = vshll.u32 %v188, 16
      %v289 = vrot.slane %v287, 5
      %v290 = vsel %vm192, %v285, %v289
      %v292 = vshrl.u32 %v180, 16
      %v294 = vrot.slane %v292, 4
      %v295 = vshll.u32 %v180, 16
      %v297 = vrot.slane %v295, 5
      %v298 = vor.u32 %v294, %v297
      %v299 = vrot.slane %v298, 4
      %v301 = vshll.u32 %v189, 16
      %v303 = vrot.slane %v301, 5
      %v304 = vsel %vm192, %v299, %v303
      %s305 = scalar_lea.vmem %s1, 4
      %v306 = vld [vmem:[%s305] sm:$0xf]
      %v307 = vunpack.c.l.b16 %v206
      %v308 = vunpack.c.l.b16 %v220
      %v309 = vunpack.c.l.b16 %v234
      %v310 = vunpack.c.l.b16 %v248
      %v311 = vunpack.c.l.b16 %v262
      %v312 = vunpack.c.l.b16 %v276
      %v313 = vunpack.c.l.b16 %v290
      %v314 = vunpack.c.l.b16 %v304
      %v315 = vpack.c.b16 %v308, %v307
      %v316 = vpack.c.b16 %v310, %v309
      %v317 = vpack.c.b16 %v312, %v311
      %v318 = vpack.c.b16 %v314, %v313
      %vm319 = vcmask 64512
      %v321 = vsel %vm319, %v315, 0
      %v324 = vsel %vm319, %v316, 0
      %v327 = vsel %vm319, %v317, 0
      %v330 = vsel %vm319, %v318, 0
      %vm332 = vcmask 1043456
      %v334 = vsel %vm332, %v306, 0
      %336 = vmatprep.subr.bf16.mxu0 0
      %337 = vmatpush1.bf16.msra.mxu0 0
      %338 = vmatprep.subr.bf16.mxu0 0
      %339 = vmatpush1.bf16.msra.mxu0 0
      %340 = vmatprep.subr.bf16.mxu0 0
      %341 = vmatpush1.bf16.msra.mxu0 0
      %342 = vmatprep.subr.bf16.mxu0 0
      %343 = vmatpush1.bf16.msra.mxu0 0
      %344 = vmatprep.subr.bf16.mxu0 0
      %345 = vmatpush1.bf16.msra.mxu0 0
      %346 = vmatprep.subr.bf16.mxu0 0
      %347 = vmatpush1.bf16.msra.mxu0 0
      %348 = vmatprep.subr.bf16.mxu0 0
      %349 = vmatpush1.bf16.msra.mxu0 0
      %350 = vmatprep.subr.bf16.mxu0 0
      %351 = vmatpush1.bf16.msra.mxu0 %v334
      %352 = vmatprep.subr.bf16.mxu0 0
      %353 = vmatpush2.bf16.msra.mxu0 0
      %354 = vmatprep.subr.bf16.mxu0 0
      %355 = vmatpush2.bf16.msra.mxu0 0
      %356 = vmatprep.subr.bf16.mxu0 0
      %357 = vmatpush2.bf16.msra.mxu0 0
      %358 = vmatprep.subr.bf16.mxu0 0
      %359 = vmatpush2.bf16.msra.mxu0 0
      %360 = vmatprep.subr.bf16.mxu0 0
      %361 = vmatpush2.bf16.msra.mxu0 0
      %362 = vmatprep.subr.bf16.mxu0 0
      %363 = vmatpush2.bf16.msra.mxu0 0
      %364 = vmatprep.subr.bf16.mxu0 0
      %365 = vmatpush2.bf16.msra.mxu0 0
      %366 = vmatprep.subr.bf16.mxu0 0
      %367 = vmatpush2.bf16.msra.mxu0 0
      %368 = vmatprep.mubr.bf16.mxu0 0
      %369 = vmatmul.mubr.bf16.gmra.mxu0 %v321
      %v370 = vpop.f32.mrf.mxu0
      %v371 = vadd.f32 0.0, %v370
      %v372 = vpop.f32.mrf.mxu0
      %v373 = vpop.f32.mrf.mxu0
      %v374 = vadd.f32 0.0, %v373
      %v375 = vpop.f32.mrf.mxu0
      %376 = vmatprep.mubr.bf16.mxu0 0
      %377 = vmatmul.mubr.bf16.gmra.mxu0 %v324
      %v378 = vpop.f32.mrf.mxu0
      %v379 = vadd.f32 0.0, %v378
      %v380 = vpop.f32.mrf.mxu0
      %v381 = vpop.f32.mrf.mxu0
      %v382 = vadd.f32 0.0, %v381
      %v383 = vpop.f32.mrf.mxu0
      %384 = vmatprep.mubr.bf16.mxu0 0
      %385 = vmatmul.mubr.bf16.gmra.mxu0 %v327
      %v386 = vpop.f32.mrf.mxu0
      %v387 = vadd.f32 0.0, %v386
      %v388 = vpop.f32.mrf.mxu0
      %v389 = vpop.f32.mrf.mxu0
      %v390 = vadd.f32 0.0, %v389
      %v391 = vpop.f32.mrf.mxu0
      %392 = vmatprep.mubr.bf16.mxu0 0
      %393 = vmatmul.mubr.bf16.gmra.mxu0 %v330
      %v394 = vpop.f32.mrf.mxu0
      %v395 = vadd.f32 0.0, %v394
      %v396 = vpop.f32.mrf.mxu0
      %v397 = vpop.f32.mrf.mxu0
      %v398 = vadd.f32 0.0, %v397
      %v399 = vpop.f32.mrf.mxu0
      %400 = vdwg.mxu0
      %v409 = vunpack.c.l.b16 %v173
      %v410 = vunpack.c.l.b16 %v174
      %v411 = vunpack.c.l.b16 %v175
      %v412 = vunpack.c.l.b16 %v176
      %v413 = vunpack.c.l.b16 %v177
      %v414 = vunpack.c.l.b16 %v178
      %v415 = vunpack.c.l.b16 %v179
      %v416 = vunpack.c.l.b16 %v180
      %v417 = vpack.c.b16 %v410, %v409
      %v418 = vpack.c.b16 %v412, %v411
      %v419 = vpack.c.b16 %v414, %v413
      %v420 = vpack.c.b16 %v416, %v415
      %v422 = vsel %vm319, %v417, 0
      %v425 = vsel %vm319, %v418, 0
      %v428 = vsel %vm319, %v419, 0
      %v431 = vsel %vm319, %v420, 0
      %v434 = vsel %vm332, %v181, 0
      %436 = vmatprep.subr.bf16.mxu0 0
      %437 = vmatpush1.bf16.msra.mxu0 0
      %438 = vmatprep.subr.bf16.mxu0 0
      %439 = vmatpush1.bf16.msra.mxu0 0
      %440 = vmatprep.subr.bf16.mxu0 0
      %441 = vmatpush1.bf16.msra.mxu0 0
      %442 = vmatprep.subr.bf16.mxu0 0
      %443 = vmatpush1.bf16.msra.mxu0 0
      %444 = vmatprep.subr.bf16.mxu0 0
      %445 = vmatpush1.bf16.msra.mxu0 0
      %446 = vmatprep.subr.bf16.mxu0 0
      %447 = vmatpush1.bf16.msra.mxu0 0
      %448 = vmatprep.subr.bf16.mxu0 0
      %449 = vmatpush1.bf16.msra.mxu0 0
      %450 = vmatprep.subr.bf16.mxu0 0
      %451 = vmatpush1.bf16.msra.mxu0 %v434
      %452 = vmatprep.subr.bf16.mxu0 0
      %453 = vmatpush2.bf16.msra.mxu0 0
      %454 = vmatprep.subr.bf16.mxu0 0
      %455 = vmatpush2.bf16.msra.mxu0 0
      %456 = vmatprep.subr.bf16.mxu0 0
      %457 = vmatpush2.bf16.msra.mxu0 0
      %458 = vmatprep.subr.bf16.mxu0 0
      %459 = vmatpush2.bf16.msra.mxu0 0
      %460 = vmatprep.subr.bf16.mxu0 0
      %461 = vmatpush2.bf16.msra.mxu0 0
      %462 = vmatprep.subr.bf16.mxu0 0
      %463 = vmatpush2.bf16.msra.mxu0 0
      %464 = vmatprep.subr.bf16.mxu0 0
      %465 = vmatpush2.bf16.msra.mxu0 0
      %466 = vmatprep.subr.bf16.mxu0 0
      %467 = vmatpush2.bf16.msra.mxu0 0
      %468 = vmatprep.mubr.bf16.mxu0 0
      %469 = vmatmul.mubr.bf16.gmra.mxu0 %v422
      %v470 = vpop.f32.mrf.mxu0
      %v471 = vadd.f32 %v371, %v470
      %v472 = vpop.f32.mrf.mxu0
      %v473 = vpop.f32.mrf.mxu0
      %v474 = vadd.f32 %v374, %v473
      %v475 = vpop.f32.mrf.mxu0
      %476 = vmatprep.mubr.bf16.mxu0 0
      %477 = vmatmul.mubr.bf16.gmra.mxu0 %v425
      %v478 = vpop.f32.mrf.mxu0
      %v479 = vadd.f32 %v379, %v478
      %v480 = vpop.f32.mrf.mxu0
      %v481 = vpop.f32.mrf.mxu0
      %v482 = vadd.f32 %v382, %v481
      %v483 = vpop.f32.mrf.mxu0
      %484 = vmatprep.mubr.bf16.mxu0 0
      %485 = vmatmul.mubr.bf16.gmra.mxu0 %v428
      %v486 = vpop.f32.mrf.mxu0
      %v487 = vadd.f32 %v387, %v486
      %v488 = vpop.f32.mrf.mxu0
      %v489 = vpop.f32.mrf.mxu0
      %v490 = vadd.f32 %v390, %v489
      %v491 = vpop.f32.mrf.mxu0
      %492 = vmatprep.mubr.bf16.mxu0 0
      %493 = vmatmul.mubr.bf16.gmra.mxu0 %v431
      %v494 = vpop.f32.mrf.mxu0
      %v495 = vadd.f32 %v395, %v494
      %v496 = vpop.f32.mrf.mxu0
      %v497 = vpop.f32.mrf.mxu0
      %v498 = vadd.f32 %v398, %v497
      %v499 = vpop.f32.mrf.mxu0
      %500 = vdwg.mxu0
      %s501 = scalar_lea.vmem %s165, 8
      %v502 = vld [vmem:[%s501] sm:$0xf]
      %v503 = vld [vmem:[%s501 + $0x8] sm:$0xf]
      %v504 = vld [vmem:[%s501 + $0x10] sm:$0xf]
      %v505 = vld [vmem:[%s501 + $0x18] sm:$0xf]
      %v506 = vld [vmem:[%s501 + $0x20] sm:$0xf]
      %v507 = vld [vmem:[%s501 + $0x28] sm:$0xf]
      %v508 = vld [vmem:[%s501 + $0x30] sm:$0xf]
      %v509 = vld [vmem:[%s501 + $0x38] sm:$0xf]
      %s510 = scalar_lea.vmem %s1, 8
      %v511 = vld [vmem:[%s510] sm:$0xf]
      %v520 = vunpack.c.l.b16 %v502
      %v521 = vunpack.c.l.b16 %v503
      %v522 = vunpack.c.l.b16 %v504
      %v523 = vunpack.c.l.b16 %v505
      %v524 = vunpack.c.l.b16 %v506
      %v525 = vunpack.c.l.b16 %v507
      %v526 = vunpack.c.l.b16 %v508
      %v527 = vunpack.c.l.b16 %v509
      %v528 = vpack.c.b16 %v521, %v520
      %v529 = vpack.c.b16 %v523, %v522
      %v530 = vpack.c.b16 %v525, %v524
      %v531 = vpack.c.b16 %v527, %v526
      %v533 = vsel %vm319, %v528, 0
      %v536 = vsel %vm319, %v529, 0
      %v539 = vsel %vm319, %v530, 0
      %v542 = vsel %vm319, %v531, 0
      %v545 = vsel %vm332, %v511, 0
      %547 = vmatprep.subr.bf16.mxu0 0
      %548 = vmatpush1.bf16.msra.mxu0 0
      %549 = vmatprep.subr.bf16.mxu0 0
      %550 = vmatpush1.bf16.msra.mxu0 0
      %551 = vmatprep.subr.bf16.mxu0 0
      %552 = vmatpush1.bf16.msra.mxu0 0
      %553 = vmatprep.subr.bf16.mxu0 0
      %554 = vmatpush1.bf16.msra.mxu0 0
      %555 = vmatprep.subr.bf16.mxu0 0
      %556 = vmatpush1.bf16.msra.mxu0 0
      %557 = vmatprep.subr.bf16.mxu0 0
      %558 = vmatpush1.bf16.msra.mxu0 0
      %559 = vmatprep.subr.bf16.mxu0 0
      %560 = vmatpush1.bf16.msra.mxu0 0
      %561 = vmatprep.subr.bf16.mxu0 0
      %562 = vmatpush1.bf16.msra.mxu0 %v545
      %563 = vmatprep.subr.bf16.mxu0 0
      %564 = vmatpush2.bf16.msra.mxu0 0
      %565 = vmatprep.subr.bf16.mxu0 0
      %566 = vmatpush2.bf16.msra.mxu0 0
      %567 = vmatprep.subr.bf16.mxu0 0
      %568 = vmatpush2.bf16.msra.mxu0 0
      %569 = vmatprep.subr.bf16.mxu0 0
      %570 = vmatpush2.bf16.msra.mxu0 0
      %571 = vmatprep.subr.bf16.mxu0 0
      %572 = vmatpush2.bf16.msra.mxu0 0
      %573 = vmatprep.subr.bf16.mxu0 0
      %574 = vmatpush2.bf16.msra.mxu0 0
      %575 = vmatprep.subr.bf16.mxu0 0
      %576 = vmatpush2.bf16.msra.mxu0 0
      %577 = vmatprep.subr.bf16.mxu0 0
      %578 = vmatpush2.bf16.msra.mxu0 0
      %579 = vmatprep.mubr.bf16.mxu0 0
      %580 = vmatmul.mubr.bf16.gmra.mxu0 %v533
      %v581 = vpop.f32.mrf.mxu0
      %v582 = vadd.f32 0.0, %v581
      %v583 = vpop.f32.mrf.mxu0
      %v584 = vpop.f32.mrf.mxu0
      %v585 = vadd.f32 0.0, %v584
      %v586 = vpop.f32.mrf.mxu0
      %587 = vmatprep.mubr.bf16.mxu0 0
      %588 = vmatmul.mubr.bf16.gmra.mxu0 %v536
      %v589 = vpop.f32.mrf.mxu0
      %v590 = vadd.f32 0.0, %v589
      %v591 = vpop.f32.mrf.mxu0
      %v592 = vpop.f32.mrf.mxu0
      %v593 = vadd.f32 0.0, %v592
      %v594 = vpop.f32.mrf.mxu0
      %595 = vmatprep.mubr.bf16.mxu0 0
      %596 = vmatmul.mubr.bf16.gmra.mxu0 %v539
      %v597 = vpop.f32.mrf.mxu0
      %v598 = vadd.f32 0.0, %v597
      %v599 = vpop.f32.mrf.mxu0
      %v600 = vpop.f32.mrf.mxu0
      %v601 = vadd.f32 0.0, %v600
      %v602 = vpop.f32.mrf.mxu0
      %603 = vmatprep.mubr.bf16.mxu0 0
      %604 = vmatmul.mubr.bf16.gmra.mxu0 %v542
      %v605 = vpop.f32.mrf.mxu0
      %v606 = vadd.f32 0.0, %v605
      %v607 = vpop.f32.mrf.mxu0
      %v608 = vpop.f32.mrf.mxu0
      %v609 = vadd.f32 0.0, %v608
      %v610 = vpop.f32.mrf.mxu0
      %611 = vdwg.mxu0
      %v612 = vadd.f32 %v471, %v582
      %v613 = vadd.f32 %v474, %v585
      %v614 = vadd.f32 %v479, %v590
      %v615 = vadd.f32 %v482, %v593
      %v616 = vadd.f32 %v487, %v598
      %v617 = vadd.f32 %v490, %v601
      %v618 = vadd.f32 %v495, %v606
      %v619 = vadd.f32 %v498, %v609
      %v620 = vld [vmem:[%s501] sm:$0xf]
      %v621 = vld [vmem:[%s501 + $0x4] sm:$0x1]
      %v622 = vld [vmem:[%s501 + $0x8] sm:$0xf]
      %v623 = vld [vmem:[%s501 + $0xc] sm:$0x1]
      %v624 = vld [vmem:[%s501 + $0x10] sm:$0xf]
      %v625 = vld [vmem:[%s501 + $0x14] sm:$0x1]
      %v626 = vld [vmem:[%s501 + $0x18] sm:$0xf]
      %v627 = vld [vmem:[%s501 + $0x1c] sm:$0x1]
      %v628 = vld [vmem:[%s501 + $0x20] sm:$0xf]
      %v629 = vld [vmem:[%s501 + $0x24] sm:$0x1]
      %v630 = vld [vmem:[%s501 + $0x28] sm:$0xf]
      %v631 = vld [vmem:[%s501 + $0x2c] sm:$0x1]
      %v632 = vld [vmem:[%s501 + $0x30] sm:$0xf]
      %v633 = vld [vmem:[%s501 + $0x34] sm:$0x1]
      %v634 = vld [vmem:[%s501 + $0x38] sm:$0xf]
      %v635 = vld [vmem:[%s501 + $0x3c] sm:$0x1]
      %v637 = vshrl.u32 %v620, 16
      %v639 = vrot.slane %v637, 4
      %v640 = vshll.u32 %v620, 16
      %v642 = vrot.slane %v640, 5
      %v643 = vor.u32 %v639, %v642
      %v644 = vrot.slane %v643, 4
      %v646 = vshll.u32 %v621, 16
      %v648 = vrot.slane %v646, 5
      %v649 = vsel %vm192, %v644, %v648
      %v651 = vshrl.u32 %v622, 16
      %v653 = vrot.slane %v651, 4
      %v654 = vshll.u32 %v622, 16
      %v656 = vrot.slane %v654, 5
      %v657 = vor.u32 %v653, %v656
      %v658 = vrot.slane %v657, 4
      %v660 = vshll.u32 %v623, 16
      %v662 = vrot.slane %v660, 5
      %v663 = vsel %vm192, %v658, %v662
      %v665 = vshrl.u32 %v624, 16
      %v667 = vrot.slane %v665, 4
      %v668 = vshll.u32 %v624, 16
      %v670 = vrot.slane %v668, 5
      %v671 = vor.u32 %v667, %v670
      %v672 = vrot.slane %v671, 4
      %v674 = vshll.u32 %v625, 16
      %v676 = vrot.slane %v674, 5
      %v677 = vsel %vm192, %v672, %v676
      %v679 = vshrl.u32 %v626, 16
      %v681 = vrot.slane %v679, 4
      %v682 = vshll.u32 %v626, 16
      %v684 = vrot.slane %v682, 5
      %v685 = vor.u32 %v681, %v684
      %v686 = vrot.slane %v685, 4
      %v688 = vshll.u32 %v627, 16
      %v690 = vrot.slane %v688, 5
      %v691 = vsel %vm192, %v686, %v690
      %v693 = vshrl.u32 %v628, 16
      %v695 = vrot.slane %v693, 4
      %v696 = vshll.u32 %v628, 16
      %v698 = vrot.slane %v696, 5
      %v699 = vor.u32 %v695, %v698
      %v700 = vrot.slane %v699, 4
      %v702 = vshll.u32 %v629, 16
      %v704 = vrot.slane %v702, 5
      %v705 = vsel %vm192, %v700, %v704
      %v707 = vshrl.u32 %v630, 16
      %v709 = vrot.slane %v707, 4
      %v710 = vshll.u32 %v630, 16
      %v712 = vrot.slane %v710, 5
      %v713 = vor.u32 %v709, %v712
      %v714 = vrot.slane %v713, 4
      %v716 = vshll.u32 %v631, 16
      %v718 = vrot.slane %v716, 5
      %v719 = vsel %vm192, %v714, %v718
      %v721 = vshrl.u32 %v632, 16
      %v723 = vrot.slane %v721, 4
      %v724 = vshll.u32 %v632, 16
      %v726 = vrot.slane %v724, 5
      %v727 = vor.u32 %v723, %v726
      %v728 = vrot.slane %v727, 4
      %v730 = vshll.u32 %v633, 16
      %v732 = vrot.slane %v730, 5
      %v733 = vsel %vm192, %v728, %v732
      %v735 = vshrl.u32 %v634, 16
      %v737 = vrot.slane %v735, 4
      %v738 = vshll.u32 %v634, 16
      %v740 = vrot.slane %v738, 5
      %v741 = vor.u32 %v737, %v740
      %v742 = vrot.slane %v741, 4
      %v744 = vshll.u32 %v635, 16
      %v746 = vrot.slane %v744, 5
      %v747 = vsel %vm192, %v742, %v746
      %s748 = scalar_lea.vmem %s1, 12
      %v749 = vld [vmem:[%s748] sm:$0xf]
      %v750 = vunpack.c.l.b16 %v649
      %v751 = vunpack.c.l.b16 %v663
      %v752 = vunpack.c.l.b16 %v677
      %v753 = vunpack.c.l.b16 %v691
      %v754 = vunpack.c.l.b16 %v705
      %v755 = vunpack.c.l.b16 %v719
      %v756 = vunpack.c.l.b16 %v733
      %v757 = vunpack.c.l.b16 %v747
      %v758 = vpack.c.b16 %v751, %v750
      %v759 = vpack.c.b16 %v753, %v752
      %v760 = vpack.c.b16 %v755, %v754
      %v761 = vpack.c.b16 %v757, %v756
      %v763 = vsel %vm319, %v758, 0
      %v766 = vsel %vm319, %v759, 0
      %v769 = vsel %vm319, %v760, 0
      %v772 = vsel %vm319, %v761, 0
      %v775 = vsel %vm332, %v749, 0
      %777 = vmatprep.subr.bf16.mxu0 0
      %778 = vmatpush1.bf16.msra.mxu0 0
      %779 = vmatprep.subr.bf16.mxu0 0
      %780 = vmatpush1.bf16.msra.mxu0 0
      %781 = vmatprep.subr.bf16.mxu0 0
      %782 = vmatpush1.bf16.msra.mxu0 0
      %783 = vmatprep.subr.bf16.mxu0 0
      %784 = vmatpush1.bf16.msra.mxu0 0
      %785 = vmatprep.subr.bf16.mxu0 0
      %786 = vmatpush1.bf16.msra.mxu0 0
      %787 = vmatprep.subr.bf16.mxu0 0
      %788 = vmatpush1.bf16.msra.mxu0 0
      %789 = vmatprep.subr.bf16.mxu0 0
      %790 = vmatpush1.bf16.msra.mxu0 0
      %791 = vmatprep.subr.bf16.mxu0 0
      %792 = vmatpush1.bf16.msra.mxu0 %v775
      %793 = vmatprep.subr.bf16.mxu0 0
      %794 = vmatpush2.bf16.msra.mxu0 0
      %795 = vmatprep.subr.bf16.mxu0 0
      %796 = vmatpush2.bf16.msra.mxu0 0
      %797 = vmatprep.subr.bf16.mxu0 0
      %798 = vmatpush2.bf16.msra.mxu0 0
      %799 = vmatprep.subr.bf16.mxu0 0
      %800 = vmatpush2.bf16.msra.mxu0 0
      %801 = vmatprep.subr.bf16.mxu0 0
      %802 = vmatpush2.bf16.msra.mxu0 0
      %803 = vmatprep.subr.bf16.mxu0 0
      %804 = vmatpush2.bf16.msra.mxu0 0
      %805 = vmatprep.subr.bf16.mxu0 0
      %806 = vmatpush2.bf16.msra.mxu0 0
      %807 = vmatprep.subr.bf16.mxu0 0
      %808 = vmatpush2.bf16.msra.mxu0 0
      %809 = vmatprep.mubr.bf16.mxu0 0
      %810 = vmatmul.mubr.bf16.gmra.mxu0 %v763
      %v811 = vpop.f32.mrf.mxu0
      %v812 = vadd.f32 0.0, %v811
      %v813 = vpop.f32.mrf.mxu0
      %v814 = vpop.f32.mrf.mxu0
      %v815 = vadd.f32 0.0, %v814
      %v816 = vpop.f32.mrf.mxu0
      %817 = vmatprep.mubr.bf16.mxu0 0
      %818 = vmatmul.mubr.bf16.gmra.mxu0 %v766
      %v819 = vpop.f32.mrf.mxu0
      %v820 = vadd.f32 0.0, %v819
      %v821 = vpop.f32.mrf.mxu0
      %v822 = vpop.f32.mrf.mxu0
      %v823 = vadd.f32 0.0, %v822
      %v824 = vpop.f32.mrf.mxu0
      %825 = vmatprep.mubr.bf16.mxu0 0
      %826 = vmatmul.mubr.bf16.gmra.mxu0 %v769
      %v827 = vpop.f32.mrf.mxu0
      %v828 = vadd.f32 0.0, %v827
      %v829 = vpop.f32.mrf.mxu0
      %v830 = vpop.f32.mrf.mxu0
      %v831 = vadd.f32 0.0, %v830
      %v832 = vpop.f32.mrf.mxu0
      %833 = vmatprep.mubr.bf16.mxu0 0
      %834 = vmatmul.mubr.bf16.gmra.mxu0 %v772
      %v835 = vpop.f32.mrf.mxu0
      %v836 = vadd.f32 0.0, %v835
      %v837 = vpop.f32.mrf.mxu0
      %v838 = vpop.f32.mrf.mxu0
      %v839 = vadd.f32 0.0, %v838
      %v840 = vpop.f32.mrf.mxu0
      %841 = vdwg.mxu0
      %v842 = vadd.f32 %v612, %v812
      %v843 = vadd.f32 %v613, %v815
      %v844 = vadd.f32 %v614, %v820
      %v845 = vadd.f32 %v615, %v823
      %v846 = vadd.f32 %v616, %v828
      %v847 = vadd.f32 %v617, %v831
      %v848 = vadd.f32 %v618, %v836
      %v849 = vadd.f32 %v619, %v839
      %v851 = vlaneseq
      %v852 = vshrl.u32 %v851, 7
      %v853 = vsub.s32 0, %v852
      %v854 = vrot.slane %v172, %v853
      %v856 = vadd.f32 %v842, %v854
      %v857 = vadd.f32 %v843, %v854
      %v858 = vadd.f32 %v844, %v854
      %v859 = vadd.f32 %v845, %v854
      %v860 = vadd.f32 %v846, %v854
      %v861 = vadd.f32 %v847, %v854
      %v862 = vadd.f32 %v848, %v854
      %v863 = vadd.f32 %v849, %v854
      %v864 = vtanh.pop %v856
      %v865 = vtanh.pop %v857
      %v866 = vtanh.pop %v858
      %v867 = vtanh.pop %v859
      %v868 = vtanh.pop %v860
      %v869 = vtanh.pop %v861
      %v870 = vtanh.pop %v862
      %v871 = vtanh.pop %v863
      %s872 = scalar_lea.vmem %s1, 16
      %v873 = vld [vmem:[%s872] sm:$0xf]
      %v874 = vld [vmem:[%s165] sm:$0xe]
      %v875 = vld [vmem:[%s165 + $0x8] sm:$0xe]
      %v876 = vld [vmem:[%s165 + $0x10] sm:$0xe]
      %v877 = vld [vmem:[%s165 + $0x18] sm:$0xe]
      %v878 = vld [vmem:[%s165 + $0x20] sm:$0xe]
      %v879 = vld [vmem:[%s165 + $0x28] sm:$0xe]
      %v880 = vld [vmem:[%s165 + $0x30] sm:$0xe]
      %v881 = vld [vmem:[%s165 + $0x38] sm:$0xe]
      %vm898 = vcmask 1042432
      %vm899 = vcmask 1046532
      %vm900 = vmor %vm898, %vm899
      %v901 = vrot.slane %v874, 5
      %v902 = vrot.slane %v901, 4
      %v903 = vrot.slane %v182, 5
      %v904 = vsel %vm900, %v902, %v903
      %v905 = vrot.slane %v875, 5
      %v906 = vrot.slane %v905, 4
      %v907 = vrot.slane %v183, 5
      %v908 = vsel %vm900, %v906, %v907
      %v909 = vrot.slane %v876, 5
      %v910 = vrot.slane %v909, 4
      %v911 = vrot.slane %v184, 5
      %v912 = vsel %vm900, %v910, %v911
      %v913 = vrot.slane %v877, 5
      %v914 = vrot.slane %v913, 4
      %v915 = vrot.slane %v185, 5
      %v916 = vsel %vm900, %v914, %v915
      %v917 = vrot.slane %v878, 5
      %v918 = vrot.slane %v917, 4
      %v919 = vrot.slane %v186, 5
      %v920 = vsel %vm900, %v918, %v919
      %v921 = vrot.slane %v879, 5
      %v922 = vrot.slane %v921, 4
      %v923 = vrot.slane %v187, 5
      %v924 = vsel %vm900, %v922, %v923
      %v925 = vrot.slane %v880, 5
      %v926 = vrot.slane %v925, 4
      %v927 = vrot.slane %v188, 5
      %v928 = vsel %vm900, %v926, %v927
      %v929 = vrot.slane %v881, 5
      %v930 = vrot.slane %v929, 4
      %v931 = vrot.slane %v189, 5
      %v932 = vsel %vm900, %v930, %v931
      %s933 = scalar_lea.vmem %s1, 20
      %v934 = vld [vmem:[%s933] sm:$0xf]
      %v935 = vunpack.c.l.b16 %v904
      %v936 = vunpack.c.l.b16 %v908
      %v937 = vunpack.c.l.b16 %v912
      %v938 = vunpack.c.l.b16 %v916
      %v939 = vunpack.c.l.b16 %v920
      %v940 = vunpack.c.l.b16 %v924
      %v941 = vunpack.c.l.b16 %v928
      %v942 = vunpack.c.l.b16 %v932
      %v943 = vpack.c.b16 %v936, %v935
      %v944 = vpack.c.b16 %v938, %v937
      %v945 = vpack.c.b16 %v940, %v939
      %v946 = vpack.c.b16 %v942, %v941
      %v948 = vsel %vm319, %v943, 0
      %v951 = vsel %vm319, %v944, 0
      %v954 = vsel %vm319, %v945, 0
      %v957 = vsel %vm319, %v946, 0
      %v960 = vsel %vm332, %v934, 0
      %962 = vmatprep.subr.bf16.mxu0 0
      %963 = vmatpush1.bf16.msra.mxu0 0
      %964 = vmatprep.subr.bf16.mxu0 0
      %965 = vmatpush1.bf16.msra.mxu0 0
      %966 = vmatprep.subr.bf16.mxu0 0
      %967 = vmatpush1.bf16.msra.mxu0 0
      %968 = vmatprep.subr.bf16.mxu0 0
      %969 = vmatpush1.bf16.msra.mxu0 0
      %970 = vmatprep.subr.bf16.mxu0 0
      %971 = vmatpush1.bf16.msra.mxu0 0
      %972 = vmatprep.subr.bf16.mxu0 0
      %973 = vmatpush1.bf16.msra.mxu0 0
      %974 = vmatprep.subr.bf16.mxu0 0
      %975 = vmatpush1.bf16.msra.mxu0 0
      %976 = vmatprep.subr.bf16.mxu0 0
      %977 = vmatpush1.bf16.msra.mxu0 %v960
      %978 = vmatprep.subr.bf16.mxu0 0
      %979 = vmatpush2.bf16.msra.mxu0 0
      %980 = vmatprep.subr.bf16.mxu0 0
      %981 = vmatpush2.bf16.msra.mxu0 0
      %982 = vmatprep.subr.bf16.mxu0 0
      %983 = vmatpush2.bf16.msra.mxu0 0
      %984 = vmatprep.subr.bf16.mxu0 0
      %985 = vmatpush2.bf16.msra.mxu0 0
      %986 = vmatprep.subr.bf16.mxu0 0
      %987 = vmatpush2.bf16.msra.mxu0 0
      %988 = vmatprep.subr.bf16.mxu0 0
      %989 = vmatpush2.bf16.msra.mxu0 0
      %990 = vmatprep.subr.bf16.mxu0 0
      %991 = vmatpush2.bf16.msra.mxu0 0
      %992 = vmatprep.subr.bf16.mxu0 0
      %993 = vmatpush2.bf16.msra.mxu0 0
      %994 = vmatprep.mubr.bf16.mxu0 0
      %995 = vmatmul.mubr.bf16.gmra.mxu0 %v948
      %v996 = vpop.f32.mrf.mxu0
      %v997 = vadd.f32 0.0, %v996
      %v998 = vpop.f32.mrf.mxu0
      %v999 = vpop.f32.mrf.mxu0
      %v1000 = vadd.f32 0.0, %v999
      %v1001 = vpop.f32.mrf.mxu0
      %1002 = vmatprep.mubr.bf16.mxu0 0
      %1003 = vmatmul.mubr.bf16.gmra.mxu0 %v951
      %v1004 = vpop.f32.mrf.mxu0
      %v1005 = vadd.f32 0.0, %v1004
      %v1006 = vpop.f32.mrf.mxu0
      %v1007 = vpop.f32.mrf.mxu0
      %v1008 = vadd.f32 0.0, %v1007
      %v1009 = vpop.f32.mrf.mxu0
      %1010 = vmatprep.mubr.bf16.mxu0 0
      %1011 = vmatmul.mubr.bf16.gmra.mxu0 %v954
      %v1012 = vpop.f32.mrf.mxu0
      %v1013 = vadd.f32 0.0, %v1012
      %v1014 = vpop.f32.mrf.mxu0
      %v1015 = vpop.f32.mrf.mxu0
      %v1016 = vadd.f32 0.0, %v1015
      %v1017 = vpop.f32.mrf.mxu0
      %1018 = vmatprep.mubr.bf16.mxu0 0
      %1019 = vmatmul.mubr.bf16.gmra.mxu0 %v957
      %v1020 = vpop.f32.mrf.mxu0
      %v1021 = vadd.f32 0.0, %v1020
      %v1022 = vpop.f32.mrf.mxu0
      %v1023 = vpop.f32.mrf.mxu0
      %v1024 = vadd.f32 0.0, %v1023
      %v1025 = vpop.f32.mrf.mxu0
      %1026 = vdwg.mxu0
      %v1028 = vsel %vm332, %v873, 0
      %1030 = vmatprep.subr.bf16.mxu0 0
      %1031 = vmatpush1.bf16.msra.mxu0 0
      %1032 = vmatprep.subr.bf16.mxu0 0
      %1033 = vmatpush1.bf16.msra.mxu0 0
      %1034 = vmatprep.subr.bf16.mxu0 0
      %1035 = vmatpush1.bf16.msra.mxu0 0
      %1036 = vmatprep.subr.bf16.mxu0 0
      %1037 = vmatpush1.bf16.msra.mxu0 0
      %1038 = vmatprep.subr.bf16.mxu0 0
      %1039 = vmatpush1.bf16.msra.mxu0 0
      %1040 = vmatprep.subr.bf16.mxu0 0
      %1041 = vmatpush1.bf16.msra.mxu0 0
      %1042 = vmatprep.subr.bf16.mxu0 0
      %1043 = vmatpush1.bf16.msra.mxu0 0
      %1044 = vmatprep.subr.bf16.mxu0 0
      %1045 = vmatpush1.bf16.msra.mxu0 %v1028
      %1046 = vmatprep.subr.bf16.mxu0 0
      %1047 = vmatpush2.bf16.msra.mxu0 0
      %1048 = vmatprep.subr.bf16.mxu0 0
      %1049 = vmatpush2.bf16.msra.mxu0 0
      %1050 = vmatprep.subr.bf16.mxu0 0
      %1051 = vmatpush2.bf16.msra.mxu0 0
      %1052 = vmatprep.subr.bf16.mxu0 0
      %1053 = vmatpush2.bf16.msra.mxu0 0
      %1054 = vmatprep.subr.bf16.mxu0 0
      %1055 = vmatpush2.bf16.msra.mxu0 0
      %1056 = vmatprep.subr.bf16.mxu0 0
      %1057 = vmatpush2.bf16.msra.mxu0 0
      %1058 = vmatprep.subr.bf16.mxu0 0
      %1059 = vmatpush2.bf16.msra.mxu0 0
      %1060 = vmatprep.subr.bf16.mxu0 0
      %1061 = vmatpush2.bf16.msra.mxu0 0
      %1062 = vmatprep.mubr.bf16.mxu0 0
      %1063 = vmatmul.mubr.bf16.gmra.mxu0 %v321
      %v1064 = vpop.f32.mrf.mxu0
      %v1065 = vadd.f32 %v997, %v1064
      %v1066 = vpop.f32.mrf.mxu0
      %v1067 = vpop.f32.mrf.mxu0
      %v1068 = vadd.f32 %v1000, %v1067
      %v1069 = vpop.f32.mrf.mxu0
      %1070 = vmatprep.mubr.bf16.mxu0 0
      %1071 = vmatmul.mubr.bf16.gmra.mxu0 %v324
      %v1072 = vpop.f32.mrf.mxu0
      %v1073 = vadd.f32 %v1005, %v1072
      %v1074 = vpop.f32.mrf.mxu0
      %v1075 = vpop.f32.mrf.mxu0
      %v1076 = vadd.f32 %v1008, %v1075
      %v1077 = vpop.f32.mrf.mxu0
      %1078 = vmatprep.mubr.bf16.mxu0 0
      %1079 = vmatmul.mubr.bf16.gmra.mxu0 %v327
      %v1080 = vpop.f32.mrf.mxu0
      %v1081 = vadd.f32 %v1013, %v1080
      %v1082 = vpop.f32.mrf.mxu0
      %v1083 = vpop.f32.mrf.mxu0
      %v1084 = vadd.f32 %v1016, %v1083
      %v1085 = vpop.f32.mrf.mxu0
      %1086 = vmatprep.mubr.bf16.mxu0 0
      %1087 = vmatmul.mubr.bf16.gmra.mxu0 %v330
      %v1088 = vpop.f32.mrf.mxu0
      %v1089 = vadd.f32 %v1021, %v1088
      %v1090 = vpop.f32.mrf.mxu0
      %v1091 = vpop.f32.mrf.mxu0
      %v1092 = vadd.f32 %v1024, %v1091
      %v1093 = vpop.f32.mrf.mxu0
      %1094 = vdwg.mxu0
      %s1095 = scalar_lea.vmem %s1, 24
      %v1096 = vld [vmem:[%s1095] sm:$0xf]
      %v1098 = vsel %vm332, %v1096, 0
      %1100 = vmatprep.subr.bf16.mxu0 0
      %1101 = vmatpush1.bf16.msra.mxu0 0
      %1102 = vmatprep.subr.bf16.mxu0 0
      %1103 = vmatpush1.bf16.msra.mxu0 0
      %1104 = vmatprep.subr.bf16.mxu0 0
      %1105 = vmatpush1.bf16.msra.mxu0 0
      %1106 = vmatprep.subr.bf16.mxu0 0
      %1107 = vmatpush1.bf16.msra.mxu0 0
      %1108 = vmatprep.subr.bf16.mxu0 0
      %1109 = vmatpush1.bf16.msra.mxu0 0
      %1110 = vmatprep.subr.bf16.mxu0 0
      %1111 = vmatpush1.bf16.msra.mxu0 0
      %1112 = vmatprep.subr.bf16.mxu0 0
      %1113 = vmatpush1.bf16.msra.mxu0 0
      %1114 = vmatprep.subr.bf16.mxu0 0
      %1115 = vmatpush1.bf16.msra.mxu0 %v1098
      %1116 = vmatprep.subr.bf16.mxu0 0
      %1117 = vmatpush2.bf16.msra.mxu0 0
      %1118 = vmatprep.subr.bf16.mxu0 0
      %1119 = vmatpush2.bf16.msra.mxu0 0
      %1120 = vmatprep.subr.bf16.mxu0 0
      %1121 = vmatpush2.bf16.msra.mxu0 0
      %1122 = vmatprep.subr.bf16.mxu0 0
      %1123 = vmatpush2.bf16.msra.mxu0 0
      %1124 = vmatprep.subr.bf16.mxu0 0
      %1125 = vmatpush2.bf16.msra.mxu0 0
      %1126 = vmatprep.subr.bf16.mxu0 0
      %1127 = vmatpush2.bf16.msra.mxu0 0
      %1128 = vmatprep.subr.bf16.mxu0 0
      %1129 = vmatpush2.bf16.msra.mxu0 0
      %1130 = vmatprep.subr.bf16.mxu0 0
      %1131 = vmatpush2.bf16.msra.mxu0 0
      %1132 = vmatprep.mubr.bf16.mxu0 0
      %1133 = vmatmul.mubr.bf16.gmra.mxu0 %v763
      %v1134 = vpop.f32.mrf.mxu0
      %v1135 = vadd.f32 0.0, %v1134
      %v1136 = vpop.f32.mrf.mxu0
      %v1137 = vpop.f32.mrf.mxu0
      %v1138 = vadd.f32 0.0, %v1137
      %v1139 = vpop.f32.mrf.mxu0
      %1140 = vmatprep.mubr.bf16.mxu0 0
      %1141 = vmatmul.mubr.bf16.gmra.mxu0 %v766
      %v1142 = vpop.f32.mrf.mxu0
      %v1143 = vadd.f32 0.0, %v1142
      %v1144 = vpop.f32.mrf.mxu0
      %v1145 = vpop.f32.mrf.mxu0
      %v1146 = vadd.f32 0.0, %v1145
      %v1147 = vpop.f32.mrf.mxu0
      %1148 = vmatprep.mubr.bf16.mxu0 0
      %1149 = vmatmul.mubr.bf16.gmra.mxu0 %v769
      %v1150 = vpop.f32.mrf.mxu0
      %v1151 = vadd.f32 0.0, %v1150
      %v1152 = vpop.f32.mrf.mxu0
      %v1153 = vpop.f32.mrf.mxu0
      %v1154 = vadd.f32 0.0, %v1153
      %v1155 = vpop.f32.mrf.mxu0
      %1156 = vmatprep.mubr.bf16.mxu0 0
      %1157 = vmatmul.mubr.bf16.gmra.mxu0 %v772
      %v1158 = vpop.f32.mrf.mxu0
      %v1159 = vadd.f32 0.0, %v1158
      %v1160 = vpop.f32.mrf.mxu0
      %v1161 = vpop.f32.mrf.mxu0
      %v1162 = vadd.f32 0.0, %v1161
      %v1163 = vpop.f32.mrf.mxu0
      %1164 = vdwg.mxu0
      %v1165 = vadd.f32 %v1065, %v1135
      %v1166 = vadd.f32 %v1068, %v1138
      %v1167 = vadd.f32 %v1073, %v1143
      %v1168 = vadd.f32 %v1076, %v1146
      %v1169 = vadd.f32 %v1081, %v1151
      %v1170 = vadd.f32 %v1084, %v1154
      %v1171 = vadd.f32 %v1089, %v1159
      %v1172 = vadd.f32 %v1092, %v1162
      %v1173 = vld [vmem:[%s501] sm:$0xe]
      %v1174 = vld [vmem:[%s501 + $0x8] sm:$0xe]
      %v1175 = vld [vmem:[%s501 + $0x10] sm:$0xe]
      %v1176 = vld [vmem:[%s501 + $0x18] sm:$0xe]
      %v1177 = vld [vmem:[%s501 + $0x20] sm:$0xe]
      %v1178 = vld [vmem:[%s501 + $0x28] sm:$0xe]
      %v1179 = vld [vmem:[%s501 + $0x30] sm:$0xe]
      %v1180 = vld [vmem:[%s501 + $0x38] sm:$0xe]
      %v1197 = vrot.slane %v1173, 5
      %v1198 = vrot.slane %v1197, 4
      %v1199 = vrot.slane %v621, 5
      %v1200 = vsel %vm900, %v1198, %v1199
      %v1201 = vrot.slane %v1174, 5
      %v1202 = vrot.slane %v1201, 4
      %v1203 = vrot.slane %v623, 5
      %v1204 = vsel %vm900, %v1202, %v1203
      %v1205 = vrot.slane %v1175, 5
      %v1206 = vrot.slane %v1205, 4
      %v1207 = vrot.slane %v625, 5
      %v1208 = vsel %vm900, %v1206, %v1207
      %v1209 = vrot.slane %v1176, 5
      %v1210 = vrot.slane %v1209, 4
      %v1211 = vrot.slane %v627, 5
      %v1212 = vsel %vm900, %v1210, %v1211
      %v1213 = vrot.slane %v1177, 5
      %v1214 = vrot.slane %v1213, 4
      %v1215 = vrot.slane %v629, 5
      %v1216 = vsel %vm900, %v1214, %v1215
      %v1217 = vrot.slane %v1178, 5
      %v1218 = vrot.slane %v1217, 4
      %v1219 = vrot.slane %v631, 5
      %v1220 = vsel %vm900, %v1218, %v1219
      %v1221 = vrot.slane %v1179, 5
      %v1222 = vrot.slane %v1221, 4
      %v1223 = vrot.slane %v633, 5
      %v1224 = vsel %vm900, %v1222, %v1223
      %v1225 = vrot.slane %v1180, 5
      %v1226 = vrot.slane %v1225, 4
      %v1227 = vrot.slane %v635, 5
      %v1228 = vsel %vm900, %v1226, %v1227
      %s1229 = scalar_lea.vmem %s1, 28
      %v1230 = vld [vmem:[%s1229] sm:$0xf]
      %v1231 = vunpack.c.l.b16 %v1200
      %v1232 = vunpack.c.l.b16 %v1204
      %v1233 = vunpack.c.l.b16 %v1208
      %v1234 = vunpack.c.l.b16 %v1212
      %v1235 = vunpack.c.l.b16 %v1216
      %v1236 = vunpack.c.l.b16 %v1220
      %v1237 = vunpack.c.l.b16 %v1224
      %v1238 = vunpack.c.l.b16 %v1228
      %v1239 = vpack.c.b16 %v1232, %v1231
      %v1240 = vpack.c.b16 %v1234, %v1233
      %v1241 = vpack.c.b16 %v1236, %v1235
      %v1242 = vpack.c.b16 %v1238, %v1237
      %v1244 = vsel %vm319, %v1239, 0
      %v1247 = vsel %vm319, %v1240, 0
      %v1250 = vsel %vm319, %v1241, 0
      %v1253 = vsel %vm319, %v1242, 0
      %v1256 = vsel %vm332, %v1230, 0
      %1258 = vmatprep.subr.bf16.mxu0 0
      %1259 = vmatpush1.bf16.msra.mxu0 0
      %1260 = vmatprep.subr.bf16.mxu0 0
      %1261 = vmatpush1.bf16.msra.mxu0 0
      %1262 = vmatprep.subr.bf16.mxu0 0
      %1263 = vmatpush1.bf16.msra.mxu0 0
      %1264 = vmatprep.subr.bf16.mxu0 0
      %1265 = vmatpush1.bf16.msra.mxu0 0
      %1266 = vmatprep.subr.bf16.mxu0 0
      %1267 = vmatpush1.bf16.msra.mxu0 0
      %1268 = vmatprep.subr.bf16.mxu0 0
      %1269 = vmatpush1.bf16.msra.mxu0 0
      %1270 = vmatprep.subr.bf16.mxu0 0
      %1271 = vmatpush1.bf16.msra.mxu0 0
      %1272 = vmatprep.subr.bf16.mxu0 0
      %1273 = vmatpush1.bf16.msra.mxu0 %v1256
      %1274 = vmatprep.subr.bf16.mxu0 0
      %1275 = vmatpush2.bf16.msra.mxu0 0
      %1276 = vmatprep.subr.bf16.mxu0 0
      %1277 = vmatpush2.bf16.msra.mxu0 0
      %1278 = vmatprep.subr.bf16.mxu0 0
      %1279 = vmatpush2.bf16.msra.mxu0 0
      %1280 = vmatprep.subr.bf16.mxu0 0
      %1281 = vmatpush2.bf16.msra.mxu0 0
      %1282 = vmatprep.subr.bf16.mxu0 0
      %1283 = vmatpush2.bf16.msra.mxu0 0
      %1284 = vmatprep.subr.bf16.mxu0 0
      %1285 = vmatpush2.bf16.msra.mxu0 0
      %1286 = vmatprep.subr.bf16.mxu0 0
      %1287 = vmatpush2.bf16.msra.mxu0 0
      %1288 = vmatprep.subr.bf16.mxu0 0
      %1289 = vmatpush2.bf16.msra.mxu0 0
      %1290 = vmatprep.mubr.bf16.mxu0 0
      %1291 = vmatmul.mubr.bf16.gmra.mxu0 %v1244
      %v1292 = vpop.f32.mrf.mxu0
      %v1293 = vadd.f32 0.0, %v1292
      %v1294 = vpop.f32.mrf.mxu0
      %v1295 = vpop.f32.mrf.mxu0
      %v1296 = vadd.f32 0.0, %v1295
      %v1297 = vpop.f32.mrf.mxu0
      %1298 = vmatprep.mubr.bf16.mxu0 0
      %1299 = vmatmul.mubr.bf16.gmra.mxu0 %v1247
      %v1300 = vpop.f32.mrf.mxu0
      %v1301 = vadd.f32 0.0, %v1300
      %v1302 = vpop.f32.mrf.mxu0
      %v1303 = vpop.f32.mrf.mxu0
      %v1304 = vadd.f32 0.0, %v1303
      %v1305 = vpop.f32.mrf.mxu0
      %1306 = vmatprep.mubr.bf16.mxu0 0
      %1307 = vmatmul.mubr.bf16.gmra.mxu0 %v1250
      %v1308 = vpop.f32.mrf.mxu0
      %v1309 = vadd.f32 0.0, %v1308
      %v1310 = vpop.f32.mrf.mxu0
      %v1311 = vpop.f32.mrf.mxu0
      %v1312 = vadd.f32 0.0, %v1311
      %v1313 = vpop.f32.mrf.mxu0
      %1314 = vmatprep.mubr.bf16.mxu0 0
      %1315 = vmatmul.mubr.bf16.gmra.mxu0 %v1253
      %v1316 = vpop.f32.mrf.mxu0
      %v1317 = vadd.f32 0.0, %v1316
      %v1318 = vpop.f32.mrf.mxu0
      %v1319 = vpop.f32.mrf.mxu0
      %v1320 = vadd.f32 0.0, %v1319
      %v1321 = vpop.f32.mrf.mxu0
      %1322 = vdwg.mxu0
      %v1323 = vadd.f32 %v1165, %v1293
      %v1324 = vadd.f32 %v1166, %v1296
      %v1325 = vadd.f32 %v1167, %v1301
      %v1326 = vadd.f32 %v1168, %v1304
      %v1327 = vadd.f32 %v1169, %v1309
      %v1328 = vadd.f32 %v1170, %v1312
      %v1329 = vadd.f32 %v1171, %v1317
      %v1330 = vadd.f32 %v1172, %v1320
      %v1331 = vadd.f32 %v1323, %v854
      %v1332 = vadd.f32 %v1324, %v854
      %v1333 = vadd.f32 %v1325, %v854
      %v1334 = vadd.f32 %v1326, %v854
      %v1335 = vadd.f32 %v1327, %v854
      %v1336 = vadd.f32 %v1328, %v854
      %v1337 = vadd.f32 %v1329, %v854
      %v1338 = vadd.f32 %v1330, %v854
      %v1339 = vtanh.pop %v1331
      %v1340 = vtanh.pop %v1332
      %v1341 = vtanh.pop %v1333
      %v1342 = vtanh.pop %v1334
      %v1343 = vtanh.pop %v1335
      %v1344 = vtanh.pop %v1336
      %v1345 = vtanh.pop %v1337
      %v1346 = vtanh.pop %v1338
      %s1347 = scalar_lea.vmem %s1, 32
      %v1348 = vld [vmem:[%s1347] sm:$0xf]
      %s1349 = scalar_lea.vmem %s1, 36
      %v1350 = vld [vmem:[%s1349] sm:$0xf]
      %v1352 = vsel %vm332, %v1350, 0
      %1354 = vmatprep.subr.bf16.mxu0 0
      %1355 = vmatpush1.bf16.msra.mxu0 0
      %1356 = vmatprep.subr.bf16.mxu0 0
      %1357 = vmatpush1.bf16.msra.mxu0 0
      %1358 = vmatprep.subr.bf16.mxu0 0
      %1359 = vmatpush1.bf16.msra.mxu0 0
      %1360 = vmatprep.subr.bf16.mxu0 0
      %1361 = vmatpush1.bf16.msra.mxu0 0
      %1362 = vmatprep.subr.bf16.mxu0 0
      %1363 = vmatpush1.bf16.msra.mxu0 0
      %1364 = vmatprep.subr.bf16.mxu0 0
      %1365 = vmatpush1.bf16.msra.mxu0 0
      %1366 = vmatprep.subr.bf16.mxu0 0
      %1367 = vmatpush1.bf16.msra.mxu0 0
      %1368 = vmatprep.subr.bf16.mxu0 0
      %1369 = vmatpush1.bf16.msra.mxu0 %v1352
      %1370 = vmatprep.subr.bf16.mxu0 0
      %1371 = vmatpush2.bf16.msra.mxu0 0
      %1372 = vmatprep.subr.bf16.mxu0 0
      %1373 = vmatpush2.bf16.msra.mxu0 0
      %1374 = vmatprep.subr.bf16.mxu0 0
      %1375 = vmatpush2.bf16.msra.mxu0 0
      %1376 = vmatprep.subr.bf16.mxu0 0
      %1377 = vmatpush2.bf16.msra.mxu0 0
      %1378 = vmatprep.subr.bf16.mxu0 0
      %1379 = vmatpush2.bf16.msra.mxu0 0
      %1380 = vmatprep.subr.bf16.mxu0 0
      %1381 = vmatpush2.bf16.msra.mxu0 0
      %1382 = vmatprep.subr.bf16.mxu0 0
      %1383 = vmatpush2.bf16.msra.mxu0 0
      %1384 = vmatprep.subr.bf16.mxu0 0
      %1385 = vmatpush2.bf16.msra.mxu0 0
      %1386 = vmatprep.mubr.bf16.mxu0 0
      %1387 = vmatmul.mubr.bf16.gmra.mxu0 %v763
      %v1388 = vpop.f32.mrf.mxu0
      %v1389 = vadd.f32 0.0, %v1388
      %v1390 = vpop.f32.mrf.mxu0
      %v1391 = vpop.f32.mrf.mxu0
      %v1392 = vadd.f32 0.0, %v1391
      %v1393 = vpop.f32.mrf.mxu0
      %1394 = vmatprep.mubr.bf16.mxu0 0
      %1395 = vmatmul.mubr.bf16.gmra.mxu0 %v766
      %v1396 = vpop.f32.mrf.mxu0
      %v1397 = vadd.f32 0.0, %v1396
      %v1398 = vpop.f32.mrf.mxu0
      %v1399 = vpop.f32.mrf.mxu0
      %v1400 = vadd.f32 0.0, %v1399
      %v1401 = vpop.f32.mrf.mxu0
      %1402 = vmatprep.mubr.bf16.mxu0 0
      %1403 = vmatmul.mubr.bf16.gmra.mxu0 %v769
      %v1404 = vpop.f32.mrf.mxu0
      %v1405 = vadd.f32 0.0, %v1404
      %v1406 = vpop.f32.mrf.mxu0
      %v1407 = vpop.f32.mrf.mxu0
      %v1408 = vadd.f32 0.0, %v1407
      %v1409 = vpop.f32.mrf.mxu0
      %1410 = vmatprep.mubr.bf16.mxu0 0
      %1411 = vmatmul.mubr.bf16.gmra.mxu0 %v772
      %v1412 = vpop.f32.mrf.mxu0
      %v1413 = vadd.f32 0.0, %v1412
      %v1414 = vpop.f32.mrf.mxu0
      %v1415 = vpop.f32.mrf.mxu0
      %v1416 = vadd.f32 0.0, %v1415
      %v1417 = vpop.f32.mrf.mxu0
      %1418 = vdwg.mxu0
      %v1420 = vsel %vm332, %v1348, 0
      %1422 = vmatprep.subr.bf16.mxu0 0
      %1423 = vmatpush1.bf16.msra.mxu0 0
      %1424 = vmatprep.subr.bf16.mxu0 0
      %1425 = vmatpush1.bf16.msra.mxu0 0
      %1426 = vmatprep.subr.bf16.mxu0 0
      %1427 = vmatpush1.bf16.msra.mxu0 0
      %1428 = vmatprep.subr.bf16.mxu0 0
      %1429 = vmatpush1.bf16.msra.mxu0 0
      %1430 = vmatprep.subr.bf16.mxu0 0
      %1431 = vmatpush1.bf16.msra.mxu0 0
      %1432 = vmatprep.subr.bf16.mxu0 0
      %1433 = vmatpush1.bf16.msra.mxu0 0
      %1434 = vmatprep.subr.bf16.mxu0 0
      %1435 = vmatpush1.bf16.msra.mxu0 0
      %1436 = vmatprep.subr.bf16.mxu0 0
      %1437 = vmatpush1.bf16.msra.mxu0 %v1420
      %1438 = vmatprep.subr.bf16.mxu0 0
      %1439 = vmatpush2.bf16.msra.mxu0 0
      %1440 = vmatprep.subr.bf16.mxu0 0
      %1441 = vmatpush2.bf16.msra.mxu0 0
      %1442 = vmatprep.subr.bf16.mxu0 0
      %1443 = vmatpush2.bf16.msra.mxu0 0
      %1444 = vmatprep.subr.bf16.mxu0 0
      %1445 = vmatpush2.bf16.msra.mxu0 0
      %1446 = vmatprep.subr.bf16.mxu0 0
      %1447 = vmatpush2.bf16.msra.mxu0 0
      %1448 = vmatprep.subr.bf16.mxu0 0
      %1449 = vmatpush2.bf16.msra.mxu0 0
      %1450 = vmatprep.subr.bf16.mxu0 0
      %1451 = vmatpush2.bf16.msra.mxu0 0
      %1452 = vmatprep.subr.bf16.mxu0 0
      %1453 = vmatpush2.bf16.msra.mxu0 0
      %1454 = vmatprep.mubr.bf16.mxu0 0
      %1455 = vmatmul.mubr.bf16.gmra.mxu0 %v533
      %v1456 = vpop.f32.mrf.mxu0
      %v1457 = vadd.f32 %v1389, %v1456
      %v1458 = vpop.f32.mrf.mxu0
      %v1459 = vpop.f32.mrf.mxu0
      %v1460 = vadd.f32 %v1392, %v1459
      %v1461 = vpop.f32.mrf.mxu0
      %1462 = vmatprep.mubr.bf16.mxu0 0
      %1463 = vmatmul.mubr.bf16.gmra.mxu0 %v536
      %v1464 = vpop.f32.mrf.mxu0
      %v1465 = vadd.f32 %v1397, %v1464
      %v1466 = vpop.f32.mrf.mxu0
      %v1467 = vpop.f32.mrf.mxu0
      %v1468 = vadd.f32 %v1400, %v1467
      %v1469 = vpop.f32.mrf.mxu0
      %1470 = vmatprep.mubr.bf16.mxu0 0
      %1471 = vmatmul.mubr.bf16.gmra.mxu0 %v539
      %v1472 = vpop.f32.mrf.mxu0
      %v1473 = vadd.f32 %v1405, %v1472
      %v1474 = vpop.f32.mrf.mxu0
      %v1475 = vpop.f32.mrf.mxu0
      %v1476 = vadd.f32 %v1408, %v1475
      %v1477 = vpop.f32.mrf.mxu0
      %1478 = vmatprep.mubr.bf16.mxu0 0
      %1479 = vmatmul.mubr.bf16.gmra.mxu0 %v542
      %v1480 = vpop.f32.mrf.mxu0
      %v1481 = vadd.f32 %v1413, %v1480
      %v1482 = vpop.f32.mrf.mxu0
      %v1483 = vpop.f32.mrf.mxu0
      %v1484 = vadd.f32 %v1416, %v1483
      %v1485 = vpop.f32.mrf.mxu0
      %1486 = vdwg.mxu0
      %s1487 = scalar_lea.vmem %s165, 16
      %v1488 = vld [vmem:[%s1487] sm:$0xf]
      %v1489 = vld [vmem:[%s1487 + $0x8] sm:$0xf]
      %v1490 = vld [vmem:[%s1487 + $0x10] sm:$0xf]
      %v1491 = vld [vmem:[%s1487 + $0x18] sm:$0xf]
      %v1492 = vld [vmem:[%s1487 + $0x20] sm:$0xf]
      %v1493 = vld [vmem:[%s1487 + $0x28] sm:$0xf]
      %v1494 = vld [vmem:[%s1487 + $0x30] sm:$0xf]
      %v1495 = vld [vmem:[%s1487 + $0x38] sm:$0xf]
      %s1496 = scalar_lea.vmem %s1, 40
      %v1497 = vld [vmem:[%s1496] sm:$0xf]
      %v1506 = vunpack.c.l.b16 %v1488
      %v1507 = vunpack.c.l.b16 %v1489
      %v1508 = vunpack.c.l.b16 %v1490
      %v1509 = vunpack.c.l.b16 %v1491
      %v1510 = vunpack.c.l.b16 %v1492
      %v1511 = vunpack.c.l.b16 %v1493
      %v1512 = vunpack.c.l.b16 %v1494
      %v1513 = vunpack.c.l.b16 %v1495
      %v1514 = vpack.c.b16 %v1507, %v1506
      %v1515 = vpack.c.b16 %v1509, %v1508
      %v1516 = vpack.c.b16 %v1511, %v1510
      %v1517 = vpack.c.b16 %v1513, %v1512
      %v1519 = vsel %vm319, %v1514, 0
      %v1522 = vsel %vm319, %v1515, 0
      %v1525 = vsel %vm319, %v1516, 0
      %v1528 = vsel %vm319, %v1517, 0
      %v1531 = vsel %vm332, %v1497, 0
      %1533 = vmatprep.subr.bf16.mxu0 0
      %1534 = vmatpush1.bf16.msra.mxu0 0
      %1535 = vmatprep.subr.bf16.mxu0 0
      %1536 = vmatpush1.bf16.msra.mxu0 0
      %1537 = vmatprep.subr.bf16.mxu0 0
      %1538 = vmatpush1.bf16.msra.mxu0 0
      %1539 = vmatprep.subr.bf16.mxu0 0
      %1540 = vmatpush1.bf16.msra.mxu0 0
      %1541 = vmatprep.subr.bf16.mxu0 0
      %1542 = vmatpush1.bf16.msra.mxu0 0
      %1543 = vmatprep.subr.bf16.mxu0 0
      %1544 = vmatpush1.bf16.msra.mxu0 0
      %1545 = vmatprep.subr.bf16.mxu0 0
      %1546 = vmatpush1.bf16.msra.mxu0 0
      %1547 = vmatprep.subr.bf16.mxu0 0
      %1548 = vmatpush1.bf16.msra.mxu0 %v1531
      %1549 = vmatprep.subr.bf16.mxu0 0
      %1550 = vmatpush2.bf16.msra.mxu0 0
      %1551 = vmatprep.subr.bf16.mxu0 0
      %1552 = vmatpush2.bf16.msra.mxu0 0
      %1553 = vmatprep.subr.bf16.mxu0 0
      %1554 = vmatpush2.bf16.msra.mxu0 0
      %1555 = vmatprep.subr.bf16.mxu0 0
      %1556 = vmatpush2.bf16.msra.mxu0 0
      %1557 = vmatprep.subr.bf16.mxu0 0
      %1558 = vmatpush2.bf16.msra.mxu0 0
      %1559 = vmatprep.subr.bf16.mxu0 0
      %1560 = vmatpush2.bf16.msra.mxu0 0
      %1561 = vmatprep.subr.bf16.mxu0 0
      %1562 = vmatpush2.bf16.msra.mxu0 0
      %1563 = vmatprep.subr.bf16.mxu0 0
      %1564 = vmatpush2.bf16.msra.mxu0 0
      %1565 = vmatprep.mubr.bf16.mxu0 0
      %1566 = vmatmul.mubr.bf16.gmra.mxu0 %v1519
      %v1567 = vpop.f32.mrf.mxu0
      %v1568 = vadd.f32 0.0, %v1567
      %v1569 = vpop.f32.mrf.mxu0
      %v1570 = vpop.f32.mrf.mxu0
      %v1571 = vadd.f32 0.0, %v1570
      %v1572 = vpop.f32.mrf.mxu0
      %1573 = vmatprep.mubr.bf16.mxu0 0
      %1574 = vmatmul.mubr.bf16.gmra.mxu0 %v1522
      %v1575 = vpop.f32.mrf.mxu0
      %v1576 = vadd.f32 0.0, %v1575
      %v1577 = vpop.f32.mrf.mxu0
      %v1578 = vpop.f32.mrf.mxu0
      %v1579 = vadd.f32 0.0, %v1578
      %v1580 = vpop.f32.mrf.mxu0
      %1581 = vmatprep.mubr.bf16.mxu0 0
      %1582 = vmatmul.mubr.bf16.gmra.mxu0 %v1525
      %v1583 = vpop.f32.mrf.mxu0
      %v1584 = vadd.f32 0.0, %v1583
      %v1585 = vpop.f32.mrf.mxu0
      %v1586 = vpop.f32.mrf.mxu0
      %v1587 = vadd.f32 0.0, %v1586
      %v1588 = vpop.f32.mrf.mxu0
      %1589 = vmatprep.mubr.bf16.mxu0 0
      %1590 = vmatmul.mubr.bf16.gmra.mxu0 %v1528
      %v1591 = vpop.f32.mrf.mxu0
      %v1592 = vadd.f32 0.0, %v1591
      %v1593 = vpop.f32.mrf.mxu0
      %v1594 = vpop.f32.mrf.mxu0
      %v1595 = vadd.f32 0.0, %v1594
      %v1596 = vpop.f32.mrf.mxu0
      %1597 = vdwg.mxu0
      %v1598 = vadd.f32 %v1457, %v1568
      %v1599 = vadd.f32 %v1460, %v1571
      %v1600 = vadd.f32 %v1465, %v1576
      %v1601 = vadd.f32 %v1468, %v1579
      %v1602 = vadd.f32 %v1473, %v1584
      %v1603 = vadd.f32 %v1476, %v1587
      %v1604 = vadd.f32 %v1481, %v1592
      %v1605 = vadd.f32 %v1484, %v1595
      %v1606 = vld [vmem:[%s1487] sm:$0xf]
      %v1607 = vld [vmem:[%s1487 + $0x4] sm:$0x1]
      %v1608 = vld [vmem:[%s1487 + $0x8] sm:$0xf]
      %v1609 = vld [vmem:[%s1487 + $0xc] sm:$0x1]
      %v1610 = vld [vmem:[%s1487 + $0x10] sm:$0xf]
      %v1611 = vld [vmem:[%s1487 + $0x14] sm:$0x1]
      %v1612 = vld [vmem:[%s1487 + $0x18] sm:$0xf]
      %v1613 = vld [vmem:[%s1487 + $0x1c] sm:$0x1]
      %v1614 = vld [vmem:[%s1487 + $0x20] sm:$0xf]
      %v1615 = vld [vmem:[%s1487 + $0x24] sm:$0x1]
      %v1616 = vld [vmem:[%s1487 + $0x28] sm:$0xf]
      %v1617 = vld [vmem:[%s1487 + $0x2c] sm:$0x1]
      %v1618 = vld [vmem:[%s1487 + $0x30] sm:$0xf]
      %v1619 = vld [vmem:[%s1487 + $0x34] sm:$0x1]
      %v1620 = vld [vmem:[%s1487 + $0x38] sm:$0xf]
      %v1621 = vld [vmem:[%s1487 + $0x3c] sm:$0x1]
      %v1623 = vshrl.u32 %v1606, 16
      %v1625 = vrot.slane %v1623, 4
      %v1626 = vshll.u32 %v1606, 16
      %v1628 = vrot.slane %v1626, 5
      %v1629 = vor.u32 %v1625, %v1628
      %v1630 = vrot.slane %v1629, 4
      %v1632 = vshll.u32 %v1607, 16
      %v1634 = vrot.slane %v1632, 5
      %v1635 = vsel %vm192, %v1630, %v1634
      %v1637 = vshrl.u32 %v1608, 16
      %v1639 = vrot.slane %v1637, 4
      %v1640 = vshll.u32 %v1608, 16
      %v1642 = vrot.slane %v1640, 5
      %v1643 = vor.u32 %v1639, %v1642
      %v1644 = vrot.slane %v1643, 4
      %v1646 = vshll.u32 %v1609, 16
      %v1648 = vrot.slane %v1646, 5
      %v1649 = vsel %vm192, %v1644, %v1648
      %v1651 = vshrl.u32 %v1610, 16
      %v1653 = vrot.slane %v1651, 4
      %v1654 = vshll.u32 %v1610, 16
      %v1656 = vrot.slane %v1654, 5
      %v1657 = vor.u32 %v1653, %v1656
      %v1658 = vrot.slane %v1657, 4
      %v1660 = vshll.u32 %v1611, 16
      %v1662 = vrot.slane %v1660, 5
      %v1663 = vsel %vm192, %v1658, %v1662
      %v1665 = vshrl.u32 %v1612, 16
      %v1667 = vrot.slane %v1665, 4
      %v1668 = vshll.u32 %v1612, 16
      %v1670 = vrot.slane %v1668, 5
      %v1671 = vor.u32 %v1667, %v1670
      %v1672 = vrot.slane %v1671, 4
      %v1674 = vshll.u32 %v1613, 16
      %v1676 = vrot.slane %v1674, 5
      %v1677 = vsel %vm192, %v1672, %v1676
      %v1679 = vshrl.u32 %v1614, 16
      %v1681 = vrot.slane %v1679, 4
      %v1682 = vshll.u32 %v1614, 16
      %v1684 = vrot.slane %v1682, 5
      %v1685 = vor.u32 %v1681, %v1684
      %v1686 = vrot.slane %v1685, 4
      %v1688 = vshll.u32 %v1615, 16
      %v1690 = vrot.slane %v1688, 5
      %v1691 = vsel %vm192, %v1686, %v1690
      %v1693 = vshrl.u32 %v1616, 16
      %v1695 = vrot.slane %v1693, 4
      %v1696 = vshll.u32 %v1616, 16
      %v1698 = vrot.slane %v1696, 5
      %v1699 = vor.u32 %v1695, %v1698
      %v1700 = vrot.slane %v1699, 4
      %v1702 = vshll.u32 %v1617, 16
      %v1704 = vrot.slane %v1702, 5
      %v1705 = vsel %vm192, %v1700, %v1704
      %v1707 = vshrl.u32 %v1618, 16
      %v1709 = vrot.slane %v1707, 4
      %v1710 = vshll.u32 %v1618, 16
      %v1712 = vrot.slane %v1710, 5
      %v1713 = vor.u32 %v1709, %v1712
      %v1714 = vrot.slane %v1713, 4
      %v1716 = vshll.u32 %v1619, 16
      %v1718 = vrot.slane %v1716, 5
      %v1719 = vsel %vm192, %v1714, %v1718
      %v1721 = vshrl.u32 %v1620, 16
      %v1723 = vrot.slane %v1721, 4
      %v1724 = vshll.u32 %v1620, 16
      %v1726 = vrot.slane %v1724, 5
      %v1727 = vor.u32 %v1723, %v1726
      %v1728 = vrot.slane %v1727, 4
      %v1730 = vshll.u32 %v1621, 16
      %v1732 = vrot.slane %v1730, 5
      %v1733 = vsel %vm192, %v1728, %v1732
      %s1734 = scalar_lea.vmem %s1, 44
      %v1735 = vld [vmem:[%s1734] sm:$0xf]
      %v1736 = vunpack.c.l.b16 %v1635
      %v1737 = vunpack.c.l.b16 %v1649
      %v1738 = vunpack.c.l.b16 %v1663
      %v1739 = vunpack.c.l.b16 %v1677
      %v1740 = vunpack.c.l.b16 %v1691
      %v1741 = vunpack.c.l.b16 %v1705
      %v1742 = vunpack.c.l.b16 %v1719
      %v1743 = vunpack.c.l.b16 %v1733
      %v1744 = vpack.c.b16 %v1737, %v1736
      %v1745 = vpack.c.b16 %v1739, %v1738
      %v1746 = vpack.c.b16 %v1741, %v1740
      %v1747 = vpack.c.b16 %v1743, %v1742
      %v1749 = vsel %vm319, %v1744, 0
      %v1752 = vsel %vm319, %v1745, 0
      %v1755 = vsel %vm319, %v1746, 0
      %v1758 = vsel %vm319, %v1747, 0
      %v1761 = vsel %vm332, %v1735, 0
      %1763 = vmatprep.subr.bf16.mxu0 0
      %1764 = vmatpush1.bf16.msra.mxu0 0
      %1765 = vmatprep.subr.bf16.mxu0 0
      %1766 = vmatpush1.bf16.msra.mxu0 0
      %1767 = vmatprep.subr.bf16.mxu0 0
      %1768 = vmatpush1.bf16.msra.mxu0 0
      %1769 = vmatprep.subr.bf16.mxu0 0
      %1770 = vmatpush1.bf16.msra.mxu0 0
      %1771 = vmatprep.subr.bf16.mxu0 0
      %1772 = vmatpush1.bf16.msra.mxu0 0
      %1773 = vmatprep.subr.bf16.mxu0 0
      %1774 = vmatpush1.bf16.msra.mxu0 0
      %1775 = vmatprep.subr.bf16.mxu0 0
      %1776 = vmatpush1.bf16.msra.mxu0 0
      %1777 = vmatprep.subr.bf16.mxu0 0
      %1778 = vmatpush1.bf16.msra.mxu0 %v1761
      %1779 = vmatprep.subr.bf16.mxu0 0
      %1780 = vmatpush2.bf16.msra.mxu0 0
      %1781 = vmatprep.subr.bf16.mxu0 0
      %1782 = vmatpush2.bf16.msra.mxu0 0
      %1783 = vmatprep.subr.bf16.mxu0 0
      %1784 = vmatpush2.bf16.msra.mxu0 0
      %1785 = vmatprep.subr.bf16.mxu0 0
      %1786 = vmatpush2.bf16.msra.mxu0 0
      %1787 = vmatprep.subr.bf16.mxu0 0
      %1788 = vmatpush2.bf16.msra.mxu0 0
      %1789 = vmatprep.subr.bf16.mxu0 0
      %1790 = vmatpush2.bf16.msra.mxu0 0
      %1791 = vmatprep.subr.bf16.mxu0 0
      %1792 = vmatpush2.bf16.msra.mxu0 0
      %1793 = vmatprep.subr.bf16.mxu0 0
      %1794 = vmatpush2.bf16.msra.mxu0 0
      %1795 = vmatprep.mubr.bf16.mxu0 0
      %1796 = vmatmul.mubr.bf16.gmra.mxu0 %v1749
      %v1797 = vpop.f32.mrf.mxu0
      %v1798 = vadd.f32 0.0, %v1797
      %v1799 = vpop.f32.mrf.mxu0
      %v1800 = vpop.f32.mrf.mxu0
      %v1801 = vadd.f32 0.0, %v1800
      %v1802 = vpop.f32.mrf.mxu0
      %1803 = vmatprep.mubr.bf16.mxu0 0
      %1804 = vmatmul.mubr.bf16.gmra.mxu0 %v1752
      %v1805 = vpop.f32.mrf.mxu0
      %v1806 = vadd.f32 0.0, %v1805
      %v1807 = vpop.f32.mrf.mxu0
      %v1808 = vpop.f32.mrf.mxu0
      %v1809 = vadd.f32 0.0, %v1808
      %v1810 = vpop.f32.mrf.mxu0
      %1811 = vmatprep.mubr.bf16.mxu0 0
      %1812 = vmatmul.mubr.bf16.gmra.mxu0 %v1755
      %v1813 = vpop.f32.mrf.mxu0
      %v1814 = vadd.f32 0.0, %v1813
      %v1815 = vpop.f32.mrf.mxu0
      %v1816 = vpop.f32.mrf.mxu0
      %v1817 = vadd.f32 0.0, %v1816
      %v1818 = vpop.f32.mrf.mxu0
      %1819 = vmatprep.mubr.bf16.mxu0 0
      %1820 = vmatmul.mubr.bf16.gmra.mxu0 %v1758
      %v1821 = vpop.f32.mrf.mxu0
      %v1822 = vadd.f32 0.0, %v1821
      %v1823 = vpop.f32.mrf.mxu0
      %v1824 = vpop.f32.mrf.mxu0
      %v1825 = vadd.f32 0.0, %v1824
      %v1826 = vpop.f32.mrf.mxu0
      %1827 = vdwg.mxu0
      %v1828 = vadd.f32 %v1598, %v1798
      %v1829 = vadd.f32 %v1599, %v1801
      %v1830 = vadd.f32 %v1600, %v1806
      %v1831 = vadd.f32 %v1601, %v1809
      %v1832 = vadd.f32 %v1602, %v1814
      %v1833 = vadd.f32 %v1603, %v1817
      %v1834 = vadd.f32 %v1604, %v1822
      %v1835 = vadd.f32 %v1605, %v1825
      %v1836 = vadd.f32 %v1828, %v854
      %v1837 = vadd.f32 %v1829, %v854
      %v1838 = vadd.f32 %v1830, %v854
      %v1839 = vadd.f32 %v1831, %v854
      %v1840 = vadd.f32 %v1832, %v854
      %v1841 = vadd.f32 %v1833, %v854
      %v1842 = vadd.f32 %v1834, %v854
      %v1843 = vadd.f32 %v1835, %v854
      %v1844 = vtanh.pop %v1836
      %v1845 = vtanh.pop %v1837
      %v1846 = vtanh.pop %v1838
      %v1847 = vtanh.pop %v1839
      %v1848 = vtanh.pop %v1840
      %v1849 = vtanh.pop %v1841
      %v1850 = vtanh.pop %v1842
      %v1851 = vtanh.pop %v1843
      %s1852 = scalar_lea.vmem %s1, 48
      %v1853 = vld [vmem:[%s1852] sm:$0xf]
      %s1854 = scalar_lea.vmem %s1, 52
      %v1855 = vld [vmem:[%s1854] sm:$0xf]
      %v1857 = vsel %vm332, %v1855, 0
      %1859 = vmatprep.subr.bf16.mxu0 0
      %1860 = vmatpush1.bf16.msra.mxu0 0
      %1861 = vmatprep.subr.bf16.mxu0 0
      %1862 = vmatpush1.bf16.msra.mxu0 0
      %1863 = vmatprep.subr.bf16.mxu0 0
      %1864 = vmatpush1.bf16.msra.mxu0 0
      %1865 = vmatprep.subr.bf16.mxu0 0
      %1866 = vmatpush1.bf16.msra.mxu0 0
      %1867 = vmatprep.subr.bf16.mxu0 0
      %1868 = vmatpush1.bf16.msra.mxu0 0
      %1869 = vmatprep.subr.bf16.mxu0 0
      %1870 = vmatpush1.bf16.msra.mxu0 0
      %1871 = vmatprep.subr.bf16.mxu0 0
      %1872 = vmatpush1.bf16.msra.mxu0 0
      %1873 = vmatprep.subr.bf16.mxu0 0
      %1874 = vmatpush1.bf16.msra.mxu0 %v1857
      %1875 = vmatprep.subr.bf16.mxu0 0
      %1876 = vmatpush2.bf16.msra.mxu0 0
      %1877 = vmatprep.subr.bf16.mxu0 0
      %1878 = vmatpush2.bf16.msra.mxu0 0
      %1879 = vmatprep.subr.bf16.mxu0 0
      %1880 = vmatpush2.bf16.msra.mxu0 0
      %1881 = vmatprep.subr.bf16.mxu0 0
      %1882 = vmatpush2.bf16.msra.mxu0 0
      %1883 = vmatprep.subr.bf16.mxu0 0
      %1884 = vmatpush2.bf16.msra.mxu0 0
      %1885 = vmatprep.subr.bf16.mxu0 0
      %1886 = vmatpush2.bf16.msra.mxu0 0
      %1887 = vmatprep.subr.bf16.mxu0 0
      %1888 = vmatpush2.bf16.msra.mxu0 0
      %1889 = vmatprep.subr.bf16.mxu0 0
      %1890 = vmatpush2.bf16.msra.mxu0 0
      %1891 = vmatprep.mubr.bf16.mxu0 0
      %1892 = vmatmul.mubr.bf16.gmra.mxu0 %v1244
      %v1893 = vpop.f32.mrf.mxu0
      %v1894 = vadd.f32 0.0, %v1893
      %v1895 = vpop.f32.mrf.mxu0
      %v1896 = vpop.f32.mrf.mxu0
      %v1897 = vadd.f32 0.0, %v1896
      %v1898 = vpop.f32.mrf.mxu0
      %1899 = vmatprep.mubr.bf16.mxu0 0
      %1900 = vmatmul.mubr.bf16.gmra.mxu0 %v1247
      %v1901 = vpop.f32.mrf.mxu0
      %v1902 = vadd.f32 0.0, %v1901
      %v1903 = vpop.f32.mrf.mxu0
      %v1904 = vpop.f32.mrf.mxu0
      %v1905 = vadd.f32 0.0, %v1904
      %v1906 = vpop.f32.mrf.mxu0
      %1907 = vmatprep.mubr.bf16.mxu0 0
      %1908 = vmatmul.mubr.bf16.gmra.mxu0 %v1250
      %v1909 = vpop.f32.mrf.mxu0
      %v1910 = vadd.f32 0.0, %v1909
      %v1911 = vpop.f32.mrf.mxu0
      %v1912 = vpop.f32.mrf.mxu0
      %v1913 = vadd.f32 0.0, %v1912
      %v1914 = vpop.f32.mrf.mxu0
      %1915 = vmatprep.mubr.bf16.mxu0 0
      %1916 = vmatmul.mubr.bf16.gmra.mxu0 %v1253
      %v1917 = vpop.f32.mrf.mxu0
      %v1918 = vadd.f32 0.0, %v1917
      %v1919 = vpop.f32.mrf.mxu0
      %v1920 = vpop.f32.mrf.mxu0
      %v1921 = vadd.f32 0.0, %v1920
      %v1922 = vpop.f32.mrf.mxu0
      %1923 = vdwg.mxu0
      %v1925 = vsel %vm332, %v1853, 0
      %1927 = vmatprep.subr.bf16.mxu0 0
      %1928 = vmatpush1.bf16.msra.mxu0 0
      %1929 = vmatprep.subr.bf16.mxu0 0
      %1930 = vmatpush1.bf16.msra.mxu0 0
      %1931 = vmatprep.subr.bf16.mxu0 0
      %1932 = vmatpush1.bf16.msra.mxu0 0
      %1933 = vmatprep.subr.bf16.mxu0 0
      %1934 = vmatpush1.bf16.msra.mxu0 0
      %1935 = vmatprep.subr.bf16.mxu0 0
      %1936 = vmatpush1.bf16.msra.mxu0 0
      %1937 = vmatprep.subr.bf16.mxu0 0
      %1938 = vmatpush1.bf16.msra.mxu0 0
      %1939 = vmatprep.subr.bf16.mxu0 0
      %1940 = vmatpush1.bf16.msra.mxu0 0
      %1941 = vmatprep.subr.bf16.mxu0 0
      %1942 = vmatpush1.bf16.msra.mxu0 %v1925
      %1943 = vmatprep.subr.bf16.mxu0 0
      %1944 = vmatpush2.bf16.msra.mxu0 0
      %1945 = vmatprep.subr.bf16.mxu0 0
      %1946 = vmatpush2.bf16.msra.mxu0 0
      %1947 = vmatprep.subr.bf16.mxu0 0
      %1948 = vmatpush2.bf16.msra.mxu0 0
      %1949 = vmatprep.subr.bf16.mxu0 0
      %1950 = vmatpush2.bf16.msra.mxu0 0
      %1951 = vmatprep.subr.bf16.mxu0 0
      %1952 = vmatpush2.bf16.msra.mxu0 0
      %1953 = vmatprep.subr.bf16.mxu0 0
      %1954 = vmatpush2.bf16.msra.mxu0 0
      %1955 = vmatprep.subr.bf16.mxu0 0
      %1956 = vmatpush2.bf16.msra.mxu0 0
      %1957 = vmatprep.subr.bf16.mxu0 0
      %1958 = vmatpush2.bf16.msra.mxu0 0
      %1959 = vmatprep.mubr.bf16.mxu0 0
      %1960 = vmatmul.mubr.bf16.gmra.mxu0 %v763
      %v1961 = vpop.f32.mrf.mxu0
      %v1962 = vadd.f32 %v1894, %v1961
      %v1963 = vpop.f32.mrf.mxu0
      %v1964 = vpop.f32.mrf.mxu0
      %v1965 = vadd.f32 %v1897, %v1964
      %v1966 = vpop.f32.mrf.mxu0
      %1967 = vmatprep.mubr.bf16.mxu0 0
      %1968 = vmatmul.mubr.bf16.gmra.mxu0 %v766
      %v1969 = vpop.f32.mrf.mxu0
      %v1970 = vadd.f32 %v1902, %v1969
      %v1971 = vpop.f32.mrf.mxu0
      %v1972 = vpop.f32.mrf.mxu0
      %v1973 = vadd.f32 %v1905, %v1972
      %v1974 = vpop.f32.mrf.mxu0
      %1975 = vmatprep.mubr.bf16.mxu0 0
      %1976 = vmatmul.mubr.bf16.gmra.mxu0 %v769
      %v1977 = vpop.f32.mrf.mxu0
      %v1978 = vadd.f32 %v1910, %v1977
      %v1979 = vpop.f32.mrf.mxu0
      %v1980 = vpop.f32.mrf.mxu0
      %v1981 = vadd.f32 %v1913, %v1980
      %v1982 = vpop.f32.mrf.mxu0
      %1983 = vmatprep.mubr.bf16.mxu0 0
      %1984 = vmatmul.mubr.bf16.gmra.mxu0 %v772
      %v1985 = vpop.f32.mrf.mxu0
      %v1986 = vadd.f32 %v1918, %v1985
      %v1987 = vpop.f32.mrf.mxu0
      %v1988 = vpop.f32.mrf.mxu0
      %v1989 = vadd.f32 %v1921, %v1988
      %v1990 = vpop.f32.mrf.mxu0
      %1991 = vdwg.mxu0
      %s1992 = scalar_lea.vmem %s1, 56
      %v1993 = vld [vmem:[%s1992] sm:$0xf]
      %v1995 = vsel %vm332, %v1993, 0
      %1997 = vmatprep.subr.bf16.mxu0 0
      %1998 = vmatpush1.bf16.msra.mxu0 0
      %1999 = vmatprep.subr.bf16.mxu0 0
      %2000 = vmatpush1.bf16.msra.mxu0 0
      %2001 = vmatprep.subr.bf16.mxu0 0
      %2002 = vmatpush1.bf16.msra.mxu0 0
      %2003 = vmatprep.subr.bf16.mxu0 0
      %2004 = vmatpush1.bf16.msra.mxu0 0
      %2005 = vmatprep.subr.bf16.mxu0 0
      %2006 = vmatpush1.bf16.msra.mxu0 0
      %2007 = vmatprep.subr.bf16.mxu0 0
      %2008 = vmatpush1.bf16.msra.mxu0 0
      %2009 = vmatprep.subr.bf16.mxu0 0
      %2010 = vmatpush1.bf16.msra.mxu0 0
      %2011 = vmatprep.subr.bf16.mxu0 0
      %2012 = vmatpush1.bf16.msra.mxu0 %v1995
      %2013 = vmatprep.subr.bf16.mxu0 0
      %2014 = vmatpush2.bf16.msra.mxu0 0
      %2015 = vmatprep.subr.bf16.mxu0 0
      %2016 = vmatpush2.bf16.msra.mxu0 0
      %2017 = vmatprep.subr.bf16.mxu0 0
      %2018 = vmatpush2.bf16.msra.mxu0 0
      %2019 = vmatprep.subr.bf16.mxu0 0
      %2020 = vmatpush2.bf16.msra.mxu0 0
      %2021 = vmatprep.subr.bf16.mxu0 0
      %2022 = vmatpush2.bf16.msra.mxu0 0
      %2023 = vmatprep.subr.bf16.mxu0 0
      %2024 = vmatpush2.bf16.msra.mxu0 0
      %2025 = vmatprep.subr.bf16.mxu0 0
      %2026 = vmatpush2.bf16.msra.mxu0 0
      %2027 = vmatprep.subr.bf16.mxu0 0
      %2028 = vmatpush2.bf16.msra.mxu0 0
      %2029 = vmatprep.mubr.bf16.mxu0 0
      %2030 = vmatmul.mubr.bf16.gmra.mxu0 %v1749
      %v2031 = vpop.f32.mrf.mxu0
      %v2032 = vadd.f32 0.0, %v2031
      %v2033 = vpop.f32.mrf.mxu0
      %v2034 = vpop.f32.mrf.mxu0
      %v2035 = vadd.f32 0.0, %v2034
      %v2036 = vpop.f32.mrf.mxu0
      %2037 = vmatprep.mubr.bf16.mxu0 0
      %2038 = vmatmul.mubr.bf16.gmra.mxu0 %v1752
      %v2039 = vpop.f32.mrf.mxu0
      %v2040 = vadd.f32 0.0, %v2039
      %v2041 = vpop.f32.mrf.mxu0
      %v2042 = vpop.f32.mrf.mxu0
      %v2043 = vadd.f32 0.0, %v2042
      %v2044 = vpop.f32.mrf.mxu0
      %2045 = vmatprep.mubr.bf16.mxu0 0
      %2046 = vmatmul.mubr.bf16.gmra.mxu0 %v1755
      %v2047 = vpop.f32.mrf.mxu0
      %v2048 = vadd.f32 0.0, %v2047
      %v2049 = vpop.f32.mrf.mxu0
      %v2050 = vpop.f32.mrf.mxu0
      %v2051 = vadd.f32 0.0, %v2050
      %v2052 = vpop.f32.mrf.mxu0
      %2053 = vmatprep.mubr.bf16.mxu0 0
      %2054 = vmatmul.mubr.bf16.gmra.mxu0 %v1758
      %v2055 = vpop.f32.mrf.mxu0
      %v2056 = vadd.f32 0.0, %v2055
      %v2057 = vpop.f32.mrf.mxu0
      %v2058 = vpop.f32.mrf.mxu0
      %v2059 = vadd.f32 0.0, %v2058
      %v2060 = vpop.f32.mrf.mxu0
      %2061 = vdwg.mxu0
      %v2062 = vadd.f32 %v1962, %v2032
      %v2063 = vadd.f32 %v1965, %v2035
      %v2064 = vadd.f32 %v1970, %v2040
      %v2065 = vadd.f32 %v1973, %v2043
      %v2066 = vadd.f32 %v1978, %v2048
      %v2067 = vadd.f32 %v1981, %v2051
      %v2068 = vadd.f32 %v1986, %v2056
      %v2069 = vadd.f32 %v1989, %v2059
      %v2070 = vld [vmem:[%s1487] sm:$0xe]
      %v2071 = vld [vmem:[%s1487 + $0x8] sm:$0xe]
      %v2072 = vld [vmem:[%s1487 + $0x10] sm:$0xe]
      %v2073 = vld [vmem:[%s1487 + $0x18] sm:$0xe]
      %v2074 = vld [vmem:[%s1487 + $0x20] sm:$0xe]
      %v2075 = vld [vmem:[%s1487 + $0x28] sm:$0xe]
      %v2076 = vld [vmem:[%s1487 + $0x30] sm:$0xe]
      %v2077 = vld [vmem:[%s1487 + $0x38] sm:$0xe]
      %v2094 = vrot.slane %v2070, 5
      %v2095 = vrot.slane %v2094, 4
      %v2096 = vrot.slane %v1607, 5
      %v2097 = vsel %vm900, %v2095, %v2096
      %v2098 = vrot.slane %v2071, 5
      %v2099 = vrot.slane %v2098, 4
      %v2100 = vrot.slane %v1609, 5
      %v2101 = vsel %vm900, %v2099, %v2100
      %v2102 = vrot.slane %v2072, 5
      %v2103 = vrot.slane %v2102, 4
      %v2104 = vrot.slane %v1611, 5
      %v2105 = vsel %vm900, %v2103, %v2104
      %v2106 = vrot.slane %v2073, 5
      %v2107 = vrot.slane %v2106, 4
      %v2108 = vrot.slane %v1613, 5
      %v2109 = vsel %vm900, %v2107, %v2108
      %v2110 = vrot.slane %v2074, 5
      %v2111 = vrot.slane %v2110, 4
      %v2112 = vrot.slane %v1615, 5
      %v2113 = vsel %vm900, %v2111, %v2112
      %v2114 = vrot.slane %v2075, 5
      %v2115 = vrot.slane %v2114, 4
      %v2116 = vrot.slane %v1617, 5
      %v2117 = vsel %vm900, %v2115, %v2116
      %v2118 = vrot.slane %v2076, 5
      %v2119 = vrot.slane %v2118, 4
      %v2120 = vrot.slane %v1619, 5
      %v2121 = vsel %vm900, %v2119, %v2120
      %v2122 = vrot.slane %v2077, 5
      %v2123 = vrot.slane %v2122, 4
      %v2124 = vrot.slane %v1621, 5
      %v2125 = vsel %vm900, %v2123, %v2124
      %s2126 = scalar_lea.vmem %s1, 60
      %v2127 = vld [vmem:[%s2126] sm:$0xf]
      %v2128 = vunpack.c.l.b16 %v2097
      %v2129 = vunpack.c.l.b16 %v2101
      %v2130 = vunpack.c.l.b16 %v2105
      %v2131 = vunpack.c.l.b16 %v2109
      %v2132 = vunpack.c.l.b16 %v2113
      %v2133 = vunpack.c.l.b16 %v2117
      %v2134 = vunpack.c.l.b16 %v2121
      %v2135 = vunpack.c.l.b16 %v2125
      %v2136 = vpack.c.b16 %v2129, %v2128
      %v2137 = vpack.c.b16 %v2131, %v2130
      %v2138 = vpack.c.b16 %v2133, %v2132
      %v2139 = vpack.c.b16 %v2135, %v2134
      %v2141 = vsel %vm319, %v2136, 0
      %v2144 = vsel %vm319, %v2137, 0
      %v2147 = vsel %vm319, %v2138, 0
      %v2150 = vsel %vm319, %v2139, 0
      %v2153 = vsel %vm332, %v2127, 0
      %2155 = vmatprep.subr.bf16.mxu0 0
      %2156 = vmatpush1.bf16.msra.mxu0 0
      %2157 = vmatprep.subr.bf16.mxu0 0
      %2158 = vmatpush1.bf16.msra.mxu0 0
      %2159 = vmatprep.subr.bf16.mxu0 0
      %2160 = vmatpush1.bf16.msra.mxu0 0
      %2161 = vmatprep.subr.bf16.mxu0 0
      %2162 = vmatpush1.bf16.msra.mxu0 0
      %2163 = vmatprep.subr.bf16.mxu0 0
      %2164 = vmatpush1.bf16.msra.mxu0 0
      %2165 = vmatprep.subr.bf16.mxu0 0
      %2166 = vmatpush1.bf16.msra.mxu0 0
      %2167 = vmatprep.subr.bf16.mxu0 0
      %2168 = vmatpush1.bf16.msra.mxu0 0
      %2169 = vmatprep.subr.bf16.mxu0 0
      %2170 = vmatpush1.bf16.msra.mxu0 %v2153
      %2171 = vmatprep.subr.bf16.mxu0 0
      %2172 = vmatpush2.bf16.msra.mxu0 0
      %2173 = vmatprep.subr.bf16.mxu0 0
      %2174 = vmatpush2.bf16.msra.mxu0 0
      %2175 = vmatprep.subr.bf16.mxu0 0
      %2176 = vmatpush2.bf16.msra.mxu0 0
      %2177 = vmatprep.subr.bf16.mxu0 0
      %2178 = vmatpush2.bf16.msra.mxu0 0
      %2179 = vmatprep.subr.bf16.mxu0 0
      %2180 = vmatpush2.bf16.msra.mxu0 0
      %2181 = vmatprep.subr.bf16.mxu0 0
      %2182 = vmatpush2.bf16.msra.mxu0 0
      %2183 = vmatprep.subr.bf16.mxu0 0
      %2184 = vmatpush2.bf16.msra.mxu0 0
      %2185 = vmatprep.subr.bf16.mxu0 0
      %2186 = vmatpush2.bf16.msra.mxu0 0
      %2187 = vmatprep.mubr.bf16.mxu0 0
      %2188 = vmatmul.mubr.bf16.gmra.mxu0 %v2141
      %v2189 = vpop.f32.mrf.mxu0
      %v2190 = vadd.f32 0.0, %v2189
      %v2191 = vpop.f32.mrf.mxu0
      %v2192 = vpop.f32.mrf.mxu0
      %v2193 = vadd.f32 0.0, %v2192
      %v2194 = vpop.f32.mrf.mxu0
      %2195 = vmatprep.mubr.bf16.mxu0 0
      %2196 = vmatmul.mubr.bf16.gmra.mxu0 %v2144
      %v2197 = vpop.f32.mrf.mxu0
      %v2198 = vadd.f32 0.0, %v2197
      %v2199 = vpop.f32.mrf.mxu0
      %v2200 = vpop.f32.mrf.mxu0
      %v2201 = vadd.f32 0.0, %v2200
      %v2202 = vpop.f32.mrf.mxu0
      %2203 = vmatprep.mubr.bf16.mxu0 0
      %2204 = vmatmul.mubr.bf16.gmra.mxu0 %v2147
      %v2205 = vpop.f32.mrf.mxu0
      %v2206 = vadd.f32 0.0, %v2205
      %v2207 = vpop.f32.mrf.mxu0
      %v2208 = vpop.f32.mrf.mxu0
      %v2209 = vadd.f32 0.0, %v2208
      %v2210 = vpop.f32.mrf.mxu0
      %2211 = vmatprep.mubr.bf16.mxu0 0
      %2212 = vmatmul.mubr.bf16.gmra.mxu0 %v2150
      %v2213 = vpop.f32.mrf.mxu0
      %v2214 = vadd.f32 0.0, %v2213
      %v2215 = vpop.f32.mrf.mxu0
      %v2216 = vpop.f32.mrf.mxu0
      %v2217 = vadd.f32 0.0, %v2216
      %v2218 = vpop.f32.mrf.mxu0
      %2219 = vdwg.mxu0
      %v2220 = vadd.f32 %v2062, %v2190
      %v2221 = vadd.f32 %v2063, %v2193
      %v2222 = vadd.f32 %v2064, %v2198
      %v2223 = vadd.f32 %v2065, %v2201
      %v2224 = vadd.f32 %v2066, %v2206
      %v2225 = vadd.f32 %v2067, %v2209
      %v2226 = vadd.f32 %v2068, %v2214
      %v2227 = vadd.f32 %v2069, %v2217
      %v2228 = vadd.f32 %v2220, %v854
      %v2229 = vadd.f32 %v2221, %v854
      %v2230 = vadd.f32 %v2222, %v854
      %v2231 = vadd.f32 %v2223, %v854
      %v2232 = vadd.f32 %v2224, %v854
      %v2233 = vadd.f32 %v2225, %v854
      %v2234 = vadd.f32 %v2226, %v854
      %v2235 = vadd.f32 %v2227, %v854
      %v2236 = vtanh.pop %v2228
      %v2237 = vtanh.pop %v2229
      %v2238 = vtanh.pop %v2230
      %v2239 = vtanh.pop %v2231
      %v2240 = vtanh.pop %v2232
      %v2241 = vtanh.pop %v2233
      %v2242 = vtanh.pop %v2234
      %v2243 = vtanh.pop %v2235
      %2252 = vrot.lane.b32.xlu0 %v1339, 3
      %v2253 = vpop.permute.xlu0 %2252
      %2254 = vrot.lane.b32.xlu0 %v1340, 3
      %v2255 = vpop.permute.xlu0 %2254
      %2256 = vrot.lane.b32.xlu0 %v1341, 3
      %v2257 = vpop.permute.xlu0 %2256
      %2258 = vrot.lane.b32.xlu0 %v1342, 3
      %v2259 = vpop.permute.xlu0 %2258
      %2260 = vrot.lane.b32.xlu0 %v1343, 3
      %v2261 = vpop.permute.xlu0 %2260
      %2262 = vrot.lane.b32.xlu0 %v1344, 3
      %v2263 = vpop.permute.xlu0 %2262
      %2264 = vrot.lane.b32.xlu0 %v1345, 3
      %v2265 = vpop.permute.xlu0 %2264
      %2266 = vrot.lane.b32.xlu0 %v1346, 3
      %v2267 = vpop.permute.xlu0 %2266
      %2284 = vrot.lane.b32.xlu0 %v1844, 6
      %v2285 = vpop.permute.xlu0 %2284
      %2286 = vrot.lane.b32.xlu0 %v1845, 6
      %v2287 = vpop.permute.xlu0 %2286
      %2288 = vrot.lane.b32.xlu0 %v1846, 6
      %v2289 = vpop.permute.xlu0 %2288
      %2290 = vrot.lane.b32.xlu0 %v1847, 6
      %v2291 = vpop.permute.xlu0 %2290
      %2292 = vrot.lane.b32.xlu0 %v1848, 6
      %v2293 = vpop.permute.xlu0 %2292
      %2294 = vrot.lane.b32.xlu0 %v1849, 6
      %v2295 = vpop.permute.xlu0 %2294
      %2296 = vrot.lane.b32.xlu0 %v1850, 6
      %v2297 = vpop.permute.xlu0 %2296
      %2298 = vrot.lane.b32.xlu0 %v1851, 6
      %v2299 = vpop.permute.xlu0 %2298
      %2316 = vrot.lane.b32.xlu0 %v2236, 9
      %v2317 = vpop.permute.xlu0 %2316
      %2318 = vrot.lane.b32.xlu0 %v2237, 9
      %v2319 = vpop.permute.xlu0 %2318
      %2320 = vrot.lane.b32.xlu0 %v2238, 9
      %v2321 = vpop.permute.xlu0 %2320
      %2322 = vrot.lane.b32.xlu0 %v2239, 9
      %v2323 = vpop.permute.xlu0 %2322
      %2324 = vrot.lane.b32.xlu0 %v2240, 9
      %v2325 = vpop.permute.xlu0 %2324
      %2326 = vrot.lane.b32.xlu0 %v2241, 9
      %v2327 = vpop.permute.xlu0 %2326
      %2328 = vrot.lane.b32.xlu0 %v2242, 9
      %v2329 = vpop.permute.xlu0 %2328
      %2330 = vrot.lane.b32.xlu0 %v2243, 9
      %v2331 = vpop.permute.xlu0 %2330
      %vm2340 = vcmask 23552
      %v2341 = vsel %vm2340, %v864, %v2253
      %v2342 = vsel %vm2340, %v865, %v2255
      %v2343 = vsel %vm2340, %v866, %v2257
      %v2344 = vsel %vm2340, %v867, %v2259
      %v2345 = vsel %vm2340, %v868, %v2261
      %v2346 = vsel %vm2340, %v869, %v2263
      %v2347 = vsel %vm2340, %v870, %v2265
      %v2348 = vsel %vm2340, %v871, %v2267
      %vm2349 = vcmask 48128
      %v2350 = vsel %vm2349, %v2341, %v2285
      %v2351 = vsel %vm2349, %v2342, %v2287
      %v2352 = vsel %vm2349, %v2343, %v2289
      %v2353 = vsel %vm2349, %v2344, %v2291
      %v2354 = vsel %vm2349, %v2345, %v2293
      %v2355 = vsel %vm2349, %v2346, %v2295
      %v2356 = vsel %vm2349, %v2347, %v2297
      %v2357 = vsel %vm2349, %v2348, %v2299
      %vm2358 = vcmask 72704
      %v2359 = vsel %vm2358, %v2350, %v2317
      %v2360 = vsel %vm2358, %v2351, %v2319
      %v2361 = vsel %vm2358, %v2352, %v2321
      %v2362 = vsel %vm2358, %v2353, %v2323
      %v2363 = vsel %vm2358, %v2354, %v2325
      %v2364 = vsel %vm2358, %v2355, %v2327
      %v2365 = vsel %vm2358, %v2356, %v2329
      %v2366 = vsel %vm2358, %v2357, %v2331
      %vm2367 = vcmask 97280
      %2368 = vst.msk [vmem:[%s170] sm:$0xff] %vm2367, %v2359
      %2369 = vst.msk [vmem:[%s170 + $0x8] sm:$0xff] %vm2367, %v2360
      %2370 = vst.msk [vmem:[%s170 + $0x10] sm:$0xff] %vm2367, %v2361
      %2371 = vst.msk [vmem:[%s170 + $0x18] sm:$0xff] %vm2367, %v2362
      %2372 = vst.msk [vmem:[%s170 + $0x20] sm:$0xff] %vm2367, %v2363
      %2373 = vst.msk [vmem:[%s170 + $0x28] sm:$0xff] %vm2367, %v2364
      %2374 = vst.msk [vmem:[%s170 + $0x30] sm:$0xff] %vm2367, %v2365
      %2375 = vst.msk [vmem:[%s170 + $0x38] sm:$0xff] %vm2367, %v2366
      %p2376 = scmp.lt.s32.totalorder %s14, 1
      %s2377 = scalar_select %p2376, %s14, 1
      %s2378 = smul.addr %s2377, 8
      %s2379 = smul.addr %s2378, 8
      %s2380 = scalar_lea.vmem %s3, %s2379
      // Predicated region
      $region33: #{generator_forward.15} parent=31 // pred_check
        %p2381 = pneg %p100
      $region34: #{generator_forward.15} parent=31 // pred_check_branch
        %2383 = sbr.rel (%p2381) target = $region36
      $region35: #{generator_forward.15} parent=31 // pred_region
        _
      $region36: #{generator_forward.15} parent=31 // pred_fallthru
        _
    $region32: #{generator_forward.15} parent=5 // pred_fallthru
      _
    %p2384 = scmp.le.s32.totalorder 2, %s9
    // Predicated region
    $region37: #{generator_forward.15} parent=5 // pred_check
      %p2385 = pneg %p2384
    $region38: #{generator_forward.15} parent=5 // pred_check_branch
      %2387 = sbr.rel (%p2385) target = $region40
    $region39: #{generator_forward.15} parent=5 // pred_region
      %s2388 = ssub.s32 %s9, 2
      // Predicated region
      $region41: #{generator_forward.15} parent=39 // pred_check
        %p2389 = pneg %p106
      $region42: #{generator_forward.15} parent=39 // pred_check_branch
        %2391 = sbr.rel (%p2389) target = $region44
      $region43: #{generator_forward.15} parent=39 // pred_region
        %p2392 = scmp.lt.s32.totalorder %s15, 1
        %s2393 = scalar_select %p2392, %s15, 1
        %s2394 = smul.addr %s2393, 8
        %s2395 = smul.addr %s2394, 8
        %s2396 = scalar_lea.vmem %s3, %s2395
      $region44: #{generator_forward.15} parent=39 // pred_fallthru
        _
    $region40: #{generator_forward.15} parent=5 // pred_fallthru
      _
  $region6: #{generator_forward.15} parent=0 // loop_footer
    %s13 = sadd.s32 1, %s9
  $region7: #{generator_forward.15} parent=0 // loop_footer_branch
    %8 = sbr.rel target = $region3
  $region8: #{generator_forward.15} parent=0 // loop_exit
    _

</llo_original>
